<compile_context>
chip_gen: v5e
topology: v5e:2x2
jax: 0.10.0
libtpu: 0.0.40
codegen_flags: <defaults>
</compile_context>

<pallas_src>
import functools

import jax
import jax.numpy as jnp
from jax import lax
from jax.experimental import pallas as pl
from jax.experimental.pallas import tpu as pltpu


# ----------------------------------------------------------------------------
# helpers
# ----------------------------------------------------------------------------
def _pick_divisor(n, cap, multiple=1):
    """Largest divisor of n that is <= cap and a multiple of `multiple`."""
    cap = max(multiple, min(cap, n))
    for t in range(cap, 0, -1):
        if n % t == 0 and t % multiple == 0:
            return t
    return n


def _cp(dims):
    return pltpu.CompilerParams(dimension_semantics=dims,
                                vmem_limit_bytes=48 * 1024 * 1024)


# ----------------------------------------------------------------------------
# Pallas kernels
# ----------------------------------------------------------------------------
def _tpg_kernel(x_ref, w_ref, b_ref, th_ref, ph_ref, g_ref, *, Cb):
    """Fused theta/phi/g 1x1 convs, channels-first: out = W @ x + b."""
    x = x_ref[0]                                               # (C, tn) bf16
    for i, o_ref in enumerate((th_ref, ph_ref, g_ref)):
        w = w_ref[0, i * Cb:(i + 1) * Cb]                      # (Cb, C) bf16
        y = jnp.dot(w, x, preferred_element_type=jnp.float32)  # (Cb, tn) f32
        o_ref[0, 0] = (y + b_ref[0, i * Cb:(i + 1) * Cb]).astype(o_ref.dtype)


def _att_stats_kernel(th_ref, ph_ref, mx_ref, sm_ref):
    """Pass 1: per-key-column max / sum-exp (softmax axis is the query axis)."""
    q = pl.program_id(2)
    s = jnp.dot(th_ref[0], ph_ref[0],
                preferred_element_type=jnp.float32)            # (tq, tk)

    @pl.when(q == 0)
    def _():
        mx_ref[0] = jnp.full_like(mx_ref[0], -1e30)
        sm_ref[0] = jnp.zeros_like(sm_ref[0])

    m_old = mx_ref[0]
    m_new = jnp.maximum(m_old, jnp.max(s, axis=0, keepdims=True))
    sm_ref[0] = sm_ref[0] * jnp.exp(m_old - m_new) + jnp.sum(
        jnp.exp(s - m_new), axis=0, keepdims=True)
    mx_ref[0] = m_new


def _att_apply_kernel(th_ref, ph_ref, g_ref, mx_ref, sm_ref, o_ref, acc_ref):
    """Pass 2: out[m] = sum_n softmax_col(s)[m, n] * g[n], key-tiled reduction."""
    k = pl.program_id(2)

    @pl.when(k == 0)
    def _():
        acc_ref[...] = jnp.zeros_like(acc_ref)

    s = jnp.dot(th_ref[0], ph_ref[0],
                preferred_element_type=jnp.float32)            # (tq, tk)
    p = jnp.exp(s - mx_ref[0]) * pl.reciprocal(sm_ref[0], approx=True)
    acc_ref[...] += jnp.dot(p.astype(jnp.bfloat16), g_ref[0],
                            preferred_element_type=jnp.float32)  # (tq, Cb)

    @pl.when(k == pl.num_programs(2) - 1)
    def _():
        o_ref[0] = acc_ref[...].astype(o_ref.dtype)


def _wconv_kernel(att_ref, w_ref, b_ref, x_ref, o_ref):
    """Per-corner W 1x1 conv + bias + residual, channels-first."""
    y = jnp.dot(w_ref[0], att_ref[0, 0],
                preferred_element_type=jnp.float32)            # (C, tn)
    o_ref[0, 0] = (y + b_ref[0] + x_ref[0].astype(jnp.float32)).astype(o_ref.dtype)


def _conv3x3_heads_kernel(xa_ref, xb_ref, w3_ref, b3_ref, whT_ref, bh_ref,
                          o_ref, win_ref, *, th, W):
    """Fused Conv3x3(bias)+ReLU -> block-diagonal 1x1 heads, row-tiled.

    The (th+2)-row halo window is pre-shifted along W once per dx into a
    small VMEM scratch (3 relayouts per step instead of 9); the 9 tap matmuls
    then read aligned leading-dim slices.  The head 1x1 is computed with the
    output transposed so the store is lane-dense (lanes = pixels).
    """
    C = xa_ref.shape[-1]
    C3 = w3_ref.shape[-1]

    for dx in range(3):
        win_ref[dx, 0:th] = xa_ref[0, 0, :, dx:dx + W, :]          # (th, W, C)
        win_ref[dx, th:th + 2] = xb_ref[0, 0, :, dx:dx + W, :]     # (2,  W, C)

    acc = jnp.zeros((th * W, C3), jnp.float32)
    for dy in range(3):
        for dx in range(3):
            patch = win_ref[dx, dy:dy + th].reshape(th * W, C)     # bf16
            acc = acc + jnp.dot(patch, w3_ref[0, dy * 3 + dx],
                                preferred_element_type=jnp.float32)

    y = jnp.maximum(acc + b3_ref[0], 0.0).astype(jnp.bfloat16)     # (th*W, 3C)
    out = lax.dot_general(whT_ref[0], y, (((1,), (1,)), ((), ())),
                          preferred_element_type=jnp.float32)      # (n_out, th*W)
    o_ref[0, 0] = (out + bh_ref[0]).astype(o_ref.dtype)


# ----------------------------------------------------------------------------
# Pallas wrappers
# ----------------------------------------------------------------------------
def tpg_conv(x, w, b, *, tile_n=512):
    """x:(B,C,N) bf16, w:(2,3Cb,C) bf16, b:(2,3Cb,1) -> theta/phi/g (2,B,Cb,N) bf16."""
    B, C, N = x.shape
    Cb = w.shape[1] // 3
    tn = _pick_divisor(N, tile_n)
    G = 2
    sds = jax.ShapeDtypeStruct((G, B, Cb, N), jnp.bfloat16)
    ospec = pl.BlockSpec((1, 1, Cb, tn), lambda bb, j, g: (g, bb, 0, j))
    return pl.pallas_call(
        functools.partial(_tpg_kernel, Cb=Cb),
        out_shape=(sds, sds, sds),
        grid=(B, N // tn, G),     # corner innermost -> x block stays resident
        in_specs=[pl.BlockSpec((1, C, tn), lambda bb, j, g: (bb, 0, j)),
                  pl.BlockSpec((1, 3 * Cb, C), lambda bb, j, g: (g, 0, 0)),
                  pl.BlockSpec((1, 3 * Cb, 1), lambda bb, j, g: (g, 0, 0))],
        out_specs=(ospec, ospec, ospec),
        compiler_params=_cp(("parallel", "parallel", "arbitrary")),
    )(x, w, b)


def nl_attention(theta_r, phi_r, g_r, *, tile=256):
    """theta_r/g_r:(GB,N,Cb) raw-reshape layout, phi_r:(GB,Cb,N) NCHW layout.

    Two-pass column softmax (torch softmax(dim=1)): bounded VMEM at any N.
    """
    GB, N, Cb = theta_r.shape
    t = _pick_divisor(N, tile)
    nt = N // t

    mx, sm = pl.pallas_call(
        _att_stats_kernel,
        out_shape=(jax.ShapeDtypeStruct((GB, 1, N), jnp.float32),
                   jax.ShapeDtypeStruct((GB, 1, N), jnp.float32)),
        grid=(GB, nt, nt),                               # (batch, key, query)
        in_specs=[pl.BlockSpec((1, t, Cb), lambda b, k, q: (b, q, 0)),
                  pl.BlockSpec((1, Cb, t), lambda b, k, q: (b, 0, k))],
        out_specs=(pl.BlockSpec((1, 1, t), lambda b, k, q: (b, 0, k)),
                   pl.BlockSpec((1, 1, t), lambda b, k, q: (b, 0, k))),
        compiler_params=_cp(("parallel", "parallel", "arbitrary")),
    )(theta_r, phi_r)

    return pl.pallas_call(
        _att_apply_kernel,
        out_shape=jax.ShapeDtypeStruct((GB, N, Cb), jnp.bfloat16),
        grid=(GB, nt, nt),                               # (batch, query, key)
        in_specs=[pl.BlockSpec((1, t, Cb), lambda b, q, k: (b, q, 0)),
                  pl.BlockSpec((1, Cb, t), lambda b, q, k: (b, 0, k)),
                  pl.BlockSpec((1, t, Cb), lambda b, q, k: (b, k, 0)),
                  pl.BlockSpec((1, 1, t), lambda b, q, k: (b, 0, k)),
                  pl.BlockSpec((1, 1, t), lambda b, q, k: (b, 0, k))],
        out_specs=pl.BlockSpec((1, t, Cb), lambda b, q, k: (b, q, 0)),
        scratch_shapes=[pltpu.VMEM((t, Cb), jnp.float32)],
        compiler_params=_cp(("parallel", "parallel", "arbitrary")),
    )(theta_r, phi_r, g_r, mx, sm)


def wconv_residual(att, w, b, x, *, tile_n=512):
    """att:(2,B,Cb,N) bf16, w:(2,C,Cb) bf16, b:(2,C,1), x:(B,C,N) bf16 -> z:(2,B,C,N) bf16."""
    G, B, Cb, N = att.shape
    C = w.shape[1]
    tn = _pick_divisor(N, tile_n)
    return pl.pallas_call(
        _wconv_kernel,
        out_shape=jax.ShapeDtypeStruct((G, B, C, N), jnp.bfloat16),
        grid=(B, N // tn, G),     # corner innermost -> residual block resident
        in_specs=[pl.BlockSpec((1, 1, Cb, tn), lambda bb, j, g: (g, bb, 0, j)),
                  pl.BlockSpec((1, C, Cb), lambda bb, j, g: (g, 0, 0)),
                  pl.BlockSpec((1, C, 1), lambda bb, j, g: (g, 0, 0)),
                  pl.BlockSpec((1, C, tn), lambda bb, j, g: (bb, 0, j))],
        out_specs=pl.BlockSpec((1, 1, C, tn), lambda bb, j, g: (g, bb, 0, j)),
        compiler_params=_cp(("parallel", "parallel", "arbitrary")),
    )(att, w, b, x)


def conv3x3_heads(z_cl, w3, b3, whT, bh, *, max_tile_rows=16):
    """z_cl:(G,B,H,W,C) bf16 -> fused Conv3x3+ReLU+1x1 heads, (G,B,n_out,H*W) f32."""
    G, B, H, W, C = z_cl.shape
    C3 = w3.shape[-1]
    n_out = whT.shape[1]
    H2 = H + (H % 2)                      # even height so the 2-row halo block aligns
    th = _pick_divisor(H2, max_tile_rows, multiple=2)
    nt = H2 // th
    zp = jnp.pad(z_cl, ((0, 0), (0, 0), (1, 1 + H2 - H), (1, 1), (0, 0)))

    out = pl.pallas_call(
        functools.partial(_conv3x3_heads_kernel, th=th, W=W),
        out_shape=jax.ShapeDtypeStruct((G, B, n_out, H2 * W), jnp.float32),
        grid=(G, B, nt),
        in_specs=[
            pl.BlockSpec((1, 1, th, W + 2, C), lambda g, b, i: (g, b, i, 0, 0)),
            pl.BlockSpec((1, 1, 2, W + 2, C),
                         lambda g, b, i: (g, b, (i + 1) * (th // 2), 0, 0)),
            pl.BlockSpec((1, 9, C, C3), lambda g, b, i: (g, 0, 0, 0)),
            pl.BlockSpec((1, 1, C3), lambda g, b, i: (g, 0, 0)),
            pl.BlockSpec((1, n_out, C3), lambda g, b, i: (g, 0, 0)),
            pl.BlockSpec((1, n_out, 1), lambda g, b, i: (g, 0, 0)),
        ],
        out_specs=pl.BlockSpec((1, 1, n_out, th * W),
                               lambda g, b, i: (g, b, 0, i)),
        scratch_shapes=[pltpu.VMEM((3, th + 2, W, C), jnp.bfloat16)],
        compiler_params=_cp(("parallel", "parallel", "parallel")),
    )(zp, zp, w3, b3, whT, bh)
    return out[..., :H * W] if H2 != H else out


# ----------------------------------------------------------------------------
# Parameter fusion (built from the per-module PyTorch-shaped params)
# ----------------------------------------------------------------------------
def _fuse_level_params(params, C):
    Cb = C // 2
    f32, bf16 = jnp.float32, jnp.bfloat16
    nl = [params["tl_nl"], params["br_nl"]]

    # fused theta/phi/g 1x1 convs, channels-first: (2, 3*Cb, C)
    w_tpg = jnp.stack([jnp.concatenate([p["theta_w"], p["phi_w"], p["g_w"]], 0)
                       for p in nl]).astype(bf16)
    b_tpg = jnp.stack([jnp.concatenate([p["theta_b"], p["phi_b"], p["g_b"]])
                       for p in nl]).reshape(2, 3 * Cb, 1).astype(f32)

    # W conv (channels-first), per corner
    w_W = jnp.stack([p["W_w"] for p in nl]).astype(bf16)              # (2, C, Cb)
    b_W = jnp.stack([p["W_b"] for p in nl]).reshape(2, C, 1).astype(f32)

    # heads: 3x3 convs concatenated to 3C outputs; 1x1 heads block-diagonal.
    head_sets = [("tl_heat", "tl_tags", "tl_regr"),
                 ("br_heat", "br_tags", "br_regr")]
    dims = [params[n]["out_w"].shape[0] for n in head_sets[0]]
    n_out = sum(dims)
    w3_l, b3_l, whT_l, bh_l = [], [], [], []
    for names in head_sets:
        hs = [params[n] for n in names]
        w3_l.append(jnp.concatenate(
            [jnp.transpose(h["conv_w"], (2, 3, 1, 0)).reshape(9, C, C)
             for h in hs], axis=-1))                                   # (9, C, 3C)
        b3_l.append(jnp.concatenate([h["conv_b"] for h in hs]))        # (3C,)
        whT = jnp.zeros((n_out, 3 * C), f32)
        off = 0
        for j, h in enumerate(hs):
            whT = whT.at[off:off + dims[j], j * C:(j + 1) * C].set(h["out_w"])
            off += dims[j]
        whT_l.append(whT)
        bh_l.append(jnp.concatenate([h["out_b"] for h in hs]))
    return dict(
        w_tpg=w_tpg, b_tpg=b_tpg, w_W=w_W, b_W=b_W,
        w3=jnp.stack(w3_l).astype(bf16),
        b3=jnp.stack(b3_l).reshape(2, 1, 3 * C).astype(f32),
        whT=jnp.stack(whT_l).astype(bf16),
        bh=jnp.stack(bh_l).reshape(2, n_out, 1).astype(f32),
        head_dims=dims)


# ----------------------------------------------------------------------------
# Module-level forward (matches CornerNetModule.forward head semantics)
# ----------------------------------------------------------------------------
def _forward_level(f, params):
    B, C, H, W = f.shape
    Cb, N, G = C // 2, H * W, 2
    fp = _fuse_level_params(params, C)

    # channels-first (native NCHW) throughout the NonLocal block:
    # every torch raw reshape below is a free jnp.reshape.
    x = f.reshape(B, C, N).astype(jnp.bfloat16)

    theta, phi, g = tpg_conv(x, fp["w_tpg"], fp["b_tpg"])        # each (G,B,Cb,N)

    theta_r = theta.reshape(G * B, N, Cb)   # torch reshape((B,-1,Cb))  - free
    g_r = g.reshape(G * B, N, Cb)           # torch reshape((B,-1,Cb))  - free
    phi_r = phi.reshape(G * B, Cb, N)       # torch reshape((B,Cb,-1))  - free

    att = nl_attention(theta_r, phi_r, g_r)                      # (G*B, N, Cb)
    att_nchw = att.reshape(G, B, Cb, N)     # torch reshape((B,-1,H,W)) - free

    z = wconv_residual(att_nchw, fp["w_W"], fp["b_W"], x)        # (G, B, C, N)

    # single layout conversion: channels-last for the spatial 3x3 stage
    z_cl = jnp.transpose(z.reshape(G, B, C, H, W), (0, 1, 3, 4, 2))

    heads = conv3x3_heads(z_cl, fp["w3"], fp["b3"], fp["whT"], fp["bh"])
    heads = heads.reshape(G, B, -1, H, W)                        # (G,B,n_out,H,W)

    ncls, ntag, _ = fp["head_dims"]
    tl, br = heads[0], heads[1]
    return [tl[:, :ncls], br[:, :ncls],
            tl[:, ncls:ncls + ntag], br[:, ncls:ncls + ntag],
            tl[:, ncls + ntag:], br[:, ncls + ntag:]]


def cornernet_forward(features, params):
    return [_forward_level(f, params) for f in features]


# ----------------------------------------------------------------------------
# Deterministic parameter init (std=0.01 normals, zero biases, heat bias -2.19)
# ----------------------------------------------------------------------------
def init_params(key, in_channels, num_classes):
    C = in_channels
    Cb = C // 2
    keys = iter(jax.random.split(key, 64))

    def normal(shape, std=0.01):
        return (std * jax.random.normal(next(keys), shape)).astype(jnp.float32)

    def nl_params():
        return {
            "theta_w": normal((Cb, C)), "theta_b": jnp.zeros((Cb,), jnp.float32),
            "phi_w": normal((Cb, C)), "phi_b": jnp.zeros((Cb,), jnp.float32),
            "g_w": normal((Cb, C)), "g_b": jnp.zeros((Cb,), jnp.float32),
            "W_w": normal((C, Cb)), "W_b": jnp.zeros((C,), jnp.float32),
        }

    def kp_params(out_dim, out_bias=0.0):
        return {
            "conv_w": normal((C, C, 3, 3)),
            "conv_b": jnp.zeros((C,), jnp.float32),
            "out_w": normal((out_dim, C)),
            "out_b": jnp.full((out_dim,), out_bias, jnp.float32),
        }

    return {
        "tl_nl": nl_params(), "br_nl": nl_params(),
        "tl_heat": kp_params(num_classes, -2.19),
        "br_heat": kp_params(num_classes, -2.19),
        "tl_tags": kp_params(1), "br_tags": kp_params(1),
        "tl_regr": kp_params(2), "br_regr": kp_params(2),
    }


if __name__ == "__main__":
    key = jax.random.PRNGKey(0)
    B, C, H, W = 2, 8, 16, 16        # small FPN-level feature map
    num_classes = 4                   # cfg.MODEL.FCOS.NUM_CLASSES - 1

    kx, kparams = jax.random.split(key)
    x = jax.random.normal(kx, (B, C, H, W), jnp.float32)
    params = init_params(kparams, C, num_classes)

    fwd = jax.jit(lambda f, p: cornernet_forward([f], p))
    outs = fwd(x, params)
    jax.block_until_ready(outs)

    tl_heat, br_heat, tl_tag, br_tag, tl_regr, br_regr = outs[0]
    assert tl_heat.shape == (B, num_classes, H, W)
    assert br_heat.shape == (B, num_classes, H, W)
    assert tl_tag.shape == (B, 1, H, W)
    assert br_tag.shape == (B, 1, H, W)
    assert tl_regr.shape == (B, 2, H, W)
    assert br_regr.shape == (B, 2, H, W)
    print("KERNEL_OK")
</pallas_src>

<mosaic_0001>
module attributes {stable_mosaic.version = 11 : i64} {
  func.func @_tpg_kernel(%arg0: i32, %arg1: i32, %arg2: i32, %arg3: memref<1x8x256xbf16, #tpu.memory_space<vmem>>, %arg4: memref<1x12x8xbf16, #tpu.memory_space<vmem>>, %arg5: memref<1x12x1xf32, #tpu.memory_space<vmem>>, %arg6: memref<1x1x4x256xbf16, #tpu.memory_space<vmem>>, %arg7: memref<1x1x4x256xbf16, #tpu.memory_space<vmem>>, %arg8: memref<1x1x4x256xbf16, #tpu.memory_space<vmem>>) attributes {dimension_semantics = [#tpu.dimension_semantics<parallel>, #tpu.dimension_semantics<parallel>, #tpu.dimension_semantics<arbitrary>], iteration_bounds = array<i64: 2, 1, 2>, scalar_prefetch = 0 : i64, scratch_operands = 0 : i64, tpu.core_type = #tpu.core_type<tc>, window_params = [{transform_indices = @transform_0, window_bounds = array<i64: 1, 8, 256>}, {transform_indices = @transform_1, window_bounds = array<i64: 1, 12, 8>}, {transform_indices = @transform_2, window_bounds = array<i64: 1, 12, 1>}, {transform_indices = @transform_3, window_bounds = array<i64: 1, 1, 4, 256>}, {transform_indices = @transform_4, window_bounds = array<i64: 1, 1, 4, 256>}, {transform_indices = @transform_5, window_bounds = array<i64: 1, 1, 4, 256>}]} {
    %c0 = arith.constant 0 : index
    %c0_0 = arith.constant 0 : index
    %c0_1 = arith.constant 0 : index
    %0 = vector.load %arg3[%c0, %c0_0, %c0_1] : memref<1x8x256xbf16, #tpu.memory_space<vmem>>, vector<1x8x256xbf16>
    %1 = vector.shape_cast %0 : vector<1x8x256xbf16> to vector<8x256xbf16>
    %c0_2 = arith.constant 0 : index
    %c0_3 = arith.constant 0 : index
    %c0_4 = arith.constant 0 : index
    %2 = vector.load %arg4[%c0_2, %c0_3, %c0_4] : memref<1x12x8xbf16, #tpu.memory_space<vmem>>, vector<1x4x8xbf16>
    %3 = vector.shape_cast %2 : vector<1x4x8xbf16> to vector<4x8xbf16>
    %cst = arith.constant dense<0.000000e+00> : vector<4x256xf32>
    %4 = tpu.matmul %3, %1, %cst {dimension_numbers = #tpu.dot_dimension_numbers<[1], [0], [0], [1], [0, 0, 1, 1], [], []>} : vector<4x8xbf16>, vector<8x256xbf16>, vector<4x256xf32> -> vector<4x256xf32>
    %c0_5 = arith.constant 0 : index
    %c0_6 = arith.constant 0 : index
    %c0_7 = arith.constant 0 : index
    %5 = vector.load %arg5[%c0_5, %c0_6, %c0_7] : memref<1x12x1xf32, #tpu.memory_space<vmem>>, vector<1x4x1xf32>
    %6 = vector.shape_cast %5 : vector<1x4x1xf32> to vector<4x1xf32>
    %7 = vector.broadcast %6 : vector<4x1xf32> to vector<4x256xf32>
    %8 = arith.addf %4, %7 : vector<4x256xf32>
    %9 = arith.truncf %8 : vector<4x256xf32> to vector<4x256xbf16>
    %c0_8 = arith.constant 0 : index
    %c0_9 = arith.constant 0 : index
    %c0_10 = arith.constant 0 : index
    %c0_11 = arith.constant 0 : index
    %10 = vector.load %arg6[%c0_8, %c0_9, %c0_10, %c0_11] : memref<1x1x4x256xbf16, #tpu.memory_space<vmem>>, vector<1x1x4x256xbf16>
    %11 = vector.shape_cast %10 : vector<1x1x4x256xbf16> to vector<4x256xbf16>
    %12 = vector.shape_cast %9 : vector<4x256xbf16> to vector<1x1x4x256xbf16>
    tpu.vector_store %arg6[%c0_8, %c0_9, %c0_10, %c0_11], %12 {strides = array<i32>} : memref<1x1x4x256xbf16, #tpu.memory_space<vmem>>, vector<1x1x4x256xbf16>,
    %c0_12 = arith.constant 0 : index
    %c4 = arith.constant 4 : index
    %c0_13 = arith.constant 0 : index
    %13 = vector.load %arg4[%c0_12, %c4, %c0_13] : memref<1x12x8xbf16, #tpu.memory_space<vmem>>, vector<1x4x8xbf16>
    %14 = vector.shape_cast %13 : vector<1x4x8xbf16> to vector<4x8xbf16>
    %cst_14 = arith.constant dense<0.000000e+00> : vector<4x256xf32>
    %15 = tpu.matmul %14, %1, %cst_14 {dimension_numbers = #tpu.dot_dimension_numbers<[1], [0], [0], [1], [0, 0, 1, 1], [], []>} : vector<4x8xbf16>, vector<8x256xbf16>, vector<4x256xf32> -> vector<4x256xf32>
    %c0_15 = arith.constant 0 : index
    %c4_16 = arith.constant 4 : index
    %c0_17 = arith.constant 0 : index
    %16 = vector.load %arg5[%c0_15, %c4_16, %c0_17] : memref<1x12x1xf32, #tpu.memory_space<vmem>>, vector<1x4x1xf32>
    %17 = vector.shape_cast %16 : vector<1x4x1xf32> to vector<4x1xf32>
    %18 = vector.broadcast %17 : vector<4x1xf32> to vector<4x256xf32>
    %19 = arith.addf %15, %18 : vector<4x256xf32>
    %20 = arith.truncf %19 : vector<4x256xf32> to vector<4x256xbf16>
    %c0_18 = arith.constant 0 : index
    %c0_19 = arith.constant 0 : index
    %c0_20 = arith.constant 0 : index
    %c0_21 = arith.constant 0 : index
    %21 = vector.load %arg7[%c0_18, %c0_19, %c0_20, %c0_21] : memref<1x1x4x256xbf16, #tpu.memory_space<vmem>>, vector<1x1x4x256xbf16>
    %22 = vector.shape_cast %21 : vector<1x1x4x256xbf16> to vector<4x256xbf16>
    %23 = vector.shape_cast %20 : vector<4x256xbf16> to vector<1x1x4x256xbf16>
    tpu.vector_store %arg7[%c0_18, %c0_19, %c0_20, %c0_21], %23 {strides = array<i32>} : memref<1x1x4x256xbf16, #tpu.memory_space<vmem>>, vector<1x1x4x256xbf16>,
    %c0_22 = arith.constant 0 : index
    %c8 = arith.constant 8 : index
    %c0_23 = arith.constant 0 : index
    %24 = vector.load %arg4[%c0_22, %c8, %c0_23] : memref<1x12x8xbf16, #tpu.memory_space<vmem>>, vector<1x4x8xbf16>
    %25 = vector.shape_cast %24 : vector<1x4x8xbf16> to vector<4x8xbf16>
    %cst_24 = arith.constant dense<0.000000e+00> : vector<4x256xf32>
    %26 = tpu.matmul %25, %1, %cst_24 {dimension_numbers = #tpu.dot_dimension_numbers<[1], [0], [0], [1], [0, 0, 1, 1], [], []>} : vector<4x8xbf16>, vector<8x256xbf16>, vector<4x256xf32> -> vector<4x256xf32>
    %c0_25 = arith.constant 0 : index
    %c8_26 = arith.constant 8 : index
    %c0_27 = arith.constant 0 : index
    %27 = vector.load %arg5[%c0_25, %c8_26, %c0_27] : memref<1x12x1xf32, #tpu.memory_space<vmem>>, vector<1x4x1xf32>
    %28 = vector.shape_cast %27 : vector<1x4x1xf32> to vector<4x1xf32>
    %29 = vector.broadcast %28 : vector<4x1xf32> to vector<4x256xf32>
    %30 = arith.addf %26, %29 : vector<4x256xf32>
    %31 = arith.truncf %30 : vector<4x256xf32> to vector<4x256xbf16>
    %c0_28 = arith.constant 0 : index
    %c0_29 = arith.constant 0 : index
    %c0_30 = arith.constant 0 : index
    %c0_31 = arith.constant 0 : index
    %32 = vector.load %arg8[%c0_28, %c0_29, %c0_30, %c0_31] : memref<1x1x4x256xbf16, #tpu.memory_space<vmem>>, vector<1x1x4x256xbf16>
    %33 = vector.shape_cast %32 : vector<1x1x4x256xbf16> to vector<4x256xbf16>
    %34 = vector.shape_cast %31 : vector<4x256xbf16> to vector<1x1x4x256xbf16>
    tpu.vector_store %arg8[%c0_28, %c0_29, %c0_30, %c0_31], %34 {strides = array<i32>} : memref<1x1x4x256xbf16, #tpu.memory_space<vmem>>, vector<1x1x4x256xbf16>,
    return
  }
  func.func @transform_0(%arg0: i32, %arg1: i32, %arg2: i32) -> (i32, i32, i32) {
    %c0_i32 = arith.constant 0 : i32
    %c0_i32_0 = arith.constant 0 : i32
    return %arg0, %c0_i32, %arg1 : i32, i32, i32
  }
  func.func @transform_1(%arg0: i32, %arg1: i32, %arg2: i32) -> (i32, i32, i32) {
    %c0_i32 = arith.constant 0 : i32
    %c0_i32_0 = arith.constant 0 : i32
    %c0_i32_1 = arith.constant 0 : i32
    return %arg2, %c0_i32, %c0_i32_0 : i32, i32, i32
  }
  func.func @transform_2(%arg0: i32, %arg1: i32, %arg2: i32) -> (i32, i32, i32) {
    %c0_i32 = arith.constant 0 : i32
    %c0_i32_0 = arith.constant 0 : i32
    %c0_i32_1 = arith.constant 0 : i32
    return %arg2, %c0_i32, %c0_i32_0 : i32, i32, i32
  }
  func.func @transform_3(%arg0: i32, %arg1: i32, %arg2: i32) -> (i32, i32, i32, i32) {
    %c0_i32 = arith.constant 0 : i32
    %c0_i32_0 = arith.constant 0 : i32
    return %arg2, %arg0, %c0_i32, %arg1 : i32, i32, i32, i32
  }
  func.func @transform_4(%arg0: i32, %arg1: i32, %arg2: i32) -> (i32, i32, i32, i32) {
    %c0_i32 = arith.constant 0 : i32
    %c0_i32_0 = arith.constant 0 : i32
    return %arg2, %arg0, %c0_i32, %arg1 : i32, i32, i32, i32
  }
  func.func @transform_5(%arg0: i32, %arg1: i32, %arg2: i32) -> (i32, i32, i32, i32) {
    %c0_i32 = arith.constant 0 : i32
    %c0_i32_0 = arith.constant 0 : i32
    return %arg2, %arg0, %c0_i32, %arg1 : i32, i32, i32, i32
  }
}

module attributes {stable_mosaic.version = 11 : i64} {
  func.func @_att_stats_kernel(%arg0: i32, %arg1: i32, %arg2: i32, %arg3: memref<1x256x4xbf16, #tpu.memory_space<vmem>>, %arg4: memref<1x4x256xbf16, #tpu.memory_space<vmem>>, %arg5: memref<1x1x256xf32, #tpu.memory_space<vmem>>, %arg6: memref<1x1x256xf32, #tpu.memory_space<vmem>>) attributes {dimension_semantics = [#tpu.dimension_semantics<parallel>, #tpu.dimension_semantics<parallel>, #tpu.dimension_semantics<arbitrary>], iteration_bounds = array<i64: 4, 1, 1>, scalar_prefetch = 0 : i64, scratch_operands = 0 : i64, tpu.core_type = #tpu.core_type<tc>, window_params = [{transform_indices = @transform_0, window_bounds = array<i64: 1, 256, 4>}, {transform_indices = @transform_1, window_bounds = array<i64: 1, 4, 256>}, {transform_indices = @transform_2, window_bounds = array<i64: 1, 1, 256>}, {transform_indices = @transform_3, window_bounds = array<i64: 1, 1, 256>}]} {
    %c0 = arith.constant 0 : index
    %c0_0 = arith.constant 0 : index
    %c0_1 = arith.constant 0 : index
    %0 = vector.load %arg3[%c0, %c0_0, %c0_1] : memref<1x256x4xbf16, #tpu.memory_space<vmem>>, vector<1x256x4xbf16>
    %1 = vector.shape_cast %0 : vector<1x256x4xbf16> to vector<256x4xbf16>
    %c0_2 = arith.constant 0 : index
    %c0_3 = arith.constant 0 : index
    %c0_4 = arith.constant 0 : index
    %2 = vector.load %arg4[%c0_2, %c0_3, %c0_4] : memref<1x4x256xbf16, #tpu.memory_space<vmem>>, vector<1x4x256xbf16>
    %3 = vector.shape_cast %2 : vector<1x4x256xbf16> to vector<4x256xbf16>
    %cst = arith.constant dense<0.000000e+00> : vector<256x256xf32>
    %4 = tpu.matmul %1, %3, %cst {dimension_numbers = #tpu.dot_dimension_numbers<[1], [0], [0], [1], [0, 0, 1, 1], [], []>} : vector<256x4xbf16>, vector<4x256xbf16>, vector<256x256xf32> -> vector<256x256xf32>
    %c0_i32 = arith.constant 0 : i32
    %5 = arith.cmpi eq, %arg2, %c0_i32 : i32
    %6 = arith.extui %5 : i1 to i32
    %c0_i32_5 = arith.constant 0 : i32
    %7 = arith.cmpi ne, %6, %c0_i32_5 : i32
    scf.if %7 {
      %cst_20 = arith.constant -1.000000e+30 : f32
      %30 = vector.broadcast %cst_20 : f32 to vector<1x256xf32>
      %c0_21 = arith.constant 0 : index
      %c0_22 = arith.constant 0 : index
      %c0_23 = arith.constant 0 : index
      %31 = vector.load %arg5[%c0_21, %c0_22, %c0_23] : memref<1x1x256xf32, #tpu.memory_space<vmem>>, vector<1x1x256xf32>
      %32 = vector.shape_cast %31 : vector<1x1x256xf32> to vector<1x256xf32>
      %33 = vector.shape_cast %30 : vector<1x256xf32> to vector<1x1x256xf32>
      tpu.vector_store %arg5[%c0_21, %c0_22, %c0_23], %33 {strides = array<i32>} : memref<1x1x256xf32, #tpu.memory_space<vmem>>, vector<1x1x256xf32>,
      %cst_24 = arith.constant 0.000000e+00 : f32
      %34 = vector.broadcast %cst_24 : f32 to vector<1x256xf32>
      %c0_25 = arith.constant 0 : index
      %c0_26 = arith.constant 0 : index
      %c0_27 = arith.constant 0 : index
      %35 = vector.load %arg6[%c0_25, %c0_26, %c0_27] : memref<1x1x256xf32, #tpu.memory_space<vmem>>, vector<1x1x256xf32>
      %36 = vector.shape_cast %35 : vector<1x1x256xf32> to vector<1x256xf32>
      %37 = vector.shape_cast %34 : vector<1x256xf32> to vector<1x1x256xf32>
      tpu.vector_store %arg6[%c0_25, %c0_26, %c0_27], %37 {strides = array<i32>} : memref<1x1x256xf32, #tpu.memory_space<vmem>>, vector<1x1x256xf32>,
    } else {
    }
    %c0_6 = arith.constant 0 : index
    %c0_7 = arith.constant 0 : index
    %c0_8 = arith.constant 0 : index
    %8 = vector.load %arg5[%c0_6, %c0_7, %c0_8] : memref<1x1x256xf32, #tpu.memory_space<vmem>>, vector<1x1x256xf32>
    %9 = vector.shape_cast %8 : vector<1x1x256xf32> to vector<1x256xf32>
    %cst_9 = arith.constant dense<0xFF800000> : vector<256xf32>
    %10 = vector.multi_reduction <maximumf>, %4, %cst_9 [0] : vector<256x256xf32> to vector<256xf32>
    %11 = vector.shape_cast %10 : vector<256xf32> to vector<1x256xf32>
    %12 = arith.maximumf %9, %11 : vector<1x256xf32>
    %c0_10 = arith.constant 0 : index
    %c0_11 = arith.constant 0 : index
    %c0_12 = arith.constant 0 : index
    %13 = vector.load %arg6[%c0_10, %c0_11, %c0_12] : memref<1x1x256xf32, #tpu.memory_space<vmem>>, vector<1x1x256xf32>
    %14 = vector.shape_cast %13 : vector<1x1x256xf32> to vector<1x256xf32>
    %15 = arith.subf %9, %12 : vector<1x256xf32>
    %16 = math.exp %15 : vector<1x256xf32>
    %17 = arith.mulf %14, %16 : vector<1x256xf32>
    %18 = vector.broadcast %12 : vector<1x256xf32> to vector<256x256xf32>
    %19 = arith.subf %4, %18 : vector<256x256xf32>
    %20 = math.exp %19 : vector<256x256xf32>
    %cst_13 = arith.constant dense<0.000000e+00> : vector<256xf32>
    %21 = vector.multi_reduction <add>, %20, %cst_13 [0] : vector<256x256xf32> to vector<256xf32>
    %22 = vector.shape_cast %21 : vector<256xf32> to vector<1x256xf32>
    %23 = arith.addf %17, %22 : vector<1x256xf32>
    %c0_14 = arith.constant 0 : index
    %c0_15 = arith.constant 0 : index
    %c0_16 = arith.constant 0 : index
    %24 = vector.load %arg6[%c0_14, %c0_15, %c0_16] : memref<1x1x256xf32, #tpu.memory_space<vmem>>, vector<1x1x256xf32>
    %25 = vector.shape_cast %24 : vector<1x1x256xf32> to vector<1x256xf32>
    %26 = vector.shape_cast %23 : vector<1x256xf32> to vector<1x1x256xf32>
    tpu.vector_store %arg6[%c0_14, %c0_15, %c0_16], %26 {strides = array<i32>} : memref<1x1x256xf32, #tpu.memory_space<vmem>>, vector<1x1x256xf32>,
    %c0_17 = arith.constant 0 : index
    %c0_18 = arith.constant 0 : index
    %c0_19 = arith.constant 0 : index
    %27 = vector.load %arg5[%c0_17, %c0_18, %c0_19] : memref<1x1x256xf32, #tpu.memory_space<vmem>>, vector<1x1x256xf32>
    %28 = vector.shape_cast %27 : vector<1x1x256xf32> to vector<1x256xf32>
    %29 = vector.shape_cast %12 : vector<1x256xf32> to vector<1x1x256xf32>
    tpu.vector_store %arg5[%c0_17, %c0_18, %c0_19], %29 {strides = array<i32>} : memref<1x1x256xf32, #tpu.memory_space<vmem>>, vector<1x1x256xf32>,
    return
  }
  func.func @transform_0(%arg0: i32, %arg1: i32, %arg2: i32) -> (i32, i32, i32) {
    %c0_i32 = arith.constant 0 : i32
    %c0_i32_0 = arith.constant 0 : i32
    return %arg0, %arg2, %c0_i32 : i32, i32, i32
  }
  func.func @transform_1(%arg0: i32, %arg1: i32, %arg2: i32) -> (i32, i32, i32) {
    %c0_i32 = arith.constant 0 : i32
    %c0_i32_0 = arith.constant 0 : i32
    return %arg0, %c0_i32, %arg1 : i32, i32, i32
  }
  func.func @transform_2(%arg0: i32, %arg1: i32, %arg2: i32) -> (i32, i32, i32) {
    %c0_i32 = arith.constant 0 : i32
    %c0_i32_0 = arith.constant 0 : i32
    return %arg0, %c0_i32, %arg1 : i32, i32, i32
  }
  func.func @transform_3(%arg0: i32, %arg1: i32, %arg2: i32) -> (i32, i32, i32) {
    %c0_i32 = arith.constant 0 : i32
    %c0_i32_0 = arith.constant 0 : i32
    return %arg0, %c0_i32, %arg1 : i32, i32, i32
  }
}

module attributes {stable_mosaic.version = 11 : i64} {
  func.func @_att_apply_kernel(%arg0: i32, %arg1: i32, %arg2: i32, %arg3: memref<1x256x4xbf16, #tpu.memory_space<vmem>>, %arg4: memref<1x4x256xbf16, #tpu.memory_space<vmem>>, %arg5: memref<1x256x4xbf16, #tpu.memory_space<vmem>>, %arg6: memref<1x1x256xf32, #tpu.memory_space<vmem>>, %arg7: memref<1x1x256xf32, #tpu.memory_space<vmem>>, %arg8: memref<1x256x4xbf16, #tpu.memory_space<vmem>>, %arg9: memref<256x4xf32, #tpu.memory_space<vmem>>) attributes {dimension_semantics = [#tpu.dimension_semantics<parallel>, #tpu.dimension_semantics<parallel>, #tpu.dimension_semantics<arbitrary>], iteration_bounds = array<i64: 4, 1, 1>, scalar_prefetch = 0 : i64, scratch_operands = 1 : i64, tpu.core_type = #tpu.core_type<tc>, window_params = [{transform_indices = @transform_0, window_bounds = array<i64: 1, 256, 4>}, {transform_indices = @transform_1, window_bounds = array<i64: 1, 4, 256>}, {transform_indices = @transform_2, window_bounds = array<i64: 1, 256, 4>}, {transform_indices = @transform_3, window_bounds = array<i64: 1, 1, 256>}, {transform_indices = @transform_4, window_bounds = array<i64: 1, 1, 256>}, {transform_indices = @transform_5, window_bounds = array<i64: 1, 256, 4>}]} {
    %c0_i32 = arith.constant 0 : i32
    %0 = arith.cmpi eq, %arg2, %c0_i32 : i32
    %1 = arith.extui %0 : i1 to i32
    %c0_i32_0 = arith.constant 0 : i32
    %2 = arith.cmpi ne, %1, %c0_i32_0 : i32
    scf.if %2 {
      %cst_22 = arith.constant 0.000000e+00 : f32
      %28 = vector.broadcast %cst_22 : f32 to vector<256x4xf32>
      %c0_23 = arith.constant 0 : index
      %c0_24 = arith.constant 0 : index
      %29 = vector.load %arg9[%c0_23, %c0_24] : memref<256x4xf32, #tpu.memory_space<vmem>>, vector<256x4xf32>
      tpu.vector_store %arg9[%c0_23, %c0_24], %28 {strides = array<i32>} : memref<256x4xf32, #tpu.memory_space<vmem>>, vector<256x4xf32>,
    } else {
    }
    %c0 = arith.constant 0 : index
    %c0_1 = arith.constant 0 : index
    %c0_2 = arith.constant 0 : index
    %3 = vector.load %arg3[%c0, %c0_1, %c0_2] : memref<1x256x4xbf16, #tpu.memory_space<vmem>>, vector<1x256x4xbf16>
    %4 = vector.shape_cast %3 : vector<1x256x4xbf16> to vector<256x4xbf16>
    %c0_3 = arith.constant 0 : index
    %c0_4 = arith.constant 0 : index
    %c0_5 = arith.constant 0 : index
    %5 = vector.load %arg4[%c0_3, %c0_4, %c0_5] : memref<1x4x256xbf16, #tpu.memory_space<vmem>>, vector<1x4x256xbf16>
    %6 = vector.shape_cast %5 : vector<1x4x256xbf16> to vector<4x256xbf16>
    %cst = arith.constant dense<0.000000e+00> : vector<256x256xf32>
    %7 = tpu.matmul %4, %6, %cst {dimension_numbers = #tpu.dot_dimension_numbers<[1], [0], [0], [1], [0, 0, 1, 1], [], []>} : vector<256x4xbf16>, vector<4x256xbf16>, vector<256x256xf32> -> vector<256x256xf32>
    %c0_6 = arith.constant 0 : index
    %c0_7 = arith.constant 0 : index
    %c0_8 = arith.constant 0 : index
    %8 = vector.load %arg6[%c0_6, %c0_7, %c0_8] : memref<1x1x256xf32, #tpu.memory_space<vmem>>, vector<1x1x256xf32>
    %9 = vector.shape_cast %8 : vector<1x1x256xf32> to vector<1x256xf32>
    %10 = vector.broadcast %9 : vector<1x256xf32> to vector<256x256xf32>
    %11 = arith.subf %7, %10 : vector<256x256xf32>
    %12 = math.exp %11 : vector<256x256xf32>
    %c0_9 = arith.constant 0 : index
    %c0_10 = arith.constant 0 : index
    %c0_11 = arith.constant 0 : index
    %13 = vector.load %arg7[%c0_9, %c0_10, %c0_11] : memref<1x1x256xf32, #tpu.memory_space<vmem>>, vector<1x1x256xf32>
    %14 = vector.shape_cast %13 : vector<1x1x256xf32> to vector<1x256xf32>
    %15 = tpu.reciprocal %14 {approx = true} : vector<1x256xf32> -> vector<1x256xf32>
    %16 = vector.broadcast %15 : vector<1x256xf32> to vector<256x256xf32>
    %17 = arith.mulf %12, %16 : vector<256x256xf32>
    %c0_12 = arith.constant 0 : index
    %c0_13 = arith.constant 0 : index
    %18 = vector.load %arg9[%c0_12, %c0_13] : memref<256x4xf32, #tpu.memory_space<vmem>>, vector<256x4xf32>
    %19 = arith.truncf %17 : vector<256x256xf32> to vector<256x256xbf16>
    %c0_14 = arith.constant 0 : index
    %c0_15 = arith.constant 0 : index
    %c0_16 = arith.constant 0 : index
    %20 = vector.load %arg5[%c0_14, %c0_15, %c0_16] : memref<1x256x4xbf16, #tpu.memory_space<vmem>>, vector<1x256x4xbf16>
    %21 = vector.shape_cast %20 : vector<1x256x4xbf16> to vector<256x4xbf16>
    %cst_17 = arith.constant dense<0.000000e+00> : vector<256x4xf32>
    %22 = tpu.matmul %19, %21, %cst_17 {dimension_numbers = #tpu.dot_dimension_numbers<[1], [0], [0], [1], [0, 0, 1, 1], [], []>} : vector<256x256xbf16>, vector<256x4xbf16>, vector<256x4xf32> -> vector<256x4xf32>
    %23 = arith.addf %18, %22 : vector<256x4xf32>
    %c0_18 = arith.constant 0 : index
    %c0_19 = arith.constant 0 : index
    %24 = vector.load %arg9[%c0_18, %c0_19] : memref<256x4xf32, #tpu.memory_space<vmem>>, vector<256x4xf32>
    tpu.vector_store %arg9[%c0_18, %c0_19], %23 {strides = array<i32>} : memref<256x4xf32, #tpu.memory_space<vmem>>, vector<256x4xf32>,
    %c0_i32_20 = arith.constant 0 : i32
    %25 = arith.cmpi eq, %arg2, %c0_i32_20 : i32
    %26 = arith.extui %25 : i1 to i32
    %c0_i32_21 = arith.constant 0 : i32
    %27 = arith.cmpi ne, %26, %c0_i32_21 : i32
    scf.if %27 {
      %c0_22 = arith.constant 0 : index
      %c0_23 = arith.constant 0 : index
      %28 = vector.load %arg9[%c0_22, %c0_23] : memref<256x4xf32, #tpu.memory_space<vmem>>, vector<256x4xf32>
      %29 = arith.truncf %28 : vector<256x4xf32> to vector<256x4xbf16>
      %c0_24 = arith.constant 0 : index
      %c0_25 = arith.constant 0 : index
      %c0_26 = arith.constant 0 : index
      %30 = vector.load %arg8[%c0_24, %c0_25, %c0_26] : memref<1x256x4xbf16, #tpu.memory_space<vmem>>, vector<1x256x4xbf16>
      %31 = vector.shape_cast %30 : vector<1x256x4xbf16> to vector<256x4xbf16>
      %32 = vector.shape_cast %29 : vector<256x4xbf16> to vector<1x256x4xbf16>
      tpu.vector_store %arg8[%c0_24, %c0_25, %c0_26], %32 {strides = array<i32>} : memref<1x256x4xbf16, #tpu.memory_space<vmem>>, vector<1x256x4xbf16>,
    } else {
    }
    return
  }
  func.func @transform_0(%arg0: i32, %arg1: i32, %arg2: i32) -> (i32, i32, i32) {
    %c0_i32 = arith.constant 0 : i32
    %c0_i32_0 = arith.constant 0 : i32
    return %arg0, %arg1, %c0_i32 : i32, i32, i32
  }
  func.func @transform_1(%arg0: i32, %arg1: i32, %arg2: i32) -> (i32, i32, i32) {
    %c0_i32 = arith.constant 0 : i32
    %c0_i32_0 = arith.constant 0 : i32
    return %arg0, %c0_i32, %arg2 : i32, i32, i32
  }
  func.func @transform_2(%arg0: i32, %arg1: i32, %arg2: i32) -> (i32, i32, i32) {
    %c0_i32 = arith.constant 0 : i32
    %c0_i32_0 = arith.constant 0 : i32
    return %arg0, %arg2, %c0_i32 : i32, i32, i32
  }
  func.func @transform_3(%arg0: i32, %arg1: i32, %arg2: i32) -> (i32, i32, i32) {
    %c0_i32 = arith.constant 0 : i32
    %c0_i32_0 = arith.constant 0 : i32
    return %arg0, %c0_i32, %arg2 : i32, i32, i32
  }
  func.func @transform_4(%arg0: i32, %arg1: i32, %arg2: i32) -> (i32, i32, i32) {
    %c0_i32 = arith.constant 0 : i32
    %c0_i32_0 = arith.constant 0 : i32
    return %arg0, %c0_i32, %arg2 : i32, i32, i32
  }
  func.func @transform_5(%arg0: i32, %arg1: i32, %arg2: i32) -> (i32, i32, i32) {
    %c0_i32 = arith.constant 0 : i32
    %c0_i32_0 = arith.constant 0 : i32
    return %arg0, %arg1, %c0_i32 : i32, i32, i32
  }
}

module attributes {stable_mosaic.version = 11 : i64} {
  func.func @_wconv_kernel(%arg0: i32, %arg1: i32, %arg2: i32, %arg3: memref<1x1x4x256xbf16, #tpu.memory_space<vmem>>, %arg4: memref<1x8x4xbf16, #tpu.memory_space<vmem>>, %arg5: memref<1x8x1xf32, #tpu.memory_space<vmem>>, %arg6: memref<1x8x256xbf16, #tpu.memory_space<vmem>>, %arg7: memref<1x1x8x256xbf16, #tpu.memory_space<vmem>>) attributes {dimension_semantics = [#tpu.dimension_semantics<parallel>, #tpu.dimension_semantics<parallel>, #tpu.dimension_semantics<arbitrary>], iteration_bounds = array<i64: 2, 1, 2>, scalar_prefetch = 0 : i64, scratch_operands = 0 : i64, tpu.core_type = #tpu.core_type<tc>, window_params = [{transform_indices = @transform_0, window_bounds = array<i64: 1, 1, 4, 256>}, {transform_indices = @transform_1, window_bounds = array<i64: 1, 8, 4>}, {transform_indices = @transform_2, window_bounds = array<i64: 1, 8, 1>}, {transform_indices = @transform_3, window_bounds = array<i64: 1, 8, 256>}, {transform_indices = @transform_4, window_bounds = array<i64: 1, 1, 8, 256>}]} {
    %c0 = arith.constant 0 : index
    %c0_0 = arith.constant 0 : index
    %c0_1 = arith.constant 0 : index
    %0 = vector.load %arg4[%c0, %c0_0, %c0_1] : memref<1x8x4xbf16, #tpu.memory_space<vmem>>, vector<1x8x4xbf16>
    %1 = vector.shape_cast %0 : vector<1x8x4xbf16> to vector<8x4xbf16>
    %c0_2 = arith.constant 0 : index
    %c0_3 = arith.constant 0 : index
    %c0_4 = arith.constant 0 : index
    %c0_5 = arith.constant 0 : index
    %2 = vector.load %arg3[%c0_2, %c0_3, %c0_4, %c0_5] : memref<1x1x4x256xbf16, #tpu.memory_space<vmem>>, vector<1x1x4x256xbf16>
    %3 = vector.shape_cast %2 : vector<1x1x4x256xbf16> to vector<4x256xbf16>
    %cst = arith.constant dense<0.000000e+00> : vector<8x256xf32>
    %4 = tpu.matmul %1, %3, %cst {dimension_numbers = #tpu.dot_dimension_numbers<[1], [0], [0], [1], [0, 0, 1, 1], [], []>} : vector<8x4xbf16>, vector<4x256xbf16>, vector<8x256xf32> -> vector<8x256xf32>
    %c0_6 = arith.constant 0 : index
    %c0_7 = arith.constant 0 : index
    %c0_8 = arith.constant 0 : index
    %5 = vector.load %arg5[%c0_6, %c0_7, %c0_8] : memref<1x8x1xf32, #tpu.memory_space<vmem>>, vector<1x8x1xf32>
    %6 = vector.shape_cast %5 : vector<1x8x1xf32> to vector<8x1xf32>
    %7 = vector.broadcast %6 : vector<8x1xf32> to vector<8x256xf32>
    %8 = arith.addf %4, %7 : vector<8x256xf32>
    %c0_9 = arith.constant 0 : index
    %c0_10 = arith.constant 0 : index
    %c0_11 = arith.constant 0 : index
    %9 = vector.load %arg6[%c0_9, %c0_10, %c0_11] : memref<1x8x256xbf16, #tpu.memory_space<vmem>>, vector<1x8x256xbf16>
    %10 = vector.shape_cast %9 : vector<1x8x256xbf16> to vector<8x256xbf16>
    %11 = arith.extf %10 : vector<8x256xbf16> to vector<8x256xf32>
    %12 = arith.addf %8, %11 : vector<8x256xf32>
    %13 = arith.truncf %12 : vector<8x256xf32> to vector<8x256xbf16>
    %c0_12 = arith.constant 0 : index
    %c0_13 = arith.constant 0 : index
    %c0_14 = arith.constant 0 : index
    %c0_15 = arith.constant 0 : index
    %14 = vector.load %arg7[%c0_12, %c0_13, %c0_14, %c0_15] : memref<1x1x8x256xbf16, #tpu.memory_space<vmem>>, vector<1x1x8x256xbf16>
    %15 = vector.shape_cast %14 : vector<1x1x8x256xbf16> to vector<8x256xbf16>
    %16 = vector.shape_cast %13 : vector<8x256xbf16> to vector<1x1x8x256xbf16>
    tpu.vector_store %arg7[%c0_12, %c0_13, %c0_14, %c0_15], %16 {strides = array<i32>} : memref<1x1x8x256xbf16, #tpu.memory_space<vmem>>, vector<1x1x8x256xbf16>,
    return
  }
  func.func @transform_0(%arg0: i32, %arg1: i32, %arg2: i32) -> (i32, i32, i32, i32) {
    %c0_i32 = arith.constant 0 : i32
    %c0_i32_0 = arith.constant 0 : i32
    return %arg2, %arg0, %c0_i32, %arg1 : i32, i32, i32, i32
  }
  func.func @transform_1(%arg0: i32, %arg1: i32, %arg2: i32) -> (i32, i32, i32) {
    %c0_i32 = arith.constant 0 : i32
    %c0_i32_0 = arith.constant 0 : i32
    %c0_i32_1 = arith.constant 0 : i32
    return %arg2, %c0_i32, %c0_i32_0 : i32, i32, i32
  }
  func.func @transform_2(%arg0: i32, %arg1: i32, %arg2: i32) -> (i32, i32, i32) {
    %c0_i32 = arith.constant 0 : i32
    %c0_i32_0 = arith.constant 0 : i32
    %c0_i32_1 = arith.constant 0 : i32
    return %arg2, %c0_i32, %c0_i32_0 : i32, i32, i32
  }
  func.func @transform_3(%arg0: i32, %arg1: i32, %arg2: i32) -> (i32, i32, i32) {
    %c0_i32 = arith.constant 0 : i32
    %c0_i32_0 = arith.constant 0 : i32
    return %arg0, %c0_i32, %arg1 : i32, i32, i32
  }
  func.func @transform_4(%arg0: i32, %arg1: i32, %arg2: i32) -> (i32, i32, i32, i32) {
    %c0_i32 = arith.constant 0 : i32
    %c0_i32_0 = arith.constant 0 : i32
    return %arg2, %arg0, %c0_i32, %arg1 : i32, i32, i32, i32
  }
}

module attributes {stable_mosaic.version = 11 : i64} {
  func.func @_conv3x3_heads_kernel(%arg0: i32, %arg1: i32, %arg2: i32, %arg3: memref<1x1x16x18x8xbf16, #tpu.memory_space<vmem>>, %arg4: memref<1x1x2x18x8xbf16, #tpu.memory_space<vmem>>, %arg5: memref<1x9x8x24xbf16, #tpu.memory_space<vmem>>, %arg6: memref<1x1x24xf32, #tpu.memory_space<vmem>>, %arg7: memref<1x7x24xbf16, #tpu.memory_space<vmem>>, %arg8: memref<1x7x1xf32, #tpu.memory_space<vmem>>, %arg9: memref<1x1x7x256xf32, #tpu.memory_space<vmem>>, %arg10: memref<3x18x16x8xbf16, #tpu.memory_space<vmem>>) attributes {dimension_semantics = [#tpu.dimension_semantics<parallel>, #tpu.dimension_semantics<parallel>, #tpu.dimension_semantics<parallel>], iteration_bounds = array<i64: 2, 2, 1>, scalar_prefetch = 0 : i64, scratch_operands = 1 : i64, tpu.core_type = #tpu.core_type<tc>, window_params = [{transform_indices = @transform_0, window_bounds = array<i64: 1, 1, 16, 18, 8>}, {transform_indices = @transform_1, window_bounds = array<i64: 1, 1, 2, 18, 8>}, {transform_indices = @transform_2, window_bounds = array<i64: 1, 9, 8, 24>}, {transform_indices = @transform_3, window_bounds = array<i64: 1, 1, 24>}, {transform_indices = @transform_4, window_bounds = array<i64: 1, 7, 24>}, {transform_indices = @transform_5, window_bounds = array<i64: 1, 7, 1>}, {transform_indices = @transform_6, window_bounds = array<i64: 1, 1, 7, 256>}]} {
    %c0 = arith.constant 0 : index
    %c0_0 = arith.constant 0 : index
    %c0_1 = arith.constant 0 : index
    %c0_2 = arith.constant 0 : index
    %c0_3 = arith.constant 0 : index
    %0 = vector.load %arg3[%c0, %c0_0, %c0_1, %c0_2, %c0_3] : memref<1x1x16x18x8xbf16, #tpu.memory_space<vmem>>, vector<1x1x16x16x8xbf16>
    %1 = vector.shape_cast %0 : vector<1x1x16x16x8xbf16> to vector<16x16x8xbf16>
    %c0_4 = arith.constant 0 : index
    %c0_5 = arith.constant 0 : index
    %c0_6 = arith.constant 0 : index
    %c0_7 = arith.constant 0 : index
    %2 = vector.load %arg10[%c0_4, %c0_5, %c0_6, %c0_7] : memref<3x18x16x8xbf16, #tpu.memory_space<vmem>>, vector<1x16x16x8xbf16>
    %3 = vector.shape_cast %2 : vector<1x16x16x8xbf16> to vector<16x16x8xbf16>
    %4 = vector.shape_cast %1 : vector<16x16x8xbf16> to vector<1x16x16x8xbf16>
    tpu.vector_store %arg10[%c0_4, %c0_5, %c0_6, %c0_7], %4 {strides = array<i32>} : memref<3x18x16x8xbf16, #tpu.memory_space<vmem>>, vector<1x16x16x8xbf16>,
    %c0_8 = arith.constant 0 : index
    %c0_9 = arith.constant 0 : index
    %c0_10 = arith.constant 0 : index
    %c0_11 = arith.constant 0 : index
    %c0_12 = arith.constant 0 : index
    %5 = vector.load %arg4[%c0_8, %c0_9, %c0_10, %c0_11, %c0_12] : memref<1x1x2x18x8xbf16, #tpu.memory_space<vmem>>, vector<1x1x2x16x8xbf16>
    %6 = vector.shape_cast %5 : vector<1x1x2x16x8xbf16> to vector<2x16x8xbf16>
    %c0_13 = arith.constant 0 : index
    %c16 = arith.constant 16 : index
    %c0_14 = arith.constant 0 : index
    %c0_15 = arith.constant 0 : index
    %7 = vector.load %arg10[%c0_13, %c16, %c0_14, %c0_15] : memref<3x18x16x8xbf16, #tpu.memory_space<vmem>>, vector<1x2x16x8xbf16>
    %8 = vector.shape_cast %7 : vector<1x2x16x8xbf16> to vector<2x16x8xbf16>
    %9 = vector.shape_cast %6 : vector<2x16x8xbf16> to vector<1x2x16x8xbf16>
    tpu.vector_store %arg10[%c0_13, %c16, %c0_14, %c0_15], %9 {strides = array<i32>} : memref<3x18x16x8xbf16, #tpu.memory_space<vmem>>, vector<1x2x16x8xbf16>,
    %c0_16 = arith.constant 0 : index
    %c0_17 = arith.constant 0 : index
    %c0_18 = arith.constant 0 : index
    %c1 = arith.constant 1 : index
    %c0_19 = arith.constant 0 : index
    %10 = vector.load %arg3[%c0_16, %c0_17, %c0_18, %c1, %c0_19] : memref<1x1x16x18x8xbf16, #tpu.memory_space<vmem>>, vector<1x1x16x16x8xbf16>
    %11 = vector.shape_cast %10 : vector<1x1x16x16x8xbf16> to vector<16x16x8xbf16>
    %c1_20 = arith.constant 1 : index
    %c0_21 = arith.constant 0 : index
    %c0_22 = arith.constant 0 : index
    %c0_23 = arith.constant 0 : index
    %12 = vector.load %arg10[%c1_20, %c0_21, %c0_22, %c0_23] : memref<3x18x16x8xbf16, #tpu.memory_space<vmem>>, vector<1x16x16x8xbf16>
    %13 = vector.shape_cast %12 : vector<1x16x16x8xbf16> to vector<16x16x8xbf16>
    %14 = vector.shape_cast %11 : vector<16x16x8xbf16> to vector<1x16x16x8xbf16>
    tpu.vector_store %arg10[%c1_20, %c0_21, %c0_22, %c0_23], %14 {strides = array<i32>} : memref<3x18x16x8xbf16, #tpu.memory_space<vmem>>, vector<1x16x16x8xbf16>,
    %c0_24 = arith.constant 0 : index
    %c0_25 = arith.constant 0 : index
    %c0_26 = arith.constant 0 : index
    %c1_27 = arith.constant 1 : index
    %c0_28 = arith.constant 0 : index
    %15 = vector.load %arg4[%c0_24, %c0_25, %c0_26, %c1_27, %c0_28] : memref<1x1x2x18x8xbf16, #tpu.memory_space<vmem>>, vector<1x1x2x16x8xbf16>
    %16 = vector.shape_cast %15 : vector<1x1x2x16x8xbf16> to vector<2x16x8xbf16>
    %c1_29 = arith.constant 1 : index
    %c16_30 = arith.constant 16 : index
    %c0_31 = arith.constant 0 : index
    %c0_32 = arith.constant 0 : index
    %17 = vector.load %arg10[%c1_29, %c16_30, %c0_31, %c0_32] : memref<3x18x16x8xbf16, #tpu.memory_space<vmem>>, vector<1x2x16x8xbf16>
    %18 = vector.shape_cast %17 : vector<1x2x16x8xbf16> to vector<2x16x8xbf16>
    %19 = vector.shape_cast %16 : vector<2x16x8xbf16> to vector<1x2x16x8xbf16>
    tpu.vector_store %arg10[%c1_29, %c16_30, %c0_31, %c0_32], %19 {strides = array<i32>} : memref<3x18x16x8xbf16, #tpu.memory_space<vmem>>, vector<1x2x16x8xbf16>,
    %c0_33 = arith.constant 0 : index
    %c0_34 = arith.constant 0 : index
    %c0_35 = arith.constant 0 : index
    %c2 = arith.constant 2 : index
    %c0_36 = arith.constant 0 : index
    %20 = vector.load %arg3[%c0_33, %c0_34, %c0_35, %c2, %c0_36] : memref<1x1x16x18x8xbf16, #tpu.memory_space<vmem>>, vector<1x1x16x16x8xbf16>
    %21 = vector.shape_cast %20 : vector<1x1x16x16x8xbf16> to vector<16x16x8xbf16>
    %c2_37 = arith.constant 2 : index
    %c0_38 = arith.constant 0 : index
    %c0_39 = arith.constant 0 : index
    %c0_40 = arith.constant 0 : index
    %22 = vector.load %arg10[%c2_37, %c0_38, %c0_39, %c0_40] : memref<3x18x16x8xbf16, #tpu.memory_space<vmem>>, vector<1x16x16x8xbf16>
    %23 = vector.shape_cast %22 : vector<1x16x16x8xbf16> to vector<16x16x8xbf16>
    %24 = vector.shape_cast %21 : vector<16x16x8xbf16> to vector<1x16x16x8xbf16>
    tpu.vector_store %arg10[%c2_37, %c0_38, %c0_39, %c0_40], %24 {strides = array<i32>} : memref<3x18x16x8xbf16, #tpu.memory_space<vmem>>, vector<1x16x16x8xbf16>,
    %c0_41 = arith.constant 0 : index
    %c0_42 = arith.constant 0 : index
    %c0_43 = arith.constant 0 : index
    %c2_44 = arith.constant 2 : index
    %c0_45 = arith.constant 0 : index
    %25 = vector.load %arg4[%c0_41, %c0_42, %c0_43, %c2_44, %c0_45] : memref<1x1x2x18x8xbf16, #tpu.memory_space<vmem>>, vector<1x1x2x16x8xbf16>
    %26 = vector.shape_cast %25 : vector<1x1x2x16x8xbf16> to vector<2x16x8xbf16>
    %c2_46 = arith.constant 2 : index
    %c16_47 = arith.constant 16 : index
    %c0_48 = arith.constant 0 : index
    %c0_49 = arith.constant 0 : index
    %27 = vector.load %arg10[%c2_46, %c16_47, %c0_48, %c0_49] : memref<3x18x16x8xbf16, #tpu.memory_space<vmem>>, vector<1x2x16x8xbf16>
    %28 = vector.shape_cast %27 : vector<1x2x16x8xbf16> to vector<2x16x8xbf16>
    %29 = vector.shape_cast %26 : vector<2x16x8xbf16> to vector<1x2x16x8xbf16>
    tpu.vector_store %arg10[%c2_46, %c16_47, %c0_48, %c0_49], %29 {strides = array<i32>} : memref<3x18x16x8xbf16, #tpu.memory_space<vmem>>, vector<1x2x16x8xbf16>,
    %cst = arith.constant 0.000000e+00 : f32
    %30 = vector.broadcast %cst : f32 to vector<256x24xf32>
    %c0_50 = arith.constant 0 : index
    %c0_51 = arith.constant 0 : index
    %c0_52 = arith.constant 0 : index
    %c0_53 = arith.constant 0 : index
    %31 = vector.load %arg10[%c0_50, %c0_51, %c0_52, %c0_53] : memref<3x18x16x8xbf16, #tpu.memory_space<vmem>>, vector<1x16x16x8xbf16>
    %32 = vector.shape_cast %31 : vector<1x16x16x8xbf16> to vector<16x16x8xbf16>
    %33 = vector.shape_cast %32 : vector<16x16x8xbf16> to vector<256x8xbf16>
    %c0_54 = arith.constant 0 : index
    %c0_55 = arith.constant 0 : index
    %c0_56 = arith.constant 0 : index
    %c0_57 = arith.constant 0 : index
    %34 = vector.load %arg5[%c0_54, %c0_55, %c0_56, %c0_57] : memref<1x9x8x24xbf16, #tpu.memory_space<vmem>>, vector<1x1x8x24xbf16>
    %35 = vector.shape_cast %34 : vector<1x1x8x24xbf16> to vector<8x24xbf16>
    %cst_58 = arith.constant dense<0.000000e+00> : vector<256x24xf32>
    %36 = tpu.matmul %33, %35, %cst_58 {dimension_numbers = #tpu.dot_dimension_numbers<[1], [0], [0], [1], [0, 0, 1, 1], [], []>} : vector<256x8xbf16>, vector<8x24xbf16>, vector<256x24xf32> -> vector<256x24xf32>
    %37 = arith.addf %30, %36 : vector<256x24xf32>
    %c1_59 = arith.constant 1 : index
    %c0_60 = arith.constant 0 : index
    %c0_61 = arith.constant 0 : index
    %c0_62 = arith.constant 0 : index
    %38 = vector.load %arg10[%c1_59, %c0_60, %c0_61, %c0_62] : memref<3x18x16x8xbf16, #tpu.memory_space<vmem>>, vector<1x16x16x8xbf16>
    %39 = vector.shape_cast %38 : vector<1x16x16x8xbf16> to vector<16x16x8xbf16>
    %40 = vector.shape_cast %39 : vector<16x16x8xbf16> to vector<256x8xbf16>
    %c0_63 = arith.constant 0 : index
    %c1_64 = arith.constant 1 : index
    %c0_65 = arith.constant 0 : index
    %c0_66 = arith.constant 0 : index
    %41 = vector.load %arg5[%c0_63, %c1_64, %c0_65, %c0_66] : memref<1x9x8x24xbf16, #tpu.memory_space<vmem>>, vector<1x1x8x24xbf16>
    %42 = vector.shape_cast %41 : vector<1x1x8x24xbf16> to vector<8x24xbf16>
    %cst_67 = arith.constant dense<0.000000e+00> : vector<256x24xf32>
    %43 = tpu.matmul %40, %42, %cst_67 {dimension_numbers = #tpu.dot_dimension_numbers<[1], [0], [0], [1], [0, 0, 1, 1], [], []>} : vector<256x8xbf16>, vector<8x24xbf16>, vector<256x24xf32> -> vector<256x24xf32>
    %44 = arith.addf %37, %43 : vector<256x24xf32>
    %c2_68 = arith.constant 2 : index
    %c0_69 = arith.constant 0 : index
    %c0_70 = arith.constant 0 : index
    %c0_71 = arith.constant 0 : index
    %45 = vector.load %arg10[%c2_68, %c0_69, %c0_70, %c0_71] : memref<3x18x16x8xbf16, #tpu.memory_space<vmem>>, vector<1x16x16x8xbf16>
    %46 = vector.shape_cast %45 : vector<1x16x16x8xbf16> to vector<16x16x8xbf16>
    %47 = vector.shape_cast %46 : vector<16x16x8xbf16> to vector<256x8xbf16>
    %c0_72 = arith.constant 0 : index
    %c2_73 = arith.constant 2 : index
    %c0_74 = arith.constant 0 : index
    %c0_75 = arith.constant 0 : index
    %48 = vector.load %arg5[%c0_72, %c2_73, %c0_74, %c0_75] : memref<1x9x8x24xbf16, #tpu.memory_space<vmem>>, vector<1x1x8x24xbf16>
    %49 = vector.shape_cast %48 : vector<1x1x8x24xbf16> to vector<8x24xbf16>
    %cst_76 = arith.constant dense<0.000000e+00> : vector<256x24xf32>
    %50 = tpu.matmul %47, %49, %cst_76 {dimension_numbers = #tpu.dot_dimension_numbers<[1], [0], [0], [1], [0, 0, 1, 1], [], []>} : vector<256x8xbf16>, vector<8x24xbf16>, vector<256x24xf32> -> vector<256x24xf32>
    %51 = arith.addf %44, %50 : vector<256x24xf32>
    %c0_77 = arith.constant 0 : index
    %c1_78 = arith.constant 1 : index
    %c0_79 = arith.constant 0 : index
    %c0_80 = arith.constant 0 : index
    %52 = vector.load %arg10[%c0_77, %c1_78, %c0_79, %c0_80] : memref<3x18x16x8xbf16, #tpu.memory_space<vmem>>, vector<1x16x16x8xbf16>
    %53 = vector.shape_cast %52 : vector<1x16x16x8xbf16> to vector<16x16x8xbf16>
    %54 = vector.shape_cast %53 : vector<16x16x8xbf16> to vector<256x8xbf16>
    %c0_81 = arith.constant 0 : index
    %c3 = arith.constant 3 : index
    %c0_82 = arith.constant 0 : index
    %c0_83 = arith.constant 0 : index
    %55 = vector.load %arg5[%c0_81, %c3, %c0_82, %c0_83] : memref<1x9x8x24xbf16, #tpu.memory_space<vmem>>, vector<1x1x8x24xbf16>
    %56 = vector.shape_cast %55 : vector<1x1x8x24xbf16> to vector<8x24xbf16>
    %cst_84 = arith.constant dense<0.000000e+00> : vector<256x24xf32>
    %57 = tpu.matmul %54, %56, %cst_84 {dimension_numbers = #tpu.dot_dimension_numbers<[1], [0], [0], [1], [0, 0, 1, 1], [], []>} : vector<256x8xbf16>, vector<8x24xbf16>, vector<256x24xf32> -> vector<256x24xf32>
    %58 = arith.addf %51, %57 : vector<256x24xf32>
    %c1_85 = arith.constant 1 : index
    %c1_86 = arith.constant 1 : index
    %c0_87 = arith.constant 0 : index
    %c0_88 = arith.constant 0 : index
    %59 = vector.load %arg10[%c1_85, %c1_86, %c0_87, %c0_88] : memref<3x18x16x8xbf16, #tpu.memory_space<vmem>>, vector<1x16x16x8xbf16>
    %60 = vector.shape_cast %59 : vector<1x16x16x8xbf16> to vector<16x16x8xbf16>
    %61 = vector.shape_cast %60 : vector<16x16x8xbf16> to vector<256x8xbf16>
    %c0_89 = arith.constant 0 : index
    %c4 = arith.constant 4 : index
    %c0_90 = arith.constant 0 : index
    %c0_91 = arith.constant 0 : index
    %62 = vector.load %arg5[%c0_89, %c4, %c0_90, %c0_91] : memref<1x9x8x24xbf16, #tpu.memory_space<vmem>>, vector<1x1x8x24xbf16>
    %63 = vector.shape_cast %62 : vector<1x1x8x24xbf16> to vector<8x24xbf16>
    %cst_92 = arith.constant dense<0.000000e+00> : vector<256x24xf32>
    %64 = tpu.matmul %61, %63, %cst_92 {dimension_numbers = #tpu.dot_dimension_numbers<[1], [0], [0], [1], [0, 0, 1, 1], [], []>} : vector<256x8xbf16>, vector<8x24xbf16>, vector<256x24xf32> -> vector<256x24xf32>
    %65 = arith.addf %58, %64 : vector<256x24xf32>
    %c2_93 = arith.constant 2 : index
    %c1_94 = arith.constant 1 : index
    %c0_95 = arith.constant 0 : index
    %c0_96 = arith.constant 0 : index
    %66 = vector.load %arg10[%c2_93, %c1_94, %c0_95, %c0_96] : memref<3x18x16x8xbf16, #tpu.memory_space<vmem>>, vector<1x16x16x8xbf16>
    %67 = vector.shape_cast %66 : vector<1x16x16x8xbf16> to vector<16x16x8xbf16>
    %68 = vector.shape_cast %67 : vector<16x16x8xbf16> to vector<256x8xbf16>
    %c0_97 = arith.constant 0 : index
    %c5 = arith.constant 5 : index
    %c0_98 = arith.constant 0 : index
    %c0_99 = arith.constant 0 : index
    %69 = vector.load %arg5[%c0_97, %c5, %c0_98, %c0_99] : memref<1x9x8x24xbf16, #tpu.memory_space<vmem>>, vector<1x1x8x24xbf16>
    %70 = vector.shape_cast %69 : vector<1x1x8x24xbf16> to vector<8x24xbf16>
    %cst_100 = arith.constant dense<0.000000e+00> : vector<256x24xf32>
    %71 = tpu.matmul %68, %70, %cst_100 {dimension_numbers = #tpu.dot_dimension_numbers<[1], [0], [0], [1], [0, 0, 1, 1], [], []>} : vector<256x8xbf16>, vector<8x24xbf16>, vector<256x24xf32> -> vector<256x24xf32>
    %72 = arith.addf %65, %71 : vector<256x24xf32>
    %c0_101 = arith.constant 0 : index
    %c2_102 = arith.constant 2 : index
    %c0_103 = arith.constant 0 : index
    %c0_104 = arith.constant 0 : index
    %73 = vector.load %arg10[%c0_101, %c2_102, %c0_103, %c0_104] : memref<3x18x16x8xbf16, #tpu.memory_space<vmem>>, vector<1x16x16x8xbf16>
    %74 = vector.shape_cast %73 : vector<1x16x16x8xbf16> to vector<16x16x8xbf16>
    %75 = vector.shape_cast %74 : vector<16x16x8xbf16> to vector<256x8xbf16>
    %c0_105 = arith.constant 0 : index
    %c6 = arith.constant 6 : index
    %c0_106 = arith.constant 0 : index
    %c0_107 = arith.constant 0 : index
    %76 = vector.load %arg5[%c0_105, %c6, %c0_106, %c0_107] : memref<1x9x8x24xbf16, #tpu.memory_space<vmem>>, vector<1x1x8x24xbf16>
    %77 = vector.shape_cast %76 : vector<1x1x8x24xbf16> to vector<8x24xbf16>
    %cst_108 = arith.constant dense<0.000000e+00> : vector<256x24xf32>
    %78 = tpu.matmul %75, %77, %cst_108 {dimension_numbers = #tpu.dot_dimension_numbers<[1], [0], [0], [1], [0, 0, 1, 1], [], []>} : vector<256x8xbf16>, vector<8x24xbf16>, vector<256x24xf32> -> vector<256x24xf32>
    %79 = arith.addf %72, %78 : vector<256x24xf32>
    %c1_109 = arith.constant 1 : index
    %c2_110 = arith.constant 2 : index
    %c0_111 = arith.constant 0 : index
    %c0_112 = arith.constant 0 : index
    %80 = vector.load %arg10[%c1_109, %c2_110, %c0_111, %c0_112] : memref<3x18x16x8xbf16, #tpu.memory_space<vmem>>, vector<1x16x16x8xbf16>
    %81 = vector.shape_cast %80 : vector<1x16x16x8xbf16> to vector<16x16x8xbf16>
    %82 = vector.shape_cast %81 : vector<16x16x8xbf16> to vector<256x8xbf16>
    %c0_113 = arith.constant 0 : index
    %c7 = arith.constant 7 : index
    %c0_114 = arith.constant 0 : index
    %c0_115 = arith.constant 0 : index
    %83 = vector.load %arg5[%c0_113, %c7, %c0_114, %c0_115] : memref<1x9x8x24xbf16, #tpu.memory_space<vmem>>, vector<1x1x8x24xbf16>
    %84 = vector.shape_cast %83 : vector<1x1x8x24xbf16> to vector<8x24xbf16>
    %cst_116 = arith.constant dense<0.000000e+00> : vector<256x24xf32>
    %85 = tpu.matmul %82, %84, %cst_116 {dimension_numbers = #tpu.dot_dimension_numbers<[1], [0], [0], [1], [0, 0, 1, 1], [], []>} : vector<256x8xbf16>, vector<8x24xbf16>, vector<256x24xf32> -> vector<256x24xf32>
    %86 = arith.addf %79, %85 : vector<256x24xf32>
    %c2_117 = arith.constant 2 : index
    %c2_118 = arith.constant 2 : index
    %c0_119 = arith.constant 0 : index
    %c0_120 = arith.constant 0 : index
    %87 = vector.load %arg10[%c2_117, %c2_118, %c0_119, %c0_120] : memref<3x18x16x8xbf16, #tpu.memory_space<vmem>>, vector<1x16x16x8xbf16>
    %88 = vector.shape_cast %87 : vector<1x16x16x8xbf16> to vector<16x16x8xbf16>
    %89 = vector.shape_cast %88 : vector<16x16x8xbf16> to vector<256x8xbf16>
    %c0_121 = arith.constant 0 : index
    %c8 = arith.constant 8 : index
    %c0_122 = arith.constant 0 : index
    %c0_123 = arith.constant 0 : index
    %90 = vector.load %arg5[%c0_121, %c8, %c0_122, %c0_123] : memref<1x9x8x24xbf16, #tpu.memory_space<vmem>>, vector<1x1x8x24xbf16>
    %91 = vector.shape_cast %90 : vector<1x1x8x24xbf16> to vector<8x24xbf16>
    %cst_124 = arith.constant dense<0.000000e+00> : vector<256x24xf32>
    %92 = tpu.matmul %89, %91, %cst_124 {dimension_numbers = #tpu.dot_dimension_numbers<[1], [0], [0], [1], [0, 0, 1, 1], [], []>} : vector<256x8xbf16>, vector<8x24xbf16>, vector<256x24xf32> -> vector<256x24xf32>
    %93 = arith.addf %86, %92 : vector<256x24xf32>
    %c0_125 = arith.constant 0 : index
    %c0_126 = arith.constant 0 : index
    %c0_127 = arith.constant 0 : index
    %94 = vector.load %arg6[%c0_125, %c0_126, %c0_127] : memref<1x1x24xf32, #tpu.memory_space<vmem>>, vector<1x1x24xf32>
    %95 = vector.shape_cast %94 : vector<1x1x24xf32> to vector<1x24xf32>
    %96 = vector.broadcast %95 : vector<1x24xf32> to vector<256x24xf32>
    %97 = arith.addf %93, %96 : vector<256x24xf32>
    %cst_128 = arith.constant 0.000000e+00 : f32
    %98 = vector.broadcast %cst_128 : f32 to vector<256x24xf32>
    %99 = arith.maximumf %97, %98 : vector<256x24xf32>
    %100 = arith.truncf %99 : vector<256x24xf32> to vector<256x24xbf16>
    %c0_129 = arith.constant 0 : index
    %c0_130 = arith.constant 0 : index
    %c0_131 = arith.constant 0 : index
    %101 = vector.load %arg7[%c0_129, %c0_130, %c0_131] : memref<1x7x24xbf16, #tpu.memory_space<vmem>>, vector<1x7x24xbf16>
    %102 = vector.shape_cast %101 : vector<1x7x24xbf16> to vector<7x24xbf16>
    %cst_132 = arith.constant dense<0.000000e+00> : vector<7x256xf32>
    %103 = tpu.matmul %102, %100, %cst_132 {dimension_numbers = #tpu.dot_dimension_numbers<[1], [1], [0], [0], [0, 0, 1, 0], [], []>} : vector<7x24xbf16>, vector<256x24xbf16>, vector<7x256xf32> -> vector<7x256xf32>
    %c0_133 = arith.constant 0 : index
    %c0_134 = arith.constant 0 : index
    %c0_135 = arith.constant 0 : index
    %104 = vector.load %arg8[%c0_133, %c0_134, %c0_135] : memref<1x7x1xf32, #tpu.memory_space<vmem>>, vector<1x7x1xf32>
    %105 = vector.shape_cast %104 : vector<1x7x1xf32> to vector<7x1xf32>
    %106 = vector.broadcast %105 : vector<7x1xf32> to vector<7x256xf32>
    %107 = arith.addf %103, %106 : vector<7x256xf32>
    %c0_136 = arith.constant 0 : index
    %c0_137 = arith.constant 0 : index
    %c0_138 = arith.constant 0 : index
    %c0_139 = arith.constant 0 : index
    %108 = vector.load %arg9[%c0_136, %c0_137, %c0_138, %c0_139] : memref<1x1x7x256xf32, #tpu.memory_space<vmem>>, vector<1x1x7x256xf32>
    %109 = vector.shape_cast %108 : vector<1x1x7x256xf32> to vector<7x256xf32>
    %110 = vector.shape_cast %107 : vector<7x256xf32> to vector<1x1x7x256xf32>
    tpu.vector_store %arg9[%c0_136, %c0_137, %c0_138, %c0_139], %110 {strides = array<i32>} : memref<1x1x7x256xf32, #tpu.memory_space<vmem>>, vector<1x1x7x256xf32>,
    return
  }
  func.func @transform_0(%arg0: i32, %arg1: i32, %arg2: i32) -> (i32, i32, i32, i32, i32) {
    %c0_i32 = arith.constant 0 : i32
    %c0_i32_0 = arith.constant 0 : i32
    %c0_i32_1 = arith.constant 0 : i32
    return %arg0, %arg1, %arg2, %c0_i32, %c0_i32_0 : i32, i32, i32, i32, i32
  }
  func.func @transform_1(%arg0: i32, %arg1: i32, %arg2: i32) -> (i32, i32, i32, i32, i32) {
    %c1_i32 = arith.constant 1 : i32
    %0 = arith.addi %arg2, %c1_i32 : i32
    %c8_i32 = arith.constant 8 : i32
    %1 = arith.muli %0, %c8_i32 : i32
    %c0_i32 = arith.constant 0 : i32
    %c0_i32_0 = arith.constant 0 : i32
    %c0_i32_1 = arith.constant 0 : i32
    return %arg0, %arg1, %1, %c0_i32, %c0_i32_0 : i32, i32, i32, i32, i32
  }
  func.func @transform_2(%arg0: i32, %arg1: i32, %arg2: i32) -> (i32, i32, i32, i32) {
    %c0_i32 = arith.constant 0 : i32
    %c0_i32_0 = arith.constant 0 : i32
    %c0_i32_1 = arith.constant 0 : i32
    %c0_i32_2 = arith.constant 0 : i32
    return %arg0, %c0_i32, %c0_i32_0, %c0_i32_1 : i32, i32, i32, i32
  }
  func.func @transform_3(%arg0: i32, %arg1: i32, %arg2: i32) -> (i32, i32, i32) {
    %c0_i32 = arith.constant 0 : i32
    %c0_i32_0 = arith.constant 0 : i32
    %c0_i32_1 = arith.constant 0 : i32
    return %arg0, %c0_i32, %c0_i32_0 : i32, i32, i32
  }
  func.func @transform_4(%arg0: i32, %arg1: i32, %arg2: i32) -> (i32, i32, i32) {
    %c0_i32 = arith.constant 0 : i32
    %c0_i32_0 = arith.constant 0 : i32
    %c0_i32_1 = arith.constant 0 : i32
    return %arg0, %c0_i32, %c0_i32_0 : i32, i32, i32
  }
  func.func @transform_5(%arg0: i32, %arg1: i32, %arg2: i32) -> (i32, i32, i32) {
    %c0_i32 = arith.constant 0 : i32
    %c0_i32_0 = arith.constant 0 : i32
    %c0_i32_1 = arith.constant 0 : i32
    return %arg0, %c0_i32, %c0_i32_0 : i32, i32, i32
  }
  func.func @transform_6(%arg0: i32, %arg1: i32, %arg2: i32) -> (i32, i32, i32, i32) {
    %c0_i32 = arith.constant 0 : i32
    %c0_i32_0 = arith.constant 0 : i32
    return %arg0, %arg1, %c0_i32, %arg2 : i32, i32, i32, i32
  }
}

</mosaic_0001>

<llo_original>
// kernel: _lambda_.5
$region0: #{_lambda_.5}
  #allocation0 [shape = 'u32[]', space=smem, size = 0x4, offset = 0x4, fixed_abs, tag = 'smem constant byte address 0x4 - core index']
  #allocation1 [shape = 'u32[72,128]{1,0:T(1,128)}', space=vmem, size = 0x9000, scoped, tag = 'internal scratch']
  %s0 = inlined_call_operand.vmem [shape: bf16[2,8,256], index: 0, kind: input, shape index: {}]
  %s1 = inlined_call_operand.vmem [shape: bf16[2,12,8], index: 1, kind: input, shape index: {}]
  %s2 = inlined_call_operand.vmem [shape: f32[2,12,1], index: 2, kind: input, shape index: {}]
  %s3 = inlined_call_operand.vmem [shape: bf16[2,2,4,256], index: 3, kind: output, shape index: {0}]
  %s4 = inlined_call_operand.vmem [shape: bf16[2,2,4,256], index: 4, kind: output, shape index: {1}]
  %s5 = inlined_call_operand.vmem [shape: bf16[2,2,4,256], index: 5, kind: output, shape index: {2}]
  %6 = xla_tuple %s3, %s4, %s5
  %s7 = sld [smem:[#allocation0]]
  $region61: #{_lambda_.5} parent=0
    _
  %s9 = ssub.s32 1, %s7
  %s10 = scalar_select 0, %s9, %s7
  loop: start=0, step=1, limit=6
  $region2: #{_lambda_.5} parent=0 // loop_pre_header
    _
  $region3: #{_lambda_.5} parent=0 // loop_header
    %s12 = sphi 0, %s16
    %p13 = scmp.ge.s32.totalorder %s12, 6
    %s19 = sphi 0, %s38
    %s20 = sphi 0, %s34
    %s21 = sphi 0, %s30
    %s22 = sphi 0, %s19
    %s23 = sphi 0, %s20
    %s24 = sphi 0, %s21
    %s25 = sphi 0, %s22
    %s26 = sphi 0, %s23
    %s27 = sphi 0, %s24
    %s43 = sphi 0, %s45
    %s46 = sphi 0, %s43
    %s47 = sphi 0, %s46
    %s63 = sphi 0, %s47
    %s69 = sphi 0, %s71
    %s72 = sphi 0, %s69
    %s73 = sphi 0, %s72
    %s89 = sphi 0, %s73
    %s95 = sphi 0, %s97
    %s98 = sphi 0, %s95
    %s99 = sphi 0, %s98
    %s115 = sphi 0, %s99
    %s125 = sphi 0, %s127
    %s128 = sphi 0, %s125
    %s129 = sphi 0, %s128
    %s145 = sphi 0, %s129
    %s155 = sphi 0, %s157
    %s158 = sphi 0, %s155
    %s159 = sphi 0, %s158
    %s175 = sphi 0, %s159
    %s185 = sphi 0, %s187
    %s188 = sphi 0, %s185
    %s189 = sphi 0, %s188
    %s205 = sphi 0, %s189
  $region4: #{_lambda_.5} parent=0 // loop_header_branch
    %15 = sbr.rel (%p13) target = $region8
  $region5: #{_lambda_.5} parent=0 // loop_body
    %s17 = ssub.s32 %s12, 1
    %s18 = ssub.s32 %s12, 2
    %s28 = sadd.s32 1, %s21
    %p29 = scmp.ge.s32.totalorder %s28, 2
    %s30 = scalar_select %p29, 0, %s28
    %s31 = sadd.s32 1, %s20
    %s32 = scalar_select %p29, %s31, %s20
    %p33 = scmp.ge.s32.totalorder %s32, 1
    %s34 = scalar_select %p33, 0, %s32
    %s35 = sadd.s32 1, %s19
    %s36 = scalar_select %p33, %s35, %s19
    %p37 = scmp.ge.s32.totalorder %s36, 2
    %s38 = scalar_select %p37, 0, %s36
    %s39 = ssub.s32 %s19, %s38
    %s40 = ssub.s32 %s20, %s34
    %s41 = sor.u32 %s39, %s40
    %p42 = scmp.eq.s32.totalorder %s41, 0
    %s44 = sadd.s32 %s43, 1
    %s45 = scalar_select %p42, %s43, %s44
    %p48 = pneg %p42
    %p49 = scmp.eq.s32.totalorder %s12, 3
    %p50 = por %p48, %p49
    %p51 = scmp.ne.s32.totalorder %s43, %s46
    %p52 = scmp.eq.s32.totalorder %s12, 0
    %p53 = por %p51, %p52
    %p54 = scmp.ne.s32.totalorder %s43, %s46
    %p55 = scmp.eq.s32.totalorder %s17, 3
    %p56 = por %p54, %p55
    %p57 = scmp.ne.s32.totalorder %s46, %s47
    %p58 = scmp.eq.s32.totalorder %s17, 0
    %p59 = por %p57, %p58
    %p60 = scmp.ne.s32.totalorder %s46, %s47
    %p61 = scmp.eq.s32.totalorder %s18, 3
    %p62 = por %p60, %p61
    %p64 = scmp.ne.s32.totalorder %s47, %s63
    %p65 = scmp.eq.s32.totalorder %s18, 0
    %p66 = por %p64, %p65
    %s67 = ssub.s32 %s21, %s30
    %p68 = scmp.eq.s32.totalorder %s67, 0
    %s70 = sadd.s32 %s69, 1
    %s71 = scalar_select %p68, %s69, %s70
    %p74 = pneg %p68
    %p75 = scmp.eq.s32.totalorder %s12, 3
    %p76 = por %p74, %p75
    %p77 = scmp.ne.s32.totalorder %s69, %s72
    %p78 = scmp.eq.s32.totalorder %s12, 0
    %p79 = por %p77, %p78
    %p80 = scmp.ne.s32.totalorder %s69, %s72
    %p81 = scmp.eq.s32.totalorder %s17, 3
    %p82 = por %p80, %p81
    %p83 = scmp.ne.s32.totalorder %s72, %s73
    %p84 = scmp.eq.s32.totalorder %s17, 0
    %p85 = por %p83, %p84
    %p86 = scmp.ne.s32.totalorder %s72, %s73
    %p87 = scmp.eq.s32.totalorder %s18, 3
    %p88 = por %p86, %p87
    %p90 = scmp.ne.s32.totalorder %s73, %s89
    %p91 = scmp.eq.s32.totalorder %s18, 0
    %p92 = por %p90, %p91
    %s93 = ssub.s32 %s21, %s30
    %p94 = scmp.eq.s32.totalorder %s93, 0
    %s96 = sadd.s32 %s95, 1
    %s97 = scalar_select %p94, %s95, %s96
    %p100 = pneg %p94
    %p101 = scmp.eq.s32.totalorder %s12, 3
    %p102 = por %p100, %p101
    %p103 = scmp.ne.s32.totalorder %s95, %s98
    %p104 = scmp.eq.s32.totalorder %s12, 0
    %p105 = por %p103, %p104
    %p106 = scmp.ne.s32.totalorder %s95, %s98
    %p107 = scmp.eq.s32.totalorder %s17, 3
    %p108 = por %p106, %p107
    %p109 = scmp.ne.s32.totalorder %s98, %s99
    %p110 = scmp.eq.s32.totalorder %s17, 0
    %p111 = por %p109, %p110
    %p112 = scmp.ne.s32.totalorder %s98, %s99
    %p113 = scmp.eq.s32.totalorder %s18, 3
    %p114 = por %p112, %p113
    %p116 = scmp.ne.s32.totalorder %s99, %s115
    %p117 = scmp.eq.s32.totalorder %s18, 0
    %p118 = por %p116, %p117
    %s119 = ssub.s32 %s21, %s30
    %s120 = ssub.s32 %s19, %s38
    %s121 = sor.u32 %s119, %s120
    %s122 = ssub.s32 %s20, %s34
    %s123 = sor.u32 %s121, %s122
    %p124 = scmp.eq.s32.totalorder %s123, 0
    %s126 = sadd.s32 %s125, 1
    %s127 = scalar_select %p124, %s125, %s126
    %p130 = pneg %p124
    %p131 = scmp.eq.s32.totalorder %s12, 3
    %p132 = por %p130, %p131
    %p133 = scmp.ne.s32.totalorder %s125, %s128
    %p134 = scmp.eq.s32.totalorder %s12, 0
    %p135 = por %p133, %p134
    %p136 = scmp.ne.s32.totalorder %s125, %s128
    %p137 = scmp.eq.s32.totalorder %s17, 3
    %p138 = por %p136, %p137
    %p139 = scmp.ne.s32.totalorder %s128, %s129
    %p140 = scmp.eq.s32.totalorder %s17, 0
    %p141 = por %p139, %p140
    %p142 = scmp.ne.s32.totalorder %s128, %s129
    %p143 = scmp.eq.s32.totalorder %s18, 3
    %p144 = por %p142, %p143
    %p146 = scmp.ne.s32.totalorder %s129, %s145
    %p147 = scmp.eq.s32.totalorder %s18, 0
    %p148 = por %p146, %p147
    %s149 = ssub.s32 %s21, %s30
    %s150 = ssub.s32 %s19, %s38
    %s151 = sor.u32 %s149, %s150
    %s152 = ssub.s32 %s20, %s34
    %s153 = sor.u32 %s151, %s152
    %p154 = scmp.eq.s32.totalorder %s153, 0
    %s156 = sadd.s32 %s155, 1
    %s157 = scalar_select %p154, %s155, %s156
    %p160 = pneg %p154
    %p161 = scmp.eq.s32.totalorder %s12, 3
    %p162 = por %p160, %p161
    %p163 = scmp.ne.s32.totalorder %s155, %s158
    %p164 = scmp.eq.s32.totalorder %s12, 0
    %p165 = por %p163, %p164
    %p166 = scmp.ne.s32.totalorder %s155, %s158
    %p167 = scmp.eq.s32.totalorder %s17, 3
    %p168 = por %p166, %p167
    %p169 = scmp.ne.s32.totalorder %s158, %s159
    %p170 = scmp.eq.s32.totalorder %s17, 0
    %p171 = por %p169, %p170
    %p172 = scmp.ne.s32.totalorder %s158, %s159
    %p173 = scmp.eq.s32.totalorder %s18, 3
    %p174 = por %p172, %p173
    %p176 = scmp.ne.s32.totalorder %s159, %s175
    %p177 = scmp.eq.s32.totalorder %s18, 0
    %p178 = por %p176, %p177
    %s179 = ssub.s32 %s21, %s30
    %s180 = ssub.s32 %s19, %s38
    %s181 = sor.u32 %s179, %s180
    %s182 = ssub.s32 %s20, %s34
    %s183 = sor.u32 %s181, %s182
    %p184 = scmp.eq.s32.totalorder %s183, 0
    %s186 = sadd.s32 %s185, 1
    %s187 = scalar_select %p184, %s185, %s186
    %p190 = pneg %p184
    %p191 = scmp.eq.s32.totalorder %s12, 3
    %p192 = por %p190, %p191
    %p193 = scmp.ne.s32.totalorder %s185, %s188
    %p194 = scmp.eq.s32.totalorder %s12, 0
    %p195 = por %p193, %p194
    %p196 = scmp.ne.s32.totalorder %s185, %s188
    %p197 = scmp.eq.s32.totalorder %s17, 3
    %p198 = por %p196, %p197
    %p199 = scmp.ne.s32.totalorder %s188, %s189
    %p200 = scmp.eq.s32.totalorder %s17, 0
    %p201 = por %p199, %p200
    %p202 = scmp.ne.s32.totalorder %s188, %s189
    %p203 = scmp.eq.s32.totalorder %s18, 3
    %p204 = por %p202, %p203
    %p206 = scmp.ne.s32.totalorder %s189, %s205
    %p207 = scmp.eq.s32.totalorder %s18, 0
    %p208 = por %p206, %p207
    %p209 = scmp.le.s32.totalorder 1, %s12
    %p210 = scmp.lt.s32.totalorder %s12, 5
    %p211 = pnand %p209, %p210
    %p212 = pneg %p211
    // Predicated region
    $region9: #{_lambda_.5} parent=5 // pred_check
      _
    $region10: #{_lambda_.5} parent=5 // pred_check_branch
      %214 = sbr.rel (%p211) target = $region12
    $region11: #{_lambda_.5} parent=5 // pred_region
      %s215 = ssub.s32 %s12, 1
    $region12: #{_lambda_.5} parent=5 // pred_fallthru
      _
    %p216 = scmp.lt.s32.totalorder %s12, 4
    // Predicated region
    $region13: #{_lambda_.5} parent=5 // pred_check
      %p217 = pneg %p216
    $region14: #{_lambda_.5} parent=5 // pred_check_branch
      %219 = sbr.rel (%p217) target = $region16
    $region15: #{_lambda_.5} parent=5 // pred_region
      // Predicated region
      $region17: #{_lambda_.5} parent=15 // pred_check
        %p220 = pneg %p53
      $region18: #{_lambda_.5} parent=15 // pred_check_branch
        %222 = sbr.rel (%p220) target = $region20
      $region19: #{_lambda_.5} parent=15 // pred_region
        %s223 = smul.u32 2, %s20
        %p224 = scmp.lt.s32.totalorder %s19, 1
        %s225 = scalar_select %p224, %s19, 1
        %p226 = scmp.lt.s32.totalorder %s223, 1
        %s227 = scalar_select %p226, %s223, 1
        %s228 = smul.addr %s225, 2
        %s229 = sadd.s32 %s227, %s228
        %s230 = smul.addr %s229, 4
        %s231 = scalar_lea.vmem %s0, %s230
        %s232 = smul.u32 2, %s20
      $region20: #{_lambda_.5} parent=15 // pred_fallthru
        _
      // Predicated region
      $region21: #{_lambda_.5} parent=15 // pred_check
        %p233 = pneg %p79
      $region22: #{_lambda_.5} parent=15 // pred_check_branch
        %235 = sbr.rel (%p233) target = $region24
      $region23: #{_lambda_.5} parent=15 // pred_region
        %p236 = scmp.lt.s32.totalorder %s21, 1
        %s237 = scalar_select %p236, %s21, 1
        %s238 = smul.addr %s237, 2
        %s239 = smul.addr %s238, 4
        %s240 = scalar_lea.vmem %s1, %s239
      $region24: #{_lambda_.5} parent=15 // pred_fallthru
        _
      // Predicated region
      $region25: #{_lambda_.5} parent=15 // pred_check
        %p241 = pneg %p105
      $region26: #{_lambda_.5} parent=15 // pred_check_branch
        %243 = sbr.rel (%p241) target = $region28
      $region27: #{_lambda_.5} parent=15 // pred_region
        %p244 = scmp.lt.s32.totalorder %s21, 1
        %s245 = scalar_select %p244, %s21, 1
        %s246 = smul.addr %s245, 2
        %s247 = smul.addr %s246, 8
        %s248 = scalar_lea.vmem %s2, %s247
      $region28: #{_lambda_.5} parent=15 // pred_fallthru
        _
    $region16: #{_lambda_.5} parent=5 // pred_fallthru
      _
    %p249 = scmp.le.s32.totalorder 1, %s12
    %p250 = scmp.lt.s32.totalorder %s12, 5
    %p251 = pnand %p249, %p250
    %p252 = pneg %p251
    // Predicated region
    $region29: #{_lambda_.5} parent=5 // pred_check
      _
    $region30: #{_lambda_.5} parent=5 // pred_check_branch
      %254 = sbr.rel (%p251) target = $region32
    $region31: #{_lambda_.5} parent=5 // pred_region
      %s255 = ssub.s32 %s12, 1
      %s256 = smul.u32 2, %s23
      %p257 = scmp.lt.s32.totalorder %s22, 1
      %s258 = scalar_select %p257, %s22, 1
      %p259 = scmp.lt.s32.totalorder %s256, 1
      %s260 = scalar_select %p259, %s256, 1
      %s261 = smul.addr %s258, 2
      %s262 = sadd.s32 %s260, %s261
      %s263 = smul.addr %s262, 4
      %s264 = scalar_lea.vmem %s0, %s263
      %p265 = pneg %p59
      %p266 = pneg %p56
      %p267 = scmp.lt.s32.totalorder %s24, 1
      %s268 = scalar_select %p267, %s24, 1
      %s269 = smul.addr %s268, 2
      %s270 = smul.addr %s269, 4
      %s271 = scalar_lea.vmem %s1, %s270
      %p272 = pneg %p85
      %p273 = pneg %p82
      %p274 = scmp.lt.s32.totalorder %s24, 1
      %s275 = scalar_select %p274, %s24, 1
      %s276 = smul.addr %s275, 2
      %s277 = smul.addr %s276, 8
      %s278 = scalar_lea.vmem %s2, %s277
      %p279 = pneg %p111
      %p280 = pneg %p108
      %p281 = pneg %p141
      %p282 = pneg %p138
      %s283 = smul.u32 2, %s23
      %p284 = scmp.lt.s32.totalorder %s24, 1
      %s285 = scalar_select %p284, %s24, 1
      %p286 = scmp.lt.s32.totalorder %s22, 1
      %s287 = scalar_select %p286, %s22, 1
      %p288 = scmp.lt.s32.totalorder %s283, 1
      %s289 = scalar_select %p288, %s283, 1
      %s290 = smul.addr %s287, 2
      %s291 = sadd.s32 %s289, %s290
      %s292 = smul.addr %s285, 4
      %s293 = sadd.s32 %s291, %s292
      %s294 = smul.addr %s293, 2
      %s295 = scalar_lea.vmem %s3, %s294
      %p296 = pneg %p171
      %p297 = pneg %p168
      %s298 = smul.u32 2, %s23
      %p299 = scmp.lt.s32.totalorder %s24, 1
      %s300 = scalar_select %p299, %s24, 1
      %p301 = scmp.lt.s32.totalorder %s22, 1
      %s302 = scalar_select %p301, %s22, 1
      %p303 = scmp.lt.s32.totalorder %s298, 1
      %s304 = scalar_select %p303, %s298, 1
      %s305 = smul.addr %s302, 2
      %s306 = sadd.s32 %s304, %s305
      %s307 = smul.addr %s300, 4
      %s308 = sadd.s32 %s306, %s307
      %s309 = smul.addr %s308, 2
      %s310 = scalar_lea.vmem %s4, %s309
      %p311 = pneg %p201
      %p312 = pneg %p198
      %s313 = smul.u32 2, %s23
      %p314 = scmp.lt.s32.totalorder %s24, 1
      %s315 = scalar_select %p314, %s24, 1
      %p316 = scmp.lt.s32.totalorder %s22, 1
      %s317 = scalar_select %p316, %s22, 1
      %p318 = scmp.lt.s32.totalorder %s313, 1
      %s319 = scalar_select %p318, %s313, 1
      %s320 = smul.addr %s317, 2
      %s321 = sadd.s32 %s319, %s320
      %s322 = smul.addr %s315, 4
      %s323 = sadd.s32 %s321, %s322
      %s324 = smul.addr %s323, 2
      %s325 = scalar_lea.vmem %s5, %s324
      %s326 = smul.u32 2, %s23
      %p327 = scmp.lt.s32.totalorder %s22, 1
      %s328 = scalar_select %p327, %s22, 1
      %p329 = scmp.lt.s32.totalorder %s326, 1
      %s330 = scalar_select %p329, %s326, 1
      %s331 = smul.addr %s328, 2
      %s332 = sadd.s32 %s330, %s331
      %s333 = smul.addr %s332, 4
      %s334 = scalar_lea.vmem %s0, %s333
      %s335 = smul.u32 2, %s23
      %p336 = scmp.lt.s32.totalorder %s24, 1
      %s337 = scalar_select %p336, %s24, 1
      %s338 = smul.addr %s337, 2
      %s339 = smul.addr %s338, 4
      %s340 = scalar_lea.vmem %s1, %s339
      %p341 = scmp.lt.s32.totalorder %s24, 1
      %s342 = scalar_select %p341, %s24, 1
      %s343 = smul.addr %s342, 2
      %s344 = smul.addr %s343, 8
      %s345 = scalar_lea.vmem %s2, %s344
      %s346 = smul.u32 2, %s23
      %p347 = scmp.lt.s32.totalorder %s24, 1
      %s348 = scalar_select %p347, %s24, 1
      %p349 = scmp.lt.s32.totalorder %s22, 1
      %s350 = scalar_select %p349, %s22, 1
      %p351 = scmp.lt.s32.totalorder %s346, 1
      %s352 = scalar_select %p351, %s346, 1
      %s353 = smul.addr %s350, 2
      %s354 = sadd.s32 %s352, %s353
      %s355 = smul.addr %s348, 4
      %s356 = sadd.s32 %s354, %s355
      %s357 = smul.addr %s356, 2
      %s358 = scalar_lea.vmem %s3, %s357
      %s359 = smul.u32 2, %s23
      %s360 = smul.u32 2, %s23
      %p361 = scmp.lt.s32.totalorder %s24, 1
      %s362 = scalar_select %p361, %s24, 1
      %p363 = scmp.lt.s32.totalorder %s22, 1
      %s364 = scalar_select %p363, %s22, 1
      %p365 = scmp.lt.s32.totalorder %s360, 1
      %s366 = scalar_select %p365, %s360, 1
      %s367 = smul.addr %s364, 2
      %s368 = sadd.s32 %s366, %s367
      %s369 = smul.addr %s362, 4
      %s370 = sadd.s32 %s368, %s369
      %s371 = smul.addr %s370, 2
      %s372 = scalar_lea.vmem %s4, %s371
      %s373 = smul.u32 2, %s23
      %s374 = smul.u32 2, %s23
      %p375 = scmp.lt.s32.totalorder %s24, 1
      %s376 = scalar_select %p375, %s24, 1
      %p377 = scmp.lt.s32.totalorder %s22, 1
      %s378 = scalar_select %p377, %s22, 1
      %p379 = scmp.lt.s32.totalorder %s374, 1
      %s380 = scalar_select %p379, %s374, 1
      %s381 = smul.addr %s378, 2
      %s382 = sadd.s32 %s380, %s381
      %s383 = smul.addr %s376, 4
      %s384 = sadd.s32 %s382, %s383
      %s385 = smul.addr %s384, 2
      %s386 = scalar_lea.vmem %s5, %s385
      %s387 = smul.u32 2, %s23
      %v389 = vld [vmem:[%s334] sm:$0xff]
      %v390 = vld [vmem:[%s340] sm:$0x3]
      %v391 = vld [vmem:[%s345] sm:$0xf]
      %393 = vset.pattern.permute.xlu0 0
      %394 = vperm.xlu0 %393, %v391
      %v395 = vpop.permute.xlu0 %394
      %v398 = vunpack.c.l.b16 %v389
      %v399 = vunpack.c.h.b16 %v389
      %v400 = vpack.c.b16 %v398, %v398
      %v401 = vpack.c.b16 %v399, %v399
      %vm402 = vcmask 64512
      %v404 = vsel %vm402, %v390, 0
      %vm406 = vcmask 1043456
      %v408 = vsel %vm406, %v400, 0
      %v411 = vsel %vm406, %v401, 0
      %413 = vmatpush.bf16.msra.mxu0 0
      %414 = vmatpush.bf16.msra.mxu0 0
      %415 = vmatpush.bf16.msra.mxu0 0
      %416 = vmatpush.bf16.msra.mxu0 0
      %417 = vmatpush.bf16.msra.mxu0 0
      %418 = vmatpush.bf16.msra.mxu0 0
      %419 = vmatpush.bf16.msra.mxu0 0
      %420 = vmatpush.bf16.msra.mxu0 %v408
      %421 = vmatmul.bf16.gmra.mxu0 %v404
      %v422 = vpop.f32.mrf.mxu0
      %v423 = vadd.f32 %v395, %v422
      %v424 = vpop.f32.mrf.mxu0
      %425 = vdwg.mxu0
      %426 = vmatpush.bf16.msra.mxu0 0
      %427 = vmatpush.bf16.msra.mxu0 0
      %428 = vmatpush.bf16.msra.mxu0 0
      %429 = vmatpush.bf16.msra.mxu0 0
      %430 = vmatpush.bf16.msra.mxu0 0
      %431 = vmatpush.bf16.msra.mxu0 0
      %432 = vmatpush.bf16.msra.mxu0 0
      %433 = vmatpush.bf16.msra.mxu0 %v411
      %434 = vmatmul.bf16.gmra.mxu0 %v404
      %v435 = vpop.f32.mrf.mxu0
      %v436 = vadd.f32 %v395, %v435
      %v437 = vpop.f32.mrf.mxu0
      %438 = vdwg.mxu0
      %v439 = vpack.c.bf16 %v436, %v423
      %v441 = vrot.slane %v439, 2
      %vm442 = vcmask 1041408
      %v445 = vsel %vm442, %v439, %v441
      %447 = vst [vmem:[%s358] sm:$0xf] %v445
      %v448 = vld [vmem:[%s340] sm:$0xc]
      %v449 = vld [vmem:[%s345 + $0x4] sm:$0xf]
      %451 = vset.pattern.permute.xlu0 0
      %452 = vperm.xlu0 %451, %v449
      %v453 = vpop.permute.xlu0 %452
      %v456 = vunpack.c.l.b16 %v448
      %v457 = vpack.c.b16 %v456, %v456
      %v458 = vrot.slane %v457, 2
      %v460 = vsel %vm402, %v458, 0
      %462 = vmatpush.bf16.msra.mxu0 0
      %463 = vmatpush.bf16.msra.mxu0 0
      %464 = vmatpush.bf16.msra.mxu0 0
      %465 = vmatpush.bf16.msra.mxu0 0
      %466 = vmatpush.bf16.msra.mxu0 0
      %467 = vmatpush.bf16.msra.mxu0 0
      %468 = vmatpush.bf16.msra.mxu0 0
      %469 = vmatpush.bf16.msra.mxu0 %v408
      %470 = vmatmul.bf16.gmra.mxu0 %v460
      %v471 = vpop.f32.mrf.mxu0
      %v472 = vadd.f32 %v453, %v471
      %v473 = vpop.f32.mrf.mxu0
      %474 = vdwg.mxu0
      %475 = vmatpush.bf16.msra.mxu0 0
      %476 = vmatpush.bf16.msra.mxu0 0
      %477 = vmatpush.bf16.msra.mxu0 0
      %478 = vmatpush.bf16.msra.mxu0 0
      %479 = vmatpush.bf16.msra.mxu0 0
      %480 = vmatpush.bf16.msra.mxu0 0
      %481 = vmatpush.bf16.msra.mxu0 0
      %482 = vmatpush.bf16.msra.mxu0 %v411
      %483 = vmatmul.bf16.gmra.mxu0 %v460
      %v484 = vpop.f32.mrf.mxu0
      %v485 = vadd.f32 %v453, %v484
      %v486 = vpop.f32.mrf.mxu0
      %487 = vdwg.mxu0
      %v488 = vpack.c.bf16 %v485, %v472
      %v490 = vrot.slane %v488, 2
      %v493 = vsel %vm442, %v488, %v490
      %495 = vst [vmem:[%s372] sm:$0xf] %v493
      %v496 = vld [vmem:[%s340 + $0x4] sm:$0x3]
      %v497 = vld [vmem:[%s345 + $0x8] sm:$0xf]
      %499 = vset.pattern.permute.xlu0 0
      %500 = vperm.xlu0 %499, %v497
      %v501 = vpop.permute.xlu0 %500
      %v504 = vsel %vm402, %v496, 0
      %506 = vmatpush.bf16.msra.mxu0 0
      %507 = vmatpush.bf16.msra.mxu0 0
      %508 = vmatpush.bf16.msra.mxu0 0
      %509 = vmatpush.bf16.msra.mxu0 0
      %510 = vmatpush.bf16.msra.mxu0 0
      %511 = vmatpush.bf16.msra.mxu0 0
      %512 = vmatpush.bf16.msra.mxu0 0
      %513 = vmatpush.bf16.msra.mxu0 %v408
      %514 = vmatmul.bf16.gmra.mxu0 %v504
      %v515 = vpop.f32.mrf.mxu0
      %v516 = vadd.f32 %v501, %v515
      %v517 = vpop.f32.mrf.mxu0
      %518 = vdwg.mxu0
      %519 = vmatpush.bf16.msra.mxu0 0
      %520 = vmatpush.bf16.msra.mxu0 0
      %521 = vmatpush.bf16.msra.mxu0 0
      %522 = vmatpush.bf16.msra.mxu0 0
      %523 = vmatpush.bf16.msra.mxu0 0
      %524 = vmatpush.bf16.msra.mxu0 0
      %525 = vmatpush.bf16.msra.mxu0 0
      %526 = vmatpush.bf16.msra.mxu0 %v411
      %527 = vmatmul.bf16.gmra.mxu0 %v504
      %v528 = vpop.f32.mrf.mxu0
      %v529 = vadd.f32 %v501, %v528
      %v530 = vpop.f32.mrf.mxu0
      %531 = vdwg.mxu0
      %v532 = vpack.c.bf16 %v529, %v516
      %v534 = vrot.slane %v532, 2
      %v537 = vsel %vm442, %v532, %v534
      %539 = vst [vmem:[%s386] sm:$0xf] %v537
      %s540 = smul.u32 2, %s23
      %p541 = scmp.lt.s32.totalorder %s24, 1
      %s542 = scalar_select %p541, %s24, 1
      %p543 = scmp.lt.s32.totalorder %s22, 1
      %s544 = scalar_select %p543, %s22, 1
      %p545 = scmp.lt.s32.totalorder %s540, 1
      %s546 = scalar_select %p545, %s540, 1
      %s547 = smul.addr %s544, 2
      %s548 = sadd.s32 %s546, %s547
      %s549 = smul.addr %s542, 4
      %s550 = sadd.s32 %s548, %s549
      %s551 = smul.addr %s550, 2
      %s552 = scalar_lea.vmem %s3, %s551
      %s553 = smul.u32 2, %s23
      %p554 = scmp.lt.s32.totalorder %s24, 1
      %s555 = scalar_select %p554, %s24, 1
      %p556 = scmp.lt.s32.totalorder %s22, 1
      %s557 = scalar_select %p556, %s22, 1
      %p558 = scmp.lt.s32.totalorder %s553, 1
      %s559 = scalar_select %p558, %s553, 1
      %s560 = smul.addr %s557, 2
      %s561 = sadd.s32 %s559, %s560
      %s562 = smul.addr %s555, 4
      %s563 = sadd.s32 %s561, %s562
      %s564 = smul.addr %s563, 2
      %s565 = scalar_lea.vmem %s4, %s564
      %s566 = smul.u32 2, %s23
      %p567 = scmp.lt.s32.totalorder %s24, 1
      %s568 = scalar_select %p567, %s24, 1
      %p569 = scmp.lt.s32.totalorder %s22, 1
      %s570 = scalar_select %p569, %s22, 1
      %p571 = scmp.lt.s32.totalorder %s566, 1
      %s572 = scalar_select %p571, %s566, 1
      %s573 = smul.addr %s570, 2
      %s574 = sadd.s32 %s572, %s573
      %s575 = smul.addr %s568, 4
      %s576 = sadd.s32 %s574, %s575
      %s577 = smul.addr %s576, 2
      %s578 = scalar_lea.vmem %s5, %s577
      // Predicated region
      $region33: #{_lambda_.5} parent=31 // pred_check
        %p579 = pneg %p138
      $region34: #{_lambda_.5} parent=31 // pred_check_branch
        %581 = sbr.rel (%p579) target = $region36
      $region35: #{_lambda_.5} parent=31 // pred_region
        %s582 = smul.u32 2, %s23
      $region36: #{_lambda_.5} parent=31 // pred_fallthru
        _
      // Predicated region
      $region37: #{_lambda_.5} parent=31 // pred_check
        %p583 = pneg %p168
      $region38: #{_lambda_.5} parent=31 // pred_check_branch
        %585 = sbr.rel (%p583) target = $region40
      $region39: #{_lambda_.5} parent=31 // pred_region
        %s586 = smul.u32 2, %s23
      $region40: #{_lambda_.5} parent=31 // pred_fallthru
        _
      // Predicated region
      $region41: #{_lambda_.5} parent=31 // pred_check
        %p587 = pneg %p198
      $region42: #{_lambda_.5} parent=31 // pred_check_branch
        %589 = sbr.rel (%p587) target = $region44
      $region43: #{_lambda_.5} parent=31 // pred_region
        %s590 = smul.u32 2, %s23
      $region44: #{_lambda_.5} parent=31 // pred_fallthru
        _
    $region32: #{_lambda_.5} parent=5 // pred_fallthru
      _
    %p591 = scmp.le.s32.totalorder 2, %s12
    // Predicated region
    $region45: #{_lambda_.5} parent=5 // pred_check
      %p592 = pneg %p591
    $region46: #{_lambda_.5} parent=5 // pred_check_branch
      %594 = sbr.rel (%p592) target = $region48
    $region47: #{_lambda_.5} parent=5 // pred_region
      %s595 = ssub.s32 %s12, 2
      // Predicated region
      $region49: #{_lambda_.5} parent=47 // pred_check
        %p596 = pneg %p144
      $region50: #{_lambda_.5} parent=47 // pred_check_branch
        %598 = sbr.rel (%p596) target = $region52
      $region51: #{_lambda_.5} parent=47 // pred_region
        %s599 = smul.u32 2, %s26
        %p600 = scmp.lt.s32.totalorder %s27, 1
        %s601 = scalar_select %p600, %s27, 1
        %p602 = scmp.lt.s32.totalorder %s25, 1
        %s603 = scalar_select %p602, %s25, 1
        %p604 = scmp.lt.s32.totalorder %s599, 1
        %s605 = scalar_select %p604, %s599, 1
        %s606 = smul.addr %s603, 2
        %s607 = sadd.s32 %s605, %s606
        %s608 = smul.addr %s601, 4
        %s609 = sadd.s32 %s607, %s608
        %s610 = smul.addr %s609, 2
        %s611 = scalar_lea.vmem %s3, %s610
      $region52: #{_lambda_.5} parent=47 // pred_fallthru
        _
      // Predicated region
      $region53: #{_lambda_.5} parent=47 // pred_check
        %p612 = pneg %p174
      $region54: #{_lambda_.5} parent=47 // pred_check_branch
        %614 = sbr.rel (%p612) target = $region56
      $region55: #{_lambda_.5} parent=47 // pred_region
        %s615 = smul.u32 2, %s26
        %p616 = scmp.lt.s32.totalorder %s27, 1
        %s617 = scalar_select %p616, %s27, 1
        %p618 = scmp.lt.s32.totalorder %s25, 1
        %s619 = scalar_select %p618, %s25, 1
        %p620 = scmp.lt.s32.totalorder %s615, 1
        %s621 = scalar_select %p620, %s615, 1
        %s622 = smul.addr %s619, 2
        %s623 = sadd.s32 %s621, %s622
        %s624 = smul.addr %s617, 4
        %s625 = sadd.s32 %s623, %s624
        %s626 = smul.addr %s625, 2
        %s627 = scalar_lea.vmem %s4, %s626
      $region56: #{_lambda_.5} parent=47 // pred_fallthru
        _
      // Predicated region
      $region57: #{_lambda_.5} parent=47 // pred_check
        %p628 = pneg %p204
      $region58: #{_lambda_.5} parent=47 // pred_check_branch
        %630 = sbr.rel (%p628) target = $region60
      $region59: #{_lambda_.5} parent=47 // pred_region
        %s631 = smul.u32 2, %s26
        %p632 = scmp.lt.s32.totalorder %s27, 1
        %s633 = scalar_select %p632, %s27, 1
        %p634 = scmp.lt.s32.totalorder %s25, 1
        %s635 = scalar_select %p634, %s25, 1
        %p636 = scmp.lt.s32.totalorder %s631, 1
        %s637 = scalar_select %p636, %s631, 1
        %s638 = smul.addr %s635, 2
        %s639 = sadd.s32 %s637, %s638
        %s640 = smul.addr %s633, 4
        %s641 = sadd.s32 %s639, %s640
        %s642 = smul.addr %s641, 2
        %s643 = scalar_lea.vmem %s5, %s642
      $region60: #{_lambda_.5} parent=47 // pred_fallthru
        _
    $region48: #{_lambda_.5} parent=5 // pred_fallthru
      _
  $region6: #{_lambda_.5} parent=0 // loop_footer
    %s16 = sadd.s32 1, %s12
  $region7: #{_lambda_.5} parent=0 // loop_footer_branch
    %11 = sbr.rel target = $region3
  $region8: #{_lambda_.5} parent=0 // loop_exit
    _

// kernel: _lambda_.6
$region0: #{_lambda_.6}
  #allocation0 [shape = 'u32[]', space=smem, size = 0x4, offset = 0x4, fixed_abs, tag = 'smem constant byte address 0x4 - core index']
  #allocation1 [shape = 'u32[72,128]{1,0:T(1,128)}', space=vmem, size = 0x9000, scoped, tag = 'internal scratch']
  %s0 = inlined_call_operand.vmem [shape: bf16[4,256,4], index: 0, kind: input, shape index: {}]
  %s1 = inlined_call_operand.vmem [shape: bf16[4,4,256], index: 1, kind: input, shape index: {}]
  %s2 = inlined_call_operand.vmem [shape: f32[4,1,256], index: 2, kind: output, shape index: {0}]
  %s3 = inlined_call_operand.vmem [shape: f32[4,1,256], index: 3, kind: output, shape index: {1}]
  %4 = xla_tuple %s2, %s3
  %s5 = sld [smem:[#allocation0]]
  $region53: #{_lambda_.6} parent=0
    _
  %s7 = ssub.s32 1, %s5
  %s8 = scalar_select 0, %s7, %s5
  loop: start=0, step=1, limit=6
  $region2: #{_lambda_.6} parent=0 // loop_pre_header
    _
  $region3: #{_lambda_.6} parent=0 // loop_header
    %s10 = sphi 0, %s14
    %p11 = scmp.ge.s32.totalorder %s10, 6
    %s17 = sphi 0, %s36
    %s18 = sphi 0, %s32
    %s19 = sphi 0, %s28
    %s20 = sphi 0, %s17
    %s21 = sphi 0, %s18
    %s22 = sphi 0, %s19
    %s23 = sphi 0, %s20
    %s24 = sphi 0, %s21
    %s25 = sphi 0, %s22
    %s41 = sphi 0, %s43
    %s44 = sphi 0, %s41
    %s45 = sphi 0, %s44
    %s61 = sphi 0, %s45
    %s69 = sphi 0, %s71
    %s72 = sphi 0, %s69
    %s73 = sphi 0, %s72
    %s89 = sphi 0, %s73
    %s97 = sphi 0, %s99
    %s100 = sphi 0, %s97
    %s101 = sphi 0, %s100
    %s117 = sphi 0, %s101
    %s125 = sphi 0, %s127
    %s128 = sphi 0, %s125
    %s129 = sphi 0, %s128
    %s145 = sphi 0, %s129
  $region4: #{_lambda_.6} parent=0 // loop_header_branch
    %13 = sbr.rel (%p11) target = $region8
  $region5: #{_lambda_.6} parent=0 // loop_body
    %s15 = ssub.s32 %s10, 1
    %s16 = ssub.s32 %s10, 2
    %s26 = sadd.s32 1, %s19
    %p27 = scmp.ge.s32.totalorder %s26, 1
    %s28 = scalar_select %p27, 0, %s26
    %s29 = sadd.s32 1, %s18
    %s30 = scalar_select %p27, %s29, %s18
    %p31 = scmp.ge.s32.totalorder %s30, 1
    %s32 = scalar_select %p31, 0, %s30
    %s33 = sadd.s32 1, %s17
    %s34 = scalar_select %p31, %s33, %s17
    %p35 = scmp.ge.s32.totalorder %s34, 4
    %s36 = scalar_select %p35, 0, %s34
    %s37 = ssub.s32 %s17, %s36
    %s38 = ssub.s32 %s19, %s28
    %s39 = sor.u32 %s37, %s38
    %p40 = scmp.eq.s32.totalorder %s39, 0
    %s42 = sadd.s32 %s41, 1
    %s43 = scalar_select %p40, %s41, %s42
    %p46 = pneg %p40
    %p47 = scmp.eq.s32.totalorder %s10, 3
    %p48 = por %p46, %p47
    %p49 = scmp.ne.s32.totalorder %s41, %s44
    %p50 = scmp.eq.s32.totalorder %s10, 0
    %p51 = por %p49, %p50
    %p52 = scmp.ne.s32.totalorder %s41, %s44
    %p53 = scmp.eq.s32.totalorder %s15, 3
    %p54 = por %p52, %p53
    %p55 = scmp.ne.s32.totalorder %s44, %s45
    %p56 = scmp.eq.s32.totalorder %s15, 0
    %p57 = por %p55, %p56
    %p58 = scmp.ne.s32.totalorder %s44, %s45
    %p59 = scmp.eq.s32.totalorder %s16, 3
    %p60 = por %p58, %p59
    %p62 = scmp.ne.s32.totalorder %s45, %s61
    %p63 = scmp.eq.s32.totalorder %s16, 0
    %p64 = por %p62, %p63
    %s65 = ssub.s32 %s17, %s36
    %s66 = ssub.s32 %s18, %s32
    %s67 = sor.u32 %s65, %s66
    %p68 = scmp.eq.s32.totalorder %s67, 0
    %s70 = sadd.s32 %s69, 1
    %s71 = scalar_select %p68, %s69, %s70
    %p74 = pneg %p68
    %p75 = scmp.eq.s32.totalorder %s10, 3
    %p76 = por %p74, %p75
    %p77 = scmp.ne.s32.totalorder %s69, %s72
    %p78 = scmp.eq.s32.totalorder %s10, 0
    %p79 = por %p77, %p78
    %p80 = scmp.ne.s32.totalorder %s69, %s72
    %p81 = scmp.eq.s32.totalorder %s15, 3
    %p82 = por %p80, %p81
    %p83 = scmp.ne.s32.totalorder %s72, %s73
    %p84 = scmp.eq.s32.totalorder %s15, 0
    %p85 = por %p83, %p84
    %p86 = scmp.ne.s32.totalorder %s72, %s73
    %p87 = scmp.eq.s32.totalorder %s16, 3
    %p88 = por %p86, %p87
    %p90 = scmp.ne.s32.totalorder %s73, %s89
    %p91 = scmp.eq.s32.totalorder %s16, 0
    %p92 = por %p90, %p91
    %s93 = ssub.s32 %s17, %s36
    %s94 = ssub.s32 %s18, %s32
    %s95 = sor.u32 %s93, %s94
    %p96 = scmp.eq.s32.totalorder %s95, 0
    %s98 = sadd.s32 %s97, 1
    %s99 = scalar_select %p96, %s97, %s98
    %p102 = pneg %p96
    %p103 = scmp.eq.s32.totalorder %s10, 3
    %p104 = por %p102, %p103
    %p105 = scmp.ne.s32.totalorder %s97, %s100
    %p106 = scmp.eq.s32.totalorder %s10, 0
    %p107 = por %p105, %p106
    %p108 = scmp.ne.s32.totalorder %s97, %s100
    %p109 = scmp.eq.s32.totalorder %s15, 3
    %p110 = por %p108, %p109
    %p111 = scmp.ne.s32.totalorder %s100, %s101
    %p112 = scmp.eq.s32.totalorder %s15, 0
    %p113 = por %p111, %p112
    %p114 = scmp.ne.s32.totalorder %s100, %s101
    %p115 = scmp.eq.s32.totalorder %s16, 3
    %p116 = por %p114, %p115
    %p118 = scmp.ne.s32.totalorder %s101, %s117
    %p119 = scmp.eq.s32.totalorder %s16, 0
    %p120 = por %p118, %p119
    %s121 = ssub.s32 %s17, %s36
    %s122 = ssub.s32 %s18, %s32
    %s123 = sor.u32 %s121, %s122
    %p124 = scmp.eq.s32.totalorder %s123, 0
    %s126 = sadd.s32 %s125, 1
    %s127 = scalar_select %p124, %s125, %s126
    %p130 = pneg %p124
    %p131 = scmp.eq.s32.totalorder %s10, 3
    %p132 = por %p130, %p131
    %p133 = scmp.ne.s32.totalorder %s125, %s128
    %p134 = scmp.eq.s32.totalorder %s10, 0
    %p135 = por %p133, %p134
    %p136 = scmp.ne.s32.totalorder %s125, %s128
    %p137 = scmp.eq.s32.totalorder %s15, 3
    %p138 = por %p136, %p137
    %p139 = scmp.ne.s32.totalorder %s128, %s129
    %p140 = scmp.eq.s32.totalorder %s15, 0
    %p141 = por %p139, %p140
    %p142 = scmp.ne.s32.totalorder %s128, %s129
    %p143 = scmp.eq.s32.totalorder %s16, 3
    %p144 = por %p142, %p143
    %p146 = scmp.ne.s32.totalorder %s129, %s145
    %p147 = scmp.eq.s32.totalorder %s16, 0
    %p148 = por %p146, %p147
    %p149 = scmp.le.s32.totalorder 1, %s10
    %p150 = scmp.lt.s32.totalorder %s10, 5
    %p151 = pnand %p149, %p150
    %p152 = pneg %p151
    // Predicated region
    $region9: #{_lambda_.6} parent=5 // pred_check
      _
    $region10: #{_lambda_.6} parent=5 // pred_check_branch
      %154 = sbr.rel (%p151) target = $region12
    $region11: #{_lambda_.6} parent=5 // pred_region
      %s155 = ssub.s32 %s10, 1
    $region12: #{_lambda_.6} parent=5 // pred_fallthru
      _
    %p156 = scmp.lt.s32.totalorder %s10, 4
    // Predicated region
    $region13: #{_lambda_.6} parent=5 // pred_check
      %p157 = pneg %p156
    $region14: #{_lambda_.6} parent=5 // pred_check_branch
      %159 = sbr.rel (%p157) target = $region16
    $region15: #{_lambda_.6} parent=5 // pred_region
      // Predicated region
      $region17: #{_lambda_.6} parent=15 // pred_check
        %p160 = pneg %p51
      $region18: #{_lambda_.6} parent=15 // pred_check_branch
        %162 = sbr.rel (%p160) target = $region20
      $region19: #{_lambda_.6} parent=15 // pred_region
        %s163 = smul.u32 32, %s19
        %p164 = scmp.lt.s32.totalorder %s17, 3
        %s165 = scalar_select %p164, %s17, 3
        %p166 = scmp.lt.s32.totalorder %s163, 31
        %s167 = scalar_select %p166, %s163, 31
        %s168 = smul.addr %s165, 32
        %s169 = sadd.s32 %s167, %s168
        %s170 = smul.addr %s169, 4
        %s171 = scalar_lea.vmem %s0, %s170
        %s172 = smul.u32 32, %s19
      $region20: #{_lambda_.6} parent=15 // pred_fallthru
        _
      // Predicated region
      $region21: #{_lambda_.6} parent=15 // pred_check
        %p173 = pneg %p79
      $region22: #{_lambda_.6} parent=15 // pred_check_branch
        %175 = sbr.rel (%p173) target = $region24
      $region23: #{_lambda_.6} parent=15 // pred_region
        %s176 = smul.u32 2, %s18
        %p177 = scmp.lt.s32.totalorder %s17, 3
        %s178 = scalar_select %p177, %s17, 3
        %p179 = scmp.lt.s32.totalorder %s176, 1
        %s180 = scalar_select %p179, %s176, 1
        %s181 = smul.addr %s178, 2
        %s182 = sadd.s32 %s180, %s181
        %s183 = smul.addr %s182, 2
        %s184 = scalar_lea.vmem %s1, %s183
        %s185 = smul.u32 2, %s18
      $region24: #{_lambda_.6} parent=15 // pred_fallthru
        _
    $region16: #{_lambda_.6} parent=5 // pred_fallthru
      _
    %p186 = scmp.le.s32.totalorder 1, %s10
    %p187 = scmp.lt.s32.totalorder %s10, 5
    %p188 = pnand %p186, %p187
    %p189 = pneg %p188
    // Predicated region
    $region25: #{_lambda_.6} parent=5 // pred_check
      _
    $region26: #{_lambda_.6} parent=5 // pred_check_branch
      %191 = sbr.rel (%p188) target = $region28
    $region27: #{_lambda_.6} parent=5 // pred_region
      %s192 = ssub.s32 %s10, 1
      %s193 = smul.u32 32, %s22
      %p194 = scmp.lt.s32.totalorder %s20, 3
      %s195 = scalar_select %p194, %s20, 3
      %p196 = scmp.lt.s32.totalorder %s193, 31
      %s197 = scalar_select %p196, %s193, 31
      %s198 = smul.addr %s195, 32
      %s199 = sadd.s32 %s197, %s198
      %s200 = smul.addr %s199, 4
      %s201 = scalar_lea.vmem %s0, %s200
      %p202 = pneg %p57
      %p203 = pneg %p54
      %s204 = smul.u32 2, %s21
      %p205 = scmp.lt.s32.totalorder %s20, 3
      %s206 = scalar_select %p205, %s20, 3
      %p207 = scmp.lt.s32.totalorder %s204, 1
      %s208 = scalar_select %p207, %s204, 1
      %s209 = smul.addr %s206, 2
      %s210 = sadd.s32 %s208, %s209
      %s211 = smul.addr %s210, 2
      %s212 = scalar_lea.vmem %s1, %s211
      %p213 = pneg %p85
      %p214 = pneg %p82
      %p215 = pneg %p113
      %p216 = pneg %p110
      %s217 = smul.u32 2, %s21
      %p218 = scmp.lt.s32.totalorder %s20, 3
      %s219 = scalar_select %p218, %s20, 3
      %p220 = scmp.lt.s32.totalorder %s217, 1
      %s221 = scalar_select %p220, %s217, 1
      %s222 = smul.addr %s219, 2
      %s223 = sadd.s32 %s221, %s222
      %s224 = scalar_lea.vmem %s2, %s223
      %p225 = pneg %p141
      %p226 = pneg %p138
      %s227 = smul.u32 2, %s21
      %p228 = scmp.lt.s32.totalorder %s20, 3
      %s229 = scalar_select %p228, %s20, 3
      %p230 = scmp.lt.s32.totalorder %s227, 1
      %s231 = scalar_select %p230, %s227, 1
      %s232 = smul.addr %s229, 2
      %s233 = sadd.s32 %s231, %s232
      %s234 = scalar_lea.vmem %s3, %s233
      %s235 = smul.u32 32, %s22
      %p236 = scmp.lt.s32.totalorder %s20, 3
      %s237 = scalar_select %p236, %s20, 3
      %p238 = scmp.lt.s32.totalorder %s235, 31
      %s239 = scalar_select %p238, %s235, 31
      %s240 = smul.addr %s237, 32
      %s241 = sadd.s32 %s239, %s240
      %s242 = smul.addr %s241, 4
      %s243 = scalar_lea.vmem %s0, %s242
      %s244 = smul.u32 32, %s22
      %s245 = smul.u32 2, %s21
      %p246 = scmp.lt.s32.totalorder %s20, 3
      %s247 = scalar_select %p246, %s20, 3
      %p248 = scmp.lt.s32.totalorder %s245, 1
      %s249 = scalar_select %p248, %s245, 1
      %s250 = smul.addr %s247, 2
      %s251 = sadd.s32 %s249, %s250
      %s252 = smul.addr %s251, 2
      %s253 = scalar_lea.vmem %s1, %s252
      %s254 = smul.u32 2, %s21
      %s255 = smul.u32 2, %s21
      %p256 = scmp.lt.s32.totalorder %s20, 3
      %s257 = scalar_select %p256, %s20, 3
      %p258 = scmp.lt.s32.totalorder %s255, 1
      %s259 = scalar_select %p258, %s255, 1
      %s260 = smul.addr %s257, 2
      %s261 = sadd.s32 %s259, %s260
      %s262 = scalar_lea.vmem %s2, %s261
      %s263 = smul.u32 2, %s21
      %s264 = smul.u32 2, %s21
      %p265 = scmp.lt.s32.totalorder %s20, 3
      %s266 = scalar_select %p265, %s20, 3
      %p267 = scmp.lt.s32.totalorder %s264, 1
      %s268 = scalar_select %p267, %s264, 1
      %s269 = smul.addr %s266, 2
      %s270 = sadd.s32 %s268, %s269
      %s271 = scalar_lea.vmem %s3, %s270
      %s272 = smul.u32 2, %s21
      %v274 = vld [vmem:[%s243] sm:$0xf]
      %v275 = vld [vmem:[%s243 + $0x4] sm:$0xf]
      %v276 = vld [vmem:[%s243 + $0x8] sm:$0xf]
      %v277 = vld [vmem:[%s243 + $0xc] sm:$0xf]
      %v278 = vld [vmem:[%s243 + $0x10] sm:$0xf]
      %v279 = vld [vmem:[%s243 + $0x14] sm:$0xf]
      %v280 = vld [vmem:[%s243 + $0x18] sm:$0xf]
      %v281 = vld [vmem:[%s243 + $0x1c] sm:$0xf]
      %v282 = vld [vmem:[%s243 + $0x20] sm:$0xf]
      %v283 = vld [vmem:[%s243 + $0x24] sm:$0xf]
      %v284 = vld [vmem:[%s243 + $0x28] sm:$0xf]
      %v285 = vld [vmem:[%s243 + $0x2c] sm:$0xf]
      %v286 = vld [vmem:[%s243 + $0x30] sm:$0xf]
      %v287 = vld [vmem:[%s243 + $0x34] sm:$0xf]
      %v288 = vld [vmem:[%s243 + $0x38] sm:$0xf]
      %v289 = vld [vmem:[%s243 + $0x3c] sm:$0xf]
      %v290 = vld [vmem:[%s243 + $0x40] sm:$0xf]
      %v291 = vld [vmem:[%s243 + $0x44] sm:$0xf]
      %v292 = vld [vmem:[%s243 + $0x48] sm:$0xf]
      %v293 = vld [vmem:[%s243 + $0x4c] sm:$0xf]
      %v294 = vld [vmem:[%s243 + $0x50] sm:$0xf]
      %v295 = vld [vmem:[%s243 + $0x54] sm:$0xf]
      %v296 = vld [vmem:[%s243 + $0x58] sm:$0xf]
      %v297 = vld [vmem:[%s243 + $0x5c] sm:$0xf]
      %v298 = vld [vmem:[%s243 + $0x60] sm:$0xf]
      %v299 = vld [vmem:[%s243 + $0x64] sm:$0xf]
      %v300 = vld [vmem:[%s243 + $0x68] sm:$0xf]
      %v301 = vld [vmem:[%s243 + $0x6c] sm:$0xf]
      %v302 = vld [vmem:[%s243 + $0x70] sm:$0xf]
      %v303 = vld [vmem:[%s243 + $0x74] sm:$0xf]
      %v304 = vld [vmem:[%s243 + $0x78] sm:$0xf]
      %v305 = vld [vmem:[%s243 + $0x7c] sm:$0xf]
      %v306 = vld [vmem:[%s253] sm:$0xf]
      %v339 = vunpack.c.l.b16 %v274
      %v340 = vunpack.c.l.b16 %v275
      %v341 = vunpack.c.l.b16 %v276
      %v342 = vunpack.c.l.b16 %v277
      %v343 = vunpack.c.l.b16 %v278
      %v344 = vunpack.c.l.b16 %v279
      %v345 = vunpack.c.l.b16 %v280
      %v346 = vunpack.c.l.b16 %v281
      %v347 = vunpack.c.l.b16 %v282
      %v348 = vunpack.c.l.b16 %v283
      %v349 = vunpack.c.l.b16 %v284
      %v350 = vunpack.c.l.b16 %v285
      %v351 = vunpack.c.l.b16 %v286
      %v352 = vunpack.c.l.b16 %v287
      %v353 = vunpack.c.l.b16 %v288
      %v354 = vunpack.c.l.b16 %v289
      %v355 = vunpack.c.l.b16 %v290
      %v356 = vunpack.c.l.b16 %v291
      %v357 = vunpack.c.l.b16 %v292
      %v358 = vunpack.c.l.b16 %v293
      %v359 = vunpack.c.l.b16 %v294
      %v360 = vunpack.c.l.b16 %v295
      %v361 = vunpack.c.l.b16 %v296
      %v362 = vunpack.c.l.b16 %v297
      %v363 = vunpack.c.l.b16 %v298
      %v364 = vunpack.c.l.b16 %v299
      %v365 = vunpack.c.l.b16 %v300
      %v366 = vunpack.c.l.b16 %v301
      %v367 = vunpack.c.l.b16 %v302
      %v368 = vunpack.c.l.b16 %v303
      %v369 = vunpack.c.l.b16 %v304
      %v370 = vunpack.c.l.b16 %v305
      %v371 = vpack.c.b16 %v340, %v339
      %v372 = vpack.c.b16 %v342, %v341
      %v373 = vpack.c.b16 %v344, %v343
      %v374 = vpack.c.b16 %v346, %v345
      %v375 = vpack.c.b16 %v348, %v347
      %v376 = vpack.c.b16 %v350, %v349
      %v377 = vpack.c.b16 %v352, %v351
      %v378 = vpack.c.b16 %v354, %v353
      %v379 = vpack.c.b16 %v356, %v355
      %v380 = vpack.c.b16 %v358, %v357
      %v381 = vpack.c.b16 %v360, %v359
      %v382 = vpack.c.b16 %v362, %v361
      %v383 = vpack.c.b16 %v364, %v363
      %v384 = vpack.c.b16 %v366, %v365
      %v385 = vpack.c.b16 %v368, %v367
      %v386 = vpack.c.b16 %v370, %v369
      %388 = vst [vmem:[#allocation1] ss:$4 sm:$0xff] %v306
      %v389 = vld.sshfl [vmem:[#allocation1] sm:$0xff pattern:$0x73625140]
      %v390 = vld.sshfl [vmem:[#allocation1 + $0x8] sm:$0xff pattern:$0x73625140]
      %vm391 = vcmask 31744
      %v393 = vsel %vm391, %v371, 0
      %v396 = vsel %vm391, %v372, 0
      %v399 = vsel %vm391, %v373, 0
      %v402 = vsel %vm391, %v374, 0
      %v405 = vsel %vm391, %v375, 0
      %v408 = vsel %vm391, %v376, 0
      %v411 = vsel %vm391, %v377, 0
      %v414 = vsel %vm391, %v378, 0
      %v417 = vsel %vm391, %v379, 0
      %v420 = vsel %vm391, %v380, 0
      %v423 = vsel %vm391, %v381, 0
      %v426 = vsel %vm391, %v382, 0
      %v429 = vsel %vm391, %v383, 0
      %v432 = vsel %vm391, %v384, 0
      %v435 = vsel %vm391, %v385, 0
      %v438 = vsel %vm391, %v386, 0
      %vm440 = vcmask 1041408
      %v441 = vsel %vm440, %v389, 0
      %v443 = vsel %vm440, %v390, 0
      %445 = vmatpush.bf16.msra.mxu0 0
      %446 = vmatpush.bf16.msra.mxu0 0
      %447 = vmatpush.bf16.msra.mxu0 0
      %448 = vmatpush.bf16.msra.mxu0 0
      %449 = vmatpush.bf16.msra.mxu0 0
      %450 = vmatpush.bf16.msra.mxu0 0
      %451 = vmatpush.bf16.msra.mxu0 0
      %452 = vmatpush.bf16.msra.mxu0 %v441
      %453 = vmatmul.bf16.gmra.mxu0 %v393
      %v454 = vpop.f32.mrf.mxu0
      %v455 = vadd.f32 0.0, %v454
      %v456 = vpop.f32.mrf.mxu0
      %v457 = vadd.f32 0.0, %v456
      %458 = vmatmul.bf16.gmra.mxu0 %v396
      %v459 = vpop.f32.mrf.mxu0
      %v460 = vadd.f32 0.0, %v459
      %v461 = vpop.f32.mrf.mxu0
      %v462 = vadd.f32 0.0, %v461
      %463 = vmatmul.bf16.gmra.mxu0 %v399
      %v464 = vpop.f32.mrf.mxu0
      %v465 = vadd.f32 0.0, %v464
      %v466 = vpop.f32.mrf.mxu0
      %v467 = vadd.f32 0.0, %v466
      %468 = vmatmul.bf16.gmra.mxu0 %v402
      %v469 = vpop.f32.mrf.mxu0
      %v470 = vadd.f32 0.0, %v469
      %v471 = vpop.f32.mrf.mxu0
      %v472 = vadd.f32 0.0, %v471
      %473 = vmatmul.bf16.gmra.mxu0 %v405
      %v474 = vpop.f32.mrf.mxu0
      %v475 = vadd.f32 0.0, %v474
      %v476 = vpop.f32.mrf.mxu0
      %v477 = vadd.f32 0.0, %v476
      %478 = vmatmul.bf16.gmra.mxu0 %v408
      %v479 = vpop.f32.mrf.mxu0
      %v480 = vadd.f32 0.0, %v479
      %v481 = vpop.f32.mrf.mxu0
      %v482 = vadd.f32 0.0, %v481
      %483 = vmatmul.bf16.gmra.mxu0 %v411
      %v484 = vpop.f32.mrf.mxu0
      %v485 = vadd.f32 0.0, %v484
      %v486 = vpop.f32.mrf.mxu0
      %v487 = vadd.f32 0.0, %v486
      %488 = vmatmul.bf16.gmra.mxu0 %v414
      %v489 = vpop.f32.mrf.mxu0
      %v490 = vadd.f32 0.0, %v489
      %v491 = vpop.f32.mrf.mxu0
      %v492 = vadd.f32 0.0, %v491
      %493 = vmatmul.bf16.gmra.mxu0 %v417
      %v494 = vpop.f32.mrf.mxu0
      %v495 = vadd.f32 0.0, %v494
      %v496 = vpop.f32.mrf.mxu0
      %v497 = vadd.f32 0.0, %v496
      %498 = vmatmul.bf16.gmra.mxu0 %v420
      %v499 = vpop.f32.mrf.mxu0
      %v500 = vadd.f32 0.0, %v499
      %v501 = vpop.f32.mrf.mxu0
      %v502 = vadd.f32 0.0, %v501
      %503 = vmatmul.bf16.gmra.mxu0 %v423
      %v504 = vpop.f32.mrf.mxu0
      %v505 = vadd.f32 0.0, %v504
      %v506 = vpop.f32.mrf.mxu0
      %v507 = vadd.f32 0.0, %v506
      %508 = vmatmul.bf16.gmra.mxu0 %v426
      %v509 = vpop.f32.mrf.mxu0
      %v510 = vadd.f32 0.0, %v509
      %v511 = vpop.f32.mrf.mxu0
      %v512 = vadd.f32 0.0, %v511
      %513 = vmatmul.bf16.gmra.mxu0 %v429
      %v514 = vpop.f32.mrf.mxu0
      %v515 = vadd.f32 0.0, %v514
      %v516 = vpop.f32.mrf.mxu0
      %v517 = vadd.f32 0.0, %v516
      %518 = vmatmul.bf16.gmra.mxu0 %v432
      %v519 = vpop.f32.mrf.mxu0
      %v520 = vadd.f32 0.0, %v519
      %v521 = vpop.f32.mrf.mxu0
      %v522 = vadd.f32 0.0, %v521
      %523 = vmatmul.bf16.gmra.mxu0 %v435
      %v524 = vpop.f32.mrf.mxu0
      %v525 = vadd.f32 0.0, %v524
      %v526 = vpop.f32.mrf.mxu0
      %v527 = vadd.f32 0.0, %v526
      %528 = vmatmul.bf16.gmra.mxu0 %v438
      %v529 = vpop.f32.mrf.mxu0
      %v530 = vadd.f32 0.0, %v529
      %v531 = vpop.f32.mrf.mxu0
      %v532 = vadd.f32 0.0, %v531
      %533 = vdwg.mxu0
      %534 = vmatpush.bf16.msra.mxu0 0
      %535 = vmatpush.bf16.msra.mxu0 0
      %536 = vmatpush.bf16.msra.mxu0 0
      %537 = vmatpush.bf16.msra.mxu0 0
      %538 = vmatpush.bf16.msra.mxu0 0
      %539 = vmatpush.bf16.msra.mxu0 0
      %540 = vmatpush.bf16.msra.mxu0 0
      %541 = vmatpush.bf16.msra.mxu0 %v443
      %542 = vmatmul.bf16.gmra.mxu0 %v393
      %v543 = vpop.f32.mrf.mxu0
      %v544 = vadd.f32 0.0, %v543
      %v545 = vpop.f32.mrf.mxu0
      %v546 = vadd.f32 0.0, %v545
      %547 = vmatmul.bf16.gmra.mxu0 %v396
      %v548 = vpop.f32.mrf.mxu0
      %v549 = vadd.f32 0.0, %v548
      %v550 = vpop.f32.mrf.mxu0
      %v551 = vadd.f32 0.0, %v550
      %552 = vmatmul.bf16.gmra.mxu0 %v399
      %v553 = vpop.f32.mrf.mxu0
      %v554 = vadd.f32 0.0, %v553
      %v555 = vpop.f32.mrf.mxu0
      %v556 = vadd.f32 0.0, %v555
      %557 = vmatmul.bf16.gmra.mxu0 %v402
      %v558 = vpop.f32.mrf.mxu0
      %v559 = vadd.f32 0.0, %v558
      %v560 = vpop.f32.mrf.mxu0
      %v561 = vadd.f32 0.0, %v560
      %562 = vmatmul.bf16.gmra.mxu0 %v405
      %v563 = vpop.f32.mrf.mxu0
      %v564 = vadd.f32 0.0, %v563
      %v565 = vpop.f32.mrf.mxu0
      %v566 = vadd.f32 0.0, %v565
      %567 = vmatmul.bf16.gmra.mxu0 %v408
      %v568 = vpop.f32.mrf.mxu0
      %v569 = vadd.f32 0.0, %v568
      %v570 = vpop.f32.mrf.mxu0
      %v571 = vadd.f32 0.0, %v570
      %572 = vmatmul.bf16.gmra.mxu0 %v411
      %v573 = vpop.f32.mrf.mxu0
      %v574 = vadd.f32 0.0, %v573
      %v575 = vpop.f32.mrf.mxu0
      %v576 = vadd.f32 0.0, %v575
      %577 = vmatmul.bf16.gmra.mxu0 %v414
      %v578 = vpop.f32.mrf.mxu0
      %v579 = vadd.f32 0.0, %v578
      %v580 = vpop.f32.mrf.mxu0
      %v581 = vadd.f32 0.0, %v580
      %582 = vmatmul.bf16.gmra.mxu0 %v417
      %v583 = vpop.f32.mrf.mxu0
      %v584 = vadd.f32 0.0, %v583
      %v585 = vpop.f32.mrf.mxu0
      %v586 = vadd.f32 0.0, %v585
      %587 = vmatmul.bf16.gmra.mxu0 %v420
      %v588 = vpop.f32.mrf.mxu0
      %v589 = vadd.f32 0.0, %v588
      %v590 = vpop.f32.mrf.mxu0
      %v591 = vadd.f32 0.0, %v590
      %592 = vmatmul.bf16.gmra.mxu0 %v423
      %v593 = vpop.f32.mrf.mxu0
      %v594 = vadd.f32 0.0, %v593
      %v595 = vpop.f32.mrf.mxu0
      %v596 = vadd.f32 0.0, %v595
      %597 = vmatmul.bf16.gmra.mxu0 %v426
      %v598 = vpop.f32.mrf.mxu0
      %v599 = vadd.f32 0.0, %v598
      %v600 = vpop.f32.mrf.mxu0
      %v601 = vadd.f32 0.0, %v600
      %602 = vmatmul.bf16.gmra.mxu0 %v429
      %v603 = vpop.f32.mrf.mxu0
      %v604 = vadd.f32 0.0, %v603
      %v605 = vpop.f32.mrf.mxu0
      %v606 = vadd.f32 0.0, %v605
      %607 = vmatmul.bf16.gmra.mxu0 %v432
      %v608 = vpop.f32.mrf.mxu0
      %v609 = vadd.f32 0.0, %v608
      %v610 = vpop.f32.mrf.mxu0
      %v611 = vadd.f32 0.0, %v610
      %612 = vmatmul.bf16.gmra.mxu0 %v435
      %v613 = vpop.f32.mrf.mxu0
      %v614 = vadd.f32 0.0, %v613
      %v615 = vpop.f32.mrf.mxu0
      %v616 = vadd.f32 0.0, %v615
      %617 = vmatmul.bf16.gmra.mxu0 %v438
      %v618 = vpop.f32.mrf.mxu0
      %v619 = vadd.f32 0.0, %v618
      %v620 = vpop.f32.mrf.mxu0
      %v621 = vadd.f32 0.0, %v620
      %622 = vdwg.mxu0
      %p623 = scmp.eq.s32.totalorder %s22, 0
      // Predicated region
      $region29: #{_lambda_.6} parent=27 // pred_check
        %p624 = pneg %p623
      $region30: #{_lambda_.6} parent=27 // pred_check_branch
        %626 = sbr.rel (%p624) target = $region32
      $region31: #{_lambda_.6} parent=27 // pred_region
        %v627 = vlaneseq
        %vm628 = vcmp.ge.s32.totalorder %v627, 0
        %vm629 = vcmp.lt.s32.totalorder %v627, 256
        %vm630 = vmand %vm628, %vm629
        %631 = vst.msk [vmem:[%s262] sm:$0x3] %vm630, -1e+30
        %632 = vst.msk [vmem:[%s271] sm:$0x3] %vm630, 0.0
      $region32: #{_lambda_.6} parent=27 // pred_fallthru
        _
      %v633 = vld [vmem:[%s262] sm:$0x3]
      %v634 = vmax.f32 %v455, %v460
      %v635 = vmax.f32 %v457, %v462
      %v636 = vmax.f32 %v634, %v465
      %v637 = vmax.f32 %v635, %v467
      %v638 = vmax.f32 %v636, %v470
      %v639 = vmax.f32 %v637, %v472
      %v640 = vmax.f32 %v638, %v475
      %v641 = vmax.f32 %v639, %v477
      %v642 = vmax.f32 %v640, %v480
      %v643 = vmax.f32 %v641, %v482
      %v644 = vmax.f32 %v642, %v485
      %v645 = vmax.f32 %v643, %v487
      %v646 = vmax.f32 %v644, %v490
      %v647 = vmax.f32 %v645, %v492
      %v648 = vmax.f32 %v646, %v495
      %v649 = vmax.f32 %v647, %v497
      %v650 = vmax.f32 %v648, %v500
      %v651 = vmax.f32 %v649, %v502
      %v652 = vmax.f32 %v650, %v505
      %v653 = vmax.f32 %v651, %v507
      %v654 = vmax.f32 %v652, %v510
      %v655 = vmax.f32 %v653, %v512
      %v656 = vmax.f32 %v654, %v515
      %v657 = vmax.f32 %v655, %v517
      %v658 = vmax.f32 %v656, %v520
      %v659 = vmax.f32 %v657, %v522
      %v660 = vmax.f32 %v658, %v525
      %v661 = vmax.f32 %v659, %v527
      %v662 = vmax.f32 %v660, %v530
      %v663 = vmax.f32 %v661, %v532
      %v664 = vmax.f32 %v662, %v663
      %v665 = vrot.slane %v664, 4
      %v666 = vmax.f32 %v664, %v665
      %v667 = vrot.slane %v666, 2
      %v668 = vmax.f32 %v666, %v667
      %v669 = vrot.slane %v668, 1
      %v670 = vmax.f32 %v668, %v669
      %v671 = vmax.f32 %v544, %v549
      %v672 = vmax.f32 %v546, %v551
      %v673 = vmax.f32 %v671, %v554
      %v674 = vmax.f32 %v672, %v556
      %v675 = vmax.f32 %v673, %v559
      %v676 = vmax.f32 %v674, %v561
      %v677 = vmax.f32 %v675, %v564
      %v678 = vmax.f32 %v676, %v566
      %v679 = vmax.f32 %v677, %v569
      %v680 = vmax.f32 %v678, %v571
      %v681 = vmax.f32 %v679, %v574
      %v682 = vmax.f32 %v680, %v576
      %v683 = vmax.f32 %v681, %v579
      %v684 = vmax.f32 %v682, %v581
      %v685 = vmax.f32 %v683, %v584
      %v686 = vmax.f32 %v684, %v586
      %v687 = vmax.f32 %v685, %v589
      %v688 = vmax.f32 %v686, %v591
      %v689 = vmax.f32 %v687, %v594
      %v690 = vmax.f32 %v688, %v596
      %v691 = vmax.f32 %v689, %v599
      %v692 = vmax.f32 %v690, %v601
      %v693 = vmax.f32 %v691, %v604
      %v694 = vmax.f32 %v692, %v606
      %v695 = vmax.f32 %v693, %v609
      %v696 = vmax.f32 %v694, %v611
      %v697 = vmax.f32 %v695, %v614
      %v698 = vmax.f32 %v696, %v616
      %v699 = vmax.f32 %v697, %v619
      %v700 = vmax.f32 %v698, %v621
      %v701 = vmax.f32 %v699, %v700
      %v702 = vrot.slane %v701, 4
      %v703 = vmax.f32 %v701, %v702
      %v704 = vrot.slane %v703, 2
      %v705 = vmax.f32 %v703, %v704
      %v706 = vrot.slane %v705, 1
      %v707 = vmax.f32 %v705, %v706
      %v710 = vrot.slane %v707, 7
      %vm711 = vcmask 1040384
      %v712 = vsel %vm711, %v670, %v710
      %v714 = vmax.f32 %v633, %v712
      %v715 = vld [vmem:[%s271] sm:$0x3]
      %v716 = vsub.f32 %v633, %v714
      %v717 = vmul.f32 %v716, 1.442695
      %v718 = vpow.pop %v717
      %v719 = vmul.f32 %v715, %v718
      %v721 = vperm.slane %v714, 0
      %v722 = vperm.slane %v714, 1
      %v725 = vsub.f32 %v455, %v721
      %v726 = vsub.f32 %v544, %v722
      %v727 = vsub.f32 %v457, %v721
      %v728 = vsub.f32 %v546, %v722
      %v729 = vsub.f32 %v460, %v721
      %v730 = vsub.f32 %v549, %v722
      %v731 = vsub.f32 %v462, %v721
      %v732 = vsub.f32 %v551, %v722
      %v733 = vsub.f32 %v465, %v721
      %v734 = vsub.f32 %v554, %v722
      %v735 = vsub.f32 %v467, %v721
      %v736 = vsub.f32 %v556, %v722
      %v737 = vsub.f32 %v470, %v721
      %v738 = vsub.f32 %v559, %v722
      %v739 = vsub.f32 %v472, %v721
      %v740 = vsub.f32 %v561, %v722
      %v741 = vsub.f32 %v475, %v721
      %v742 = vsub.f32 %v564, %v722
      %v743 = vsub.f32 %v477, %v721
      %v744 = vsub.f32 %v566, %v722
      %v745 = vsub.f32 %v480, %v721
      %v746 = vsub.f32 %v569, %v722
      %v747 = vsub.f32 %v482, %v721
      %v748 = vsub.f32 %v571, %v722
      %v749 = vsub.f32 %v485, %v721
      %v750 = vsub.f32 %v574, %v722
      %v751 = vsub.f32 %v487, %v721
      %v752 = vsub.f32 %v576, %v722
      %v753 = vsub.f32 %v490, %v721
      %v754 = vsub.f32 %v579, %v722
      %v755 = vsub.f32 %v492, %v721
      %v756 = vsub.f32 %v581, %v722
      %v757 = vsub.f32 %v495, %v721
      %v758 = vsub.f32 %v584, %v722
      %v759 = vsub.f32 %v497, %v721
      %v760 = vsub.f32 %v586, %v722
      %v761 = vsub.f32 %v500, %v721
      %v762 = vsub.f32 %v589, %v722
      %v763 = vsub.f32 %v502, %v721
      %v764 = vsub.f32 %v591, %v722
      %v765 = vsub.f32 %v505, %v721
      %v766 = vsub.f32 %v594, %v722
      %v767 = vsub.f32 %v507, %v721
      %v768 = vsub.f32 %v596, %v722
      %v769 = vsub.f32 %v510, %v721
      %v770 = vsub.f32 %v599, %v722
      %v771 = vsub.f32 %v512, %v721
      %v772 = vsub.f32 %v601, %v722
      %v773 = vsub.f32 %v515, %v721
      %v774 = vsub.f32 %v604, %v722
      %v775 = vsub.f32 %v517, %v721
      %v776 = vsub.f32 %v606, %v722
      %v777 = vsub.f32 %v520, %v721
      %v778 = vsub.f32 %v609, %v722
      %v779 = vsub.f32 %v522, %v721
      %v780 = vsub.f32 %v611, %v722
      %v781 = vsub.f32 %v525, %v721
      %v782 = vsub.f32 %v614, %v722
      %v783 = vsub.f32 %v527, %v721
      %v784 = vsub.f32 %v616, %v722
      %v785 = vsub.f32 %v530, %v721
      %v786 = vsub.f32 %v619, %v722
      %v787 = vsub.f32 %v532, %v721
      %v788 = vsub.f32 %v621, %v722
      %v789 = vmul.f32 %v725, 1.442695
      %v790 = vpow.pop %v789
      %v791 = vmul.f32 %v726, 1.442695
      %v792 = vpow.pop %v791
      %v793 = vmul.f32 %v727, 1.442695
      %v794 = vpow.pop %v793
      %v795 = vmul.f32 %v728, 1.442695
      %v796 = vpow.pop %v795
      %v797 = vmul.f32 %v729, 1.442695
      %v798 = vpow.pop %v797
      %v799 = vmul.f32 %v730, 1.442695
      %v800 = vpow.pop %v799
      %v801 = vmul.f32 %v731, 1.442695
      %v802 = vpow.pop %v801
      %v803 = vmul.f32 %v732, 1.442695
      %v804 = vpow.pop %v803
      %v805 = vmul.f32 %v733, 1.442695
      %v806 = vpow.pop %v805
      %v807 = vmul.f32 %v734, 1.442695
      %v808 = vpow.pop %v807
      %v809 = vmul.f32 %v735, 1.442695
      %v810 = vpow.pop %v809
      %v811 = vmul.f32 %v736, 1.442695
      %v812 = vpow.pop %v811
      %v813 = vmul.f32 %v737, 1.442695
      %v814 = vpow.pop %v813
      %v815 = vmul.f32 %v738, 1.442695
      %v816 = vpow.pop %v815
      %v817 = vmul.f32 %v739, 1.442695
      %v818 = vpow.pop %v817
      %v819 = vmul.f32 %v740, 1.442695
      %v820 = vpow.pop %v819
      %v821 = vmul.f32 %v741, 1.442695
      %v822 = vpow.pop %v821
      %v823 = vmul.f32 %v742, 1.442695
      %v824 = vpow.pop %v823
      %v825 = vmul.f32 %v743, 1.442695
      %v826 = vpow.pop %v825
      %v827 = vmul.f32 %v744, 1.442695
      %v828 = vpow.pop %v827
      %v829 = vmul.f32 %v745, 1.442695
      %v830 = vpow.pop %v829
      %v831 = vmul.f32 %v746, 1.442695
      %v832 = vpow.pop %v831
      %v833 = vmul.f32 %v747, 1.442695
      %v834 = vpow.pop %v833
      %v835 = vmul.f32 %v748, 1.442695
      %v836 = vpow.pop %v835
      %v837 = vmul.f32 %v749, 1.442695
      %v838 = vpow.pop %v837
      %v839 = vmul.f32 %v750, 1.442695
      %v840 = vpow.pop %v839
      %v841 = vmul.f32 %v751, 1.442695
      %v842 = vpow.pop %v841
      %v843 = vmul.f32 %v752, 1.442695
      %v844 = vpow.pop %v843
      %v845 = vmul.f32 %v753, 1.442695
      %v846 = vpow.pop %v845
      %v847 = vmul.f32 %v754, 1.442695
      %v848 = vpow.pop %v847
      %v849 = vmul.f32 %v755, 1.442695
      %v850 = vpow.pop %v849
      %v851 = vmul.f32 %v756, 1.442695
      %v852 = vpow.pop %v851
      %v853 = vmul.f32 %v757, 1.442695
      %v854 = vpow.pop %v853
      %v855 = vmul.f32 %v758, 1.442695
      %v856 = vpow.pop %v855
      %v857 = vmul.f32 %v759, 1.442695
      %v858 = vpow.pop %v857
      %v859 = vmul.f32 %v760, 1.442695
      %v860 = vpow.pop %v859
      %v861 = vmul.f32 %v761, 1.442695
      %v862 = vpow.pop %v861
      %v863 = vmul.f32 %v762, 1.442695
      %v864 = vpow.pop %v863
      %v865 = vmul.f32 %v763, 1.442695
      %v866 = vpow.pop %v865
      %v867 = vmul.f32 %v764, 1.442695
      %v868 = vpow.pop %v867
      %v869 = vmul.f32 %v765, 1.442695
      %v870 = vpow.pop %v869
      %v871 = vmul.f32 %v766, 1.442695
      %v872 = vpow.pop %v871
      %v873 = vmul.f32 %v767, 1.442695
      %v874 = vpow.pop %v873
      %v875 = vmul.f32 %v768, 1.442695
      %v876 = vpow.pop %v875
      %v877 = vmul.f32 %v769, 1.442695
      %v878 = vpow.pop %v877
      %v879 = vmul.f32 %v770, 1.442695
      %v880 = vpow.pop %v879
      %v881 = vmul.f32 %v771, 1.442695
      %v882 = vpow.pop %v881
      %v883 = vmul.f32 %v772, 1.442695
      %v884 = vpow.pop %v883
      %v885 = vmul.f32 %v773, 1.442695
      %v886 = vpow.pop %v885
      %v887 = vmul.f32 %v774, 1.442695
      %v888 = vpow.pop %v887
      %v889 = vmul.f32 %v775, 1.442695
      %v890 = vpow.pop %v889
      %v891 = vmul.f32 %v776, 1.442695
      %v892 = vpow.pop %v891
      %v893 = vmul.f32 %v777, 1.442695
      %v894 = vpow.pop %v893
      %v895 = vmul.f32 %v778, 1.442695
      %v896 = vpow.pop %v895
      %v897 = vmul.f32 %v779, 1.442695
      %v898 = vpow.pop %v897
      %v899 = vmul.f32 %v780, 1.442695
      %v900 = vpow.pop %v899
      %v901 = vmul.f32 %v781, 1.442695
      %v902 = vpow.pop %v901
      %v903 = vmul.f32 %v782, 1.442695
      %v904 = vpow.pop %v903
      %v905 = vmul.f32 %v783, 1.442695
      %v906 = vpow.pop %v905
      %v907 = vmul.f32 %v784, 1.442695
      %v908 = vpow.pop %v907
      %v909 = vmul.f32 %v785, 1.442695
      %v910 = vpow.pop %v909
      %v911 = vmul.f32 %v786, 1.442695
      %v912 = vpow.pop %v911
      %v913 = vmul.f32 %v787, 1.442695
      %v914 = vpow.pop %v913
      %v915 = vmul.f32 %v788, 1.442695
      %v916 = vpow.pop %v915
      %v917 = vadd.f32 %v790, %v794
      %v918 = vadd.f32 %v917, %v798
      %v919 = vadd.f32 %v918, %v802
      %v920 = vadd.f32 %v919, %v806
      %v921 = vadd.f32 %v920, %v810
      %v922 = vadd.f32 %v921, %v814
      %v923 = vadd.f32 %v922, %v818
      %v924 = vadd.f32 %v923, %v822
      %v925 = vadd.f32 %v924, %v826
      %v926 = vadd.f32 %v925, %v830
      %v927 = vadd.f32 %v926, %v834
      %v928 = vadd.f32 %v927, %v838
      %v929 = vadd.f32 %v928, %v842
      %v930 = vadd.f32 %v929, %v846
      %v931 = vadd.f32 %v930, %v850
      %v932 = vadd.f32 %v931, %v854
      %v933 = vadd.f32 %v932, %v858
      %v934 = vadd.f32 %v933, %v862
      %v935 = vadd.f32 %v934, %v866
      %v936 = vadd.f32 %v935, %v870
      %v937 = vadd.f32 %v936, %v874
      %v938 = vadd.f32 %v937, %v878
      %v939 = vadd.f32 %v938, %v882
      %v940 = vadd.f32 %v939, %v886
      %v941 = vadd.f32 %v940, %v890
      %v942 = vadd.f32 %v941, %v894
      %v943 = vadd.f32 %v942, %v898
      %v944 = vadd.f32 %v943, %v902
      %v945 = vadd.f32 %v944, %v906
      %v946 = vadd.f32 %v945, %v910
      %v947 = vadd.f32 %v946, %v914
      %v948 = vrot.slane %v947, 4
      %v949 = vadd.f32 %v947, %v948
      %v950 = vrot.slane %v949, 2
      %v951 = vadd.f32 %v949, %v950
      %v952 = vrot.slane %v951, 1
      %v953 = vadd.f32 %v951, %v952
      %v954 = vadd.f32 %v792, %v796
      %v955 = vadd.f32 %v954, %v800
      %v956 = vadd.f32 %v955, %v804
      %v957 = vadd.f32 %v956, %v808
      %v958 = vadd.f32 %v957, %v812
      %v959 = vadd.f32 %v958, %v816
      %v960 = vadd.f32 %v959, %v820
      %v961 = vadd.f32 %v960, %v824
      %v962 = vadd.f32 %v961, %v828
      %v963 = vadd.f32 %v962, %v832
      %v964 = vadd.f32 %v963, %v836
      %v965 = vadd.f32 %v964, %v840
      %v966 = vadd.f32 %v965, %v844
      %v967 = vadd.f32 %v966, %v848
      %v968 = vadd.f32 %v967, %v852
      %v969 = vadd.f32 %v968, %v856
      %v970 = vadd.f32 %v969, %v860
      %v971 = vadd.f32 %v970, %v864
      %v972 = vadd.f32 %v971, %v868
      %v973 = vadd.f32 %v972, %v872
      %v974 = vadd.f32 %v973, %v876
      %v975 = vadd.f32 %v974, %v880
      %v976 = vadd.f32 %v975, %v884
      %v977 = vadd.f32 %v976, %v888
      %v978 = vadd.f32 %v977, %v892
      %v979 = vadd.f32 %v978, %v896
      %v980 = vadd.f32 %v979, %v900
      %v981 = vadd.f32 %v980, %v904
      %v982 = vadd.f32 %v981, %v908
      %v983 = vadd.f32 %v982, %v912
      %v984 = vadd.f32 %v983, %v916
      %v985 = vrot.slane %v984, 4
      %v986 = vadd.f32 %v984, %v985
      %v987 = vrot.slane %v986, 2
      %v988 = vadd.f32 %v986, %v987
      %v989 = vrot.slane %v988, 1
      %v990 = vadd.f32 %v988, %v989
      %v993 = vrot.slane %v990, 7
      %v994 = vsel %vm711, %v953, %v993
      %v996 = vadd.f32 %v719, %v994
      %v997 = vlaneseq
      %vm998 = vcmp.ge.s32.totalorder %v997, 0
      %vm999 = vcmp.lt.s32.totalorder %v997, 256
      %vm1000 = vmand %vm998, %vm999
      %1001 = vst.msk [vmem:[%s271] sm:$0x3] %vm1000, %v996
      %1002 = vst.msk [vmem:[%s262] sm:$0x3] %vm1000, %v714
      %s1003 = smul.u32 2, %s21
      %p1004 = scmp.lt.s32.totalorder %s20, 3
      %s1005 = scalar_select %p1004, %s20, 3
      %p1006 = scmp.lt.s32.totalorder %s1003, 1
      %s1007 = scalar_select %p1006, %s1003, 1
      %s1008 = smul.addr %s1005, 2
      %s1009 = sadd.s32 %s1007, %s1008
      %s1010 = scalar_lea.vmem %s2, %s1009
      %s1011 = smul.u32 2, %s21
      %p1012 = scmp.lt.s32.totalorder %s20, 3
      %s1013 = scalar_select %p1012, %s20, 3
      %p1014 = scmp.lt.s32.totalorder %s1011, 1
      %s1015 = scalar_select %p1014, %s1011, 1
      %s1016 = smul.addr %s1013, 2
      %s1017 = sadd.s32 %s1015, %s1016
      %s1018 = scalar_lea.vmem %s3, %s1017
      // Predicated region
      $region33: #{_lambda_.6} parent=27 // pred_check
        %p1019 = pneg %p110
      $region34: #{_lambda_.6} parent=27 // pred_check_branch
        %1021 = sbr.rel (%p1019) target = $region36
      $region35: #{_lambda_.6} parent=27 // pred_region
        %s1022 = smul.u32 2, %s21
      $region36: #{_lambda_.6} parent=27 // pred_fallthru
        _
      // Predicated region
      $region37: #{_lambda_.6} parent=27 // pred_check
        %p1023 = pneg %p138
      $region38: #{_lambda_.6} parent=27 // pred_check_branch
        %1025 = sbr.rel (%p1023) target = $region40
      $region39: #{_lambda_.6} parent=27 // pred_region
        %s1026 = smul.u32 2, %s21
      $region40: #{_lambda_.6} parent=27 // pred_fallthru
        _
    $region28: #{_lambda_.6} parent=5 // pred_fallthru
      _
    %p1027 = scmp.le.s32.totalorder 2, %s10
    // Predicated region
    $region41: #{_lambda_.6} parent=5 // pred_check
      %p1028 = pneg %p1027
    $region42: #{_lambda_.6} parent=5 // pred_check_branch
      %1030 = sbr.rel (%p1028) target = $region44
    $region43: #{_lambda_.6} parent=5 // pred_region
      %s1031 = ssub.s32 %s10, 2
      // Predicated region
      $region45: #{_lambda_.6} parent=43 // pred_check
        %p1032 = pneg %p116
      $region46: #{_lambda_.6} parent=43 // pred_check_branch
        %1034 = sbr.rel (%p1032) target = $region48
      $region47: #{_lambda_.6} parent=43 // pred_region
        %s1035 = smul.u32 2, %s24
        %p1036 = scmp.lt.s32.totalorder %s23, 3
        %s1037 = scalar_select %p1036, %s23, 3
        %p1038 = scmp.lt.s32.totalorder %s1035, 1
        %s1039 = scalar_select %p1038, %s1035, 1
        %s1040 = smul.addr %s1037, 2
        %s1041 = sadd.s32 %s1039, %s1040
        %s1042 = scalar_lea.vmem %s2, %s1041
      $region48: #{_lambda_.6} parent=43 // pred_fallthru
        _
      // Predicated region
      $region49: #{_lambda_.6} parent=43 // pred_check
        %p1043 = pneg %p144
      $region50: #{_lambda_.6} parent=43 // pred_check_branch
        %1045 = sbr.rel (%p1043) target = $region52
      $region51: #{_lambda_.6} parent=43 // pred_region
        %s1046 = smul.u32 2, %s24
        %p1047 = scmp.lt.s32.totalorder %s23, 3
        %s1048 = scalar_select %p1047, %s23, 3
        %p1049 = scmp.lt.s32.totalorder %s1046, 1
        %s1050 = scalar_select %p1049, %s1046, 1
        %s1051 = smul.addr %s1048, 2
        %s1052 = sadd.s32 %s1050, %s1051
        %s1053 = scalar_lea.vmem %s3, %s1052
      $region52: #{_lambda_.6} parent=43 // pred_fallthru
        _
    $region44: #{_lambda_.6} parent=5 // pred_fallthru
      _
  $region6: #{_lambda_.6} parent=0 // loop_footer
    %s14 = sadd.s32 1, %s10
  $region7: #{_lambda_.6} parent=0 // loop_footer_branch
    %9 = sbr.rel target = $region3
  $region8: #{_lambda_.6} parent=0 // loop_exit
    _

// kernel: _lambda_.7
$region0: #{_lambda_.7}
  #allocation0 [shape = 'u32[]', space=smem, size = 0x4, offset = 0x4, fixed_abs, tag = 'smem constant byte address 0x4 - core index']
  #allocation1 [shape = 'u32[72,128]{1,0:T(1,128)}', space=vmem, size = 0x9000, scoped, tag = 'internal scratch']
  #allocation2 [shape = 'f32[256,4]{1,0:T(8,128)}', space=vmem, size = 0x20000, scoped, tag = 'scratch operand']
  %s0 = inlined_call_operand.vmem [shape: bf16[4,256,4], index: 0, kind: input, shape index: {}]
  %s1 = inlined_call_operand.vmem [shape: bf16[4,4,256], index: 1, kind: input, shape index: {}]
  %s2 = inlined_call_operand.vmem [shape: bf16[4,256,4], index: 2, kind: input, shape index: {}]
  %s3 = inlined_call_operand.vmem [shape: f32[4,1,256], index: 3, kind: input, shape index: {}]
  %s4 = inlined_call_operand.vmem [shape: f32[4,1,256], index: 4, kind: input, shape index: {}]
  %s5 = inlined_call_operand.vmem [shape: bf16[4,256,4], index: 5, kind: output, shape index: {}]
  %s6 = sld [smem:[#allocation0]]
  $region61: #{_lambda_.7} parent=0
    _
  %s8 = ssub.s32 1, %s6
  %s9 = scalar_select 0, %s8, %s6
  loop: start=0, step=1, limit=6
  $region2: #{_lambda_.7} parent=0 // loop_pre_header
    _
  $region3: #{_lambda_.7} parent=0 // loop_header
    %s11 = sphi 0, %s15
    %p12 = scmp.ge.s32.totalorder %s11, 6
    %s18 = sphi 0, %s37
    %s19 = sphi 0, %s33
    %s20 = sphi 0, %s29
    %s21 = sphi 0, %s18
    %s22 = sphi 0, %s19
    %s23 = sphi 0, %s20
    %s24 = sphi 0, %s21
    %s25 = sphi 0, %s22
    %s26 = sphi 0, %s23
    %s42 = sphi 0, %s44
    %s45 = sphi 0, %s42
    %s46 = sphi 0, %s45
    %s62 = sphi 0, %s46
    %s70 = sphi 0, %s72
    %s73 = sphi 0, %s70
    %s74 = sphi 0, %s73
    %s90 = sphi 0, %s74
    %s98 = sphi 0, %s100
    %s101 = sphi 0, %s98
    %s102 = sphi 0, %s101
    %s118 = sphi 0, %s102
    %s126 = sphi 0, %s128
    %s129 = sphi 0, %s126
    %s130 = sphi 0, %s129
    %s146 = sphi 0, %s130
    %s154 = sphi 0, %s156
    %s157 = sphi 0, %s154
    %s158 = sphi 0, %s157
    %s174 = sphi 0, %s158
    %s182 = sphi 0, %s184
    %s185 = sphi 0, %s182
    %s186 = sphi 0, %s185
    %s202 = sphi 0, %s186
  $region4: #{_lambda_.7} parent=0 // loop_header_branch
    %14 = sbr.rel (%p12) target = $region8
  $region5: #{_lambda_.7} parent=0 // loop_body
    %s16 = ssub.s32 %s11, 1
    %s17 = ssub.s32 %s11, 2
    %s27 = sadd.s32 1, %s20
    %p28 = scmp.ge.s32.totalorder %s27, 1
    %s29 = scalar_select %p28, 0, %s27
    %s30 = sadd.s32 1, %s19
    %s31 = scalar_select %p28, %s30, %s19
    %p32 = scmp.ge.s32.totalorder %s31, 1
    %s33 = scalar_select %p32, 0, %s31
    %s34 = sadd.s32 1, %s18
    %s35 = scalar_select %p32, %s34, %s18
    %p36 = scmp.ge.s32.totalorder %s35, 4
    %s37 = scalar_select %p36, 0, %s35
    %s38 = ssub.s32 %s18, %s37
    %s39 = ssub.s32 %s19, %s33
    %s40 = sor.u32 %s38, %s39
    %p41 = scmp.eq.s32.totalorder %s40, 0
    %s43 = sadd.s32 %s42, 1
    %s44 = scalar_select %p41, %s42, %s43
    %p47 = pneg %p41
    %p48 = scmp.eq.s32.totalorder %s11, 3
    %p49 = por %p47, %p48
    %p50 = scmp.ne.s32.totalorder %s42, %s45
    %p51 = scmp.eq.s32.totalorder %s11, 0
    %p52 = por %p50, %p51
    %p53 = scmp.ne.s32.totalorder %s42, %s45
    %p54 = scmp.eq.s32.totalorder %s16, 3
    %p55 = por %p53, %p54
    %p56 = scmp.ne.s32.totalorder %s45, %s46
    %p57 = scmp.eq.s32.totalorder %s16, 0
    %p58 = por %p56, %p57
    %p59 = scmp.ne.s32.totalorder %s45, %s46
    %p60 = scmp.eq.s32.totalorder %s17, 3
    %p61 = por %p59, %p60
    %p63 = scmp.ne.s32.totalorder %s46, %s62
    %p64 = scmp.eq.s32.totalorder %s17, 0
    %p65 = por %p63, %p64
    %s66 = ssub.s32 %s18, %s37
    %s67 = ssub.s32 %s20, %s29
    %s68 = sor.u32 %s66, %s67
    %p69 = scmp.eq.s32.totalorder %s68, 0
    %s71 = sadd.s32 %s70, 1
    %s72 = scalar_select %p69, %s70, %s71
    %p75 = pneg %p69
    %p76 = scmp.eq.s32.totalorder %s11, 3
    %p77 = por %p75, %p76
    %p78 = scmp.ne.s32.totalorder %s70, %s73
    %p79 = scmp.eq.s32.totalorder %s11, 0
    %p80 = por %p78, %p79
    %p81 = scmp.ne.s32.totalorder %s70, %s73
    %p82 = scmp.eq.s32.totalorder %s16, 3
    %p83 = por %p81, %p82
    %p84 = scmp.ne.s32.totalorder %s73, %s74
    %p85 = scmp.eq.s32.totalorder %s16, 0
    %p86 = por %p84, %p85
    %p87 = scmp.ne.s32.totalorder %s73, %s74
    %p88 = scmp.eq.s32.totalorder %s17, 3
    %p89 = por %p87, %p88
    %p91 = scmp.ne.s32.totalorder %s74, %s90
    %p92 = scmp.eq.s32.totalorder %s17, 0
    %p93 = por %p91, %p92
    %s94 = ssub.s32 %s18, %s37
    %s95 = ssub.s32 %s20, %s29
    %s96 = sor.u32 %s94, %s95
    %p97 = scmp.eq.s32.totalorder %s96, 0
    %s99 = sadd.s32 %s98, 1
    %s100 = scalar_select %p97, %s98, %s99
    %p103 = pneg %p97
    %p104 = scmp.eq.s32.totalorder %s11, 3
    %p105 = por %p103, %p104
    %p106 = scmp.ne.s32.totalorder %s98, %s101
    %p107 = scmp.eq.s32.totalorder %s11, 0
    %p108 = por %p106, %p107
    %p109 = scmp.ne.s32.totalorder %s98, %s101
    %p110 = scmp.eq.s32.totalorder %s16, 3
    %p111 = por %p109, %p110
    %p112 = scmp.ne.s32.totalorder %s101, %s102
    %p113 = scmp.eq.s32.totalorder %s16, 0
    %p114 = por %p112, %p113
    %p115 = scmp.ne.s32.totalorder %s101, %s102
    %p116 = scmp.eq.s32.totalorder %s17, 3
    %p117 = por %p115, %p116
    %p119 = scmp.ne.s32.totalorder %s102, %s118
    %p120 = scmp.eq.s32.totalorder %s17, 0
    %p121 = por %p119, %p120
    %s122 = ssub.s32 %s18, %s37
    %s123 = ssub.s32 %s20, %s29
    %s124 = sor.u32 %s122, %s123
    %p125 = scmp.eq.s32.totalorder %s124, 0
    %s127 = sadd.s32 %s126, 1
    %s128 = scalar_select %p125, %s126, %s127
    %p131 = pneg %p125
    %p132 = scmp.eq.s32.totalorder %s11, 3
    %p133 = por %p131, %p132
    %p134 = scmp.ne.s32.totalorder %s126, %s129
    %p135 = scmp.eq.s32.totalorder %s11, 0
    %p136 = por %p134, %p135
    %p137 = scmp.ne.s32.totalorder %s126, %s129
    %p138 = scmp.eq.s32.totalorder %s16, 3
    %p139 = por %p137, %p138
    %p140 = scmp.ne.s32.totalorder %s129, %s130
    %p141 = scmp.eq.s32.totalorder %s16, 0
    %p142 = por %p140, %p141
    %p143 = scmp.ne.s32.totalorder %s129, %s130
    %p144 = scmp.eq.s32.totalorder %s17, 3
    %p145 = por %p143, %p144
    %p147 = scmp.ne.s32.totalorder %s130, %s146
    %p148 = scmp.eq.s32.totalorder %s17, 0
    %p149 = por %p147, %p148
    %s150 = ssub.s32 %s18, %s37
    %s151 = ssub.s32 %s20, %s29
    %s152 = sor.u32 %s150, %s151
    %p153 = scmp.eq.s32.totalorder %s152, 0
    %s155 = sadd.s32 %s154, 1
    %s156 = scalar_select %p153, %s154, %s155
    %p159 = pneg %p153
    %p160 = scmp.eq.s32.totalorder %s11, 3
    %p161 = por %p159, %p160
    %p162 = scmp.ne.s32.totalorder %s154, %s157
    %p163 = scmp.eq.s32.totalorder %s11, 0
    %p164 = por %p162, %p163
    %p165 = scmp.ne.s32.totalorder %s154, %s157
    %p166 = scmp.eq.s32.totalorder %s16, 3
    %p167 = por %p165, %p166
    %p168 = scmp.ne.s32.totalorder %s157, %s158
    %p169 = scmp.eq.s32.totalorder %s16, 0
    %p170 = por %p168, %p169
    %p171 = scmp.ne.s32.totalorder %s157, %s158
    %p172 = scmp.eq.s32.totalorder %s17, 3
    %p173 = por %p171, %p172
    %p175 = scmp.ne.s32.totalorder %s158, %s174
    %p176 = scmp.eq.s32.totalorder %s17, 0
    %p177 = por %p175, %p176
    %s178 = ssub.s32 %s18, %s37
    %s179 = ssub.s32 %s19, %s33
    %s180 = sor.u32 %s178, %s179
    %p181 = scmp.eq.s32.totalorder %s180, 0
    %s183 = sadd.s32 %s182, 1
    %s184 = scalar_select %p181, %s182, %s183
    %p187 = pneg %p181
    %p188 = scmp.eq.s32.totalorder %s11, 3
    %p189 = por %p187, %p188
    %p190 = scmp.ne.s32.totalorder %s182, %s185
    %p191 = scmp.eq.s32.totalorder %s11, 0
    %p192 = por %p190, %p191
    %p193 = scmp.ne.s32.totalorder %s182, %s185
    %p194 = scmp.eq.s32.totalorder %s16, 3
    %p195 = por %p193, %p194
    %p196 = scmp.ne.s32.totalorder %s185, %s186
    %p197 = scmp.eq.s32.totalorder %s16, 0
    %p198 = por %p196, %p197
    %p199 = scmp.ne.s32.totalorder %s185, %s186
    %p200 = scmp.eq.s32.totalorder %s17, 3
    %p201 = por %p199, %p200
    %p203 = scmp.ne.s32.totalorder %s186, %s202
    %p204 = scmp.eq.s32.totalorder %s17, 0
    %p205 = por %p203, %p204
    %p206 = scmp.le.s32.totalorder 1, %s11
    %p207 = scmp.lt.s32.totalorder %s11, 5
    %p208 = pnand %p206, %p207
    %p209 = pneg %p208
    // Predicated region
    $region9: #{_lambda_.7} parent=5 // pred_check
      _
    $region10: #{_lambda_.7} parent=5 // pred_check_branch
      %211 = sbr.rel (%p208) target = $region12
    $region11: #{_lambda_.7} parent=5 // pred_region
      %s212 = ssub.s32 %s11, 1
    $region12: #{_lambda_.7} parent=5 // pred_fallthru
      _
    %p213 = scmp.lt.s32.totalorder %s11, 4
    // Predicated region
    $region13: #{_lambda_.7} parent=5 // pred_check
      %p214 = pneg %p213
    $region14: #{_lambda_.7} parent=5 // pred_check_branch
      %216 = sbr.rel (%p214) target = $region16
    $region15: #{_lambda_.7} parent=5 // pred_region
      // Predicated region
      $region17: #{_lambda_.7} parent=15 // pred_check
        %p217 = pneg %p52
      $region18: #{_lambda_.7} parent=15 // pred_check_branch
        %219 = sbr.rel (%p217) target = $region20
      $region19: #{_lambda_.7} parent=15 // pred_region
        %s220 = smul.u32 32, %s19
        %p221 = scmp.lt.s32.totalorder %s18, 3
        %s222 = scalar_select %p221, %s18, 3
        %p223 = scmp.lt.s32.totalorder %s220, 31
        %s224 = scalar_select %p223, %s220, 31
        %s225 = smul.addr %s222, 32
        %s226 = sadd.s32 %s224, %s225
        %s227 = smul.addr %s226, 4
        %s228 = scalar_lea.vmem %s0, %s227
        %s229 = smul.u32 32, %s19
      $region20: #{_lambda_.7} parent=15 // pred_fallthru
        _
      // Predicated region
      $region21: #{_lambda_.7} parent=15 // pred_check
        %p230 = pneg %p80
      $region22: #{_lambda_.7} parent=15 // pred_check_branch
        %232 = sbr.rel (%p230) target = $region24
      $region23: #{_lambda_.7} parent=15 // pred_region
        %s233 = smul.u32 2, %s20
        %p234 = scmp.lt.s32.totalorder %s18, 3
        %s235 = scalar_select %p234, %s18, 3
        %p236 = scmp.lt.s32.totalorder %s233, 1
        %s237 = scalar_select %p236, %s233, 1
        %s238 = smul.addr %s235, 2
        %s239 = sadd.s32 %s237, %s238
        %s240 = smul.addr %s239, 2
        %s241 = scalar_lea.vmem %s1, %s240
        %s242 = smul.u32 2, %s20
      $region24: #{_lambda_.7} parent=15 // pred_fallthru
        _
      // Predicated region
      $region25: #{_lambda_.7} parent=15 // pred_check
        %p243 = pneg %p108
      $region26: #{_lambda_.7} parent=15 // pred_check_branch
        %245 = sbr.rel (%p243) target = $region28
      $region27: #{_lambda_.7} parent=15 // pred_region
        %s246 = smul.u32 32, %s20
        %p247 = scmp.lt.s32.totalorder %s18, 3
        %s248 = scalar_select %p247, %s18, 3
        %p249 = scmp.lt.s32.totalorder %s246, 31
        %s250 = scalar_select %p249, %s246, 31
        %s251 = smul.addr %s248, 32
        %s252 = sadd.s32 %s250, %s251
        %s253 = smul.addr %s252, 4
        %s254 = scalar_lea.vmem %s2, %s253
        %s255 = smul.u32 32, %s20
      $region28: #{_lambda_.7} parent=15 // pred_fallthru
        _
      // Predicated region
      $region29: #{_lambda_.7} parent=15 // pred_check
        %p256 = pneg %p136
      $region30: #{_lambda_.7} parent=15 // pred_check_branch
        %258 = sbr.rel (%p256) target = $region32
      $region31: #{_lambda_.7} parent=15 // pred_region
        %s259 = smul.u32 2, %s20
        %p260 = scmp.lt.s32.totalorder %s18, 3
        %s261 = scalar_select %p260, %s18, 3
        %p262 = scmp.lt.s32.totalorder %s259, 1
        %s263 = scalar_select %p262, %s259, 1
        %s264 = smul.addr %s261, 2
        %s265 = sadd.s32 %s263, %s264
        %s266 = scalar_lea.vmem %s3, %s265
        %s267 = smul.u32 2, %s20
      $region32: #{_lambda_.7} parent=15 // pred_fallthru
        _
      // Predicated region
      $region33: #{_lambda_.7} parent=15 // pred_check
        %p268 = pneg %p164
      $region34: #{_lambda_.7} parent=15 // pred_check_branch
        %270 = sbr.rel (%p268) target = $region36
      $region35: #{_lambda_.7} parent=15 // pred_region
        %s271 = smul.u32 2, %s20
        %p272 = scmp.lt.s32.totalorder %s18, 3
        %s273 = scalar_select %p272, %s18, 3
        %p274 = scmp.lt.s32.totalorder %s271, 1
        %s275 = scalar_select %p274, %s271, 1
        %s276 = smul.addr %s273, 2
        %s277 = sadd.s32 %s275, %s276
        %s278 = scalar_lea.vmem %s4, %s277
        %s279 = smul.u32 2, %s20
      $region36: #{_lambda_.7} parent=15 // pred_fallthru
        _
    $region16: #{_lambda_.7} parent=5 // pred_fallthru
      _
    %p280 = scmp.le.s32.totalorder 1, %s11
    %p281 = scmp.lt.s32.totalorder %s11, 5
    %p282 = pnand %p280, %p281
    %p283 = pneg %p282
    // Predicated region
    $region37: #{_lambda_.7} parent=5 // pred_check
      _
    $region38: #{_lambda_.7} parent=5 // pred_check_branch
      %285 = sbr.rel (%p282) target = $region40
    $region39: #{_lambda_.7} parent=5 // pred_region
      %s286 = ssub.s32 %s11, 1
      %s287 = smul.u32 32, %s22
      %p288 = scmp.lt.s32.totalorder %s21, 3
      %s289 = scalar_select %p288, %s21, 3
      %p290 = scmp.lt.s32.totalorder %s287, 31
      %s291 = scalar_select %p290, %s287, 31
      %s292 = smul.addr %s289, 32
      %s293 = sadd.s32 %s291, %s292
      %s294 = smul.addr %s293, 4
      %s295 = scalar_lea.vmem %s0, %s294
      %p296 = pneg %p58
      %p297 = pneg %p55
      %s298 = smul.u32 2, %s23
      %p299 = scmp.lt.s32.totalorder %s21, 3
      %s300 = scalar_select %p299, %s21, 3
      %p301 = scmp.lt.s32.totalorder %s298, 1
      %s302 = scalar_select %p301, %s298, 1
      %s303 = smul.addr %s300, 2
      %s304 = sadd.s32 %s302, %s303
      %s305 = smul.addr %s304, 2
      %s306 = scalar_lea.vmem %s1, %s305
      %p307 = pneg %p86
      %p308 = pneg %p83
      %s309 = smul.u32 32, %s23
      %p310 = scmp.lt.s32.totalorder %s21, 3
      %s311 = scalar_select %p310, %s21, 3
      %p312 = scmp.lt.s32.totalorder %s309, 31
      %s313 = scalar_select %p312, %s309, 31
      %s314 = smul.addr %s311, 32
      %s315 = sadd.s32 %s313, %s314
      %s316 = smul.addr %s315, 4
      %s317 = scalar_lea.vmem %s2, %s316
      %p318 = pneg %p114
      %p319 = pneg %p111
      %s320 = smul.u32 2, %s23
      %p321 = scmp.lt.s32.totalorder %s21, 3
      %s322 = scalar_select %p321, %s21, 3
      %p323 = scmp.lt.s32.totalorder %s320, 1
      %s324 = scalar_select %p323, %s320, 1
      %s325 = smul.addr %s322, 2
      %s326 = sadd.s32 %s324, %s325
      %s327 = scalar_lea.vmem %s3, %s326
      %p328 = pneg %p142
      %p329 = pneg %p139
      %s330 = smul.u32 2, %s23
      %p331 = scmp.lt.s32.totalorder %s21, 3
      %s332 = scalar_select %p331, %s21, 3
      %p333 = scmp.lt.s32.totalorder %s330, 1
      %s334 = scalar_select %p333, %s330, 1
      %s335 = smul.addr %s332, 2
      %s336 = sadd.s32 %s334, %s335
      %s337 = scalar_lea.vmem %s4, %s336
      %p338 = pneg %p170
      %p339 = pneg %p167
      %p340 = pneg %p198
      %p341 = pneg %p195
      %s342 = smul.u32 32, %s22
      %p343 = scmp.lt.s32.totalorder %s21, 3
      %s344 = scalar_select %p343, %s21, 3
      %p345 = scmp.lt.s32.totalorder %s342, 31
      %s346 = scalar_select %p345, %s342, 31
      %s347 = smul.addr %s344, 32
      %s348 = sadd.s32 %s346, %s347
      %s349 = smul.addr %s348, 4
      %s350 = scalar_lea.vmem %s5, %s349
      %s351 = smul.u32 32, %s22
      %p352 = scmp.lt.s32.totalorder %s21, 3
      %s353 = scalar_select %p352, %s21, 3
      %p354 = scmp.lt.s32.totalorder %s351, 31
      %s355 = scalar_select %p354, %s351, 31
      %s356 = smul.addr %s353, 32
      %s357 = sadd.s32 %s355, %s356
      %s358 = smul.addr %s357, 4
      %s359 = scalar_lea.vmem %s0, %s358
      %s360 = smul.u32 32, %s22
      %s361 = smul.u32 2, %s23
      %p362 = scmp.lt.s32.totalorder %s21, 3
      %s363 = scalar_select %p362, %s21, 3
      %p364 = scmp.lt.s32.totalorder %s361, 1
      %s365 = scalar_select %p364, %s361, 1
      %s366 = smul.addr %s363, 2
      %s367 = sadd.s32 %s365, %s366
      %s368 = smul.addr %s367, 2
      %s369 = scalar_lea.vmem %s1, %s368
      %s370 = smul.u32 2, %s23
      %s371 = smul.u32 32, %s23
      %p372 = scmp.lt.s32.totalorder %s21, 3
      %s373 = scalar_select %p372, %s21, 3
      %p374 = scmp.lt.s32.totalorder %s371, 31
      %s375 = scalar_select %p374, %s371, 31
      %s376 = smul.addr %s373, 32
      %s377 = sadd.s32 %s375, %s376
      %s378 = smul.addr %s377, 4
      %s379 = scalar_lea.vmem %s2, %s378
      %s380 = smul.u32 32, %s23
      %s381 = smul.u32 2, %s23
      %p382 = scmp.lt.s32.totalorder %s21, 3
      %s383 = scalar_select %p382, %s21, 3
      %p384 = scmp.lt.s32.totalorder %s381, 1
      %s385 = scalar_select %p384, %s381, 1
      %s386 = smul.addr %s383, 2
      %s387 = sadd.s32 %s385, %s386
      %s388 = scalar_lea.vmem %s3, %s387
      %s389 = smul.u32 2, %s23
      %s390 = smul.u32 2, %s23
      %p391 = scmp.lt.s32.totalorder %s21, 3
      %s392 = scalar_select %p391, %s21, 3
      %p393 = scmp.lt.s32.totalorder %s390, 1
      %s394 = scalar_select %p393, %s390, 1
      %s395 = smul.addr %s392, 2
      %s396 = sadd.s32 %s394, %s395
      %s397 = scalar_lea.vmem %s4, %s396
      %s398 = smul.u32 2, %s23
      %s399 = smul.u32 32, %s22
      %p400 = scmp.lt.s32.totalorder %s21, 3
      %s401 = scalar_select %p400, %s21, 3
      %p402 = scmp.lt.s32.totalorder %s399, 31
      %s403 = scalar_select %p402, %s399, 31
      %s404 = smul.addr %s401, 32
      %s405 = sadd.s32 %s403, %s404
      %s406 = smul.addr %s405, 4
      %s407 = scalar_lea.vmem %s5, %s406
      %s408 = smul.u32 32, %s22
      %p410 = scmp.eq.s32.totalorder %s23, 0
      // Predicated region
      $region41: #{_lambda_.7} parent=39 // pred_check
        %p411 = pneg %p410
      $region42: #{_lambda_.7} parent=39 // pred_check_branch
        %413 = sbr.rel (%p411) target = $region44
      $region43: #{_lambda_.7} parent=39 // pred_region
        %vm414 = vcmask 31744
        %415 = vst.msk [vmem:[#allocation2] sm:$0xff] %vm414, 0.0
        %416 = vst.msk [vmem:[#allocation2 + $0x8] sm:$0xff] %vm414, 0.0
        %417 = vst.msk [vmem:[#allocation2 + $0x10] sm:$0xff] %vm414, 0.0
        %418 = vst.msk [vmem:[#allocation2 + $0x18] sm:$0xff] %vm414, 0.0
        %419 = vst.msk [vmem:[#allocation2 + $0x20] sm:$0xff] %vm414, 0.0
        %420 = vst.msk [vmem:[#allocation2 + $0x28] sm:$0xff] %vm414, 0.0
        %421 = vst.msk [vmem:[#allocation2 + $0x30] sm:$0xff] %vm414, 0.0
        %422 = vst.msk [vmem:[#allocation2 + $0x38] sm:$0xff] %vm414, 0.0
        %423 = vst.msk [vmem:[#allocation2 + $0x40] sm:$0xff] %vm414, 0.0
        %424 = vst.msk [vmem:[#allocation2 + $0x48] sm:$0xff] %vm414, 0.0
        %425 = vst.msk [vmem:[#allocation2 + $0x50] sm:$0xff] %vm414, 0.0
        %426 = vst.msk [vmem:[#allocation2 + $0x58] sm:$0xff] %vm414, 0.0
        %427 = vst.msk [vmem:[#allocation2 + $0x60] sm:$0xff] %vm414, 0.0
        %428 = vst.msk [vmem:[#allocation2 + $0x68] sm:$0xff] %vm414, 0.0
        %429 = vst.msk [vmem:[#allocation2 + $0x70] sm:$0xff] %vm414, 0.0
        %430 = vst.msk [vmem:[#allocation2 + $0x78] sm:$0xff] %vm414, 0.0
        %431 = vst.msk [vmem:[#allocation2 + $0x80] sm:$0xff] %vm414, 0.0
        %432 = vst.msk [vmem:[#allocation2 + $0x88] sm:$0xff] %vm414, 0.0
        %433 = vst.msk [vmem:[#allocation2 + $0x90] sm:$0xff] %vm414, 0.0
        %434 = vst.msk [vmem:[#allocation2 + $0x98] sm:$0xff] %vm414, 0.0
        %435 = vst.msk [vmem:[#allocation2 + $0xa0] sm:$0xff] %vm414, 0.0
        %436 = vst.msk [vmem:[#allocation2 + $0xa8] sm:$0xff] %vm414, 0.0
        %437 = vst.msk [vmem:[#allocation2 + $0xb0] sm:$0xff] %vm414, 0.0
        %438 = vst.msk [vmem:[#allocation2 + $0xb8] sm:$0xff] %vm414, 0.0
        %439 = vst.msk [vmem:[#allocation2 + $0xc0] sm:$0xff] %vm414, 0.0
        %440 = vst.msk [vmem:[#allocation2 + $0xc8] sm:$0xff] %vm414, 0.0
        %441 = vst.msk [vmem:[#allocation2 + $0xd0] sm:$0xff] %vm414, 0.0
        %442 = vst.msk [vmem:[#allocation2 + $0xd8] sm:$0xff] %vm414, 0.0
        %443 = vst.msk [vmem:[#allocation2 + $0xe0] sm:$0xff] %vm414, 0.0
        %444 = vst.msk [vmem:[#allocation2 + $0xe8] sm:$0xff] %vm414, 0.0
        %445 = vst.msk [vmem:[#allocation2 + $0xf0] sm:$0xff] %vm414, 0.0
        %446 = vst.msk [vmem:[#allocation2 + $0xf8] sm:$0xff] %vm414, 0.0
      $region44: #{_lambda_.7} parent=39 // pred_fallthru
        _
      %v447 = vld [vmem:[%s359] sm:$0xf]
      %v448 = vld [vmem:[%s359 + $0x4] sm:$0xf]
      %v449 = vld [vmem:[%s359 + $0x8] sm:$0xf]
      %v450 = vld [vmem:[%s359 + $0xc] sm:$0xf]
      %v451 = vld [vmem:[%s359 + $0x10] sm:$0xf]
      %v452 = vld [vmem:[%s359 + $0x14] sm:$0xf]
      %v453 = vld [vmem:[%s359 + $0x18] sm:$0xf]
      %v454 = vld [vmem:[%s359 + $0x1c] sm:$0xf]
      %v455 = vld [vmem:[%s359 + $0x20] sm:$0xf]
      %v456 = vld [vmem:[%s359 + $0x24] sm:$0xf]
      %v457 = vld [vmem:[%s359 + $0x28] sm:$0xf]
      %v458 = vld [vmem:[%s359 + $0x2c] sm:$0xf]
      %v459 = vld [vmem:[%s359 + $0x30] sm:$0xf]
      %v460 = vld [vmem:[%s359 + $0x34] sm:$0xf]
      %v461 = vld [vmem:[%s359 + $0x38] sm:$0xf]
      %v462 = vld [vmem:[%s359 + $0x3c] sm:$0xf]
      %v463 = vld [vmem:[%s359 + $0x40] sm:$0xf]
      %v464 = vld [vmem:[%s359 + $0x44] sm:$0xf]
      %v465 = vld [vmem:[%s359 + $0x48] sm:$0xf]
      %v466 = vld [vmem:[%s359 + $0x4c] sm:$0xf]
      %v467 = vld [vmem:[%s359 + $0x50] sm:$0xf]
      %v468 = vld [vmem:[%s359 + $0x54] sm:$0xf]
      %v469 = vld [vmem:[%s359 + $0x58] sm:$0xf]
      %v470 = vld [vmem:[%s359 + $0x5c] sm:$0xf]
      %v471 = vld [vmem:[%s359 + $0x60] sm:$0xf]
      %v472 = vld [vmem:[%s359 + $0x64] sm:$0xf]
      %v473 = vld [vmem:[%s359 + $0x68] sm:$0xf]
      %v474 = vld [vmem:[%s359 + $0x6c] sm:$0xf]
      %v475 = vld [vmem:[%s359 + $0x70] sm:$0xf]
      %v476 = vld [vmem:[%s359 + $0x74] sm:$0xf]
      %v477 = vld [vmem:[%s359 + $0x78] sm:$0xf]
      %v478 = vld [vmem:[%s359 + $0x7c] sm:$0xf]
      %v479 = vld [vmem:[%s369] sm:$0xf]
      %v512 = vunpack.c.l.b16 %v447
      %v513 = vunpack.c.l.b16 %v448
      %v514 = vunpack.c.l.b16 %v449
      %v515 = vunpack.c.l.b16 %v450
      %v516 = vunpack.c.l.b16 %v451
      %v517 = vunpack.c.l.b16 %v452
      %v518 = vunpack.c.l.b16 %v453
      %v519 = vunpack.c.l.b16 %v454
      %v520 = vunpack.c.l.b16 %v455
      %v521 = vunpack.c.l.b16 %v456
      %v522 = vunpack.c.l.b16 %v457
      %v523 = vunpack.c.l.b16 %v458
      %v524 = vunpack.c.l.b16 %v459
      %v525 = vunpack.c.l.b16 %v460
      %v526 = vunpack.c.l.b16 %v461
      %v527 = vunpack.c.l.b16 %v462
      %v528 = vunpack.c.l.b16 %v463
      %v529 = vunpack.c.l.b16 %v464
      %v530 = vunpack.c.l.b16 %v465
      %v531 = vunpack.c.l.b16 %v466
      %v532 = vunpack.c.l.b16 %v467
      %v533 = vunpack.c.l.b16 %v468
      %v534 = vunpack.c.l.b16 %v469
      %v535 = vunpack.c.l.b16 %v470
      %v536 = vunpack.c.l.b16 %v471
      %v537 = vunpack.c.l.b16 %v472
      %v538 = vunpack.c.l.b16 %v473
      %v539 = vunpack.c.l.b16 %v474
      %v540 = vunpack.c.l.b16 %v475
      %v541 = vunpack.c.l.b16 %v476
      %v542 = vunpack.c.l.b16 %v477
      %v543 = vunpack.c.l.b16 %v478
      %v544 = vpack.c.b16 %v513, %v512
      %v545 = vpack.c.b16 %v515, %v514
      %v546 = vpack.c.b16 %v517, %v516
      %v547 = vpack.c.b16 %v519, %v518
      %v548 = vpack.c.b16 %v521, %v520
      %v549 = vpack.c.b16 %v523, %v522
      %v550 = vpack.c.b16 %v525, %v524
      %v551 = vpack.c.b16 %v527, %v526
      %v552 = vpack.c.b16 %v529, %v528
      %v553 = vpack.c.b16 %v531, %v530
      %v554 = vpack.c.b16 %v533, %v532
      %v555 = vpack.c.b16 %v535, %v534
      %v556 = vpack.c.b16 %v537, %v536
      %v557 = vpack.c.b16 %v539, %v538
      %v558 = vpack.c.b16 %v541, %v540
      %v559 = vpack.c.b16 %v543, %v542
      %561 = vst [vmem:[#allocation1] ss:$4 sm:$0xff] %v479
      %v562 = vld.sshfl [vmem:[#allocation1] sm:$0xff pattern:$0x73625140]
      %v563 = vld.sshfl [vmem:[#allocation1 + $0x8] sm:$0xff pattern:$0x73625140]
      %vm564 = vcmask 31744
      %v566 = vsel %vm564, %v544, 0
      %v569 = vsel %vm564, %v545, 0
      %v572 = vsel %vm564, %v546, 0
      %v575 = vsel %vm564, %v547, 0
      %v578 = vsel %vm564, %v548, 0
      %v581 = vsel %vm564, %v549, 0
      %v584 = vsel %vm564, %v550, 0
      %v587 = vsel %vm564, %v551, 0
      %v590 = vsel %vm564, %v552, 0
      %v593 = vsel %vm564, %v553, 0
      %v596 = vsel %vm564, %v554, 0
      %v599 = vsel %vm564, %v555, 0
      %v602 = vsel %vm564, %v556, 0
      %v605 = vsel %vm564, %v557, 0
      %v608 = vsel %vm564, %v558, 0
      %v611 = vsel %vm564, %v559, 0
      %vm613 = vcmask 1041408
      %v614 = vsel %vm613, %v562, 0
      %v616 = vsel %vm613, %v563, 0
      %618 = vmatpush.bf16.msra.mxu0 0
      %619 = vmatpush.bf16.msra.mxu0 0
      %620 = vmatpush.bf16.msra.mxu0 0
      %621 = vmatpush.bf16.msra.mxu0 0
      %622 = vmatpush.bf16.msra.mxu0 0
      %623 = vmatpush.bf16.msra.mxu0 0
      %624 = vmatpush.bf16.msra.mxu0 0
      %625 = vmatpush.bf16.msra.mxu0 %v614
      %626 = vmatmul.bf16.gmra.mxu0 %v566
      %v627 = vpop.f32.mrf.mxu0
      %v628 = vadd.f32 0.0, %v627
      %v629 = vpop.f32.mrf.mxu0
      %v630 = vadd.f32 0.0, %v629
      %631 = vmatmul.bf16.gmra.mxu0 %v569
      %v632 = vpop.f32.mrf.mxu0
      %v633 = vadd.f32 0.0, %v632
      %v634 = vpop.f32.mrf.mxu0
      %v635 = vadd.f32 0.0, %v634
      %636 = vmatmul.bf16.gmra.mxu0 %v572
      %v637 = vpop.f32.mrf.mxu0
      %v638 = vadd.f32 0.0, %v637
      %v639 = vpop.f32.mrf.mxu0
      %v640 = vadd.f32 0.0, %v639
      %641 = vmatmul.bf16.gmra.mxu0 %v575
      %v642 = vpop.f32.mrf.mxu0
      %v643 = vadd.f32 0.0, %v642
      %v644 = vpop.f32.mrf.mxu0
      %v645 = vadd.f32 0.0, %v644
      %646 = vmatmul.bf16.gmra.mxu0 %v578
      %v647 = vpop.f32.mrf.mxu0
      %v648 = vadd.f32 0.0, %v647
      %v649 = vpop.f32.mrf.mxu0
      %v650 = vadd.f32 0.0, %v649
      %651 = vmatmul.bf16.gmra.mxu0 %v581
      %v652 = vpop.f32.mrf.mxu0
      %v653 = vadd.f32 0.0, %v652
      %v654 = vpop.f32.mrf.mxu0
      %v655 = vadd.f32 0.0, %v654
      %656 = vmatmul.bf16.gmra.mxu0 %v584
      %v657 = vpop.f32.mrf.mxu0
      %v658 = vadd.f32 0.0, %v657
      %v659 = vpop.f32.mrf.mxu0
      %v660 = vadd.f32 0.0, %v659
      %661 = vmatmul.bf16.gmra.mxu0 %v587
      %v662 = vpop.f32.mrf.mxu0
      %v663 = vadd.f32 0.0, %v662
      %v664 = vpop.f32.mrf.mxu0
      %v665 = vadd.f32 0.0, %v664
      %666 = vmatmul.bf16.gmra.mxu0 %v590
      %v667 = vpop.f32.mrf.mxu0
      %v668 = vadd.f32 0.0, %v667
      %v669 = vpop.f32.mrf.mxu0
      %v670 = vadd.f32 0.0, %v669
      %671 = vmatmul.bf16.gmra.mxu0 %v593
      %v672 = vpop.f32.mrf.mxu0
      %v673 = vadd.f32 0.0, %v672
      %v674 = vpop.f32.mrf.mxu0
      %v675 = vadd.f32 0.0, %v674
      %676 = vmatmul.bf16.gmra.mxu0 %v596
      %v677 = vpop.f32.mrf.mxu0
      %v678 = vadd.f32 0.0, %v677
      %v679 = vpop.f32.mrf.mxu0
      %v680 = vadd.f32 0.0, %v679
      %681 = vmatmul.bf16.gmra.mxu0 %v599
      %v682 = vpop.f32.mrf.mxu0
      %v683 = vadd.f32 0.0, %v682
      %v684 = vpop.f32.mrf.mxu0
      %v685 = vadd.f32 0.0, %v684
      %686 = vmatmul.bf16.gmra.mxu0 %v602
      %v687 = vpop.f32.mrf.mxu0
      %v688 = vadd.f32 0.0, %v687
      %v689 = vpop.f32.mrf.mxu0
      %v690 = vadd.f32 0.0, %v689
      %691 = vmatmul.bf16.gmra.mxu0 %v605
      %v692 = vpop.f32.mrf.mxu0
      %v693 = vadd.f32 0.0, %v692
      %v694 = vpop.f32.mrf.mxu0
      %v695 = vadd.f32 0.0, %v694
      %696 = vmatmul.bf16.gmra.mxu0 %v608
      %v697 = vpop.f32.mrf.mxu0
      %v698 = vadd.f32 0.0, %v697
      %v699 = vpop.f32.mrf.mxu0
      %v700 = vadd.f32 0.0, %v699
      %701 = vmatmul.bf16.gmra.mxu0 %v611
      %v702 = vpop.f32.mrf.mxu0
      %v703 = vadd.f32 0.0, %v702
      %v704 = vpop.f32.mrf.mxu0
      %v705 = vadd.f32 0.0, %v704
      %706 = vdwg.mxu0
      %707 = vmatpush.bf16.msra.mxu0 0
      %708 = vmatpush.bf16.msra.mxu0 0
      %709 = vmatpush.bf16.msra.mxu0 0
      %710 = vmatpush.bf16.msra.mxu0 0
      %711 = vmatpush.bf16.msra.mxu0 0
      %712 = vmatpush.bf16.msra.mxu0 0
      %713 = vmatpush.bf16.msra.mxu0 0
      %714 = vmatpush.bf16.msra.mxu0 %v616
      %715 = vmatmul.bf16.gmra.mxu0 %v566
      %v716 = vpop.f32.mrf.mxu0
      %v717 = vadd.f32 0.0, %v716
      %v718 = vpop.f32.mrf.mxu0
      %v719 = vadd.f32 0.0, %v718
      %720 = vmatmul.bf16.gmra.mxu0 %v569
      %v721 = vpop.f32.mrf.mxu0
      %v722 = vadd.f32 0.0, %v721
      %v723 = vpop.f32.mrf.mxu0
      %v724 = vadd.f32 0.0, %v723
      %725 = vmatmul.bf16.gmra.mxu0 %v572
      %v726 = vpop.f32.mrf.mxu0
      %v727 = vadd.f32 0.0, %v726
      %v728 = vpop.f32.mrf.mxu0
      %v729 = vadd.f32 0.0, %v728
      %730 = vmatmul.bf16.gmra.mxu0 %v575
      %v731 = vpop.f32.mrf.mxu0
      %v732 = vadd.f32 0.0, %v731
      %v733 = vpop.f32.mrf.mxu0
      %v734 = vadd.f32 0.0, %v733
      %735 = vmatmul.bf16.gmra.mxu0 %v578
      %v736 = vpop.f32.mrf.mxu0
      %v737 = vadd.f32 0.0, %v736
      %v738 = vpop.f32.mrf.mxu0
      %v739 = vadd.f32 0.0, %v738
      %740 = vmatmul.bf16.gmra.mxu0 %v581
      %v741 = vpop.f32.mrf.mxu0
      %v742 = vadd.f32 0.0, %v741
      %v743 = vpop.f32.mrf.mxu0
      %v744 = vadd.f32 0.0, %v743
      %745 = vmatmul.bf16.gmra.mxu0 %v584
      %v746 = vpop.f32.mrf.mxu0
      %v747 = vadd.f32 0.0, %v746
      %v748 = vpop.f32.mrf.mxu0
      %v749 = vadd.f32 0.0, %v748
      %750 = vmatmul.bf16.gmra.mxu0 %v587
      %v751 = vpop.f32.mrf.mxu0
      %v752 = vadd.f32 0.0, %v751
      %v753 = vpop.f32.mrf.mxu0
      %v754 = vadd.f32 0.0, %v753
      %755 = vmatmul.bf16.gmra.mxu0 %v590
      %v756 = vpop.f32.mrf.mxu0
      %v757 = vadd.f32 0.0, %v756
      %v758 = vpop.f32.mrf.mxu0
      %v759 = vadd.f32 0.0, %v758
      %760 = vmatmul.bf16.gmra.mxu0 %v593
      %v761 = vpop.f32.mrf.mxu0
      %v762 = vadd.f32 0.0, %v761
      %v763 = vpop.f32.mrf.mxu0
      %v764 = vadd.f32 0.0, %v763
      %765 = vmatmul.bf16.gmra.mxu0 %v596
      %v766 = vpop.f32.mrf.mxu0
      %v767 = vadd.f32 0.0, %v766
      %v768 = vpop.f32.mrf.mxu0
      %v769 = vadd.f32 0.0, %v768
      %770 = vmatmul.bf16.gmra.mxu0 %v599
      %v771 = vpop.f32.mrf.mxu0
      %v772 = vadd.f32 0.0, %v771
      %v773 = vpop.f32.mrf.mxu0
      %v774 = vadd.f32 0.0, %v773
      %775 = vmatmul.bf16.gmra.mxu0 %v602
      %v776 = vpop.f32.mrf.mxu0
      %v777 = vadd.f32 0.0, %v776
      %v778 = vpop.f32.mrf.mxu0
      %v779 = vadd.f32 0.0, %v778
      %780 = vmatmul.bf16.gmra.mxu0 %v605
      %v781 = vpop.f32.mrf.mxu0
      %v782 = vadd.f32 0.0, %v781
      %v783 = vpop.f32.mrf.mxu0
      %v784 = vadd.f32 0.0, %v783
      %785 = vmatmul.bf16.gmra.mxu0 %v608
      %v786 = vpop.f32.mrf.mxu0
      %v787 = vadd.f32 0.0, %v786
      %v788 = vpop.f32.mrf.mxu0
      %v789 = vadd.f32 0.0, %v788
      %790 = vmatmul.bf16.gmra.mxu0 %v611
      %v791 = vpop.f32.mrf.mxu0
      %v792 = vadd.f32 0.0, %v791
      %v793 = vpop.f32.mrf.mxu0
      %v794 = vadd.f32 0.0, %v793
      %795 = vdwg.mxu0
      %v796 = vld [vmem:[%s388] sm:$0x3]
      %v798 = vperm.slane %v796, 0
      %v799 = vperm.slane %v796, 1
      %v802 = vsub.f32 %v628, %v798
      %v803 = vsub.f32 %v717, %v799
      %v804 = vsub.f32 %v630, %v798
      %v805 = vsub.f32 %v719, %v799
      %v806 = vsub.f32 %v633, %v798
      %v807 = vsub.f32 %v722, %v799
      %v808 = vsub.f32 %v635, %v798
      %v809 = vsub.f32 %v724, %v799
      %v810 = vsub.f32 %v638, %v798
      %v811 = vsub.f32 %v727, %v799
      %v812 = vsub.f32 %v640, %v798
      %v813 = vsub.f32 %v729, %v799
      %v814 = vsub.f32 %v643, %v798
      %v815 = vsub.f32 %v732, %v799
      %v816 = vsub.f32 %v645, %v798
      %v817 = vsub.f32 %v734, %v799
      %v818 = vsub.f32 %v648, %v798
      %v819 = vsub.f32 %v737, %v799
      %v820 = vsub.f32 %v650, %v798
      %v821 = vsub.f32 %v739, %v799
      %v822 = vsub.f32 %v653, %v798
      %v823 = vsub.f32 %v742, %v799
      %v824 = vsub.f32 %v655, %v798
      %v825 = vsub.f32 %v744, %v799
      %v826 = vsub.f32 %v658, %v798
      %v827 = vsub.f32 %v747, %v799
      %v828 = vsub.f32 %v660, %v798
      %v829 = vsub.f32 %v749, %v799
      %v830 = vsub.f32 %v663, %v798
      %v831 = vsub.f32 %v752, %v799
      %v832 = vsub.f32 %v665, %v798
      %v833 = vsub.f32 %v754, %v799
      %v834 = vsub.f32 %v668, %v798
      %v835 = vsub.f32 %v757, %v799
      %v836 = vsub.f32 %v670, %v798
      %v837 = vsub.f32 %v759, %v799
      %v838 = vsub.f32 %v673, %v798
      %v839 = vsub.f32 %v762, %v799
      %v840 = vsub.f32 %v675, %v798
      %v841 = vsub.f32 %v764, %v799
      %v842 = vsub.f32 %v678, %v798
      %v843 = vsub.f32 %v767, %v799
      %v844 = vsub.f32 %v680, %v798
      %v845 = vsub.f32 %v769, %v799
      %v846 = vsub.f32 %v683, %v798
      %v847 = vsub.f32 %v772, %v799
      %v848 = vsub.f32 %v685, %v798
      %v849 = vsub.f32 %v774, %v799
      %v850 = vsub.f32 %v688, %v798
      %v851 = vsub.f32 %v777, %v799
      %v852 = vsub.f32 %v690, %v798
      %v853 = vsub.f32 %v779, %v799
      %v854 = vsub.f32 %v693, %v798
      %v855 = vsub.f32 %v782, %v799
      %v856 = vsub.f32 %v695, %v798
      %v857 = vsub.f32 %v784, %v799
      %v858 = vsub.f32 %v698, %v798
      %v859 = vsub.f32 %v787, %v799
      %v860 = vsub.f32 %v700, %v798
      %v861 = vsub.f32 %v789, %v799
      %v862 = vsub.f32 %v703, %v798
      %v863 = vsub.f32 %v792, %v799
      %v864 = vsub.f32 %v705, %v798
      %v865 = vsub.f32 %v794, %v799
      %v866 = vmul.f32 %v802, 1.442695
      %v867 = vpow.pop %v866
      %v868 = vmul.f32 %v803, 1.442695
      %v869 = vpow.pop %v868
      %v870 = vmul.f32 %v804, 1.442695
      %v871 = vpow.pop %v870
      %v872 = vmul.f32 %v805, 1.442695
      %v873 = vpow.pop %v872
      %v874 = vmul.f32 %v806, 1.442695
      %v875 = vpow.pop %v874
      %v876 = vmul.f32 %v807, 1.442695
      %v877 = vpow.pop %v876
      %v878 = vmul.f32 %v808, 1.442695
      %v879 = vpow.pop %v878
      %v880 = vmul.f32 %v809, 1.442695
      %v881 = vpow.pop %v880
      %v882 = vmul.f32 %v810, 1.442695
      %v883 = vpow.pop %v882
      %v884 = vmul.f32 %v811, 1.442695
      %v885 = vpow.pop %v884
      %v886 = vmul.f32 %v812, 1.442695
      %v887 = vpow.pop %v886
      %v888 = vmul.f32 %v813, 1.442695
      %v889 = vpow.pop %v888
      %v890 = vmul.f32 %v814, 1.442695
      %v891 = vpow.pop %v890
      %v892 = vmul.f32 %v815, 1.442695
      %v893 = vpow.pop %v892
      %v894 = vmul.f32 %v816, 1.442695
      %v895 = vpow.pop %v894
      %v896 = vmul.f32 %v817, 1.442695
      %v897 = vpow.pop %v896
      %v898 = vmul.f32 %v818, 1.442695
      %v899 = vpow.pop %v898
      %v900 = vmul.f32 %v819, 1.442695
      %v901 = vpow.pop %v900
      %v902 = vmul.f32 %v820, 1.442695
      %v903 = vpow.pop %v902
      %v904 = vmul.f32 %v821, 1.442695
      %v905 = vpow.pop %v904
      %v906 = vmul.f32 %v822, 1.442695
      %v907 = vpow.pop %v906
      %v908 = vmul.f32 %v823, 1.442695
      %v909 = vpow.pop %v908
      %v910 = vmul.f32 %v824, 1.442695
      %v911 = vpow.pop %v910
      %v912 = vmul.f32 %v825, 1.442695
      %v913 = vpow.pop %v912
      %v914 = vmul.f32 %v826, 1.442695
      %v915 = vpow.pop %v914
      %v916 = vmul.f32 %v827, 1.442695
      %v917 = vpow.pop %v916
      %v918 = vmul.f32 %v828, 1.442695
      %v919 = vpow.pop %v918
      %v920 = vmul.f32 %v829, 1.442695
      %v921 = vpow.pop %v920
      %v922 = vmul.f32 %v830, 1.442695
      %v923 = vpow.pop %v922
      %v924 = vmul.f32 %v831, 1.442695
      %v925 = vpow.pop %v924
      %v926 = vmul.f32 %v832, 1.442695
      %v927 = vpow.pop %v926
      %v928 = vmul.f32 %v833, 1.442695
      %v929 = vpow.pop %v928
      %v930 = vmul.f32 %v834, 1.442695
      %v931 = vpow.pop %v930
      %v932 = vmul.f32 %v835, 1.442695
      %v933 = vpow.pop %v932
      %v934 = vmul.f32 %v836, 1.442695
      %v935 = vpow.pop %v934
      %v936 = vmul.f32 %v837, 1.442695
      %v937 = vpow.pop %v936
      %v938 = vmul.f32 %v838, 1.442695
      %v939 = vpow.pop %v938
      %v940 = vmul.f32 %v839, 1.442695
      %v941 = vpow.pop %v940
      %v942 = vmul.f32 %v840, 1.442695
      %v943 = vpow.pop %v942
      %v944 = vmul.f32 %v841, 1.442695
      %v945 = vpow.pop %v944
      %v946 = vmul.f32 %v842, 1.442695
      %v947 = vpow.pop %v946
      %v948 = vmul.f32 %v843, 1.442695
      %v949 = vpow.pop %v948
      %v950 = vmul.f32 %v844, 1.442695
      %v951 = vpow.pop %v950
      %v952 = vmul.f32 %v845, 1.442695
      %v953 = vpow.pop %v952
      %v954 = vmul.f32 %v846, 1.442695
      %v955 = vpow.pop %v954
      %v956 = vmul.f32 %v847, 1.442695
      %v957 = vpow.pop %v956
      %v958 = vmul.f32 %v848, 1.442695
      %v959 = vpow.pop %v958
      %v960 = vmul.f32 %v849, 1.442695
      %v961 = vpow.pop %v960
      %v962 = vmul.f32 %v850, 1.442695
      %v963 = vpow.pop %v962
      %v964 = vmul.f32 %v851, 1.442695
      %v965 = vpow.pop %v964
      %v966 = vmul.f32 %v852, 1.442695
      %v967 = vpow.pop %v966
      %v968 = vmul.f32 %v853, 1.442695
      %v969 = vpow.pop %v968
      %v970 = vmul.f32 %v854, 1.442695
      %v971 = vpow.pop %v970
      %v972 = vmul.f32 %v855, 1.442695
      %v973 = vpow.pop %v972
      %v974 = vmul.f32 %v856, 1.442695
      %v975 = vpow.pop %v974
      %v976 = vmul.f32 %v857, 1.442695
      %v977 = vpow.pop %v976
      %v978 = vmul.f32 %v858, 1.442695
      %v979 = vpow.pop %v978
      %v980 = vmul.f32 %v859, 1.442695
      %v981 = vpow.pop %v980
      %v982 = vmul.f32 %v860, 1.442695
      %v983 = vpow.pop %v982
      %v984 = vmul.f32 %v861, 1.442695
      %v985 = vpow.pop %v984
      %v986 = vmul.f32 %v862, 1.442695
      %v987 = vpow.pop %v986
      %v988 = vmul.f32 %v863, 1.442695
      %v989 = vpow.pop %v988
      %v990 = vmul.f32 %v864, 1.442695
      %v991 = vpow.pop %v990
      %v992 = vmul.f32 %v865, 1.442695
      %v993 = vpow.pop %v992
      %v994 = vld [vmem:[%s397] sm:$0x3]
      %v995 = vrcp.pop %v994
      %v997 = vperm.slane %v995, 0
      %v998 = vperm.slane %v995, 1
      %v1001 = vmul.f32 %v867, %v997
      %v1002 = vmul.f32 %v869, %v998
      %v1003 = vmul.f32 %v871, %v997
      %v1004 = vmul.f32 %v873, %v998
      %v1005 = vmul.f32 %v875, %v997
      %v1006 = vmul.f32 %v877, %v998
      %v1007 = vmul.f32 %v879, %v997
      %v1008 = vmul.f32 %v881, %v998
      %v1009 = vmul.f32 %v883, %v997
      %v1010 = vmul.f32 %v885, %v998
      %v1011 = vmul.f32 %v887, %v997
      %v1012 = vmul.f32 %v889, %v998
      %v1013 = vmul.f32 %v891, %v997
      %v1014 = vmul.f32 %v893, %v998
      %v1015 = vmul.f32 %v895, %v997
      %v1016 = vmul.f32 %v897, %v998
      %v1017 = vmul.f32 %v899, %v997
      %v1018 = vmul.f32 %v901, %v998
      %v1019 = vmul.f32 %v903, %v997
      %v1020 = vmul.f32 %v905, %v998
      %v1021 = vmul.f32 %v907, %v997
      %v1022 = vmul.f32 %v909, %v998
      %v1023 = vmul.f32 %v911, %v997
      %v1024 = vmul.f32 %v913, %v998
      %v1025 = vmul.f32 %v915, %v997
      %v1026 = vmul.f32 %v917, %v998
      %v1027 = vmul.f32 %v919, %v997
      %v1028 = vmul.f32 %v921, %v998
      %v1029 = vmul.f32 %v923, %v997
      %v1030 = vmul.f32 %v925, %v998
      %v1031 = vmul.f32 %v927, %v997
      %v1032 = vmul.f32 %v929, %v998
      %v1033 = vmul.f32 %v931, %v997
      %v1034 = vmul.f32 %v933, %v998
      %v1035 = vmul.f32 %v935, %v997
      %v1036 = vmul.f32 %v937, %v998
      %v1037 = vmul.f32 %v939, %v997
      %v1038 = vmul.f32 %v941, %v998
      %v1039 = vmul.f32 %v943, %v997
      %v1040 = vmul.f32 %v945, %v998
      %v1041 = vmul.f32 %v947, %v997
      %v1042 = vmul.f32 %v949, %v998
      %v1043 = vmul.f32 %v951, %v997
      %v1044 = vmul.f32 %v953, %v998
      %v1045 = vmul.f32 %v955, %v997
      %v1046 = vmul.f32 %v957, %v998
      %v1047 = vmul.f32 %v959, %v997
      %v1048 = vmul.f32 %v961, %v998
      %v1049 = vmul.f32 %v963, %v997
      %v1050 = vmul.f32 %v965, %v998
      %v1051 = vmul.f32 %v967, %v997
      %v1052 = vmul.f32 %v969, %v998
      %v1053 = vmul.f32 %v971, %v997
      %v1054 = vmul.f32 %v973, %v998
      %v1055 = vmul.f32 %v975, %v997
      %v1056 = vmul.f32 %v977, %v998
      %v1057 = vmul.f32 %v979, %v997
      %v1058 = vmul.f32 %v981, %v998
      %v1059 = vmul.f32 %v983, %v997
      %v1060 = vmul.f32 %v985, %v998
      %v1061 = vmul.f32 %v987, %v997
      %v1062 = vmul.f32 %v989, %v998
      %v1063 = vmul.f32 %v991, %v997
      %v1064 = vmul.f32 %v993, %v998
      %v1065 = vld [vmem:[#allocation2] sm:$0xff]
      %v1066 = vld [vmem:[#allocation2 + $0x8] sm:$0xff]
      %v1067 = vld [vmem:[#allocation2 + $0x10] sm:$0xff]
      %v1068 = vld [vmem:[#allocation2 + $0x18] sm:$0xff]
      %v1069 = vld [vmem:[#allocation2 + $0x20] sm:$0xff]
      %v1070 = vld [vmem:[#allocation2 + $0x28] sm:$0xff]
      %v1071 = vld [vmem:[#allocation2 + $0x30] sm:$0xff]
      %v1072 = vld [vmem:[#allocation2 + $0x38] sm:$0xff]
      %v1073 = vld [vmem:[#allocation2 + $0x40] sm:$0xff]
      %v1074 = vld [vmem:[#allocation2 + $0x48] sm:$0xff]
      %v1075 = vld [vmem:[#allocation2 + $0x50] sm:$0xff]
      %v1076 = vld [vmem:[#allocation2 + $0x58] sm:$0xff]
      %v1077 = vld [vmem:[#allocation2 + $0x60] sm:$0xff]
      %v1078 = vld [vmem:[#allocation2 + $0x68] sm:$0xff]
      %v1079 = vld [vmem:[#allocation2 + $0x70] sm:$0xff]
      %v1080 = vld [vmem:[#allocation2 + $0x78] sm:$0xff]
      %v1081 = vld [vmem:[#allocation2 + $0x80] sm:$0xff]
      %v1082 = vld [vmem:[#allocation2 + $0x88] sm:$0xff]
      %v1083 = vld [vmem:[#allocation2 + $0x90] sm:$0xff]
      %v1084 = vld [vmem:[#allocation2 + $0x98] sm:$0xff]
      %v1085 = vld [vmem:[#allocation2 + $0xa0] sm:$0xff]
      %v1086 = vld [vmem:[#allocation2 + $0xa8] sm:$0xff]
      %v1087 = vld [vmem:[#allocation2 + $0xb0] sm:$0xff]
      %v1088 = vld [vmem:[#allocation2 + $0xb8] sm:$0xff]
      %v1089 = vld [vmem:[#allocation2 + $0xc0] sm:$0xff]
      %v1090 = vld [vmem:[#allocation2 + $0xc8] sm:$0xff]
      %v1091 = vld [vmem:[#allocation2 + $0xd0] sm:$0xff]
      %v1092 = vld [vmem:[#allocation2 + $0xd8] sm:$0xff]
      %v1093 = vld [vmem:[#allocation2 + $0xe0] sm:$0xff]
      %v1094 = vld [vmem:[#allocation2 + $0xe8] sm:$0xff]
      %v1095 = vld [vmem:[#allocation2 + $0xf0] sm:$0xff]
      %v1096 = vld [vmem:[#allocation2 + $0xf8] sm:$0xff]
      %v1097 = vpack.c.bf16 %v1003, %v1001
      %v1098 = vpack.c.bf16 %v1004, %v1002
      %v1099 = vpack.c.bf16 %v1007, %v1005
      %v1100 = vpack.c.bf16 %v1008, %v1006
      %v1101 = vpack.c.bf16 %v1011, %v1009
      %v1102 = vpack.c.bf16 %v1012, %v1010
      %v1103 = vpack.c.bf16 %v1015, %v1013
      %v1104 = vpack.c.bf16 %v1016, %v1014
      %v1105 = vpack.c.bf16 %v1019, %v1017
      %v1106 = vpack.c.bf16 %v1020, %v1018
      %v1107 = vpack.c.bf16 %v1023, %v1021
      %v1108 = vpack.c.bf16 %v1024, %v1022
      %v1109 = vpack.c.bf16 %v1027, %v1025
      %v1110 = vpack.c.bf16 %v1028, %v1026
      %v1111 = vpack.c.bf16 %v1031, %v1029
      %v1112 = vpack.c.bf16 %v1032, %v1030
      %v1113 = vpack.c.bf16 %v1035, %v1033
      %v1114 = vpack.c.bf16 %v1036, %v1034
      %v1115 = vpack.c.bf16 %v1039, %v1037
      %v1116 = vpack.c.bf16 %v1040, %v1038
      %v1117 = vpack.c.bf16 %v1043, %v1041
      %v1118 = vpack.c.bf16 %v1044, %v1042
      %v1119 = vpack.c.bf16 %v1047, %v1045
      %v1120 = vpack.c.bf16 %v1048, %v1046
      %v1121 = vpack.c.bf16 %v1051, %v1049
      %v1122 = vpack.c.bf16 %v1052, %v1050
      %v1123 = vpack.c.bf16 %v1055, %v1053
      %v1124 = vpack.c.bf16 %v1056, %v1054
      %v1125 = vpack.c.bf16 %v1059, %v1057
      %v1126 = vpack.c.bf16 %v1060, %v1058
      %v1127 = vpack.c.bf16 %v1063, %v1061
      %v1128 = vpack.c.bf16 %v1064, %v1062
      %v1129 = vld [vmem:[%s379] sm:$0xf]
      %v1130 = vld [vmem:[%s379 + $0x4] sm:$0xf]
      %v1131 = vld [vmem:[%s379 + $0x8] sm:$0xf]
      %v1132 = vld [vmem:[%s379 + $0xc] sm:$0xf]
      %v1133 = vld [vmem:[%s379 + $0x10] sm:$0xf]
      %v1134 = vld [vmem:[%s379 + $0x14] sm:$0xf]
      %v1135 = vld [vmem:[%s379 + $0x18] sm:$0xf]
      %v1136 = vld [vmem:[%s379 + $0x1c] sm:$0xf]
      %v1137 = vld [vmem:[%s379 + $0x20] sm:$0xf]
      %v1138 = vld [vmem:[%s379 + $0x24] sm:$0xf]
      %v1139 = vld [vmem:[%s379 + $0x28] sm:$0xf]
      %v1140 = vld [vmem:[%s379 + $0x2c] sm:$0xf]
      %v1141 = vld [vmem:[%s379 + $0x30] sm:$0xf]
      %v1142 = vld [vmem:[%s379 + $0x34] sm:$0xf]
      %v1143 = vld [vmem:[%s379 + $0x38] sm:$0xf]
      %v1144 = vld [vmem:[%s379 + $0x3c] sm:$0xf]
      %v1145 = vld [vmem:[%s379 + $0x40] sm:$0xf]
      %v1146 = vld [vmem:[%s379 + $0x44] sm:$0xf]
      %v1147 = vld [vmem:[%s379 + $0x48] sm:$0xf]
      %v1148 = vld [vmem:[%s379 + $0x4c] sm:$0xf]
      %v1149 = vld [vmem:[%s379 + $0x50] sm:$0xf]
      %v1150 = vld [vmem:[%s379 + $0x54] sm:$0xf]
      %v1151 = vld [vmem:[%s379 + $0x58] sm:$0xf]
      %v1152 = vld [vmem:[%s379 + $0x5c] sm:$0xf]
      %v1153 = vld [vmem:[%s379 + $0x60] sm:$0xf]
      %v1154 = vld [vmem:[%s379 + $0x64] sm:$0xf]
      %v1155 = vld [vmem:[%s379 + $0x68] sm:$0xf]
      %v1156 = vld [vmem:[%s379 + $0x6c] sm:$0xf]
      %v1157 = vld [vmem:[%s379 + $0x70] sm:$0xf]
      %v1158 = vld [vmem:[%s379 + $0x74] sm:$0xf]
      %v1159 = vld [vmem:[%s379 + $0x78] sm:$0xf]
      %v1160 = vld [vmem:[%s379 + $0x7c] sm:$0xf]
      %v1193 = vunpack.c.l.b16 %v1129
      %v1194 = vunpack.c.l.b16 %v1130
      %v1195 = vunpack.c.l.b16 %v1131
      %v1196 = vunpack.c.l.b16 %v1132
      %v1197 = vunpack.c.l.b16 %v1133
      %v1198 = vunpack.c.l.b16 %v1134
      %v1199 = vunpack.c.l.b16 %v1135
      %v1200 = vunpack.c.l.b16 %v1136
      %v1201 = vunpack.c.l.b16 %v1137
      %v1202 = vunpack.c.l.b16 %v1138
      %v1203 = vunpack.c.l.b16 %v1139
      %v1204 = vunpack.c.l.b16 %v1140
      %v1205 = vunpack.c.l.b16 %v1141
      %v1206 = vunpack.c.l.b16 %v1142
      %v1207 = vunpack.c.l.b16 %v1143
      %v1208 = vunpack.c.l.b16 %v1144
      %v1209 = vunpack.c.l.b16 %v1145
      %v1210 = vunpack.c.l.b16 %v1146
      %v1211 = vunpack.c.l.b16 %v1147
      %v1212 = vunpack.c.l.b16 %v1148
      %v1213 = vunpack.c.l.b16 %v1149
      %v1214 = vunpack.c.l.b16 %v1150
      %v1215 = vunpack.c.l.b16 %v1151
      %v1216 = vunpack.c.l.b16 %v1152
      %v1217 = vunpack.c.l.b16 %v1153
      %v1218 = vunpack.c.l.b16 %v1154
      %v1219 = vunpack.c.l.b16 %v1155
      %v1220 = vunpack.c.l.b16 %v1156
      %v1221 = vunpack.c.l.b16 %v1157
      %v1222 = vunpack.c.l.b16 %v1158
      %v1223 = vunpack.c.l.b16 %v1159
      %v1224 = vunpack.c.l.b16 %v1160
      %v1225 = vpack.c.b16 %v1194, %v1193
      %v1226 = vpack.c.b16 %v1196, %v1195
      %v1227 = vpack.c.b16 %v1198, %v1197
      %v1228 = vpack.c.b16 %v1200, %v1199
      %v1229 = vpack.c.b16 %v1202, %v1201
      %v1230 = vpack.c.b16 %v1204, %v1203
      %v1231 = vpack.c.b16 %v1206, %v1205
      %v1232 = vpack.c.b16 %v1208, %v1207
      %v1233 = vpack.c.b16 %v1210, %v1209
      %v1234 = vpack.c.b16 %v1212, %v1211
      %v1235 = vpack.c.b16 %v1214, %v1213
      %v1236 = vpack.c.b16 %v1216, %v1215
      %v1237 = vpack.c.b16 %v1218, %v1217
      %v1238 = vpack.c.b16 %v1220, %v1219
      %v1239 = vpack.c.b16 %v1222, %v1221
      %v1240 = vpack.c.b16 %v1224, %v1223
      %1257 = vmatpush.bf16.msra.mxu0 %v1232
      %1258 = vmatpush.bf16.msra.mxu0 %v1231
      %1259 = vmatpush.bf16.msra.mxu0 %v1230
      %1260 = vmatpush.bf16.msra.mxu0 %v1229
      %1261 = vmatpush.bf16.msra.mxu0 %v1228
      %1262 = vmatpush.bf16.msra.mxu0 %v1227
      %1263 = vmatpush.bf16.msra.mxu0 %v1226
      %1264 = vmatpush.bf16.msra.mxu0 %v1225
      %1265 = vmatmul.bf16.gmra.mxu0 %v1097
      %v1266 = vpop.f32.mrf.mxu0
      %v1267 = vadd.f32 0.0, %v1266
      %v1268 = vpop.f32.mrf.mxu0
      %v1269 = vadd.f32 0.0, %v1268
      %1270 = vmatmul.bf16.gmra.mxu0 %v1099
      %v1271 = vpop.f32.mrf.mxu0
      %v1272 = vadd.f32 0.0, %v1271
      %v1273 = vpop.f32.mrf.mxu0
      %v1274 = vadd.f32 0.0, %v1273
      %1275 = vmatmul.bf16.gmra.mxu0 %v1101
      %v1276 = vpop.f32.mrf.mxu0
      %v1277 = vadd.f32 0.0, %v1276
      %v1278 = vpop.f32.mrf.mxu0
      %v1279 = vadd.f32 0.0, %v1278
      %1280 = vmatmul.bf16.gmra.mxu0 %v1103
      %v1281 = vpop.f32.mrf.mxu0
      %v1282 = vadd.f32 0.0, %v1281
      %v1283 = vpop.f32.mrf.mxu0
      %v1284 = vadd.f32 0.0, %v1283
      %1285 = vmatmul.bf16.gmra.mxu0 %v1105
      %v1286 = vpop.f32.mrf.mxu0
      %v1287 = vadd.f32 0.0, %v1286
      %v1288 = vpop.f32.mrf.mxu0
      %v1289 = vadd.f32 0.0, %v1288
      %1290 = vmatmul.bf16.gmra.mxu0 %v1107
      %v1291 = vpop.f32.mrf.mxu0
      %v1292 = vadd.f32 0.0, %v1291
      %v1293 = vpop.f32.mrf.mxu0
      %v1294 = vadd.f32 0.0, %v1293
      %1295 = vmatmul.bf16.gmra.mxu0 %v1109
      %v1296 = vpop.f32.mrf.mxu0
      %v1297 = vadd.f32 0.0, %v1296
      %v1298 = vpop.f32.mrf.mxu0
      %v1299 = vadd.f32 0.0, %v1298
      %1300 = vmatmul.bf16.gmra.mxu0 %v1111
      %v1301 = vpop.f32.mrf.mxu0
      %v1302 = vadd.f32 0.0, %v1301
      %v1303 = vpop.f32.mrf.mxu0
      %v1304 = vadd.f32 0.0, %v1303
      %1305 = vmatmul.bf16.gmra.mxu0 %v1113
      %v1306 = vpop.f32.mrf.mxu0
      %v1307 = vadd.f32 0.0, %v1306
      %v1308 = vpop.f32.mrf.mxu0
      %v1309 = vadd.f32 0.0, %v1308
      %1310 = vmatmul.bf16.gmra.mxu0 %v1115
      %v1311 = vpop.f32.mrf.mxu0
      %v1312 = vadd.f32 0.0, %v1311
      %v1313 = vpop.f32.mrf.mxu0
      %v1314 = vadd.f32 0.0, %v1313
      %1315 = vmatmul.bf16.gmra.mxu0 %v1117
      %v1316 = vpop.f32.mrf.mxu0
      %v1317 = vadd.f32 0.0, %v1316
      %v1318 = vpop.f32.mrf.mxu0
      %v1319 = vadd.f32 0.0, %v1318
      %1320 = vmatmul.bf16.gmra.mxu0 %v1119
      %v1321 = vpop.f32.mrf.mxu0
      %v1322 = vadd.f32 0.0, %v1321
      %v1323 = vpop.f32.mrf.mxu0
      %v1324 = vadd.f32 0.0, %v1323
      %1325 = vmatmul.bf16.gmra.mxu0 %v1121
      %v1326 = vpop.f32.mrf.mxu0
      %v1327 = vadd.f32 0.0, %v1326
      %v1328 = vpop.f32.mrf.mxu0
      %v1329 = vadd.f32 0.0, %v1328
      %1330 = vmatmul.bf16.gmra.mxu0 %v1123
      %v1331 = vpop.f32.mrf.mxu0
      %v1332 = vadd.f32 0.0, %v1331
      %v1333 = vpop.f32.mrf.mxu0
      %v1334 = vadd.f32 0.0, %v1333
      %1335 = vmatmul.bf16.gmra.mxu0 %v1125
      %v1336 = vpop.f32.mrf.mxu0
      %v1337 = vadd.f32 0.0, %v1336
      %v1338 = vpop.f32.mrf.mxu0
      %v1339 = vadd.f32 0.0, %v1338
      %1340 = vmatmul.bf16.gmra.mxu0 %v1127
      %v1341 = vpop.f32.mrf.mxu0
      %v1342 = vadd.f32 0.0, %v1341
      %v1343 = vpop.f32.mrf.mxu0
      %v1344 = vadd.f32 0.0, %v1343
      %1345 = vdwg.mxu0
      %1346 = vmatpush.bf16.msra.mxu0 %v1240
      %1347 = vmatpush.bf16.msra.mxu0 %v1239
      %1348 = vmatpush.bf16.msra.mxu0 %v1238
      %1349 = vmatpush.bf16.msra.mxu0 %v1237
      %1350 = vmatpush.bf16.msra.mxu0 %v1236
      %1351 = vmatpush.bf16.msra.mxu0 %v1235
      %1352 = vmatpush.bf16.msra.mxu0 %v1234
      %1353 = vmatpush.bf16.msra.mxu0 %v1233
      %1354 = vmatmul.bf16.gmra.mxu0 %v1098
      %v1355 = vpop.f32.mrf.mxu0
      %v1356 = vadd.f32 %v1267, %v1355
      %v1357 = vpop.f32.mrf.mxu0
      %v1358 = vadd.f32 %v1269, %v1357
      %1359 = vmatmul.bf16.gmra.mxu0 %v1100
      %v1360 = vpop.f32.mrf.mxu0
      %v1361 = vadd.f32 %v1272, %v1360
      %v1362 = vpop.f32.mrf.mxu0
      %v1363 = vadd.f32 %v1274, %v1362
      %1364 = vmatmul.bf16.gmra.mxu0 %v1102
      %v1365 = vpop.f32.mrf.mxu0
      %v1366 = vadd.f32 %v1277, %v1365
      %v1367 = vpop.f32.mrf.mxu0
      %v1368 = vadd.f32 %v1279, %v1367
      %1369 = vmatmul.bf16.gmra.mxu0 %v1104
      %v1370 = vpop.f32.mrf.mxu0
      %v1371 = vadd.f32 %v1282, %v1370
      %v1372 = vpop.f32.mrf.mxu0
      %v1373 = vadd.f32 %v1284, %v1372
      %1374 = vmatmul.bf16.gmra.mxu0 %v1106
      %v1375 = vpop.f32.mrf.mxu0
      %v1376 = vadd.f32 %v1287, %v1375
      %v1377 = vpop.f32.mrf.mxu0
      %v1378 = vadd.f32 %v1289, %v1377
      %1379 = vmatmul.bf16.gmra.mxu0 %v1108
      %v1380 = vpop.f32.mrf.mxu0
      %v1381 = vadd.f32 %v1292, %v1380
      %v1382 = vpop.f32.mrf.mxu0
      %v1383 = vadd.f32 %v1294, %v1382
      %1384 = vmatmul.bf16.gmra.mxu0 %v1110
      %v1385 = vpop.f32.mrf.mxu0
      %v1386 = vadd.f32 %v1297, %v1385
      %v1387 = vpop.f32.mrf.mxu0
      %v1388 = vadd.f32 %v1299, %v1387
      %1389 = vmatmul.bf16.gmra.mxu0 %v1112
      %v1390 = vpop.f32.mrf.mxu0
      %v1391 = vadd.f32 %v1302, %v1390
      %v1392 = vpop.f32.mrf.mxu0
      %v1393 = vadd.f32 %v1304, %v1392
      %1394 = vmatmul.bf16.gmra.mxu0 %v1114
      %v1395 = vpop.f32.mrf.mxu0
      %v1396 = vadd.f32 %v1307, %v1395
      %v1397 = vpop.f32.mrf.mxu0
      %v1398 = vadd.f32 %v1309, %v1397
      %1399 = vmatmul.bf16.gmra.mxu0 %v1116
      %v1400 = vpop.f32.mrf.mxu0
      %v1401 = vadd.f32 %v1312, %v1400
      %v1402 = vpop.f32.mrf.mxu0
      %v1403 = vadd.f32 %v1314, %v1402
      %1404 = vmatmul.bf16.gmra.mxu0 %v1118
      %v1405 = vpop.f32.mrf.mxu0
      %v1406 = vadd.f32 %v1317, %v1405
      %v1407 = vpop.f32.mrf.mxu0
      %v1408 = vadd.f32 %v1319, %v1407
      %1409 = vmatmul.bf16.gmra.mxu0 %v1120
      %v1410 = vpop.f32.mrf.mxu0
      %v1411 = vadd.f32 %v1322, %v1410
      %v1412 = vpop.f32.mrf.mxu0
      %v1413 = vadd.f32 %v1324, %v1412
      %1414 = vmatmul.bf16.gmra.mxu0 %v1122
      %v1415 = vpop.f32.mrf.mxu0
      %v1416 = vadd.f32 %v1327, %v1415
      %v1417 = vpop.f32.mrf.mxu0
      %v1418 = vadd.f32 %v1329, %v1417
      %1419 = vmatmul.bf16.gmra.mxu0 %v1124
      %v1420 = vpop.f32.mrf.mxu0
      %v1421 = vadd.f32 %v1332, %v1420
      %v1422 = vpop.f32.mrf.mxu0
      %v1423 = vadd.f32 %v1334, %v1422
      %1424 = vmatmul.bf16.gmra.mxu0 %v1126
      %v1425 = vpop.f32.mrf.mxu0
      %v1426 = vadd.f32 %v1337, %v1425
      %v1427 = vpop.f32.mrf.mxu0
      %v1428 = vadd.f32 %v1339, %v1427
      %1429 = vmatmul.bf16.gmra.mxu0 %v1128
      %v1430 = vpop.f32.mrf.mxu0
      %v1431 = vadd.f32 %v1342, %v1430
      %v1432 = vpop.f32.mrf.mxu0
      %v1433 = vadd.f32 %v1344, %v1432
      %1434 = vdwg.mxu0
      %v1435 = vadd.f32 %v1065, %v1356
      %v1436 = vadd.f32 %v1066, %v1358
      %v1437 = vadd.f32 %v1067, %v1361
      %v1438 = vadd.f32 %v1068, %v1363
      %v1439 = vadd.f32 %v1069, %v1366
      %v1440 = vadd.f32 %v1070, %v1368
      %v1441 = vadd.f32 %v1071, %v1371
      %v1442 = vadd.f32 %v1072, %v1373
      %v1443 = vadd.f32 %v1073, %v1376
      %v1444 = vadd.f32 %v1074, %v1378
      %v1445 = vadd.f32 %v1075, %v1381
      %v1446 = vadd.f32 %v1076, %v1383
      %v1447 = vadd.f32 %v1077, %v1386
      %v1448 = vadd.f32 %v1078, %v1388
      %v1449 = vadd.f32 %v1079, %v1391
      %v1450 = vadd.f32 %v1080, %v1393
      %v1451 = vadd.f32 %v1081, %v1396
      %v1452 = vadd.f32 %v1082, %v1398
      %v1453 = vadd.f32 %v1083, %v1401
      %v1454 = vadd.f32 %v1084, %v1403
      %v1455 = vadd.f32 %v1085, %v1406
      %v1456 = vadd.f32 %v1086, %v1408
      %v1457 = vadd.f32 %v1087, %v1411
      %v1458 = vadd.f32 %v1088, %v1413
      %v1459 = vadd.f32 %v1089, %v1416
      %v1460 = vadd.f32 %v1090, %v1418
      %v1461 = vadd.f32 %v1091, %v1421
      %v1462 = vadd.f32 %v1092, %v1423
      %v1463 = vadd.f32 %v1093, %v1426
      %v1464 = vadd.f32 %v1094, %v1428
      %v1465 = vadd.f32 %v1095, %v1431
      %v1466 = vadd.f32 %v1096, %v1433
      %1467 = vst.msk [vmem:[#allocation2] sm:$0xff] %vm564, %v1435
      %1468 = vst.msk [vmem:[#allocation2 + $0x8] sm:$0xff] %vm564, %v1436
      %1469 = vst.msk [vmem:[#allocation2 + $0x10] sm:$0xff] %vm564, %v1437
      %1470 = vst.msk [vmem:[#allocation2 + $0x18] sm:$0xff] %vm564, %v1438
      %1471 = vst.msk [vmem:[#allocation2 + $0x20] sm:$0xff] %vm564, %v1439
      %1472 = vst.msk [vmem:[#allocation2 + $0x28] sm:$0xff] %vm564, %v1440
      %1473 = vst.msk [vmem:[#allocation2 + $0x30] sm:$0xff] %vm564, %v1441
      %1474 = vst.msk [vmem:[#allocation2 + $0x38] sm:$0xff] %vm564, %v1442
      %1475 = vst.msk [vmem:[#allocation2 + $0x40] sm:$0xff] %vm564, %v1443
      %1476 = vst.msk [vmem:[#allocation2 + $0x48] sm:$0xff] %vm564, %v1444
      %1477 = vst.msk [vmem:[#allocation2 + $0x50] sm:$0xff] %vm564, %v1445
      %1478 = vst.msk [vmem:[#allocation2 + $0x58] sm:$0xff] %vm564, %v1446
      %1479 = vst.msk [vmem:[#allocation2 + $0x60] sm:$0xff] %vm564, %v1447
      %1480 = vst.msk [vmem:[#allocation2 + $0x68] sm:$0xff] %vm564, %v1448
      %1481 = vst.msk [vmem:[#allocation2 + $0x70] sm:$0xff] %vm564, %v1449
      %1482 = vst.msk [vmem:[#allocation2 + $0x78] sm:$0xff] %vm564, %v1450
      %1483 = vst.msk [vmem:[#allocation2 + $0x80] sm:$0xff] %vm564, %v1451
      %1484 = vst.msk [vmem:[#allocation2 + $0x88] sm:$0xff] %vm564, %v1452
      %1485 = vst.msk [vmem:[#allocation2 + $0x90] sm:$0xff] %vm564, %v1453
      %1486 = vst.msk [vmem:[#allocation2 + $0x98] sm:$0xff] %vm564, %v1454
      %1487 = vst.msk [vmem:[#allocation2 + $0xa0] sm:$0xff] %vm564, %v1455
      %1488 = vst.msk [vmem:[#allocation2 + $0xa8] sm:$0xff] %vm564, %v1456
      %1489 = vst.msk [vmem:[#allocation2 + $0xb0] sm:$0xff] %vm564, %v1457
      %1490 = vst.msk [vmem:[#allocation2 + $0xb8] sm:$0xff] %vm564, %v1458
      %1491 = vst.msk [vmem:[#allocation2 + $0xc0] sm:$0xff] %vm564, %v1459
      %1492 = vst.msk [vmem:[#allocation2 + $0xc8] sm:$0xff] %vm564, %v1460
      %1493 = vst.msk [vmem:[#allocation2 + $0xd0] sm:$0xff] %vm564, %v1461
      %1494 = vst.msk [vmem:[#allocation2 + $0xd8] sm:$0xff] %vm564, %v1462
      %1495 = vst.msk [vmem:[#allocation2 + $0xe0] sm:$0xff] %vm564, %v1463
      %1496 = vst.msk [vmem:[#allocation2 + $0xe8] sm:$0xff] %vm564, %v1464
      %1497 = vst.msk [vmem:[#allocation2 + $0xf0] sm:$0xff] %vm564, %v1465
      %1498 = vst.msk [vmem:[#allocation2 + $0xf8] sm:$0xff] %vm564, %v1466
      // Predicated region
      $region45: #{_lambda_.7} parent=39 // pred_check
        %p1499 = pneg %p410
      $region46: #{_lambda_.7} parent=39 // pred_check_branch
        %1501 = sbr.rel (%p1499) target = $region48
      $region47: #{_lambda_.7} parent=39 // pred_region
        %v1502 = vld [vmem:[#allocation2] sm:$0xff]
        %v1503 = vld [vmem:[#allocation2 + $0x8] sm:$0xff]
        %v1504 = vld [vmem:[#allocation2 + $0x10] sm:$0xff]
        %v1505 = vld [vmem:[#allocation2 + $0x18] sm:$0xff]
        %v1506 = vld [vmem:[#allocation2 + $0x20] sm:$0xff]
        %v1507 = vld [vmem:[#allocation2 + $0x28] sm:$0xff]
        %v1508 = vld [vmem:[#allocation2 + $0x30] sm:$0xff]
        %v1509 = vld [vmem:[#allocation2 + $0x38] sm:$0xff]
        %v1510 = vld [vmem:[#allocation2 + $0x40] sm:$0xff]
        %v1511 = vld [vmem:[#allocation2 + $0x48] sm:$0xff]
        %v1512 = vld [vmem:[#allocation2 + $0x50] sm:$0xff]
        %v1513 = vld [vmem:[#allocation2 + $0x58] sm:$0xff]
        %v1514 = vld [vmem:[#allocation2 + $0x60] sm:$0xff]
        %v1515 = vld [vmem:[#allocation2 + $0x68] sm:$0xff]
        %v1516 = vld [vmem:[#allocation2 + $0x70] sm:$0xff]
        %v1517 = vld [vmem:[#allocation2 + $0x78] sm:$0xff]
        %v1518 = vld [vmem:[#allocation2 + $0x80] sm:$0xff]
        %v1519 = vld [vmem:[#allocation2 + $0x88] sm:$0xff]
        %v1520 = vld [vmem:[#allocation2 + $0x90] sm:$0xff]
        %v1521 = vld [vmem:[#allocation2 + $0x98] sm:$0xff]
        %v1522 = vld [vmem:[#allocation2 + $0xa0] sm:$0xff]
        %v1523 = vld [vmem:[#allocation2 + $0xa8] sm:$0xff]
        %v1524 = vld [vmem:[#allocation2 + $0xb0] sm:$0xff]
        %v1525 = vld [vmem:[#allocation2 + $0xb8] sm:$0xff]
        %v1526 = vld [vmem:[#allocation2 + $0xc0] sm:$0xff]
        %v1527 = vld [vmem:[#allocation2 + $0xc8] sm:$0xff]
        %v1528 = vld [vmem:[#allocation2 + $0xd0] sm:$0xff]
        %v1529 = vld [vmem:[#allocation2 + $0xd8] sm:$0xff]
        %v1530 = vld [vmem:[#allocation2 + $0xe0] sm:$0xff]
        %v1531 = vld [vmem:[#allocation2 + $0xe8] sm:$0xff]
        %v1532 = vld [vmem:[#allocation2 + $0xf0] sm:$0xff]
        %v1533 = vld [vmem:[#allocation2 + $0xf8] sm:$0xff]
        %v1534 = vpack.c.bf16 %v1502, %v1502
        %v1535 = vpack.c.bf16 %v1503, %v1503
        %v1536 = vpack.c.bf16 %v1504, %v1504
        %v1537 = vpack.c.bf16 %v1505, %v1505
        %v1538 = vpack.c.bf16 %v1506, %v1506
        %v1539 = vpack.c.bf16 %v1507, %v1507
        %v1540 = vpack.c.bf16 %v1508, %v1508
        %v1541 = vpack.c.bf16 %v1509, %v1509
        %v1542 = vpack.c.bf16 %v1510, %v1510
        %v1543 = vpack.c.bf16 %v1511, %v1511
        %v1544 = vpack.c.bf16 %v1512, %v1512
        %v1545 = vpack.c.bf16 %v1513, %v1513
        %v1546 = vpack.c.bf16 %v1514, %v1514
        %v1547 = vpack.c.bf16 %v1515, %v1515
        %v1548 = vpack.c.bf16 %v1516, %v1516
        %v1549 = vpack.c.bf16 %v1517, %v1517
        %v1550 = vpack.c.bf16 %v1518, %v1518
        %v1551 = vpack.c.bf16 %v1519, %v1519
        %v1552 = vpack.c.bf16 %v1520, %v1520
        %v1553 = vpack.c.bf16 %v1521, %v1521
        %v1554 = vpack.c.bf16 %v1522, %v1522
        %v1555 = vpack.c.bf16 %v1523, %v1523
        %v1556 = vpack.c.bf16 %v1524, %v1524
        %v1557 = vpack.c.bf16 %v1525, %v1525
        %v1558 = vpack.c.bf16 %v1526, %v1526
        %v1559 = vpack.c.bf16 %v1527, %v1527
        %v1560 = vpack.c.bf16 %v1528, %v1528
        %v1561 = vpack.c.bf16 %v1529, %v1529
        %v1562 = vpack.c.bf16 %v1530, %v1530
        %v1563 = vpack.c.bf16 %v1531, %v1531
        %v1564 = vpack.c.bf16 %v1532, %v1532
        %v1565 = vpack.c.bf16 %v1533, %v1533
        %vm1566 = vcmask 27648
        %1567 = vst.msk [vmem:[%s407] sm:$0xf] %vm1566, %v1534
        %1568 = vst.msk [vmem:[%s407 + $0x4] sm:$0xf] %vm1566, %v1535
        %1569 = vst.msk [vmem:[%s407 + $0x8] sm:$0xf] %vm1566, %v1536
        %1570 = vst.msk [vmem:[%s407 + $0xc] sm:$0xf] %vm1566, %v1537
        %1571 = vst.msk [vmem:[%s407 + $0x10] sm:$0xf] %vm1566, %v1538
        %1572 = vst.msk [vmem:[%s407 + $0x14] sm:$0xf] %vm1566, %v1539
        %1573 = vst.msk [vmem:[%s407 + $0x18] sm:$0xf] %vm1566, %v1540
        %1574 = vst.msk [vmem:[%s407 + $0x1c] sm:$0xf] %vm1566, %v1541
        %1575 = vst.msk [vmem:[%s407 + $0x20] sm:$0xf] %vm1566, %v1542
        %1576 = vst.msk [vmem:[%s407 + $0x24] sm:$0xf] %vm1566, %v1543
        %1577 = vst.msk [vmem:[%s407 + $0x28] sm:$0xf] %vm1566, %v1544
        %1578 = vst.msk [vmem:[%s407 + $0x2c] sm:$0xf] %vm1566, %v1545
        %1579 = vst.msk [vmem:[%s407 + $0x30] sm:$0xf] %vm1566, %v1546
        %1580 = vst.msk [vmem:[%s407 + $0x34] sm:$0xf] %vm1566, %v1547
        %1581 = vst.msk [vmem:[%s407 + $0x38] sm:$0xf] %vm1566, %v1548
        %1582 = vst.msk [vmem:[%s407 + $0x3c] sm:$0xf] %vm1566, %v1549
        %1583 = vst.msk [vmem:[%s407 + $0x40] sm:$0xf] %vm1566, %v1550
        %1584 = vst.msk [vmem:[%s407 + $0x44] sm:$0xf] %vm1566, %v1551
        %1585 = vst.msk [vmem:[%s407 + $0x48] sm:$0xf] %vm1566, %v1552
        %1586 = vst.msk [vmem:[%s407 + $0x4c] sm:$0xf] %vm1566, %v1553
        %1587 = vst.msk [vmem:[%s407 + $0x50] sm:$0xf] %vm1566, %v1554
        %1588 = vst.msk [vmem:[%s407 + $0x54] sm:$0xf] %vm1566, %v1555
        %1589 = vst.msk [vmem:[%s407 + $0x58] sm:$0xf] %vm1566, %v1556
        %1590 = vst.msk [vmem:[%s407 + $0x5c] sm:$0xf] %vm1566, %v1557
        %1591 = vst.msk [vmem:[%s407 + $0x60] sm:$0xf] %vm1566, %v1558
        %1592 = vst.msk [vmem:[%s407 + $0x64] sm:$0xf] %vm1566, %v1559
        %1593 = vst.msk [vmem:[%s407 + $0x68] sm:$0xf] %vm1566, %v1560
        %1594 = vst.msk [vmem:[%s407 + $0x6c] sm:$0xf] %vm1566, %v1561
        %1595 = vst.msk [vmem:[%s407 + $0x70] sm:$0xf] %vm1566, %v1562
        %1596 = vst.msk [vmem:[%s407 + $0x74] sm:$0xf] %vm1566, %v1563
        %1597 = vst.msk [vmem:[%s407 + $0x78] sm:$0xf] %vm1566, %v1564
        %1598 = vst.msk [vmem:[%s407 + $0x7c] sm:$0xf] %vm1566, %v1565
      $region48: #{_lambda_.7} parent=39 // pred_fallthru
        _
      %s1599 = smul.u32 32, %s22
      %p1600 = scmp.lt.s32.totalorder %s21, 3
      %s1601 = scalar_select %p1600, %s21, 3
      %p1602 = scmp.lt.s32.totalorder %s1599, 31
      %s1603 = scalar_select %p1602, %s1599, 31
      %s1604 = smul.addr %s1601, 32
      %s1605 = sadd.s32 %s1603, %s1604
      %s1606 = smul.addr %s1605, 4
      %s1607 = scalar_lea.vmem %s5, %s1606
      // Predicated region
      $region49: #{_lambda_.7} parent=39 // pred_check
        %p1608 = pneg %p195
      $region50: #{_lambda_.7} parent=39 // pred_check_branch
        %1610 = sbr.rel (%p1608) target = $region52
      $region51: #{_lambda_.7} parent=39 // pred_region
        %s1611 = smul.u32 32, %s22
      $region52: #{_lambda_.7} parent=39 // pred_fallthru
        _
    $region40: #{_lambda_.7} parent=5 // pred_fallthru
      _
    %p1612 = scmp.le.s32.totalorder 2, %s11
    // Predicated region
    $region53: #{_lambda_.7} parent=5 // pred_check
      %p1613 = pneg %p1612
    $region54: #{_lambda_.7} parent=5 // pred_check_branch
      %1615 = sbr.rel (%p1613) target = $region56
    $region55: #{_lambda_.7} parent=5 // pred_region
      %s1616 = ssub.s32 %s11, 2
      // Predicated region
      $region57: #{_lambda_.7} parent=55 // pred_check
        %p1617 = pneg %p201
      $region58: #{_lambda_.7} parent=55 // pred_check_branch
        %1619 = sbr.rel (%p1617) target = $region60
      $region59: #{_lambda_.7} parent=55 // pred_region
        %s1620 = smul.u32 32, %s25
        %p1621 = scmp.lt.s32.totalorder %s24, 3
        %s1622 = scalar_select %p1621, %s24, 3
        %p1623 = scmp.lt.s32.totalorder %s1620, 31
        %s1624 = scalar_select %p1623, %s1620, 31
        %s1625 = smul.addr %s1622, 32
        %s1626 = sadd.s32 %s1624, %s1625
        %s1627 = smul.addr %s1626, 4
        %s1628 = scalar_lea.vmem %s5, %s1627
      $region60: #{_lambda_.7} parent=55 // pred_fallthru
        _
    $region56: #{_lambda_.7} parent=5 // pred_fallthru
      _
  $region6: #{_lambda_.7} parent=0 // loop_footer
    %s15 = sadd.s32 1, %s11
  $region7: #{_lambda_.7} parent=0 // loop_footer_branch
    %10 = sbr.rel target = $region3
  $region8: #{_lambda_.7} parent=0 // loop_exit
    _

// kernel: _lambda_.8
$region0: #{_lambda_.8}
  #allocation0 [shape = 'u32[]', space=smem, size = 0x4, offset = 0x4, fixed_abs, tag = 'smem constant byte address 0x4 - core index']
  #allocation1 [shape = 'u32[72,128]{1,0:T(1,128)}', space=vmem, size = 0x9000, scoped, tag = 'internal scratch']
  %s0 = inlined_call_operand.vmem [shape: bf16[2,2,4,256], index: 0, kind: input, shape index: {}]
  %s1 = inlined_call_operand.vmem [shape: bf16[2,8,4], index: 1, kind: input, shape index: {}]
  %s2 = inlined_call_operand.vmem [shape: f32[2,8,1], index: 2, kind: input, shape index: {}]
  %s3 = inlined_call_operand.vmem [shape: bf16[2,8,256], index: 3, kind: input, shape index: {}]
  %s4 = inlined_call_operand.vmem [shape: bf16[2,2,8,256], index: 4, kind: output, shape index: {}]
  %s5 = sld [smem:[#allocation0]]
  $region49: #{_lambda_.8} parent=0
    _
  %s7 = ssub.s32 1, %s5
  %s8 = scalar_select 0, %s7, %s5
  loop: start=0, step=1, limit=6
  $region2: #{_lambda_.8} parent=0 // loop_pre_header
    _
  $region3: #{_lambda_.8} parent=0 // loop_header
    %s10 = sphi 0, %s14
    %p11 = scmp.ge.s32.totalorder %s10, 6
    %s17 = sphi 0, %s36
    %s18 = sphi 0, %s32
    %s19 = sphi 0, %s28
    %s20 = sphi 0, %s17
    %s21 = sphi 0, %s18
    %s22 = sphi 0, %s19
    %s23 = sphi 0, %s20
    %s24 = sphi 0, %s21
    %s25 = sphi 0, %s22
    %s43 = sphi 0, %s45
    %s46 = sphi 0, %s43
    %s47 = sphi 0, %s46
    %s63 = sphi 0, %s47
    %s69 = sphi 0, %s71
    %s72 = sphi 0, %s69
    %s73 = sphi 0, %s72
    %s89 = sphi 0, %s73
    %s95 = sphi 0, %s97
    %s98 = sphi 0, %s95
    %s99 = sphi 0, %s98
    %s115 = sphi 0, %s99
    %s123 = sphi 0, %s125
    %s126 = sphi 0, %s123
    %s127 = sphi 0, %s126
    %s143 = sphi 0, %s127
    %s153 = sphi 0, %s155
    %s156 = sphi 0, %s153
    %s157 = sphi 0, %s156
    %s173 = sphi 0, %s157
  $region4: #{_lambda_.8} parent=0 // loop_header_branch
    %13 = sbr.rel (%p11) target = $region8
  $region5: #{_lambda_.8} parent=0 // loop_body
    %s15 = ssub.s32 %s10, 1
    %s16 = ssub.s32 %s10, 2
    %s26 = sadd.s32 1, %s19
    %p27 = scmp.ge.s32.totalorder %s26, 2
    %s28 = scalar_select %p27, 0, %s26
    %s29 = sadd.s32 1, %s18
    %s30 = scalar_select %p27, %s29, %s18
    %p31 = scmp.ge.s32.totalorder %s30, 1
    %s32 = scalar_select %p31, 0, %s30
    %s33 = sadd.s32 1, %s17
    %s34 = scalar_select %p31, %s33, %s17
    %p35 = scmp.ge.s32.totalorder %s34, 2
    %s36 = scalar_select %p35, 0, %s34
    %s37 = ssub.s32 %s19, %s28
    %s38 = ssub.s32 %s17, %s36
    %s39 = sor.u32 %s37, %s38
    %s40 = ssub.s32 %s18, %s32
    %s41 = sor.u32 %s39, %s40
    %p42 = scmp.eq.s32.totalorder %s41, 0
    %s44 = sadd.s32 %s43, 1
    %s45 = scalar_select %p42, %s43, %s44
    %p48 = pneg %p42
    %p49 = scmp.eq.s32.totalorder %s10, 3
    %p50 = por %p48, %p49
    %p51 = scmp.ne.s32.totalorder %s43, %s46
    %p52 = scmp.eq.s32.totalorder %s10, 0
    %p53 = por %p51, %p52
    %p54 = scmp.ne.s32.totalorder %s43, %s46
    %p55 = scmp.eq.s32.totalorder %s15, 3
    %p56 = por %p54, %p55
    %p57 = scmp.ne.s32.totalorder %s46, %s47
    %p58 = scmp.eq.s32.totalorder %s15, 0
    %p59 = por %p57, %p58
    %p60 = scmp.ne.s32.totalorder %s46, %s47
    %p61 = scmp.eq.s32.totalorder %s16, 3
    %p62 = por %p60, %p61
    %p64 = scmp.ne.s32.totalorder %s47, %s63
    %p65 = scmp.eq.s32.totalorder %s16, 0
    %p66 = por %p64, %p65
    %s67 = ssub.s32 %s19, %s28
    %p68 = scmp.eq.s32.totalorder %s67, 0
    %s70 = sadd.s32 %s69, 1
    %s71 = scalar_select %p68, %s69, %s70
    %p74 = pneg %p68
    %p75 = scmp.eq.s32.totalorder %s10, 3
    %p76 = por %p74, %p75
    %p77 = scmp.ne.s32.totalorder %s69, %s72
    %p78 = scmp.eq.s32.totalorder %s10, 0
    %p79 = por %p77, %p78
    %p80 = scmp.ne.s32.totalorder %s69, %s72
    %p81 = scmp.eq.s32.totalorder %s15, 3
    %p82 = por %p80, %p81
    %p83 = scmp.ne.s32.totalorder %s72, %s73
    %p84 = scmp.eq.s32.totalorder %s15, 0
    %p85 = por %p83, %p84
    %p86 = scmp.ne.s32.totalorder %s72, %s73
    %p87 = scmp.eq.s32.totalorder %s16, 3
    %p88 = por %p86, %p87
    %p90 = scmp.ne.s32.totalorder %s73, %s89
    %p91 = scmp.eq.s32.totalorder %s16, 0
    %p92 = por %p90, %p91
    %s93 = ssub.s32 %s19, %s28
    %p94 = scmp.eq.s32.totalorder %s93, 0
    %s96 = sadd.s32 %s95, 1
    %s97 = scalar_select %p94, %s95, %s96
    %p100 = pneg %p94
    %p101 = scmp.eq.s32.totalorder %s10, 3
    %p102 = por %p100, %p101
    %p103 = scmp.ne.s32.totalorder %s95, %s98
    %p104 = scmp.eq.s32.totalorder %s10, 0
    %p105 = por %p103, %p104
    %p106 = scmp.ne.s32.totalorder %s95, %s98
    %p107 = scmp.eq.s32.totalorder %s15, 3
    %p108 = por %p106, %p107
    %p109 = scmp.ne.s32.totalorder %s98, %s99
    %p110 = scmp.eq.s32.totalorder %s15, 0
    %p111 = por %p109, %p110
    %p112 = scmp.ne.s32.totalorder %s98, %s99
    %p113 = scmp.eq.s32.totalorder %s16, 3
    %p114 = por %p112, %p113
    %p116 = scmp.ne.s32.totalorder %s99, %s115
    %p117 = scmp.eq.s32.totalorder %s16, 0
    %p118 = por %p116, %p117
    %s119 = ssub.s32 %s17, %s36
    %s120 = ssub.s32 %s18, %s32
    %s121 = sor.u32 %s119, %s120
    %p122 = scmp.eq.s32.totalorder %s121, 0
    %s124 = sadd.s32 %s123, 1
    %s125 = scalar_select %p122, %s123, %s124
    %p128 = pneg %p122
    %p129 = scmp.eq.s32.totalorder %s10, 3
    %p130 = por %p128, %p129
    %p131 = scmp.ne.s32.totalorder %s123, %s126
    %p132 = scmp.eq.s32.totalorder %s10, 0
    %p133 = por %p131, %p132
    %p134 = scmp.ne.s32.totalorder %s123, %s126
    %p135 = scmp.eq.s32.totalorder %s15, 3
    %p136 = por %p134, %p135
    %p137 = scmp.ne.s32.totalorder %s126, %s127
    %p138 = scmp.eq.s32.totalorder %s15, 0
    %p139 = por %p137, %p138
    %p140 = scmp.ne.s32.totalorder %s126, %s127
    %p141 = scmp.eq.s32.totalorder %s16, 3
    %p142 = por %p140, %p141
    %p144 = scmp.ne.s32.totalorder %s127, %s143
    %p145 = scmp.eq.s32.totalorder %s16, 0
    %p146 = por %p144, %p145
    %s147 = ssub.s32 %s19, %s28
    %s148 = ssub.s32 %s17, %s36
    %s149 = sor.u32 %s147, %s148
    %s150 = ssub.s32 %s18, %s32
    %s151 = sor.u32 %s149, %s150
    %p152 = scmp.eq.s32.totalorder %s151, 0
    %s154 = sadd.s32 %s153, 1
    %s155 = scalar_select %p152, %s153, %s154
    %p158 = pneg %p152
    %p159 = scmp.eq.s32.totalorder %s10, 3
    %p160 = por %p158, %p159
    %p161 = scmp.ne.s32.totalorder %s153, %s156
    %p162 = scmp.eq.s32.totalorder %s10, 0
    %p163 = por %p161, %p162
    %p164 = scmp.ne.s32.totalorder %s153, %s156
    %p165 = scmp.eq.s32.totalorder %s15, 3
    %p166 = por %p164, %p165
    %p167 = scmp.ne.s32.totalorder %s156, %s157
    %p168 = scmp.eq.s32.totalorder %s15, 0
    %p169 = por %p167, %p168
    %p170 = scmp.ne.s32.totalorder %s156, %s157
    %p171 = scmp.eq.s32.totalorder %s16, 3
    %p172 = por %p170, %p171
    %p174 = scmp.ne.s32.totalorder %s157, %s173
    %p175 = scmp.eq.s32.totalorder %s16, 0
    %p176 = por %p174, %p175
    %p177 = scmp.le.s32.totalorder 1, %s10
    %p178 = scmp.lt.s32.totalorder %s10, 5
    %p179 = pnand %p177, %p178
    %p180 = pneg %p179
    // Predicated region
    $region9: #{_lambda_.8} parent=5 // pred_check
      _
    $region10: #{_lambda_.8} parent=5 // pred_check_branch
      %182 = sbr.rel (%p179) target = $region12
    $region11: #{_lambda_.8} parent=5 // pred_region
      %s183 = ssub.s32 %s10, 1
    $region12: #{_lambda_.8} parent=5 // pred_fallthru
      _
    %p184 = scmp.lt.s32.totalorder %s10, 4
    // Predicated region
    $region13: #{_lambda_.8} parent=5 // pred_check
      %p185 = pneg %p184
    $region14: #{_lambda_.8} parent=5 // pred_check_branch
      %187 = sbr.rel (%p185) target = $region16
    $region15: #{_lambda_.8} parent=5 // pred_region
      // Predicated region
      $region17: #{_lambda_.8} parent=15 // pred_check
        %p188 = pneg %p53
      $region18: #{_lambda_.8} parent=15 // pred_check_branch
        %190 = sbr.rel (%p188) target = $region20
      $region19: #{_lambda_.8} parent=15 // pred_region
        %s191 = smul.u32 2, %s18
        %p192 = scmp.lt.s32.totalorder %s19, 1
        %s193 = scalar_select %p192, %s19, 1
        %p194 = scmp.lt.s32.totalorder %s17, 1
        %s195 = scalar_select %p194, %s17, 1
        %p196 = scmp.lt.s32.totalorder %s191, 1
        %s197 = scalar_select %p196, %s191, 1
        %s198 = smul.addr %s195, 2
        %s199 = sadd.s32 %s197, %s198
        %s200 = smul.addr %s193, 4
        %s201 = sadd.s32 %s199, %s200
        %s202 = smul.addr %s201, 2
        %s203 = scalar_lea.vmem %s0, %s202
        %s204 = smul.u32 2, %s18
      $region20: #{_lambda_.8} parent=15 // pred_fallthru
        _
      // Predicated region
      $region21: #{_lambda_.8} parent=15 // pred_check
        %p205 = pneg %p79
      $region22: #{_lambda_.8} parent=15 // pred_check_branch
        %207 = sbr.rel (%p205) target = $region24
      $region23: #{_lambda_.8} parent=15 // pred_region
        %p208 = scmp.lt.s32.totalorder %s19, 1
        %s209 = scalar_select %p208, %s19, 1
        %s210 = smul.addr %s209, 4
        %s211 = scalar_lea.vmem %s1, %s210
      $region24: #{_lambda_.8} parent=15 // pred_fallthru
        _
      // Predicated region
      $region25: #{_lambda_.8} parent=15 // pred_check
        %p212 = pneg %p105
      $region26: #{_lambda_.8} parent=15 // pred_check_branch
        %214 = sbr.rel (%p212) target = $region28
      $region27: #{_lambda_.8} parent=15 // pred_region
        %p215 = scmp.lt.s32.totalorder %s19, 1
        %s216 = scalar_select %p215, %s19, 1
        %s217 = smul.addr %s216, 8
        %s218 = scalar_lea.vmem %s2, %s217
      $region28: #{_lambda_.8} parent=15 // pred_fallthru
        _
      // Predicated region
      $region29: #{_lambda_.8} parent=15 // pred_check
        %p219 = pneg %p133
      $region30: #{_lambda_.8} parent=15 // pred_check_branch
        %221 = sbr.rel (%p219) target = $region32
      $region31: #{_lambda_.8} parent=15 // pred_region
        %s222 = smul.u32 2, %s18
        %p223 = scmp.lt.s32.totalorder %s17, 1
        %s224 = scalar_select %p223, %s17, 1
        %p225 = scmp.lt.s32.totalorder %s222, 1
        %s226 = scalar_select %p225, %s222, 1
        %s227 = smul.addr %s224, 2
        %s228 = sadd.s32 %s226, %s227
        %s229 = smul.addr %s228, 4
        %s230 = scalar_lea.vmem %s3, %s229
        %s231 = smul.u32 2, %s18
      $region32: #{_lambda_.8} parent=15 // pred_fallthru
        _
    $region16: #{_lambda_.8} parent=5 // pred_fallthru
      _
    %p232 = scmp.le.s32.totalorder 1, %s10
    %p233 = scmp.lt.s32.totalorder %s10, 5
    %p234 = pnand %p232, %p233
    %p235 = pneg %p234
    // Predicated region
    $region33: #{_lambda_.8} parent=5 // pred_check
      _
    $region34: #{_lambda_.8} parent=5 // pred_check_branch
      %237 = sbr.rel (%p234) target = $region36
    $region35: #{_lambda_.8} parent=5 // pred_region
      %s238 = ssub.s32 %s10, 1
      %s239 = smul.u32 2, %s21
      %p240 = scmp.lt.s32.totalorder %s22, 1
      %s241 = scalar_select %p240, %s22, 1
      %p242 = scmp.lt.s32.totalorder %s20, 1
      %s243 = scalar_select %p242, %s20, 1
      %p244 = scmp.lt.s32.totalorder %s239, 1
      %s245 = scalar_select %p244, %s239, 1
      %s246 = smul.addr %s243, 2
      %s247 = sadd.s32 %s245, %s246
      %s248 = smul.addr %s241, 4
      %s249 = sadd.s32 %s247, %s248
      %s250 = smul.addr %s249, 2
      %s251 = scalar_lea.vmem %s0, %s250
      %p252 = pneg %p59
      %p253 = pneg %p56
      %p254 = scmp.lt.s32.totalorder %s22, 1
      %s255 = scalar_select %p254, %s22, 1
      %s256 = smul.addr %s255, 4
      %s257 = scalar_lea.vmem %s1, %s256
      %p258 = pneg %p85
      %p259 = pneg %p82
      %p260 = scmp.lt.s32.totalorder %s22, 1
      %s261 = scalar_select %p260, %s22, 1
      %s262 = smul.addr %s261, 8
      %s263 = scalar_lea.vmem %s2, %s262
      %p264 = pneg %p111
      %p265 = pneg %p108
      %s266 = smul.u32 2, %s21
      %p267 = scmp.lt.s32.totalorder %s20, 1
      %s268 = scalar_select %p267, %s20, 1
      %p269 = scmp.lt.s32.totalorder %s266, 1
      %s270 = scalar_select %p269, %s266, 1
      %s271 = smul.addr %s268, 2
      %s272 = sadd.s32 %s270, %s271
      %s273 = smul.addr %s272, 4
      %s274 = scalar_lea.vmem %s3, %s273
      %p275 = pneg %p139
      %p276 = pneg %p136
      %p277 = pneg %p169
      %p278 = pneg %p166
      %s279 = smul.u32 2, %s21
      %p280 = scmp.lt.s32.totalorder %s22, 1
      %s281 = scalar_select %p280, %s22, 1
      %p282 = scmp.lt.s32.totalorder %s20, 1
      %s283 = scalar_select %p282, %s20, 1
      %p284 = scmp.lt.s32.totalorder %s279, 1
      %s285 = scalar_select %p284, %s279, 1
      %s286 = smul.addr %s283, 2
      %s287 = sadd.s32 %s285, %s286
      %s288 = smul.addr %s281, 4
      %s289 = sadd.s32 %s287, %s288
      %s290 = smul.addr %s289, 4
      %s291 = scalar_lea.vmem %s4, %s290
      %s292 = smul.u32 2, %s21
      %p293 = scmp.lt.s32.totalorder %s22, 1
      %s294 = scalar_select %p293, %s22, 1
      %p295 = scmp.lt.s32.totalorder %s20, 1
      %s296 = scalar_select %p295, %s20, 1
      %p297 = scmp.lt.s32.totalorder %s292, 1
      %s298 = scalar_select %p297, %s292, 1
      %s299 = smul.addr %s296, 2
      %s300 = sadd.s32 %s298, %s299
      %s301 = smul.addr %s294, 4
      %s302 = sadd.s32 %s300, %s301
      %s303 = smul.addr %s302, 2
      %s304 = scalar_lea.vmem %s0, %s303
      %s305 = smul.u32 2, %s21
      %p306 = scmp.lt.s32.totalorder %s22, 1
      %s307 = scalar_select %p306, %s22, 1
      %s308 = smul.addr %s307, 4
      %s309 = scalar_lea.vmem %s1, %s308
      %p310 = scmp.lt.s32.totalorder %s22, 1
      %s311 = scalar_select %p310, %s22, 1
      %s312 = smul.addr %s311, 8
      %s313 = scalar_lea.vmem %s2, %s312
      %s314 = smul.u32 2, %s21
      %p315 = scmp.lt.s32.totalorder %s20, 1
      %s316 = scalar_select %p315, %s20, 1
      %p317 = scmp.lt.s32.totalorder %s314, 1
      %s318 = scalar_select %p317, %s314, 1
      %s319 = smul.addr %s316, 2
      %s320 = sadd.s32 %s318, %s319
      %s321 = smul.addr %s320, 4
      %s322 = scalar_lea.vmem %s3, %s321
      %s323 = smul.u32 2, %s21
      %s324 = smul.u32 2, %s21
      %p325 = scmp.lt.s32.totalorder %s22, 1
      %s326 = scalar_select %p325, %s22, 1
      %p327 = scmp.lt.s32.totalorder %s20, 1
      %s328 = scalar_select %p327, %s20, 1
      %p329 = scmp.lt.s32.totalorder %s324, 1
      %s330 = scalar_select %p329, %s324, 1
      %s331 = smul.addr %s328, 2
      %s332 = sadd.s32 %s330, %s331
      %s333 = smul.addr %s326, 4
      %s334 = sadd.s32 %s332, %s333
      %s335 = smul.addr %s334, 4
      %s336 = scalar_lea.vmem %s4, %s335
      %s337 = smul.u32 2, %s21
      %v339 = vld [vmem:[%s309] sm:$0xf]
      %v340 = vld [vmem:[%s304] sm:$0xf]
      %v341 = vld [vmem:[%s313] sm:$0xff]
      %343 = vset.pattern.permute.xlu0 0
      %344 = vperm.xlu0 %343, %v341
      %v345 = vpop.permute.xlu0 %344
      %348 = vst [vmem:[#allocation1] ss:$4 sm:$0xff] %v340
      %v349 = vld.sshfl [vmem:[#allocation1] sm:$0xff pattern:$0x73625140]
      %v350 = vld.sshfl [vmem:[#allocation1 + $0x8] sm:$0xff pattern:$0x73625140]
      %vm351 = vcmask 31744
      %v353 = vsel %vm351, %v339, 0
      %vm355 = vcmask 1041408
      %v356 = vsel %vm355, %v349, 0
      %v358 = vsel %vm355, %v350, 0
      %360 = vmatpush.bf16.msra.mxu0 0
      %361 = vmatpush.bf16.msra.mxu0 0
      %362 = vmatpush.bf16.msra.mxu0 0
      %363 = vmatpush.bf16.msra.mxu0 0
      %364 = vmatpush.bf16.msra.mxu0 0
      %365 = vmatpush.bf16.msra.mxu0 0
      %366 = vmatpush.bf16.msra.mxu0 0
      %367 = vmatpush.bf16.msra.mxu0 %v356
      %368 = vmatmul.bf16.gmra.mxu0 %v353
      %v369 = vpop.f32.mrf.mxu0
      %v370 = vadd.f32 %v345, %v369
      %v371 = vpop.f32.mrf.mxu0
      %372 = vdwg.mxu0
      %373 = vmatpush.bf16.msra.mxu0 0
      %374 = vmatpush.bf16.msra.mxu0 0
      %375 = vmatpush.bf16.msra.mxu0 0
      %376 = vmatpush.bf16.msra.mxu0 0
      %377 = vmatpush.bf16.msra.mxu0 0
      %378 = vmatpush.bf16.msra.mxu0 0
      %379 = vmatpush.bf16.msra.mxu0 0
      %380 = vmatpush.bf16.msra.mxu0 %v358
      %381 = vmatmul.bf16.gmra.mxu0 %v353
      %v382 = vpop.f32.mrf.mxu0
      %v383 = vadd.f32 %v345, %v382
      %v384 = vpop.f32.mrf.mxu0
      %385 = vdwg.mxu0
      %v386 = vld [vmem:[%s322] sm:$0xff]
      %v387 = vunpack.c.l.bf16 %v386
      %v388 = vunpack.c.h.bf16 %v386
      %v389 = vadd.f32 %v370, %v387
      %v390 = vadd.f32 %v383, %v388
      %v391 = vpack.c.bf16 %v390, %v389
      %392 = vst [vmem:[%s336] sm:$0xff] %v391
      %s393 = smul.u32 2, %s21
      %p394 = scmp.lt.s32.totalorder %s22, 1
      %s395 = scalar_select %p394, %s22, 1
      %p396 = scmp.lt.s32.totalorder %s20, 1
      %s397 = scalar_select %p396, %s20, 1
      %p398 = scmp.lt.s32.totalorder %s393, 1
      %s399 = scalar_select %p398, %s393, 1
      %s400 = smul.addr %s397, 2
      %s401 = sadd.s32 %s399, %s400
      %s402 = smul.addr %s395, 4
      %s403 = sadd.s32 %s401, %s402
      %s404 = smul.addr %s403, 4
      %s405 = scalar_lea.vmem %s4, %s404
      // Predicated region
      $region37: #{_lambda_.8} parent=35 // pred_check
        %p406 = pneg %p166
      $region38: #{_lambda_.8} parent=35 // pred_check_branch
        %408 = sbr.rel (%p406) target = $region40
      $region39: #{_lambda_.8} parent=35 // pred_region
        %s409 = smul.u32 2, %s21
      $region40: #{_lambda_.8} parent=35 // pred_fallthru
        _
    $region36: #{_lambda_.8} parent=5 // pred_fallthru
      _
    %p410 = scmp.le.s32.totalorder 2, %s10
    // Predicated region
    $region41: #{_lambda_.8} parent=5 // pred_check
      %p411 = pneg %p410
    $region42: #{_lambda_.8} parent=5 // pred_check_branch
      %413 = sbr.rel (%p411) target = $region44
    $region43: #{_lambda_.8} parent=5 // pred_region
      %s414 = ssub.s32 %s10, 2
      // Predicated region
      $region45: #{_lambda_.8} parent=43 // pred_check
        %p415 = pneg %p172
      $region46: #{_lambda_.8} parent=43 // pred_check_branch
        %417 = sbr.rel (%p415) target = $region48
      $region47: #{_lambda_.8} parent=43 // pred_region
        %s418 = smul.u32 2, %s24
        %p419 = scmp.lt.s32.totalorder %s25, 1
        %s420 = scalar_select %p419, %s25, 1
        %p421 = scmp.lt.s32.totalorder %s23, 1
        %s422 = scalar_select %p421, %s23, 1
        %p423 = scmp.lt.s32.totalorder %s418, 1
        %s424 = scalar_select %p423, %s418, 1
        %s425 = smul.addr %s422, 2
        %s426 = sadd.s32 %s424, %s425
        %s427 = smul.addr %s420, 4
        %s428 = sadd.s32 %s426, %s427
        %s429 = smul.addr %s428, 4
        %s430 = scalar_lea.vmem %s4, %s429
      $region48: #{_lambda_.8} parent=43 // pred_fallthru
        _
    $region44: #{_lambda_.8} parent=5 // pred_fallthru
      _
  $region6: #{_lambda_.8} parent=0 // loop_footer
    %s14 = sadd.s32 1, %s10
  $region7: #{_lambda_.8} parent=0 // loop_footer_branch
    %9 = sbr.rel target = $region3
  $region8: #{_lambda_.8} parent=0 // loop_exit
    _

// kernel: squeeze.2
$region0: #{squeeze.2}
  %s0 = inlined_call_operand.vmem [shape: f32[1,2,7,256], index: 0, kind: input, shape index: {}]
  %s1 = inlined_call_operand.vmem [shape: f32[2,7,16,16], index: 1, kind: output, shape index: {}]
  $region1: #{squeeze.2} parent=0
    #allocation0 [shape = 'u8[57344]{0}', space=vmem, size = 0xe000, scoped, tag = 'scoped mem for input reshape']
    %s3 = ssub.s32 4, 1
    %s4 = scalar_lea.vmem %s0, 26
    %v5 = vld [vmem:[%s4] sm:%s3]
    %s6 = scalar_lea.vmem [#allocation0], 104
    %7 = vst [vmem:[%s6] sm:%s3] %v5
    %s8 = scalar_lea.vmem %s0, 24
    %v9 = vld [vmem:[%s8] sm:%s3]
    %s10 = scalar_lea.vmem [#allocation0], 96
    %11 = vst [vmem:[%s10] sm:%s3] %v9
    %s12 = scalar_lea.vmem %s0, 22
    %v13 = vld [vmem:[%s12] sm:%s3]
    %s14 = scalar_lea.vmem [#allocation0], 88
    %15 = vst [vmem:[%s14] sm:%s3] %v13
    %s16 = scalar_lea.vmem %s0, 20
    %v17 = vld [vmem:[%s16] sm:%s3]
    %s18 = scalar_lea.vmem [#allocation0], 80
    %19 = vst [vmem:[%s18] sm:%s3] %v17
    %s20 = scalar_lea.vmem %s0, 18
    %v21 = vld [vmem:[%s20] sm:%s3]
    %s22 = scalar_lea.vmem [#allocation0], 72
    %23 = vst [vmem:[%s22] sm:%s3] %v21
    %s24 = scalar_lea.vmem %s0, 16
    %v25 = vld [vmem:[%s24] sm:%s3]
    %s26 = scalar_lea.vmem [#allocation0], 64
    %27 = vst [vmem:[%s26] sm:%s3] %v25
    %s28 = scalar_lea.vmem %s0, 14
    %v29 = vld [vmem:[%s28] sm:%s3]
    %s30 = scalar_lea.vmem [#allocation0], 56
    %31 = vst [vmem:[%s30] sm:%s3] %v29
    %s32 = scalar_lea.vmem %s0, 12
    %v33 = vld [vmem:[%s32] sm:%s3]
    %s34 = scalar_lea.vmem [#allocation0], 48
    %35 = vst [vmem:[%s34] sm:%s3] %v33
    %s36 = scalar_lea.vmem %s0, 10
    %v37 = vld [vmem:[%s36] sm:%s3]
    %s38 = scalar_lea.vmem [#allocation0], 40
    %39 = vst [vmem:[%s38] sm:%s3] %v37
    %s40 = scalar_lea.vmem %s0, 8
    %v41 = vld [vmem:[%s40] sm:%s3]
    %s42 = scalar_lea.vmem [#allocation0], 32
    %43 = vst [vmem:[%s42] sm:%s3] %v41
    %s44 = scalar_lea.vmem %s0, 6
    %v45 = vld [vmem:[%s44] sm:%s3]
    %s46 = scalar_lea.vmem [#allocation0], 24
    %47 = vst [vmem:[%s46] sm:%s3] %v45
    %s48 = scalar_lea.vmem %s0, 4
    %v49 = vld [vmem:[%s48] sm:%s3]
    %s50 = scalar_lea.vmem [#allocation0], 16
    %51 = vst [vmem:[%s50] sm:%s3] %v49
    %s52 = scalar_lea.vmem %s0, 2
    %v53 = vld [vmem:[%s52] sm:%s3]
    %s54 = scalar_lea.vmem [#allocation0], 8
    %55 = vst [vmem:[%s54] sm:%s3] %v53
    %v56 = vld [vmem:[%s0] sm:%s3]
    %57 = vst [vmem:[#allocation0] sm:%s3] %v56
    %v58 = vld [vmem:[#allocation0] sm:$0x3]
    %vm59 = vcmask 130048
    %60 = vst.msk [vmem:[%s1] ss:$16 sm:$0x3] %vm59, %v58
    %s61 = scalar_lea.vmem [#allocation0], 8
    %v62 = vld [vmem:[%s61] sm:$0x3]
    %vm63 = vcmask 130048
    %s64 = scalar_lea.vmem %s1, 8
    %65 = vst.msk [vmem:[%s64] ss:$16 sm:$0x3] %vm63, %v62
    %s66 = scalar_lea.vmem [#allocation0], 16
    %v67 = vld [vmem:[%s66] sm:$0x3]
    %vm68 = vcmask 130048
    %s69 = scalar_lea.vmem %s1, 32
    %70 = vst.msk [vmem:[%s69] ss:$16 sm:$0x3] %vm68, %v67
    %s71 = scalar_lea.vmem [#allocation0], 24
    %v72 = vld [vmem:[%s71] sm:$0x3]
    %vm73 = vcmask 130048
    %s74 = scalar_lea.vmem %s1, 40
    %75 = vst.msk [vmem:[%s74] ss:$16 sm:$0x3] %vm73, %v72
    %s76 = scalar_lea.vmem [#allocation0], 32
    %v77 = vld [vmem:[%s76] sm:$0x3]
    %vm78 = vcmask 130048
    %s79 = scalar_lea.vmem %s1, 64
    %80 = vst.msk [vmem:[%s79] ss:$16 sm:$0x3] %vm78, %v77
    %s81 = scalar_lea.vmem [#allocation0], 40
    %v82 = vld [vmem:[%s81] sm:$0x3]
    %vm83 = vcmask 130048
    %s84 = scalar_lea.vmem %s1, 72
    %85 = vst.msk [vmem:[%s84] ss:$16 sm:$0x3] %vm83, %v82
    %s86 = scalar_lea.vmem [#allocation0], 48
    %v87 = vld [vmem:[%s86] sm:$0x3]
    %vm88 = vcmask 130048
    %s89 = scalar_lea.vmem %s1, 96
    %90 = vst.msk [vmem:[%s89] ss:$16 sm:$0x3] %vm88, %v87
    %s91 = scalar_lea.vmem [#allocation0], 56
    %v92 = vld [vmem:[%s91] sm:$0x3]
    %vm93 = vcmask 130048
    %s94 = scalar_lea.vmem %s1, 104
    %95 = vst.msk [vmem:[%s94] ss:$16 sm:$0x3] %vm93, %v92
    %s96 = scalar_lea.vmem [#allocation0], 64
    %v97 = vld [vmem:[%s96] sm:$0x3]
    %vm98 = vcmask 130048
    %s99 = scalar_lea.vmem %s1, 128
    %100 = vst.msk [vmem:[%s99] ss:$16 sm:$0x3] %vm98, %v97
    %s101 = scalar_lea.vmem [#allocation0], 72
    %v102 = vld [vmem:[%s101] sm:$0x3]
    %vm103 = vcmask 130048
    %s104 = scalar_lea.vmem %s1, 136
    %105 = vst.msk [vmem:[%s104] ss:$16 sm:$0x3] %vm103, %v102
    %s106 = scalar_lea.vmem [#allocation0], 80
    %v107 = vld [vmem:[%s106] sm:$0x3]
    %vm108 = vcmask 130048
    %s109 = scalar_lea.vmem %s1, 160
    %110 = vst.msk [vmem:[%s109] ss:$16 sm:$0x3] %vm108, %v107
    %s111 = scalar_lea.vmem [#allocation0], 88
    %v112 = vld [vmem:[%s111] sm:$0x3]
    %vm113 = vcmask 130048
    %s114 = scalar_lea.vmem %s1, 168
    %115 = vst.msk [vmem:[%s114] ss:$16 sm:$0x3] %vm113, %v112
    %s116 = scalar_lea.vmem [#allocation0], 96
    %v117 = vld [vmem:[%s116] sm:$0x3]
    %vm118 = vcmask 130048
    %s119 = scalar_lea.vmem %s1, 192
    %120 = vst.msk [vmem:[%s119] ss:$16 sm:$0x3] %vm118, %v117
    %s121 = scalar_lea.vmem [#allocation0], 104
    %v122 = vld [vmem:[%s121] sm:$0x3]
    %vm123 = vcmask 130048
    %s124 = scalar_lea.vmem %s1, 200
    %125 = vst.msk [vmem:[%s124] ss:$16 sm:$0x3] %vm123, %v122
    %v126 = vld.sshfl [vmem:[#allocation0] sm:$0xff pattern:$0x99999180]
    %s127 = scalar_lea.vmem [#allocation0], 16
    %v128 = vld.sshfl [vmem:[%s127] sm:$0xff pattern:$0x91800000]
    %vm129 = vcmask 1047556
    %v130 = vsel %vm129, %v128, %v126
    %131 = vrot.lane.b32.xlu0 %v130, 112
    %v132 = vpop.permute.xlu0 %131
    %vm133 = vcmask 130048
    %s134 = scalar_lea.vmem %s1, 1
    %135 = vst.msk [vmem:[%s134] ss:$8 sm:$0xf] %vm133, %v132
    %s136 = scalar_lea.vmem %s1, 1
    %137 = vst.msk [vmem:[%s136] ss:$8 sm:$0xf0] %vm133, %v132
    %s138 = scalar_lea.vmem [#allocation0], 32
    %v139 = vld.sshfl [vmem:[%s138] sm:$0xff pattern:$0x99999180]
    %s140 = scalar_lea.vmem [#allocation0], 48
    %v141 = vld.sshfl [vmem:[%s140] sm:$0xff pattern:$0x91800000]
    %vm142 = vcmask 1047556
    %v143 = vsel %vm142, %v141, %v139
    %144 = vrot.lane.b32.xlu0 %v143, 112
    %v145 = vpop.permute.xlu0 %144
    %vm146 = vcmask 130048
    %s147 = scalar_lea.vmem %s1, 65
    %148 = vst.msk [vmem:[%s147] ss:$8 sm:$0xf] %vm146, %v145
    %s149 = scalar_lea.vmem %s1, 65
    %150 = vst.msk [vmem:[%s149] ss:$8 sm:$0xf0] %vm146, %v145
    %s151 = scalar_lea.vmem [#allocation0], 64
    %v152 = vld.sshfl [vmem:[%s151] sm:$0xff pattern:$0x99999180]
    %s153 = scalar_lea.vmem [#allocation0], 80
    %v154 = vld.sshfl [vmem:[%s153] sm:$0xff pattern:$0x91800000]
    %vm155 = vcmask 1047556
    %v156 = vsel %vm155, %v154, %v152
    %157 = vrot.lane.b32.xlu0 %v156, 112
    %v158 = vpop.permute.xlu0 %157
    %vm159 = vcmask 130048
    %s160 = scalar_lea.vmem %s1, 129
    %161 = vst.msk [vmem:[%s160] ss:$8 sm:$0xf] %vm159, %v158
    %s162 = scalar_lea.vmem %s1, 129
    %163 = vst.msk [vmem:[%s162] ss:$8 sm:$0xf0] %vm159, %v158
    %s164 = scalar_lea.vmem [#allocation0], 96
    %v165 = vld.sshfl [vmem:[%s164] sm:$0xff pattern:$0x99999180]
    %166 = vrot.lane.b32.xlu0 %v165, 112
    %v167 = vpop.permute.xlu0 %166
    %vm168 = vcmask 130048
    %s169 = scalar_lea.vmem %s1, 193
    %170 = vst.msk [vmem:[%s169] ss:$8 sm:$0xf] %vm168, %v167
    %v171 = vld.sshfl [vmem:[#allocation0] sm:$0xff pattern:$0x99999180]
    %s172 = scalar_lea.vmem [#allocation0], 16
    %v173 = vld.sshfl [vmem:[%s172] sm:$0xff pattern:$0x91800000]
    %vm174 = vcmask 1047556
    %v175 = vsel %vm174, %v173, %v171
    %176 = vrot.lane.b32.xlu0 %v175, 96
    %v177 = vpop.permute.xlu0 %176
    %vm178 = vcmask 130048
    %s179 = scalar_lea.vmem %s1, 2
    %180 = vst.msk [vmem:[%s179] ss:$8 sm:$0xf] %vm178, %v177
    %s181 = scalar_lea.vmem %s1, 2
    %182 = vst.msk [vmem:[%s181] ss:$8 sm:$0xf0] %vm178, %v177
    %s183 = scalar_lea.vmem [#allocation0], 32
    %v184 = vld.sshfl [vmem:[%s183] sm:$0xff pattern:$0x99999180]
    %s185 = scalar_lea.vmem [#allocation0], 48
    %v186 = vld.sshfl [vmem:[%s185] sm:$0xff pattern:$0x91800000]
    %vm187 = vcmask 1047556
    %v188 = vsel %vm187, %v186, %v184
    %189 = vrot.lane.b32.xlu0 %v188, 96
    %v190 = vpop.permute.xlu0 %189
    %vm191 = vcmask 130048
    %s192 = scalar_lea.vmem %s1, 66
    %193 = vst.msk [vmem:[%s192] ss:$8 sm:$0xf] %vm191, %v190
    %s194 = scalar_lea.vmem %s1, 66
    %195 = vst.msk [vmem:[%s194] ss:$8 sm:$0xf0] %vm191, %v190
    %s196 = scalar_lea.vmem [#allocation0], 64
    %v197 = vld.sshfl [vmem:[%s196] sm:$0xff pattern:$0x99999180]
    %s198 = scalar_lea.vmem [#allocation0], 80
    %v199 = vld.sshfl [vmem:[%s198] sm:$0xff pattern:$0x91800000]
    %vm200 = vcmask 1047556
    %v201 = vsel %vm200, %v199, %v197
    %202 = vrot.lane.b32.xlu0 %v201, 96
    %v203 = vpop.permute.xlu0 %202
    %vm204 = vcmask 130048
    %s205 = scalar_lea.vmem %s1, 130
    %206 = vst.msk [vmem:[%s205] ss:$8 sm:$0xf] %vm204, %v203
    %s207 = scalar_lea.vmem %s1, 130
    %208 = vst.msk [vmem:[%s207] ss:$8 sm:$0xf0] %vm204, %v203
    %s209 = scalar_lea.vmem [#allocation0], 96
    %v210 = vld.sshfl [vmem:[%s209] sm:$0xff pattern:$0x99999180]
    %211 = vrot.lane.b32.xlu0 %v210, 96
    %v212 = vpop.permute.xlu0 %211
    %vm213 = vcmask 130048
    %s214 = scalar_lea.vmem %s1, 194
    %215 = vst.msk [vmem:[%s214] ss:$8 sm:$0xf] %vm213, %v212
    %v216 = vld.sshfl [vmem:[#allocation0] sm:$0xff pattern:$0x99999180]
    %s217 = scalar_lea.vmem [#allocation0], 16
    %v218 = vld.sshfl [vmem:[%s217] sm:$0xff pattern:$0x91800000]
    %vm219 = vcmask 1047556
    %v220 = vsel %vm219, %v218, %v216
    %221 = vrot.lane.b32.xlu0 %v220, 80
    %v222 = vpop.permute.xlu0 %221
    %vm223 = vcmask 130048
    %s224 = scalar_lea.vmem %s1, 3
    %225 = vst.msk [vmem:[%s224] ss:$8 sm:$0xf] %vm223, %v222
    %s226 = scalar_lea.vmem %s1, 3
    %227 = vst.msk [vmem:[%s226] ss:$8 sm:$0xf0] %vm223, %v222
    %s228 = scalar_lea.vmem [#allocation0], 32
    %v229 = vld.sshfl [vmem:[%s228] sm:$0xff pattern:$0x99999180]
    %s230 = scalar_lea.vmem [#allocation0], 48
    %v231 = vld.sshfl [vmem:[%s230] sm:$0xff pattern:$0x91800000]
    %vm232 = vcmask 1047556
    %v233 = vsel %vm232, %v231, %v229
    %234 = vrot.lane.b32.xlu0 %v233, 80
    %v235 = vpop.permute.xlu0 %234
    %vm236 = vcmask 130048
    %s237 = scalar_lea.vmem %s1, 67
    %238 = vst.msk [vmem:[%s237] ss:$8 sm:$0xf] %vm236, %v235
    %s239 = scalar_lea.vmem %s1, 67
    %240 = vst.msk [vmem:[%s239] ss:$8 sm:$0xf0] %vm236, %v235
    %s241 = scalar_lea.vmem [#allocation0], 64
    %v242 = vld.sshfl [vmem:[%s241] sm:$0xff pattern:$0x99999180]
    %s243 = scalar_lea.vmem [#allocation0], 80
    %v244 = vld.sshfl [vmem:[%s243] sm:$0xff pattern:$0x91800000]
    %vm245 = vcmask 1047556
    %v246 = vsel %vm245, %v244, %v242
    %247 = vrot.lane.b32.xlu0 %v246, 80
    %v248 = vpop.permute.xlu0 %247
    %vm249 = vcmask 130048
    %s250 = scalar_lea.vmem %s1, 131
    %251 = vst.msk [vmem:[%s250] ss:$8 sm:$0xf] %vm249, %v248
    %s252 = scalar_lea.vmem %s1, 131
    %253 = vst.msk [vmem:[%s252] ss:$8 sm:$0xf0] %vm249, %v248
    %s254 = scalar_lea.vmem [#allocation0], 96
    %v255 = vld.sshfl [vmem:[%s254] sm:$0xff pattern:$0x99999180]
    %256 = vrot.lane.b32.xlu0 %v255, 80
    %v257 = vpop.permute.xlu0 %256
    %vm258 = vcmask 130048
    %s259 = scalar_lea.vmem %s1, 195
    %260 = vst.msk [vmem:[%s259] ss:$8 sm:$0xf] %vm258, %v257
    %v261 = vld.sshfl [vmem:[#allocation0] sm:$0xff pattern:$0x99999180]
    %s262 = scalar_lea.vmem [#allocation0], 16
    %v263 = vld.sshfl [vmem:[%s262] sm:$0xff pattern:$0x91800000]
    %vm264 = vcmask 1047556
    %v265 = vsel %vm264, %v263, %v261
    %266 = vrot.lane.b32.xlu0 %v265, 64
    %v267 = vpop.permute.xlu0 %266
    %vm268 = vcmask 130048
    %s269 = scalar_lea.vmem %s1, 4
    %270 = vst.msk [vmem:[%s269] ss:$8 sm:$0xf] %vm268, %v267
    %s271 = scalar_lea.vmem %s1, 4
    %272 = vst.msk [vmem:[%s271] ss:$8 sm:$0xf0] %vm268, %v267
    %s273 = scalar_lea.vmem [#allocation0], 32
    %v274 = vld.sshfl [vmem:[%s273] sm:$0xff pattern:$0x99999180]
    %s275 = scalar_lea.vmem [#allocation0], 48
    %v276 = vld.sshfl [vmem:[%s275] sm:$0xff pattern:$0x91800000]
    %vm277 = vcmask 1047556
    %v278 = vsel %vm277, %v276, %v274
    %279 = vrot.lane.b32.xlu0 %v278, 64
    %v280 = vpop.permute.xlu0 %279
    %vm281 = vcmask 130048
    %s282 = scalar_lea.vmem %s1, 68
    %283 = vst.msk [vmem:[%s282] ss:$8 sm:$0xf] %vm281, %v280
    %s284 = scalar_lea.vmem %s1, 68
    %285 = vst.msk [vmem:[%s284] ss:$8 sm:$0xf0] %vm281, %v280
    %s286 = scalar_lea.vmem [#allocation0], 64
    %v287 = vld.sshfl [vmem:[%s286] sm:$0xff pattern:$0x99999180]
    %s288 = scalar_lea.vmem [#allocation0], 80
    %v289 = vld.sshfl [vmem:[%s288] sm:$0xff pattern:$0x91800000]
    %vm290 = vcmask 1047556
    %v291 = vsel %vm290, %v289, %v287
    %292 = vrot.lane.b32.xlu0 %v291, 64
    %v293 = vpop.permute.xlu0 %292
    %vm294 = vcmask 130048
    %s295 = scalar_lea.vmem %s1, 132
    %296 = vst.msk [vmem:[%s295] ss:$8 sm:$0xf] %vm294, %v293
    %s297 = scalar_lea.vmem %s1, 132
    %298 = vst.msk [vmem:[%s297] ss:$8 sm:$0xf0] %vm294, %v293
    %s299 = scalar_lea.vmem [#allocation0], 96
    %v300 = vld.sshfl [vmem:[%s299] sm:$0xff pattern:$0x99999180]
    %301 = vrot.lane.b32.xlu0 %v300, 64
    %v302 = vpop.permute.xlu0 %301
    %vm303 = vcmask 130048
    %s304 = scalar_lea.vmem %s1, 196
    %305 = vst.msk [vmem:[%s304] ss:$8 sm:$0xf] %vm303, %v302
    %v306 = vld.sshfl [vmem:[#allocation0] sm:$0xff pattern:$0x99999180]
    %s307 = scalar_lea.vmem [#allocation0], 16
    %v308 = vld.sshfl [vmem:[%s307] sm:$0xff pattern:$0x91800000]
    %vm309 = vcmask 1047556
    %v310 = vsel %vm309, %v308, %v306
    %311 = vrot.lane.b32.xlu0 %v310, 48
    %v312 = vpop.permute.xlu0 %311
    %vm313 = vcmask 130048
    %s314 = scalar_lea.vmem %s1, 5
    %315 = vst.msk [vmem:[%s314] ss:$8 sm:$0xf] %vm313, %v312
    %s316 = scalar_lea.vmem %s1, 5
    %317 = vst.msk [vmem:[%s316] ss:$8 sm:$0xf0] %vm313, %v312
    %s318 = scalar_lea.vmem [#allocation0], 32
    %v319 = vld.sshfl [vmem:[%s318] sm:$0xff pattern:$0x99999180]
    %s320 = scalar_lea.vmem [#allocation0], 48
    %v321 = vld.sshfl [vmem:[%s320] sm:$0xff pattern:$0x91800000]
    %vm322 = vcmask 1047556
    %v323 = vsel %vm322, %v321, %v319
    %324 = vrot.lane.b32.xlu0 %v323, 48
    %v325 = vpop.permute.xlu0 %324
    %vm326 = vcmask 130048
    %s327 = scalar_lea.vmem %s1, 69
    %328 = vst.msk [vmem:[%s327] ss:$8 sm:$0xf] %vm326, %v325
    %s329 = scalar_lea.vmem %s1, 69
    %330 = vst.msk [vmem:[%s329] ss:$8 sm:$0xf0] %vm326, %v325
    %s331 = scalar_lea.vmem [#allocation0], 64
    %v332 = vld.sshfl [vmem:[%s331] sm:$0xff pattern:$0x99999180]
    %s333 = scalar_lea.vmem [#allocation0], 80
    %v334 = vld.sshfl [vmem:[%s333] sm:$0xff pattern:$0x91800000]
    %vm335 = vcmask 1047556
    %v336 = vsel %vm335, %v334, %v332
    %337 = vrot.lane.b32.xlu0 %v336, 48
    %v338 = vpop.permute.xlu0 %337
    %vm339 = vcmask 130048
    %s340 = scalar_lea.vmem %s1, 133
    %341 = vst.msk [vmem:[%s340] ss:$8 sm:$0xf] %vm339, %v338
    %s342 = scalar_lea.vmem %s1, 133
    %343 = vst.msk [vmem:[%s342] ss:$8 sm:$0xf0] %vm339, %v338
    %s344 = scalar_lea.vmem [#allocation0], 96
    %v345 = vld.sshfl [vmem:[%s344] sm:$0xff pattern:$0x99999180]
    %346 = vrot.lane.b32.xlu0 %v345, 48
    %v347 = vpop.permute.xlu0 %346
    %vm348 = vcmask 130048
    %s349 = scalar_lea.vmem %s1, 197
    %350 = vst.msk [vmem:[%s349] ss:$8 sm:$0xf] %vm348, %v347
    %v351 = vld.sshfl [vmem:[#allocation0] sm:$0xff pattern:$0x99999180]
    %s352 = scalar_lea.vmem [#allocation0], 16
    %v353 = vld.sshfl [vmem:[%s352] sm:$0xff pattern:$0x91800000]
    %vm354 = vcmask 1047556
    %v355 = vsel %vm354, %v353, %v351
    %356 = vrot.lane.b32.xlu0 %v355, 32
    %v357 = vpop.permute.xlu0 %356
    %vm358 = vcmask 130048
    %s359 = scalar_lea.vmem %s1, 6
    %360 = vst.msk [vmem:[%s359] ss:$8 sm:$0xf] %vm358, %v357
    %s361 = scalar_lea.vmem %s1, 6
    %362 = vst.msk [vmem:[%s361] ss:$8 sm:$0xf0] %vm358, %v357
    %s363 = scalar_lea.vmem [#allocation0], 32
    %v364 = vld.sshfl [vmem:[%s363] sm:$0xff pattern:$0x99999180]
    %s365 = scalar_lea.vmem [#allocation0], 48
    %v366 = vld.sshfl [vmem:[%s365] sm:$0xff pattern:$0x91800000]
    %vm367 = vcmask 1047556
    %v368 = vsel %vm367, %v366, %v364
    %369 = vrot.lane.b32.xlu0 %v368, 32
    %v370 = vpop.permute.xlu0 %369
    %vm371 = vcmask 130048
    %s372 = scalar_lea.vmem %s1, 70
    %373 = vst.msk [vmem:[%s372] ss:$8 sm:$0xf] %vm371, %v370
    %s374 = scalar_lea.vmem %s1, 70
    %375 = vst.msk [vmem:[%s374] ss:$8 sm:$0xf0] %vm371, %v370
    %s376 = scalar_lea.vmem [#allocation0], 64
    %v377 = vld.sshfl [vmem:[%s376] sm:$0xff pattern:$0x99999180]
    %s378 = scalar_lea.vmem [#allocation0], 80
    %v379 = vld.sshfl [vmem:[%s378] sm:$0xff pattern:$0x91800000]
    %vm380 = vcmask 1047556
    %v381 = vsel %vm380, %v379, %v377
    %382 = vrot.lane.b32.xlu0 %v381, 32
    %v383 = vpop.permute.xlu0 %382
    %vm384 = vcmask 130048
    %s385 = scalar_lea.vmem %s1, 134
    %386 = vst.msk [vmem:[%s385] ss:$8 sm:$0xf] %vm384, %v383
    %s387 = scalar_lea.vmem %s1, 134
    %388 = vst.msk [vmem:[%s387] ss:$8 sm:$0xf0] %vm384, %v383
    %s389 = scalar_lea.vmem [#allocation0], 96
    %v390 = vld.sshfl [vmem:[%s389] sm:$0xff pattern:$0x99999180]
    %391 = vrot.lane.b32.xlu0 %v390, 32
    %v392 = vpop.permute.xlu0 %391
    %vm393 = vcmask 130048
    %s394 = scalar_lea.vmem %s1, 198
    %395 = vst.msk [vmem:[%s394] ss:$8 sm:$0xf] %vm393, %v392
    %v396 = vld.sshfl [vmem:[#allocation0] sm:$0xff pattern:$0x99999180]
    %s397 = scalar_lea.vmem [#allocation0], 16
    %v398 = vld.sshfl [vmem:[%s397] sm:$0xff pattern:$0x91800000]
    %vm399 = vcmask 1047556
    %v400 = vsel %vm399, %v398, %v396
    %401 = vrot.lane.b32.xlu0 %v400, 16
    %v402 = vpop.permute.xlu0 %401
    %vm403 = vcmask 130048
    %s404 = scalar_lea.vmem %s1, 7
    %405 = vst.msk [vmem:[%s404] ss:$8 sm:$0xf] %vm403, %v402
    %s406 = scalar_lea.vmem %s1, 7
    %407 = vst.msk [vmem:[%s406] ss:$8 sm:$0xf0] %vm403, %v402
    %s408 = scalar_lea.vmem [#allocation0], 32
    %v409 = vld.sshfl [vmem:[%s408] sm:$0xff pattern:$0x99999180]
    %s410 = scalar_lea.vmem [#allocation0], 48
    %v411 = vld.sshfl [vmem:[%s410] sm:$0xff pattern:$0x91800000]
    %vm412 = vcmask 1047556
    %v413 = vsel %vm412, %v411, %v409
    %414 = vrot.lane.b32.xlu0 %v413, 16
    %v415 = vpop.permute.xlu0 %414
    %vm416 = vcmask 130048
    %s417 = scalar_lea.vmem %s1, 71
    %418 = vst.msk [vmem:[%s417] ss:$8 sm:$0xf] %vm416, %v415
    %s419 = scalar_lea.vmem %s1, 71
    %420 = vst.msk [vmem:[%s419] ss:$8 sm:$0xf0] %vm416, %v415
    %s421 = scalar_lea.vmem [#allocation0], 64
    %v422 = vld.sshfl [vmem:[%s421] sm:$0xff pattern:$0x99999180]
    %s423 = scalar_lea.vmem [#allocation0], 80
    %v424 = vld.sshfl [vmem:[%s423] sm:$0xff pattern:$0x91800000]
    %vm425 = vcmask 1047556
    %v426 = vsel %vm425, %v424, %v422
    %427 = vrot.lane.b32.xlu0 %v426, 16
    %v428 = vpop.permute.xlu0 %427
    %vm429 = vcmask 130048
    %s430 = scalar_lea.vmem %s1, 135
    %431 = vst.msk [vmem:[%s430] ss:$8 sm:$0xf] %vm429, %v428
    %s432 = scalar_lea.vmem %s1, 135
    %433 = vst.msk [vmem:[%s432] ss:$8 sm:$0xf0] %vm429, %v428
    %s434 = scalar_lea.vmem [#allocation0], 96
    %v435 = vld.sshfl [vmem:[%s434] sm:$0xff pattern:$0x99999180]
    %436 = vrot.lane.b32.xlu0 %v435, 16
    %v437 = vpop.permute.xlu0 %436
    %vm438 = vcmask 130048
    %s439 = scalar_lea.vmem %s1, 199
    %440 = vst.msk [vmem:[%s439] ss:$8 sm:$0xf] %vm438, %v437

// kernel: _lambda_.9
$region0: #{_lambda_.9}
  #allocation0 [shape = 'u32[]', space=smem, size = 0x4, offset = 0x4, fixed_abs, tag = 'smem constant byte address 0x4 - core index']
  #allocation1 [shape = 'u32[72,128]{1,0:T(1,128)}', space=vmem, size = 0x9000, scoped, tag = 'internal scratch']
  #allocation2 [shape = 'bf16[3,18,16,8]{3,2,1,0:T(8,128)(2,1)}', space=vmem, size = 0x36000, scoped, tag = 'scratch operand']
  %s0 = inlined_call_operand.vmem [shape: bf16[2,2,18,18,8], index: 0, kind: input, shape index: {}, may-alias: {0,1}]
  %s1 = inlined_call_operand.vmem [shape: bf16[2,2,18,18,8], index: 1, kind: input, shape index: {}, may-alias: {0,1}]
  %s2 = inlined_call_operand.vmem [shape: bf16[2,9,8,24], index: 2, kind: input, shape index: {}]
  %s3 = inlined_call_operand.vmem [shape: f32[2,1,24], index: 3, kind: input, shape index: {}]
  %s4 = inlined_call_operand.vmem [shape: bf16[2,7,24], index: 4, kind: input, shape index: {}]
  %s5 = inlined_call_operand.vmem [shape: f32[2,7,1], index: 5, kind: input, shape index: {}]
  %s6 = inlined_call_operand.vmem [shape: f32[2,2,7,256], index: 6, kind: output, shape index: {}]
  %s7 = sld [smem:[#allocation0]]
  $region57: #{_lambda_.9} parent=0
    _
  %s9 = ssub.s32 1, %s7
  %s10 = scalar_select 0, %s9, %s7
  loop: start=0, step=1, limit=6
  $region2: #{_lambda_.9} parent=0 // loop_pre_header
    _
  $region3: #{_lambda_.9} parent=0 // loop_header
    %s12 = sphi 0, %s16
    %p13 = scmp.ge.s32.totalorder %s12, 6
    %s19 = sphi 0, %s38
    %s20 = sphi 0, %s34
    %s21 = sphi 0, %s30
    %s22 = sphi 0, %s19
    %s23 = sphi 0, %s20
    %s24 = sphi 0, %s21
    %s25 = sphi 0, %s22
    %s26 = sphi 0, %s23
    %s27 = sphi 0, %s24
    %s45 = sphi 0, %s47
    %s48 = sphi 0, %s45
    %s49 = sphi 0, %s48
    %s65 = sphi 0, %s49
    %s79 = sphi 0, %s81
    %s82 = sphi 0, %s79
    %s83 = sphi 0, %s82
    %s99 = sphi 0, %s83
    %s105 = sphi 0, %s107
    %s108 = sphi 0, %s105
    %s109 = sphi 0, %s108
    %s125 = sphi 0, %s109
    %s131 = sphi 0, %s133
    %s134 = sphi 0, %s131
    %s135 = sphi 0, %s134
    %s151 = sphi 0, %s135
    %s157 = sphi 0, %s159
    %s160 = sphi 0, %s157
    %s161 = sphi 0, %s160
    %s177 = sphi 0, %s161
    %s183 = sphi 0, %s185
    %s186 = sphi 0, %s183
    %s187 = sphi 0, %s186
    %s203 = sphi 0, %s187
    %s213 = sphi 0, %s215
    %s216 = sphi 0, %s213
    %s217 = sphi 0, %s216
    %s233 = sphi 0, %s217
  $region4: #{_lambda_.9} parent=0 // loop_header_branch
    %15 = sbr.rel (%p13) target = $region8
  $region5: #{_lambda_.9} parent=0 // loop_body
    %s17 = ssub.s32 %s12, 1
    %s18 = ssub.s32 %s12, 2
    %s28 = sadd.s32 1, %s21
    %p29 = scmp.ge.s32.totalorder %s28, 1
    %s30 = scalar_select %p29, 0, %s28
    %s31 = sadd.s32 1, %s20
    %s32 = scalar_select %p29, %s31, %s20
    %p33 = scmp.ge.s32.totalorder %s32, 2
    %s34 = scalar_select %p33, 0, %s32
    %s35 = sadd.s32 1, %s19
    %s36 = scalar_select %p33, %s35, %s19
    %p37 = scmp.ge.s32.totalorder %s36, 2
    %s38 = scalar_select %p37, 0, %s36
    %s39 = ssub.s32 %s19, %s38
    %s40 = ssub.s32 %s20, %s34
    %s41 = sor.u32 %s39, %s40
    %s42 = ssub.s32 %s21, %s30
    %s43 = sor.u32 %s41, %s42
    %p44 = scmp.eq.s32.totalorder %s43, 0
    %s46 = sadd.s32 %s45, 1
    %s47 = scalar_select %p44, %s45, %s46
    %p50 = pneg %p44
    %p51 = scmp.eq.s32.totalorder %s12, 3
    %p52 = por %p50, %p51
    %p53 = scmp.ne.s32.totalorder %s45, %s48
    %p54 = scmp.eq.s32.totalorder %s12, 0
    %p55 = por %p53, %p54
    %p56 = scmp.ne.s32.totalorder %s45, %s48
    %p57 = scmp.eq.s32.totalorder %s17, 3
    %p58 = por %p56, %p57
    %p59 = scmp.ne.s32.totalorder %s48, %s49
    %p60 = scmp.eq.s32.totalorder %s17, 0
    %p61 = por %p59, %p60
    %p62 = scmp.ne.s32.totalorder %s48, %s49
    %p63 = scmp.eq.s32.totalorder %s18, 3
    %p64 = por %p62, %p63
    %p66 = scmp.ne.s32.totalorder %s49, %s65
    %p67 = scmp.eq.s32.totalorder %s18, 0
    %p68 = por %p66, %p67
    %s69 = sadd.s32 %s21, 1
    %s70 = smul.u32 %s69, 8
    %s71 = sadd.s32 %s30, 1
    %s72 = smul.u32 %s71, 8
    %s73 = ssub.s32 %s19, %s38
    %s74 = ssub.s32 %s20, %s34
    %s75 = sor.u32 %s73, %s74
    %s76 = ssub.s32 %s70, %s72
    %s77 = sor.u32 %s75, %s76
    %p78 = scmp.eq.s32.totalorder %s77, 0
    %s80 = sadd.s32 %s79, 1
    %s81 = scalar_select %p78, %s79, %s80
    %p84 = pneg %p78
    %p85 = scmp.eq.s32.totalorder %s12, 3
    %p86 = por %p84, %p85
    %p87 = scmp.ne.s32.totalorder %s79, %s82
    %p88 = scmp.eq.s32.totalorder %s12, 0
    %p89 = por %p87, %p88
    %p90 = scmp.ne.s32.totalorder %s79, %s82
    %p91 = scmp.eq.s32.totalorder %s17, 3
    %p92 = por %p90, %p91
    %p93 = scmp.ne.s32.totalorder %s82, %s83
    %p94 = scmp.eq.s32.totalorder %s17, 0
    %p95 = por %p93, %p94
    %p96 = scmp.ne.s32.totalorder %s82, %s83
    %p97 = scmp.eq.s32.totalorder %s18, 3
    %p98 = por %p96, %p97
    %p100 = scmp.ne.s32.totalorder %s83, %s99
    %p101 = scmp.eq.s32.totalorder %s18, 0
    %p102 = por %p100, %p101
    %s103 = ssub.s32 %s19, %s38
    %p104 = scmp.eq.s32.totalorder %s103, 0
    %s106 = sadd.s32 %s105, 1
    %s107 = scalar_select %p104, %s105, %s106
    %p110 = pneg %p104
    %p111 = scmp.eq.s32.totalorder %s12, 3
    %p112 = por %p110, %p111
    %p113 = scmp.ne.s32.totalorder %s105, %s108
    %p114 = scmp.eq.s32.totalorder %s12, 0
    %p115 = por %p113, %p114
    %p116 = scmp.ne.s32.totalorder %s105, %s108
    %p117 = scmp.eq.s32.totalorder %s17, 3
    %p118 = por %p116, %p117
    %p119 = scmp.ne.s32.totalorder %s108, %s109
    %p120 = scmp.eq.s32.totalorder %s17, 0
    %p121 = por %p119, %p120
    %p122 = scmp.ne.s32.totalorder %s108, %s109
    %p123 = scmp.eq.s32.totalorder %s18, 3
    %p124 = por %p122, %p123
    %p126 = scmp.ne.s32.totalorder %s109, %s125
    %p127 = scmp.eq.s32.totalorder %s18, 0
    %p128 = por %p126, %p127
    %s129 = ssub.s32 %s19, %s38
    %p130 = scmp.eq.s32.totalorder %s129, 0
    %s132 = sadd.s32 %s131, 1
    %s133 = scalar_select %p130, %s131, %s132
    %p136 = pneg %p130
    %p137 = scmp.eq.s32.totalorder %s12, 3
    %p138 = por %p136, %p137
    %p139 = scmp.ne.s32.totalorder %s131, %s134
    %p140 = scmp.eq.s32.totalorder %s12, 0
    %p141 = por %p139, %p140
    %p142 = scmp.ne.s32.totalorder %s131, %s134
    %p143 = scmp.eq.s32.totalorder %s17, 3
    %p144 = por %p142, %p143
    %p145 = scmp.ne.s32.totalorder %s134, %s135
    %p146 = scmp.eq.s32.totalorder %s17, 0
    %p147 = por %p145, %p146
    %p148 = scmp.ne.s32.totalorder %s134, %s135
    %p149 = scmp.eq.s32.totalorder %s18, 3
    %p150 = por %p148, %p149
    %p152 = scmp.ne.s32.totalorder %s135, %s151
    %p153 = scmp.eq.s32.totalorder %s18, 0
    %p154 = por %p152, %p153
    %s155 = ssub.s32 %s19, %s38
    %p156 = scmp.eq.s32.totalorder %s155, 0
    %s158 = sadd.s32 %s157, 1
    %s159 = scalar_select %p156, %s157, %s158
    %p162 = pneg %p156
    %p163 = scmp.eq.s32.totalorder %s12, 3
    %p164 = por %p162, %p163
    %p165 = scmp.ne.s32.totalorder %s157, %s160
    %p166 = scmp.eq.s32.totalorder %s12, 0
    %p167 = por %p165, %p166
    %p168 = scmp.ne.s32.totalorder %s157, %s160
    %p169 = scmp.eq.s32.totalorder %s17, 3
    %p170 = por %p168, %p169
    %p171 = scmp.ne.s32.totalorder %s160, %s161
    %p172 = scmp.eq.s32.totalorder %s17, 0
    %p173 = por %p171, %p172
    %p174 = scmp.ne.s32.totalorder %s160, %s161
    %p175 = scmp.eq.s32.totalorder %s18, 3
    %p176 = por %p174, %p175
    %p178 = scmp.ne.s32.totalorder %s161, %s177
    %p179 = scmp.eq.s32.totalorder %s18, 0
    %p180 = por %p178, %p179
    %s181 = ssub.s32 %s19, %s38
    %p182 = scmp.eq.s32.totalorder %s181, 0
    %s184 = sadd.s32 %s183, 1
    %s185 = scalar_select %p182, %s183, %s184
    %p188 = pneg %p182
    %p189 = scmp.eq.s32.totalorder %s12, 3
    %p190 = por %p188, %p189
    %p191 = scmp.ne.s32.totalorder %s183, %s186
    %p192 = scmp.eq.s32.totalorder %s12, 0
    %p193 = por %p191, %p192
    %p194 = scmp.ne.s32.totalorder %s183, %s186
    %p195 = scmp.eq.s32.totalorder %s17, 3
    %p196 = por %p194, %p195
    %p197 = scmp.ne.s32.totalorder %s186, %s187
    %p198 = scmp.eq.s32.totalorder %s17, 0
    %p199 = por %p197, %p198
    %p200 = scmp.ne.s32.totalorder %s186, %s187
    %p201 = scmp.eq.s32.totalorder %s18, 3
    %p202 = por %p200, %p201
    %p204 = scmp.ne.s32.totalorder %s187, %s203
    %p205 = scmp.eq.s32.totalorder %s18, 0
    %p206 = por %p204, %p205
    %s207 = ssub.s32 %s19, %s38
    %s208 = ssub.s32 %s20, %s34
    %s209 = sor.u32 %s207, %s208
    %s210 = ssub.s32 %s21, %s30
    %s211 = sor.u32 %s209, %s210
    %p212 = scmp.eq.s32.totalorder %s211, 0
    %s214 = sadd.s32 %s213, 1
    %s215 = scalar_select %p212, %s213, %s214
    %p218 = pneg %p212
    %p219 = scmp.eq.s32.totalorder %s12, 3
    %p220 = por %p218, %p219
    %p221 = scmp.ne.s32.totalorder %s213, %s216
    %p222 = scmp.eq.s32.totalorder %s12, 0
    %p223 = por %p221, %p222
    %p224 = scmp.ne.s32.totalorder %s213, %s216
    %p225 = scmp.eq.s32.totalorder %s17, 3
    %p226 = por %p224, %p225
    %p227 = scmp.ne.s32.totalorder %s216, %s217
    %p228 = scmp.eq.s32.totalorder %s17, 0
    %p229 = por %p227, %p228
    %p230 = scmp.ne.s32.totalorder %s216, %s217
    %p231 = scmp.eq.s32.totalorder %s18, 3
    %p232 = por %p230, %p231
    %p234 = scmp.ne.s32.totalorder %s217, %s233
    %p235 = scmp.eq.s32.totalorder %s18, 0
    %p236 = por %p234, %p235
    %p237 = scmp.le.s32.totalorder 1, %s12
    %p238 = scmp.lt.s32.totalorder %s12, 5
    %p239 = pnand %p237, %p238
    %p240 = pneg %p239
    // Predicated region
    $region9: #{_lambda_.9} parent=5 // pred_check
      _
    $region10: #{_lambda_.9} parent=5 // pred_check_branch
      %242 = sbr.rel (%p239) target = $region12
    $region11: #{_lambda_.9} parent=5 // pred_region
      %s243 = ssub.s32 %s12, 1
    $region12: #{_lambda_.9} parent=5 // pred_fallthru
      _
    %p244 = scmp.lt.s32.totalorder %s12, 4
    // Predicated region
    $region13: #{_lambda_.9} parent=5 // pred_check
      %p245 = pneg %p244
    $region14: #{_lambda_.9} parent=5 // pred_check_branch
      %247 = sbr.rel (%p245) target = $region16
    $region15: #{_lambda_.9} parent=5 // pred_region
      // Predicated region
      $region17: #{_lambda_.9} parent=15 // pred_check
        %p248 = pneg %p55
      $region18: #{_lambda_.9} parent=15 // pred_check_branch
        %250 = sbr.rel (%p248) target = $region20
      $region19: #{_lambda_.9} parent=15 // pred_region
        %s251 = smul.u32 16, %s21
        %s252 = ssub.s32 18, %s251
        %p253 = scmp.lt.s32.totalorder %s252, 16
        %s254 = scalar_select %p253, %s252, 16
        %s255 = smul.u32 4, %s254
        %s256 = smul.u32 %s255, 3
        %p257 = scmp.lt.s32.totalorder %s19, 1
        %s258 = scalar_select %p257, %s19, 1
        %p259 = scmp.lt.s32.totalorder %s20, 1
        %s260 = scalar_select %p259, %s20, 1
        %p261 = scmp.lt.s32.totalorder %s251, 17
        %s262 = scalar_select %p261, %s251, 17
        %s263 = smul.addr %s262, 3
        %s264 = smul.addr %s260, 54
        %s265 = sadd.s32 %s263, %s264
        %s266 = smul.addr %s258, 108
        %s267 = sadd.s32 %s265, %s266
        %s268 = smul.addr %s267, 4
        %s269 = scalar_lea.vmem %s0, %s268
        %s270 = smul.u32 16, %s21
        %s271 = ssub.s32 18, %s270
        %p272 = scmp.lt.s32.totalorder %s271, 16
        %s273 = scalar_select %p272, %s271, 16
        %s274 = smul.u32 4, %s273
        %s275 = smul.u32 %s274, 3
      $region20: #{_lambda_.9} parent=15 // pred_fallthru
        _
      // Predicated region
      $region21: #{_lambda_.9} parent=15 // pred_check
        %p276 = pneg %p89
      $region22: #{_lambda_.9} parent=15 // pred_check_branch
        %278 = sbr.rel (%p276) target = $region24
      $region23: #{_lambda_.9} parent=15 // pred_region
        %s279 = sadd.s32 %s21, 1
        %s280 = smul.u32 %s279, 8
        %s281 = smul.u32 2, %s280
        %p282 = scmp.lt.s32.totalorder %s19, 1
        %s283 = scalar_select %p282, %s19, 1
        %p284 = scmp.lt.s32.totalorder %s20, 1
        %s285 = scalar_select %p284, %s20, 1
        %p286 = scmp.lt.s32.totalorder %s281, 17
        %s287 = scalar_select %p286, %s281, 17
        %s288 = smul.addr %s287, 3
        %s289 = smul.addr %s285, 54
        %s290 = sadd.s32 %s288, %s289
        %s291 = smul.addr %s283, 108
        %s292 = sadd.s32 %s290, %s291
        %s293 = smul.addr %s292, 4
        %s294 = scalar_lea.vmem %s1, %s293
        %s295 = sadd.s32 %s21, 1
        %s296 = smul.u32 %s295, 8
        %s297 = smul.u32 2, %s296
      $region24: #{_lambda_.9} parent=15 // pred_fallthru
        _
      // Predicated region
      $region25: #{_lambda_.9} parent=15 // pred_check
        %p298 = pneg %p115
      $region26: #{_lambda_.9} parent=15 // pred_check_branch
        %300 = sbr.rel (%p298) target = $region28
      $region27: #{_lambda_.9} parent=15 // pred_region
        %p301 = scmp.lt.s32.totalorder %s19, 1
        %s302 = scalar_select %p301, %s19, 1
        %s303 = smul.addr %s302, 9
        %s304 = smul.addr %s303, 4
        %s305 = scalar_lea.vmem %s2, %s304
      $region28: #{_lambda_.9} parent=15 // pred_fallthru
        _
      // Predicated region
      $region29: #{_lambda_.9} parent=15 // pred_check
        %p306 = pneg %p141
      $region30: #{_lambda_.9} parent=15 // pred_check_branch
        %308 = sbr.rel (%p306) target = $region32
      $region31: #{_lambda_.9} parent=15 // pred_region
        %p309 = scmp.lt.s32.totalorder %s19, 1
        %s310 = scalar_select %p309, %s19, 1
        %s311 = scalar_lea.vmem %s3, %s310
      $region32: #{_lambda_.9} parent=15 // pred_fallthru
        _
      // Predicated region
      $region33: #{_lambda_.9} parent=15 // pred_check
        %p312 = pneg %p167
      $region34: #{_lambda_.9} parent=15 // pred_check_branch
        %314 = sbr.rel (%p312) target = $region36
      $region35: #{_lambda_.9} parent=15 // pred_region
        %p315 = scmp.lt.s32.totalorder %s19, 1
        %s316 = scalar_select %p315, %s19, 1
        %s317 = smul.addr %s316, 4
        %s318 = scalar_lea.vmem %s4, %s317
      $region36: #{_lambda_.9} parent=15 // pred_fallthru
        _
      // Predicated region
      $region37: #{_lambda_.9} parent=15 // pred_check
        %p319 = pneg %p193
      $region38: #{_lambda_.9} parent=15 // pred_check_branch
        %321 = sbr.rel (%p319) target = $region40
      $region39: #{_lambda_.9} parent=15 // pred_region
        %p322 = scmp.lt.s32.totalorder %s19, 1
        %s323 = scalar_select %p322, %s19, 1
        %s324 = smul.addr %s323, 8
        %s325 = scalar_lea.vmem %s5, %s324
      $region40: #{_lambda_.9} parent=15 // pred_fallthru
        _
    $region16: #{_lambda_.9} parent=5 // pred_fallthru
      _
    %p326 = scmp.le.s32.totalorder 1, %s12
    %p327 = scmp.lt.s32.totalorder %s12, 5
    %p328 = pnand %p326, %p327
    %p329 = pneg %p328
    // Predicated region
    $region41: #{_lambda_.9} parent=5 // pred_check
      _
    $region42: #{_lambda_.9} parent=5 // pred_check_branch
      %331 = sbr.rel (%p328) target = $region44
    $region43: #{_lambda_.9} parent=5 // pred_region
      %s332 = ssub.s32 %s12, 1
      %s333 = smul.u32 16, %s24
      %s334 = ssub.s32 18, %s333
      %p335 = scmp.lt.s32.totalorder %s334, 16
      %s336 = scalar_select %p335, %s334, 16
      %s337 = smul.u32 4, %s336
      %s338 = smul.u32 %s337, 3
      %p339 = scmp.lt.s32.totalorder %s22, 1
      %s340 = scalar_select %p339, %s22, 1
      %p341 = scmp.lt.s32.totalorder %s23, 1
      %s342 = scalar_select %p341, %s23, 1
      %p343 = scmp.lt.s32.totalorder %s333, 17
      %s344 = scalar_select %p343, %s333, 17
      %s345 = smul.addr %s344, 3
      %s346 = smul.addr %s342, 54
      %s347 = sadd.s32 %s345, %s346
      %s348 = smul.addr %s340, 108
      %s349 = sadd.s32 %s347, %s348
      %s350 = smul.addr %s349, 4
      %s351 = scalar_lea.vmem %s0, %s350
      %p352 = pneg %p61
      %p353 = pneg %p58
      %s354 = sadd.s32 %s24, 1
      %s355 = smul.u32 %s354, 8
      %s356 = smul.u32 2, %s355
      %p357 = scmp.lt.s32.totalorder %s22, 1
      %s358 = scalar_select %p357, %s22, 1
      %p359 = scmp.lt.s32.totalorder %s23, 1
      %s360 = scalar_select %p359, %s23, 1
      %p361 = scmp.lt.s32.totalorder %s356, 17
      %s362 = scalar_select %p361, %s356, 17
      %s363 = smul.addr %s362, 3
      %s364 = smul.addr %s360, 54
      %s365 = sadd.s32 %s363, %s364
      %s366 = smul.addr %s358, 108
      %s367 = sadd.s32 %s365, %s366
      %s368 = smul.addr %s367, 4
      %s369 = scalar_lea.vmem %s1, %s368
      %p370 = pneg %p95
      %p371 = pneg %p92
      %p372 = scmp.lt.s32.totalorder %s22, 1
      %s373 = scalar_select %p372, %s22, 1
      %s374 = smul.addr %s373, 9
      %s375 = smul.addr %s374, 4
      %s376 = scalar_lea.vmem %s2, %s375
      %p377 = pneg %p121
      %p378 = pneg %p118
      %p379 = scmp.lt.s32.totalorder %s22, 1
      %s380 = scalar_select %p379, %s22, 1
      %s381 = scalar_lea.vmem %s3, %s380
      %p382 = pneg %p147
      %p383 = pneg %p144
      %p384 = scmp.lt.s32.totalorder %s22, 1
      %s385 = scalar_select %p384, %s22, 1
      %s386 = smul.addr %s385, 4
      %s387 = scalar_lea.vmem %s4, %s386
      %p388 = pneg %p173
      %p389 = pneg %p170
      %p390 = scmp.lt.s32.totalorder %s22, 1
      %s391 = scalar_select %p390, %s22, 1
      %s392 = smul.addr %s391, 8
      %s393 = scalar_lea.vmem %s5, %s392
      %p394 = pneg %p199
      %p395 = pneg %p196
      %p396 = pneg %p229
      %p397 = pneg %p226
      %s398 = smul.u32 2, %s24
      %p399 = scmp.lt.s32.totalorder %s22, 1
      %s400 = scalar_select %p399, %s22, 1
      %p401 = scmp.lt.s32.totalorder %s23, 1
      %s402 = scalar_select %p401, %s23, 1
      %p403 = scmp.lt.s32.totalorder %s398, 1
      %s404 = scalar_select %p403, %s398, 1
      %s405 = smul.addr %s402, 2
      %s406 = sadd.s32 %s404, %s405
      %s407 = smul.addr %s400, 4
      %s408 = sadd.s32 %s406, %s407
      %s409 = smul.addr %s408, 8
      %s410 = scalar_lea.vmem %s6, %s409
      %s411 = smul.u32 16, %s24
      %s412 = ssub.s32 18, %s411
      %p413 = scmp.lt.s32.totalorder %s412, 16
      %s414 = scalar_select %p413, %s412, 16
      %s415 = smul.u32 4, %s414
      %s416 = smul.u32 %s415, 3
      %p417 = scmp.lt.s32.totalorder %s22, 1
      %s418 = scalar_select %p417, %s22, 1
      %p419 = scmp.lt.s32.totalorder %s23, 1
      %s420 = scalar_select %p419, %s23, 1
      %p421 = scmp.lt.s32.totalorder %s411, 17
      %s422 = scalar_select %p421, %s411, 17
      %s423 = smul.addr %s422, 3
      %s424 = smul.addr %s420, 54
      %s425 = sadd.s32 %s423, %s424
      %s426 = smul.addr %s418, 108
      %s427 = sadd.s32 %s425, %s426
      %s428 = smul.addr %s427, 4
      %s429 = scalar_lea.vmem %s0, %s428
      %s430 = smul.u32 16, %s24
      %s431 = ssub.s32 18, %s430
      %p432 = scmp.lt.s32.totalorder %s431, 16
      %s433 = scalar_select %p432, %s431, 16
      %s434 = smul.u32 4, %s433
      %s435 = smul.u32 %s434, 3
      %s436 = sadd.s32 %s24, 1
      %s437 = smul.u32 %s436, 8
      %s438 = smul.u32 2, %s437
      %p439 = scmp.lt.s32.totalorder %s22, 1
      %s440 = scalar_select %p439, %s22, 1
      %p441 = scmp.lt.s32.totalorder %s23, 1
      %s442 = scalar_select %p441, %s23, 1
      %p443 = scmp.lt.s32.totalorder %s438, 17
      %s444 = scalar_select %p443, %s438, 17
      %s445 = smul.addr %s444, 3
      %s446 = smul.addr %s442, 54
      %s447 = sadd.s32 %s445, %s446
      %s448 = smul.addr %s440, 108
      %s449 = sadd.s32 %s447, %s448
      %s450 = smul.addr %s449, 4
      %s451 = scalar_lea.vmem %s1, %s450
      %s452 = sadd.s32 %s24, 1
      %s453 = smul.u32 %s452, 8
      %s454 = smul.u32 2, %s453
      %p455 = scmp.lt.s32.totalorder %s22, 1
      %s456 = scalar_select %p455, %s22, 1
      %s457 = smul.addr %s456, 9
      %s458 = smul.addr %s457, 4
      %s459 = scalar_lea.vmem %s2, %s458
      %p460 = scmp.lt.s32.totalorder %s22, 1
      %s461 = scalar_select %p460, %s22, 1
      %s462 = scalar_lea.vmem %s3, %s461
      %p463 = scmp.lt.s32.totalorder %s22, 1
      %s464 = scalar_select %p463, %s22, 1
      %s465 = smul.addr %s464, 4
      %s466 = scalar_lea.vmem %s4, %s465
      %p467 = scmp.lt.s32.totalorder %s22, 1
      %s468 = scalar_select %p467, %s22, 1
      %s469 = smul.addr %s468, 8
      %s470 = scalar_lea.vmem %s5, %s469
      %s471 = smul.u32 2, %s24
      %p472 = scmp.lt.s32.totalorder %s22, 1
      %s473 = scalar_select %p472, %s22, 1
      %p474 = scmp.lt.s32.totalorder %s23, 1
      %s475 = scalar_select %p474, %s23, 1
      %p476 = scmp.lt.s32.totalorder %s471, 1
      %s477 = scalar_select %p476, %s471, 1
      %s478 = smul.addr %s475, 2
      %s479 = sadd.s32 %s477, %s478
      %s480 = smul.addr %s473, 4
      %s481 = sadd.s32 %s479, %s480
      %s482 = smul.addr %s481, 8
      %s483 = scalar_lea.vmem %s6, %s482
      %s484 = smul.u32 2, %s24
      %v486 = vld [vmem:[%s429] sm:$0xf]
      %v487 = vld [vmem:[%s429 + $0x4] sm:$0xf]
      %v488 = vld [vmem:[%s429 + $0xc] sm:$0xf]
      %v489 = vld [vmem:[%s429 + $0x10] sm:$0xf]
      %v490 = vld [vmem:[%s429 + $0x18] sm:$0xf]
      %v491 = vld [vmem:[%s429 + $0x1c] sm:$0xf]
      %v492 = vld [vmem:[%s429 + $0x24] sm:$0xf]
      %v493 = vld [vmem:[%s429 + $0x28] sm:$0xf]
      %v494 = vld [vmem:[%s429 + $0x30] sm:$0xf]
      %v495 = vld [vmem:[%s429 + $0x34] sm:$0xf]
      %v496 = vld [vmem:[%s429 + $0x3c] sm:$0xf]
      %v497 = vld [vmem:[%s429 + $0x40] sm:$0xf]
      %v498 = vld [vmem:[%s429 + $0x48] sm:$0xf]
      %v499 = vld [vmem:[%s429 + $0x4c] sm:$0xf]
      %v500 = vld [vmem:[%s429 + $0x54] sm:$0xf]
      %v501 = vld [vmem:[%s429 + $0x58] sm:$0xf]
      %v502 = vld [vmem:[%s429 + $0x60] sm:$0xf]
      %v503 = vld [vmem:[%s429 + $0x64] sm:$0xf]
      %v504 = vld [vmem:[%s429 + $0x6c] sm:$0xf]
      %v505 = vld [vmem:[%s429 + $0x70] sm:$0xf]
      %v506 = vld [vmem:[%s429 + $0x78] sm:$0xf]
      %v507 = vld [vmem:[%s429 + $0x7c] sm:$0xf]
      %v508 = vld [vmem:[%s429 + $0x84] sm:$0xf]
      %v509 = vld [vmem:[%s429 + $0x88] sm:$0xf]
      %v510 = vld [vmem:[%s429 + $0x90] sm:$0xf]
      %v511 = vld [vmem:[%s429 + $0x94] sm:$0xf]
      %v512 = vld [vmem:[%s429 + $0x9c] sm:$0xf]
      %v513 = vld [vmem:[%s429 + $0xa0] sm:$0xf]
      %v514 = vld [vmem:[%s429 + $0xa8] sm:$0xf]
      %v515 = vld [vmem:[%s429 + $0xac] sm:$0xf]
      %v516 = vld [vmem:[%s429 + $0xb4] sm:$0xf]
      %v517 = vld [vmem:[%s429 + $0xb8] sm:$0xf]
      %vm518 = vcmask 60416
      %519 = vst.msk [vmem:[#allocation2] sm:$0xf] %vm518, %v486
      %520 = vst.msk [vmem:[#allocation2 + $0x4] sm:$0xf] %vm518, %v487
      %521 = vst.msk [vmem:[#allocation2 + $0x8] sm:$0xf] %vm518, %v488
      %522 = vst.msk [vmem:[#allocation2 + $0xc] sm:$0xf] %vm518, %v489
      %523 = vst.msk [vmem:[#allocation2 + $0x10] sm:$0xf] %vm518, %v490
      %524 = vst.msk [vmem:[#allocation2 + $0x14] sm:$0xf] %vm518, %v491
      %525 = vst.msk [vmem:[#allocation2 + $0x18] sm:$0xf] %vm518, %v492
      %526 = vst.msk [vmem:[#allocation2 + $0x1c] sm:$0xf] %vm518, %v493
      %527 = vst.msk [vmem:[#allocation2 + $0x20] sm:$0xf] %vm518, %v494
      %528 = vst.msk [vmem:[#allocation2 + $0x24] sm:$0xf] %vm518, %v495
      %529 = vst.msk [vmem:[#allocation2 + $0x28] sm:$0xf] %vm518, %v496
      %530 = vst.msk [vmem:[#allocation2 + $0x2c] sm:$0xf] %vm518, %v497
      %531 = vst.msk [vmem:[#allocation2 + $0x30] sm:$0xf] %vm518, %v498
      %532 = vst.msk [vmem:[#allocation2 + $0x34] sm:$0xf] %vm518, %v499
      %533 = vst.msk [vmem:[#allocation2 + $0x38] sm:$0xf] %vm518, %v500
      %534 = vst.msk [vmem:[#allocation2 + $0x3c] sm:$0xf] %vm518, %v501
      %535 = vst.msk [vmem:[#allocation2 + $0x40] sm:$0xf] %vm518, %v502
      %536 = vst.msk [vmem:[#allocation2 + $0x44] sm:$0xf] %vm518, %v503
      %537 = vst.msk [vmem:[#allocation2 + $0x48] sm:$0xf] %vm518, %v504
      %538 = vst.msk [vmem:[#allocation2 + $0x4c] sm:$0xf] %vm518, %v505
      %539 = vst.msk [vmem:[#allocation2 + $0x50] sm:$0xf] %vm518, %v506
      %540 = vst.msk [vmem:[#allocation2 + $0x54] sm:$0xf] %vm518, %v507
      %541 = vst.msk [vmem:[#allocation2 + $0x58] sm:$0xf] %vm518, %v508
      %542 = vst.msk [vmem:[#allocation2 + $0x5c] sm:$0xf] %vm518, %v509
      %543 = vst.msk [vmem:[#allocation2 + $0x60] sm:$0xf] %vm518, %v510
      %544 = vst.msk [vmem:[#allocation2 + $0x64] sm:$0xf] %vm518, %v511
      %545 = vst.msk [vmem:[#allocation2 + $0x68] sm:$0xf] %vm518, %v512
      %546 = vst.msk [vmem:[#allocation2 + $0x6c] sm:$0xf] %vm518, %v513
      %547 = vst.msk [vmem:[#allocation2 + $0x70] sm:$0xf] %vm518, %v514
      %548 = vst.msk [vmem:[#allocation2 + $0x74] sm:$0xf] %vm518, %v515
      %549 = vst.msk [vmem:[#allocation2 + $0x78] sm:$0xf] %vm518, %v516
      %550 = vst.msk [vmem:[#allocation2 + $0x7c] sm:$0xf] %vm518, %v517
      %v551 = vld [vmem:[%s451] sm:$0xf]
      %v552 = vld [vmem:[%s451 + $0x4] sm:$0xf]
      %v553 = vld [vmem:[%s451 + $0xc] sm:$0xf]
      %v554 = vld [vmem:[%s451 + $0x10] sm:$0xf]
      %s555 = scalar_lea.vmem [#allocation2], 128
      %556 = vst.msk [vmem:[%s555] sm:$0xf] %vm518, %v551
      %557 = vst.msk [vmem:[%s555 + $0x4] sm:$0xf] %vm518, %v552
      %558 = vst.msk [vmem:[%s555 + $0x8] sm:$0xf] %vm518, %v553
      %559 = vst.msk [vmem:[%s555 + $0xc] sm:$0xf] %vm518, %v554
      %v560 = vld [vmem:[%s429] sm:$0xf]
      %v561 = vld [vmem:[%s429 + $0x4] sm:$0xf]
      %v562 = vld [vmem:[%s429 + $0x8] sm:$0x1]
      %v563 = vld [vmem:[%s429 + $0xc] sm:$0xf]
      %v564 = vld [vmem:[%s429 + $0x10] sm:$0xf]
      %v565 = vld [vmem:[%s429 + $0x14] sm:$0x1]
      %v566 = vld [vmem:[%s429 + $0x18] sm:$0xf]
      %v567 = vld [vmem:[%s429 + $0x1c] sm:$0xf]
      %v568 = vld [vmem:[%s429 + $0x20] sm:$0x1]
      %v569 = vld [vmem:[%s429 + $0x24] sm:$0xf]
      %v570 = vld [vmem:[%s429 + $0x28] sm:$0xf]
      %v571 = vld [vmem:[%s429 + $0x2c] sm:$0x1]
      %v572 = vld [vmem:[%s429 + $0x30] sm:$0xf]
      %v573 = vld [vmem:[%s429 + $0x34] sm:$0xf]
      %v574 = vld [vmem:[%s429 + $0x38] sm:$0x1]
      %v575 = vld [vmem:[%s429 + $0x3c] sm:$0xf]
      %v576 = vld [vmem:[%s429 + $0x40] sm:$0xf]
      %v577 = vld [vmem:[%s429 + $0x44] sm:$0x1]
      %v578 = vld [vmem:[%s429 + $0x48] sm:$0xf]
      %v579 = vld [vmem:[%s429 + $0x4c] sm:$0xf]
      %v580 = vld [vmem:[%s429 + $0x50] sm:$0x1]
      %v581 = vld [vmem:[%s429 + $0x54] sm:$0xf]
      %v582 = vld [vmem:[%s429 + $0x58] sm:$0xf]
      %v583 = vld [vmem:[%s429 + $0x5c] sm:$0x1]
      %v584 = vld [vmem:[%s429 + $0x60] sm:$0xf]
      %v585 = vld [vmem:[%s429 + $0x64] sm:$0xf]
      %v586 = vld [vmem:[%s429 + $0x68] sm:$0x1]
      %v587 = vld [vmem:[%s429 + $0x6c] sm:$0xf]
      %v588 = vld [vmem:[%s429 + $0x70] sm:$0xf]
      %v589 = vld [vmem:[%s429 + $0x74] sm:$0x1]
      %v590 = vld [vmem:[%s429 + $0x78] sm:$0xf]
      %v591 = vld [vmem:[%s429 + $0x7c] sm:$0xf]
      %v592 = vld [vmem:[%s429 + $0x80] sm:$0x1]
      %v593 = vld [vmem:[%s429 + $0x84] sm:$0xf]
      %v594 = vld [vmem:[%s429 + $0x88] sm:$0xf]
      %v595 = vld [vmem:[%s429 + $0x8c] sm:$0x1]
      %v596 = vld [vmem:[%s429 + $0x90] sm:$0xf]
      %v597 = vld [vmem:[%s429 + $0x94] sm:$0xf]
      %v598 = vld [vmem:[%s429 + $0x98] sm:$0x1]
      %v599 = vld [vmem:[%s429 + $0x9c] sm:$0xf]
      %v600 = vld [vmem:[%s429 + $0xa0] sm:$0xf]
      %v601 = vld [vmem:[%s429 + $0xa4] sm:$0x1]
      %v602 = vld [vmem:[%s429 + $0xa8] sm:$0xf]
      %v603 = vld [vmem:[%s429 + $0xac] sm:$0xf]
      %v604 = vld [vmem:[%s429 + $0xb0] sm:$0x1]
      %v605 = vld [vmem:[%s429 + $0xb4] sm:$0xf]
      %v606 = vld [vmem:[%s429 + $0xb8] sm:$0xf]
      %v607 = vld [vmem:[%s429 + $0xbc] sm:$0x1]
      %vm608 = vsmask.f32 3328
      %vm609 = vsmask.f32 7440
      %vm610 = vmor %vm608, %vm609
      %v612 = vshrl.u32 %v560, 16
      %v614 = vrot.slane %v612, 4
      %v615 = vshll.u32 %v560, 16
      %v617 = vrot.slane %v615, 5
      %v618 = vor.u32 %v614, %v617
      %v619 = vrot.slane %v618, 4
      %v621 = vshll.u32 %v561, 16
      %v623 = vrot.slane %v621, 5
      %v624 = vsel %vm610, %v619, %v623
      %v625 = vshrl.u32 %v561, 16
      %v627 = vrot.slane %v625, 4
      %v628 = vor.u32 %v627, %v623
      %v629 = vrot.slane %v628, 4
      %v631 = vshll.u32 %v562, 16
      %v633 = vrot.slane %v631, 5
      %v634 = vsel %vm610, %v629, %v633
      %v636 = vshrl.u32 %v563, 16
      %v638 = vrot.slane %v636, 4
      %v639 = vshll.u32 %v563, 16
      %v641 = vrot.slane %v639, 5
      %v642 = vor.u32 %v638, %v641
      %v643 = vrot.slane %v642, 4
      %v645 = vshll.u32 %v564, 16
      %v647 = vrot.slane %v645, 5
      %v648 = vsel %vm610, %v643, %v647
      %v649 = vshrl.u32 %v564, 16
      %v651 = vrot.slane %v649, 4
      %v652 = vor.u32 %v651, %v647
      %v653 = vrot.slane %v652, 4
      %v655 = vshll.u32 %v565, 16
      %v657 = vrot.slane %v655, 5
      %v658 = vsel %vm610, %v653, %v657
      %v660 = vshrl.u32 %v566, 16
      %v662 = vrot.slane %v660, 4
      %v663 = vshll.u32 %v566, 16
      %v665 = vrot.slane %v663, 5
      %v666 = vor.u32 %v662, %v665
      %v667 = vrot.slane %v666, 4
      %v669 = vshll.u32 %v567, 16
      %v671 = vrot.slane %v669, 5
      %v672 = vsel %vm610, %v667, %v671
      %v673 = vshrl.u32 %v567, 16
      %v675 = vrot.slane %v673, 4
      %v676 = vor.u32 %v675, %v671
      %v677 = vrot.slane %v676, 4
      %v679 = vshll.u32 %v568, 16
      %v681 = vrot.slane %v679, 5
      %v682 = vsel %vm610, %v677, %v681
      %v684 = vshrl.u32 %v569, 16
      %v686 = vrot.slane %v684, 4
      %v687 = vshll.u32 %v569, 16
      %v689 = vrot.slane %v687, 5
      %v690 = vor.u32 %v686, %v689
      %v691 = vrot.slane %v690, 4
      %v693 = vshll.u32 %v570, 16
      %v695 = vrot.slane %v693, 5
      %v696 = vsel %vm610, %v691, %v695
      %v697 = vshrl.u32 %v570, 16
      %v699 = vrot.slane %v697, 4
      %v700 = vor.u32 %v699, %v695
      %v701 = vrot.slane %v700, 4
      %v703 = vshll.u32 %v571, 16
      %v705 = vrot.slane %v703, 5
      %v706 = vsel %vm610, %v701, %v705
      %v708 = vshrl.u32 %v572, 16
      %v710 = vrot.slane %v708, 4
      %v711 = vshll.u32 %v572, 16
      %v713 = vrot.slane %v711, 5
      %v714 = vor.u32 %v710, %v713
      %v715 = vrot.slane %v714, 4
      %v717 = vshll.u32 %v573, 16
      %v719 = vrot.slane %v717, 5
      %v720 = vsel %vm610, %v715, %v719
      %v721 = vshrl.u32 %v573, 16
      %v723 = vrot.slane %v721, 4
      %v724 = vor.u32 %v723, %v719
      %v725 = vrot.slane %v724, 4
      %v727 = vshll.u32 %v574, 16
      %v729 = vrot.slane %v727, 5
      %v730 = vsel %vm610, %v725, %v729
      %v732 = vshrl.u32 %v575, 16
      %v734 = vrot.slane %v732, 4
      %v735 = vshll.u32 %v575, 16
      %v737 = vrot.slane %v735, 5
      %v738 = vor.u32 %v734, %v737
      %v739 = vrot.slane %v738, 4
      %v741 = vshll.u32 %v576, 16
      %v743 = vrot.slane %v741, 5
      %v744 = vsel %vm610, %v739, %v743
      %v745 = vshrl.u32 %v576, 16
      %v747 = vrot.slane %v745, 4
      %v748 = vor.u32 %v747, %v743
      %v749 = vrot.slane %v748, 4
      %v751 = vshll.u32 %v577, 16
      %v753 = vrot.slane %v751, 5
      %v754 = vsel %vm610, %v749, %v753
      %v756 = vshrl.u32 %v578, 16
      %v758 = vrot.slane %v756, 4
      %v759 = vshll.u32 %v578, 16
      %v761 = vrot.slane %v759, 5
      %v762 = vor.u32 %v758, %v761
      %v763 = vrot.slane %v762, 4
      %v765 = vshll.u32 %v579, 16
      %v767 = vrot.slane %v765, 5
      %v768 = vsel %vm610, %v763, %v767
      %v769 = vshrl.u32 %v579, 16
      %v771 = vrot.slane %v769, 4
      %v772 = vor.u32 %v771, %v767
      %v773 = vrot.slane %v772, 4
      %v775 = vshll.u32 %v580, 16
      %v777 = vrot.slane %v775, 5
      %v778 = vsel %vm610, %v773, %v777
      %v780 = vshrl.u32 %v581, 16
      %v782 = vrot.slane %v780, 4
      %v783 = vshll.u32 %v581, 16
      %v785 = vrot.slane %v783, 5
      %v786 = vor.u32 %v782, %v785
      %v787 = vrot.slane %v786, 4
      %v789 = vshll.u32 %v582, 16
      %v791 = vrot.slane %v789, 5
      %v792 = vsel %vm610, %v787, %v791
      %v793 = vshrl.u32 %v582, 16
      %v795 = vrot.slane %v793, 4
      %v796 = vor.u32 %v795, %v791
      %v797 = vrot.slane %v796, 4
      %v799 = vshll.u32 %v583, 16
      %v801 = vrot.slane %v799, 5
      %v802 = vsel %vm610, %v797, %v801
      %v804 = vshrl.u32 %v584, 16
      %v806 = vrot.slane %v804, 4
      %v807 = vshll.u32 %v584, 16
      %v809 = vrot.slane %v807, 5
      %v810 = vor.u32 %v806, %v809
      %v811 = vrot.slane %v810, 4
      %v813 = vshll.u32 %v585, 16
      %v815 = vrot.slane %v813, 5
      %v816 = vsel %vm610, %v811, %v815
      %v817 = vshrl.u32 %v585, 16
      %v819 = vrot.slane %v817, 4
      %v820 = vor.u32 %v819, %v815
      %v821 = vrot.slane %v820, 4
      %v823 = vshll.u32 %v586, 16
      %v825 = vrot.slane %v823, 5
      %v826 = vsel %vm610, %v821, %v825
      %v828 = vshrl.u32 %v587, 16
      %v830 = vrot.slane %v828, 4
      %v831 = vshll.u32 %v587, 16
      %v833 = vrot.slane %v831, 5
      %v834 = vor.u32 %v830, %v833
      %v835 = vrot.slane %v834, 4
      %v837 = vshll.u32 %v588, 16
      %v839 = vrot.slane %v837, 5
      %v840 = vsel %vm610, %v835, %v839
      %v841 = vshrl.u32 %v588, 16
      %v843 = vrot.slane %v841, 4
      %v844 = vor.u32 %v843, %v839
      %v845 = vrot.slane %v844, 4
      %v847 = vshll.u32 %v589, 16
      %v849 = vrot.slane %v847, 5
      %v850 = vsel %vm610, %v845, %v849
      %v852 = vshrl.u32 %v590, 16
      %v854 = vrot.slane %v852, 4
      %v855 = vshll.u32 %v590, 16
      %v857 = vrot.slane %v855, 5
      %v858 = vor.u32 %v854, %v857
      %v859 = vrot.slane %v858, 4
      %v861 = vshll.u32 %v591, 16
      %v863 = vrot.slane %v861, 5
      %v864 = vsel %vm610, %v859, %v863
      %v865 = vshrl.u32 %v591, 16
      %v867 = vrot.slane %v865, 4
      %v868 = vor.u32 %v867, %v863
      %v869 = vrot.slane %v868, 4
      %v871 = vshll.u32 %v592, 16
      %v873 = vrot.slane %v871, 5
      %v874 = vsel %vm610, %v869, %v873
      %v876 = vshrl.u32 %v593, 16
      %v878 = vrot.slane %v876, 4
      %v879 = vshll.u32 %v593, 16
      %v881 = vrot.slane %v879, 5
      %v882 = vor.u32 %v878, %v881
      %v883 = vrot.slane %v882, 4
      %v885 = vshll.u32 %v594, 16
      %v887 = vrot.slane %v885, 5
      %v888 = vsel %vm610, %v883, %v887
      %v889 = vshrl.u32 %v594, 16
      %v891 = vrot.slane %v889, 4
      %v892 = vor.u32 %v891, %v887
      %v893 = vrot.slane %v892, 4
      %v895 = vshll.u32 %v595, 16
      %v897 = vrot.slane %v895, 5
      %v898 = vsel %vm610, %v893, %v897
      %v900 = vshrl.u32 %v596, 16
      %v902 = vrot.slane %v900, 4
      %v903 = vshll.u32 %v596, 16
      %v905 = vrot.slane %v903, 5
      %v906 = vor.u32 %v902, %v905
      %v907 = vrot.slane %v906, 4
      %v909 = vshll.u32 %v597, 16
      %v911 = vrot.slane %v909, 5
      %v912 = vsel %vm610, %v907, %v911
      %v913 = vshrl.u32 %v597, 16
      %v915 = vrot.slane %v913, 4
      %v916 = vor.u32 %v915, %v911
      %v917 = vrot.slane %v916, 4
      %v919 = vshll.u32 %v598, 16
      %v921 = vrot.slane %v919, 5
      %v922 = vsel %vm610, %v917, %v921
      %v924 = vshrl.u32 %v599, 16
      %v926 = vrot.slane %v924, 4
      %v927 = vshll.u32 %v599, 16
      %v929 = vrot.slane %v927, 5
      %v930 = vor.u32 %v926, %v929
      %v931 = vrot.slane %v930, 4
      %v933 = vshll.u32 %v600, 16
      %v935 = vrot.slane %v933, 5
      %v936 = vsel %vm610, %v931, %v935
      %v937 = vshrl.u32 %v600, 16
      %v939 = vrot.slane %v937, 4
      %v940 = vor.u32 %v939, %v935
      %v941 = vrot.slane %v940, 4
      %v943 = vshll.u32 %v601, 16
      %v945 = vrot.slane %v943, 5
      %v946 = vsel %vm610, %v941, %v945
      %v948 = vshrl.u32 %v602, 16
      %v950 = vrot.slane %v948, 4
      %v951 = vshll.u32 %v602, 16
      %v953 = vrot.slane %v951, 5
      %v954 = vor.u32 %v950, %v953
      %v955 = vrot.slane %v954, 4
      %v957 = vshll.u32 %v603, 16
      %v959 = vrot.slane %v957, 5
      %v960 = vsel %vm610, %v955, %v959
      %v961 = vshrl.u32 %v603, 16
      %v963 = vrot.slane %v961, 4
      %v964 = vor.u32 %v963, %v959
      %v965 = vrot.slane %v964, 4
      %v967 = vshll.u32 %v604, 16
      %v969 = vrot.slane %v967, 5
      %v970 = vsel %vm610, %v965, %v969
      %v972 = vshrl.u32 %v605, 16
      %v974 = vrot.slane %v972, 4
      %v975 = vshll.u32 %v605, 16
      %v977 = vrot.slane %v975, 5
      %v978 = vor.u32 %v974, %v977
      %v979 = vrot.slane %v978, 4
      %v981 = vshll.u32 %v606, 16
      %v983 = vrot.slane %v981, 5
      %v984 = vsel %vm610, %v979, %v983
      %v985 = vshrl.u32 %v606, 16
      %v987 = vrot.slane %v985, 4
      %v988 = vor.u32 %v987, %v983
      %v989 = vrot.slane %v988, 4
      %v991 = vshll.u32 %v607, 16
      %v993 = vrot.slane %v991, 5
      %v994 = vsel %vm610, %v989, %v993
      %s1027 = scalar_lea.vmem [#allocation2], 144
      %1028 = vst.msk [vmem:[%s1027] sm:$0xf] %vm518, %v624
      %1029 = vst.msk [vmem:[%s1027 + $0x4] sm:$0xf] %vm518, %v634
      %1030 = vst.msk [vmem:[%s1027 + $0x8] sm:$0xf] %vm518, %v648
      %1031 = vst.msk [vmem:[%s1027 + $0xc] sm:$0xf] %vm518, %v658
      %1032 = vst.msk [vmem:[%s1027 + $0x10] sm:$0xf] %vm518, %v672
      %1033 = vst.msk [vmem:[%s1027 + $0x14] sm:$0xf] %vm518, %v682
      %1034 = vst.msk [vmem:[%s1027 + $0x18] sm:$0xf] %vm518, %v696
      %1035 = vst.msk [vmem:[%s1027 + $0x1c] sm:$0xf] %vm518, %v706
      %1036 = vst.msk [vmem:[%s1027 + $0x20] sm:$0xf] %vm518, %v720
      %1037 = vst.msk [vmem:[%s1027 + $0x24] sm:$0xf] %vm518, %v730
      %1038 = vst.msk [vmem:[%s1027 + $0x28] sm:$0xf] %vm518, %v744
      %1039 = vst.msk [vmem:[%s1027 + $0x2c] sm:$0xf] %vm518, %v754
      %1040 = vst.msk [vmem:[%s1027 + $0x30] sm:$0xf] %vm518, %v768
      %1041 = vst.msk [vmem:[%s1027 + $0x34] sm:$0xf] %vm518, %v778
      %1042 = vst.msk [vmem:[%s1027 + $0x38] sm:$0xf] %vm518, %v792
      %1043 = vst.msk [vmem:[%s1027 + $0x3c] sm:$0xf] %vm518, %v802
      %1044 = vst.msk [vmem:[%s1027 + $0x40] sm:$0xf] %vm518, %v816
      %1045 = vst.msk [vmem:[%s1027 + $0x44] sm:$0xf] %vm518, %v826
      %1046 = vst.msk [vmem:[%s1027 + $0x48] sm:$0xf] %vm518, %v840
      %1047 = vst.msk [vmem:[%s1027 + $0x4c] sm:$0xf] %vm518, %v850
      %1048 = vst.msk [vmem:[%s1027 + $0x50] sm:$0xf] %vm518, %v864
      %1049 = vst.msk [vmem:[%s1027 + $0x54] sm:$0xf] %vm518, %v874
      %1050 = vst.msk [vmem:[%s1027 + $0x58] sm:$0xf] %vm518, %v888
      %1051 = vst.msk [vmem:[%s1027 + $0x5c] sm:$0xf] %vm518, %v898
      %1052 = vst.msk [vmem:[%s1027 + $0x60] sm:$0xf] %vm518, %v912
      %1053 = vst.msk [vmem:[%s1027 + $0x64] sm:$0xf] %vm518, %v922
      %1054 = vst.msk [vmem:[%s1027 + $0x68] sm:$0xf] %vm518, %v936
      %1055 = vst.msk [vmem:[%s1027 + $0x6c] sm:$0xf] %vm518, %v946
      %1056 = vst.msk [vmem:[%s1027 + $0x70] sm:$0xf] %vm518, %v960
      %1057 = vst.msk [vmem:[%s1027 + $0x74] sm:$0xf] %vm518, %v970
      %1058 = vst.msk [vmem:[%s1027 + $0x78] sm:$0xf] %vm518, %v984
      %1059 = vst.msk [vmem:[%s1027 + $0x7c] sm:$0xf] %vm518, %v994
      %v1060 = vld [vmem:[%s451] sm:$0xf]
      %v1061 = vld [vmem:[%s451 + $0x4] sm:$0xf]
      %v1062 = vld [vmem:[%s451 + $0x8] sm:$0x1]
      %v1063 = vld [vmem:[%s451 + $0xc] sm:$0xf]
      %v1064 = vld [vmem:[%s451 + $0x10] sm:$0xf]
      %v1065 = vld [vmem:[%s451 + $0x14] sm:$0x1]
      %v1067 = vshrl.u32 %v1060, 16
      %v1069 = vrot.slane %v1067, 4
      %v1070 = vshll.u32 %v1060, 16
      %v1072 = vrot.slane %v1070, 5
      %v1073 = vor.u32 %v1069, %v1072
      %v1074 = vrot.slane %v1073, 4
      %v1076 = vshll.u32 %v1061, 16
      %v1078 = vrot.slane %v1076, 5
      %v1079 = vsel %vm610, %v1074, %v1078
      %v1080 = vshrl.u32 %v1061, 16
      %v1082 = vrot.slane %v1080, 4
      %v1083 = vor.u32 %v1082, %v1078
      %v1084 = vrot.slane %v1083, 4
      %v1086 = vshll.u32 %v1062, 16
      %v1088 = vrot.slane %v1086, 5
      %v1089 = vsel %vm610, %v1084, %v1088
      %v1091 = vshrl.u32 %v1063, 16
      %v1093 = vrot.slane %v1091, 4
      %v1094 = vshll.u32 %v1063, 16
      %v1096 = vrot.slane %v1094, 5
      %v1097 = vor.u32 %v1093, %v1096
      %v1098 = vrot.slane %v1097, 4
      %v1100 = vshll.u32 %v1064, 16
      %v1102 = vrot.slane %v1100, 5
      %v1103 = vsel %vm610, %v1098, %v1102
      %v1104 = vshrl.u32 %v1064, 16
      %v1106 = vrot.slane %v1104, 4
      %v1107 = vor.u32 %v1106, %v1102
      %v1108 = vrot.slane %v1107, 4
      %v1110 = vshll.u32 %v1065, 16
      %v1112 = vrot.slane %v1110, 5
      %v1113 = vsel %vm610, %v1108, %v1112
      %s1118 = scalar_lea.vmem [#allocation2], 272
      %1119 = vst.msk [vmem:[%s1118] sm:$0xf] %vm518, %v1079
      %1120 = vst.msk [vmem:[%s1118 + $0x4] sm:$0xf] %vm518, %v1089
      %1121 = vst.msk [vmem:[%s1118 + $0x8] sm:$0xf] %vm518, %v1103
      %1122 = vst.msk [vmem:[%s1118 + $0xc] sm:$0xf] %vm518, %v1113
      %v1123 = vld [vmem:[%s429] sm:$0xe]
      %v1124 = vld [vmem:[%s429 + $0x4] sm:$0xf]
      %v1125 = vld [vmem:[%s429 + $0x8] sm:$0x1]
      %v1126 = vld [vmem:[%s429 + $0xc] sm:$0xe]
      %v1127 = vld [vmem:[%s429 + $0x10] sm:$0xf]
      %v1128 = vld [vmem:[%s429 + $0x14] sm:$0x1]
      %v1129 = vld [vmem:[%s429 + $0x18] sm:$0xe]
      %v1130 = vld [vmem:[%s429 + $0x1c] sm:$0xf]
      %v1131 = vld [vmem:[%s429 + $0x20] sm:$0x1]
      %v1132 = vld [vmem:[%s429 + $0x24] sm:$0xe]
      %v1133 = vld [vmem:[%s429 + $0x28] sm:$0xf]
      %v1134 = vld [vmem:[%s429 + $0x2c] sm:$0x1]
      %v1135 = vld [vmem:[%s429 + $0x30] sm:$0xe]
      %v1136 = vld [vmem:[%s429 + $0x34] sm:$0xf]
      %v1137 = vld [vmem:[%s429 + $0x38] sm:$0x1]
      %v1138 = vld [vmem:[%s429 + $0x3c] sm:$0xe]
      %v1139 = vld [vmem:[%s429 + $0x40] sm:$0xf]
      %v1140 = vld [vmem:[%s429 + $0x44] sm:$0x1]
      %v1141 = vld [vmem:[%s429 + $0x48] sm:$0xe]
      %v1142 = vld [vmem:[%s429 + $0x4c] sm:$0xf]
      %v1143 = vld [vmem:[%s429 + $0x50] sm:$0x1]
      %v1144 = vld [vmem:[%s429 + $0x54] sm:$0xe]
      %v1145 = vld [vmem:[%s429 + $0x58] sm:$0xf]
      %v1146 = vld [vmem:[%s429 + $0x5c] sm:$0x1]
      %v1147 = vld [vmem:[%s429 + $0x60] sm:$0xe]
      %v1148 = vld [vmem:[%s429 + $0x64] sm:$0xf]
      %v1149 = vld [vmem:[%s429 + $0x68] sm:$0x1]
      %v1150 = vld [vmem:[%s429 + $0x6c] sm:$0xe]
      %v1151 = vld [vmem:[%s429 + $0x70] sm:$0xf]
      %v1152 = vld [vmem:[%s429 + $0x74] sm:$0x1]
      %v1153 = vld [vmem:[%s429 + $0x78] sm:$0xe]
      %v1154 = vld [vmem:[%s429 + $0x7c] sm:$0xf]
      %v1155 = vld [vmem:[%s429 + $0x80] sm:$0x1]
      %v1156 = vld [vmem:[%s429 + $0x84] sm:$0xe]
      %v1157 = vld [vmem:[%s429 + $0x88] sm:$0xf]
      %v1158 = vld [vmem:[%s429 + $0x8c] sm:$0x1]
      %v1159 = vld [vmem:[%s429 + $0x90] sm:$0xe]
      %v1160 = vld [vmem:[%s429 + $0x94] sm:$0xf]
      %v1161 = vld [vmem:[%s429 + $0x98] sm:$0x1]
      %v1162 = vld [vmem:[%s429 + $0x9c] sm:$0xe]
      %v1163 = vld [vmem:[%s429 + $0xa0] sm:$0xf]
      %v1164 = vld [vmem:[%s429 + $0xa4] sm:$0x1]
      %v1165 = vld [vmem:[%s429 + $0xa8] sm:$0xe]
      %v1166 = vld [vmem:[%s429 + $0xac] sm:$0xf]
      %v1167 = vld [vmem:[%s429 + $0xb0] sm:$0x1]
      %v1168 = vld [vmem:[%s429 + $0xb4] sm:$0xe]
      %v1169 = vld [vmem:[%s429 + $0xb8] sm:$0xf]
      %v1170 = vld [vmem:[%s429 + $0xbc] sm:$0x1]
      %vm1219 = vcmask 1042432
      %vm1220 = vcmask 1046532
      %vm1221 = vmor %vm1219, %vm1220
      %v1222 = vrot.slane %v1123, 5
      %v1223 = vrot.slane %v1222, 4
      %v1224 = vrot.slane %v1124, 5
      %v1225 = vsel %vm1221, %v1223, %v1224
      %v1226 = vrot.slane %v1224, 4
      %v1227 = vrot.slane %v1125, 5
      %v1228 = vsel %vm1221, %v1226, %v1227
      %v1229 = vrot.slane %v1126, 5
      %v1230 = vrot.slane %v1229, 4
      %v1231 = vrot.slane %v1127, 5
      %v1232 = vsel %vm1221, %v1230, %v1231
      %v1233 = vrot.slane %v1231, 4
      %v1234 = vrot.slane %v1128, 5
      %v1235 = vsel %vm1221, %v1233, %v1234
      %v1236 = vrot.slane %v1129, 5
      %v1237 = vrot.slane %v1236, 4
      %v1238 = vrot.slane %v1130, 5
      %v1239 = vsel %vm1221, %v1237, %v1238
      %v1240 = vrot.slane %v1238, 4
      %v1241 = vrot.slane %v1131, 5
      %v1242 = vsel %vm1221, %v1240, %v1241
      %v1243 = vrot.slane %v1132, 5
      %v1244 = vrot.slane %v1243, 4
      %v1245 = vrot.slane %v1133, 5
      %v1246 = vsel %vm1221, %v1244, %v1245
      %v1247 = vrot.slane %v1245, 4
      %v1248 = vrot.slane %v1134, 5
      %v1249 = vsel %vm1221, %v1247, %v1248
      %v1250 = vrot.slane %v1135, 5
      %v1251 = vrot.slane %v1250, 4
      %v1252 = vrot.slane %v1136, 5
      %v1253 = vsel %vm1221, %v1251, %v1252
      %v1254 = vrot.slane %v1252, 4
      %v1255 = vrot.slane %v1137, 5
      %v1256 = vsel %vm1221, %v1254, %v1255
      %v1257 = vrot.slane %v1138, 5
      %v1258 = vrot.slane %v1257, 4
      %v1259 = vrot.slane %v1139, 5
      %v1260 = vsel %vm1221, %v1258, %v1259
      %v1261 = vrot.slane %v1259, 4
      %v1262 = vrot.slane %v1140, 5
      %v1263 = vsel %vm1221, %v1261, %v1262
      %v1264 = vrot.slane %v1141, 5
      %v1265 = vrot.slane %v1264, 4
      %v1266 = vrot.slane %v1142, 5
      %v1267 = vsel %vm1221, %v1265, %v1266
      %v1268 = vrot.slane %v1266, 4
      %v1269 = vrot.slane %v1143, 5
      %v1270 = vsel %vm1221, %v1268, %v1269
      %v1271 = vrot.slane %v1144, 5
      %v1272 = vrot.slane %v1271, 4
      %v1273 = vrot.slane %v1145, 5
      %v1274 = vsel %vm1221, %v1272, %v1273
      %v1275 = vrot.slane %v1273, 4
      %v1276 = vrot.slane %v1146, 5
      %v1277 = vsel %vm1221, %v1275, %v1276
      %v1278 = vrot.slane %v1147, 5
      %v1279 = vrot.slane %v1278, 4
      %v1280 = vrot.slane %v1148, 5
      %v1281 = vsel %vm1221, %v1279, %v1280
      %v1282 = vrot.slane %v1280, 4
      %v1283 = vrot.slane %v1149, 5
      %v1284 = vsel %vm1221, %v1282, %v1283
      %v1285 = vrot.slane %v1150, 5
      %v1286 = vrot.slane %v1285, 4
      %v1287 = vrot.slane %v1151, 5
      %v1288 = vsel %vm1221, %v1286, %v1287
      %v1289 = vrot.slane %v1287, 4
      %v1290 = vrot.slane %v1152, 5
      %v1291 = vsel %vm1221, %v1289, %v1290
      %v1292 = vrot.slane %v1153, 5
      %v1293 = vrot.slane %v1292, 4
      %v1294 = vrot.slane %v1154, 5
      %v1295 = vsel %vm1221, %v1293, %v1294
      %v1296 = vrot.slane %v1294, 4
      %v1297 = vrot.slane %v1155, 5
      %v1298 = vsel %vm1221, %v1296, %v1297
      %v1299 = vrot.slane %v1156, 5
      %v1300 = vrot.slane %v1299, 4
      %v1301 = vrot.slane %v1157, 5
      %v1302 = vsel %vm1221, %v1300, %v1301
      %v1303 = vrot.slane %v1301, 4
      %v1304 = vrot.slane %v1158, 5
      %v1305 = vsel %vm1221, %v1303, %v1304
      %v1306 = vrot.slane %v1159, 5
      %v1307 = vrot.slane %v1306, 4
      %v1308 = vrot.slane %v1160, 5
      %v1309 = vsel %vm1221, %v1307, %v1308
      %v1310 = vrot.slane %v1308, 4
      %v1311 = vrot.slane %v1161, 5
      %v1312 = vsel %vm1221, %v1310, %v1311
      %v1313 = vrot.slane %v1162, 5
      %v1314 = vrot.slane %v1313, 4
      %v1315 = vrot.slane %v1163, 5
      %v1316 = vsel %vm1221, %v1314, %v1315
      %v1317 = vrot.slane %v1315, 4
      %v1318 = vrot.slane %v1164, 5
      %v1319 = vsel %vm1221, %v1317, %v1318
      %v1320 = vrot.slane %v1165, 5
      %v1321 = vrot.slane %v1320, 4
      %v1322 = vrot.slane %v1166, 5
      %v1323 = vsel %vm1221, %v1321, %v1322
      %v1324 = vrot.slane %v1322, 4
      %v1325 = vrot.slane %v1167, 5
      %v1326 = vsel %vm1221, %v1324, %v1325
      %v1327 = vrot.slane %v1168, 5
      %v1328 = vrot.slane %v1327, 4
      %v1329 = vrot.slane %v1169, 5
      %v1330 = vsel %vm1221, %v1328, %v1329
      %v1331 = vrot.slane %v1329, 4
      %v1332 = vrot.slane %v1170, 5
      %v1333 = vsel %vm1221, %v1331, %v1332
      %s1366 = scalar_lea.vmem [#allocation2], 288
      %1367 = vst.msk [vmem:[%s1366] sm:$0xf] %vm518, %v1225
      %1368 = vst.msk [vmem:[%s1366 + $0x4] sm:$0xf] %vm518, %v1228
      %1369 = vst.msk [vmem:[%s1366 + $0x8] sm:$0xf] %vm518, %v1232
      %1370 = vst.msk [vmem:[%s1366 + $0xc] sm:$0xf] %vm518, %v1235
      %1371 = vst.msk [vmem:[%s1366 + $0x10] sm:$0xf] %vm518, %v1239
      %1372 = vst.msk [vmem:[%s1366 + $0x14] sm:$0xf] %vm518, %v1242
      %1373 = vst.msk [vmem:[%s1366 + $0x18] sm:$0xf] %vm518, %v1246
      %1374 = vst.msk [vmem:[%s1366 + $0x1c] sm:$0xf] %vm518, %v1249
      %1375 = vst.msk [vmem:[%s1366 + $0x20] sm:$0xf] %vm518, %v1253
      %1376 = vst.msk [vmem:[%s1366 + $0x24] sm:$0xf] %vm518, %v1256
      %1377 = vst.msk [vmem:[%s1366 + $0x28] sm:$0xf] %vm518, %v1260
      %1378 = vst.msk [vmem:[%s1366 + $0x2c] sm:$0xf] %vm518, %v1263
      %1379 = vst.msk [vmem:[%s1366 + $0x30] sm:$0xf] %vm518, %v1267
      %1380 = vst.msk [vmem:[%s1366 + $0x34] sm:$0xf] %vm518, %v1270
      %1381 = vst.msk [vmem:[%s1366 + $0x38] sm:$0xf] %vm518, %v1274
      %1382 = vst.msk [vmem:[%s1366 + $0x3c] sm:$0xf] %vm518, %v1277
      %1383 = vst.msk [vmem:[%s1366 + $0x40] sm:$0xf] %vm518, %v1281
      %1384 = vst.msk [vmem:[%s1366 + $0x44] sm:$0xf] %vm518, %v1284
      %1385 = vst.msk [vmem:[%s1366 + $0x48] sm:$0xf] %vm518, %v1288
      %1386 = vst.msk [vmem:[%s1366 + $0x4c] sm:$0xf] %vm518, %v1291
      %1387 = vst.msk [vmem:[%s1366 + $0x50] sm:$0xf] %vm518, %v1295
      %1388 = vst.msk [vmem:[%s1366 + $0x54] sm:$0xf] %vm518, %v1298
      %1389 = vst.msk [vmem:[%s1366 + $0x58] sm:$0xf] %vm518, %v1302
      %1390 = vst.msk [vmem:[%s1366 + $0x5c] sm:$0xf] %vm518, %v1305
      %1391 = vst.msk [vmem:[%s1366 + $0x60] sm:$0xf] %vm518, %v1309
      %1392 = vst.msk [vmem:[%s1366 + $0x64] sm:$0xf] %vm518, %v1312
      %1393 = vst.msk [vmem:[%s1366 + $0x68] sm:$0xf] %vm518, %v1316
      %1394 = vst.msk [vmem:[%s1366 + $0x6c] sm:$0xf] %vm518, %v1319
      %1395 = vst.msk [vmem:[%s1366 + $0x70] sm:$0xf] %vm518, %v1323
      %1396 = vst.msk [vmem:[%s1366 + $0x74] sm:$0xf] %vm518, %v1326
      %1397 = vst.msk [vmem:[%s1366 + $0x78] sm:$0xf] %vm518, %v1330
      %1398 = vst.msk [vmem:[%s1366 + $0x7c] sm:$0xf] %vm518, %v1333
      %v1399 = vld [vmem:[%s451] sm:$0xe]
      %v1400 = vld [vmem:[%s451 + $0x4] sm:$0xf]
      %v1401 = vld [vmem:[%s451 + $0x8] sm:$0x1]
      %v1402 = vld [vmem:[%s451 + $0xc] sm:$0xe]
      %v1403 = vld [vmem:[%s451 + $0x10] sm:$0xf]
      %v1404 = vld [vmem:[%s451 + $0x14] sm:$0x1]
      %v1411 = vrot.slane %v1399, 5
      %v1412 = vrot.slane %v1411, 4
      %v1413 = vrot.slane %v1400, 5
      %v1414 = vsel %vm1221, %v1412, %v1413
      %v1415 = vrot.slane %v1413, 4
      %v1416 = vrot.slane %v1401, 5
      %v1417 = vsel %vm1221, %v1415, %v1416
      %v1418 = vrot.slane %v1402, 5
      %v1419 = vrot.slane %v1418, 4
      %v1420 = vrot.slane %v1403, 5
      %v1421 = vsel %vm1221, %v1419, %v1420
      %v1422 = vrot.slane %v1420, 4
      %v1423 = vrot.slane %v1404, 5
      %v1424 = vsel %vm1221, %v1422, %v1423
      %s1429 = scalar_lea.vmem [#allocation2], 416
      %1430 = vst.msk [vmem:[%s1429] sm:$0xf] %vm518, %v1414
      %1431 = vst.msk [vmem:[%s1429 + $0x4] sm:$0xf] %vm518, %v1417
      %1432 = vst.msk [vmem:[%s1429 + $0x8] sm:$0xf] %vm518, %v1421
      %1433 = vst.msk [vmem:[%s1429 + $0xc] sm:$0xf] %vm518, %v1424
      %v1434 = vld [vmem:[#allocation2] sm:$0xf]
      %v1435 = vld [vmem:[#allocation2 + $0x4] sm:$0xf]
      %v1436 = vld [vmem:[#allocation2 + $0x8] sm:$0xf]
      %v1437 = vld [vmem:[#allocation2 + $0xc] sm:$0xf]
      %v1438 = vld [vmem:[#allocation2 + $0x10] sm:$0xf]
      %v1439 = vld [vmem:[#allocation2 + $0x14] sm:$0xf]
      %v1440 = vld [vmem:[#allocation2 + $0x18] sm:$0xf]
      %v1441 = vld [vmem:[#allocation2 + $0x1c] sm:$0xf]
      %v1442 = vld [vmem:[#allocation2 + $0x20] sm:$0xf]
      %v1443 = vld [vmem:[#allocation2 + $0x24] sm:$0xf]
      %v1444 = vld [vmem:[#allocation2 + $0x28] sm:$0xf]
      %v1445 = vld [vmem:[#allocation2 + $0x2c] sm:$0xf]
      %v1446 = vld [vmem:[#allocation2 + $0x30] sm:$0xf]
      %v1447 = vld [vmem:[#allocation2 + $0x34] sm:$0xf]
      %v1448 = vld [vmem:[#allocation2 + $0x38] sm:$0xf]
      %v1449 = vld [vmem:[#allocation2 + $0x3c] sm:$0xf]
      %v1450 = vld [vmem:[#allocation2 + $0x40] sm:$0xf]
      %v1451 = vld [vmem:[#allocation2 + $0x44] sm:$0xf]
      %v1452 = vld [vmem:[#allocation2 + $0x48] sm:$0xf]
      %v1453 = vld [vmem:[#allocation2 + $0x4c] sm:$0xf]
      %v1454 = vld [vmem:[#allocation2 + $0x50] sm:$0xf]
      %v1455 = vld [vmem:[#allocation2 + $0x54] sm:$0xf]
      %v1456 = vld [vmem:[#allocation2 + $0x58] sm:$0xf]
      %v1457 = vld [vmem:[#allocation2 + $0x5c] sm:$0xf]
      %v1458 = vld [vmem:[#allocation2 + $0x60] sm:$0xf]
      %v1459 = vld [vmem:[#allocation2 + $0x64] sm:$0xf]
      %v1460 = vld [vmem:[#allocation2 + $0x68] sm:$0xf]
      %v1461 = vld [vmem:[#allocation2 + $0x6c] sm:$0xf]
      %v1462 = vld [vmem:[#allocation2 + $0x70] sm:$0xf]
      %v1463 = vld [vmem:[#allocation2 + $0x74] sm:$0xf]
      %v1464 = vld [vmem:[#allocation2 + $0x78] sm:$0xf]
      %v1465 = vld [vmem:[#allocation2 + $0x7c] sm:$0xf]
      %v1466 = vld [vmem:[%s459] sm:$0xf]
      %v1467 = vld [vmem:[%s1027] sm:$0xf]
      %v1468 = vld [vmem:[%s1027 + $0x4] sm:$0xf]
      %v1469 = vld [vmem:[%s1027 + $0x8] sm:$0xf]
      %v1470 = vld [vmem:[%s1027 + $0xc] sm:$0xf]
      %v1471 = vld [vmem:[%s1027 + $0x10] sm:$0xf]
      %v1472 = vld [vmem:[%s1027 + $0x14] sm:$0xf]
      %v1473 = vld [vmem:[%s1027 + $0x18] sm:$0xf]
      %v1474 = vld [vmem:[%s1027 + $0x1c] sm:$0xf]
      %v1475 = vld [vmem:[%s1027 + $0x20] sm:$0xf]
      %v1476 = vld [vmem:[%s1027 + $0x24] sm:$0xf]
      %v1477 = vld [vmem:[%s1027 + $0x28] sm:$0xf]
      %v1478 = vld [vmem:[%s1027 + $0x2c] sm:$0xf]
      %v1479 = vld [vmem:[%s1027 + $0x30] sm:$0xf]
      %v1480 = vld [vmem:[%s1027 + $0x34] sm:$0xf]
      %v1481 = vld [vmem:[%s1027 + $0x38] sm:$0xf]
      %v1482 = vld [vmem:[%s1027 + $0x3c] sm:$0xf]
      %v1483 = vld [vmem:[%s1027 + $0x40] sm:$0xf]
      %v1484 = vld [vmem:[%s1027 + $0x44] sm:$0xf]
      %v1485 = vld [vmem:[%s1027 + $0x48] sm:$0xf]
      %v1486 = vld [vmem:[%s1027 + $0x4c] sm:$0xf]
      %v1487 = vld [vmem:[%s1027 + $0x50] sm:$0xf]
      %v1488 = vld [vmem:[%s1027 + $0x54] sm:$0xf]
      %v1489 = vld [vmem:[%s1027 + $0x58] sm:$0xf]
      %v1490 = vld [vmem:[%s1027 + $0x5c] sm:$0xf]
      %v1491 = vld [vmem:[%s1027 + $0x60] sm:$0xf]
      %v1492 = vld [vmem:[%s1027 + $0x64] sm:$0xf]
      %v1493 = vld [vmem:[%s1027 + $0x68] sm:$0xf]
      %v1494 = vld [vmem:[%s1027 + $0x6c] sm:$0xf]
      %v1495 = vld [vmem:[%s1027 + $0x70] sm:$0xf]
      %v1496 = vld [vmem:[%s1027 + $0x74] sm:$0xf]
      %v1497 = vld [vmem:[%s1027 + $0x78] sm:$0xf]
      %v1498 = vld [vmem:[%s1027 + $0x7c] sm:$0xf]
      %s1499 = scalar_lea.vmem %s459, 4
      %v1500 = vld [vmem:[%s1499] sm:$0xf]
      %v1533 = vunpack.c.l.b16 %v1467
      %v1534 = vunpack.c.l.b16 %v1468
      %v1535 = vunpack.c.l.b16 %v1469
      %v1536 = vunpack.c.l.b16 %v1470
      %v1537 = vunpack.c.l.b16 %v1471
      %v1538 = vunpack.c.l.b16 %v1472
      %v1539 = vunpack.c.l.b16 %v1473
      %v1540 = vunpack.c.l.b16 %v1474
      %v1541 = vunpack.c.l.b16 %v1475
      %v1542 = vunpack.c.l.b16 %v1476
      %v1543 = vunpack.c.l.b16 %v1477
      %v1544 = vunpack.c.l.b16 %v1478
      %v1545 = vunpack.c.l.b16 %v1479
      %v1546 = vunpack.c.l.b16 %v1480
      %v1547 = vunpack.c.l.b16 %v1481
      %v1548 = vunpack.c.l.b16 %v1482
      %v1549 = vunpack.c.l.b16 %v1483
      %v1550 = vunpack.c.l.b16 %v1484
      %v1551 = vunpack.c.l.b16 %v1485
      %v1552 = vunpack.c.l.b16 %v1486
      %v1553 = vunpack.c.l.b16 %v1487
      %v1554 = vunpack.c.l.b16 %v1488
      %v1555 = vunpack.c.l.b16 %v1489
      %v1556 = vunpack.c.l.b16 %v1490
      %v1557 = vunpack.c.l.b16 %v1491
      %v1558 = vunpack.c.l.b16 %v1492
      %v1559 = vunpack.c.l.b16 %v1493
      %v1560 = vunpack.c.l.b16 %v1494
      %v1561 = vunpack.c.l.b16 %v1495
      %v1562 = vunpack.c.l.b16 %v1496
      %v1563 = vunpack.c.l.b16 %v1497
      %v1564 = vunpack.c.l.b16 %v1498
      %v1565 = vpack.c.b16 %v1534, %v1533
      %v1566 = vpack.c.b16 %v1536, %v1535
      %v1567 = vpack.c.b16 %v1538, %v1537
      %v1568 = vpack.c.b16 %v1540, %v1539
      %v1569 = vpack.c.b16 %v1542, %v1541
      %v1570 = vpack.c.b16 %v1544, %v1543
      %v1571 = vpack.c.b16 %v1546, %v1545
      %v1572 = vpack.c.b16 %v1548, %v1547
      %v1573 = vpack.c.b16 %v1550, %v1549
      %v1574 = vpack.c.b16 %v1552, %v1551
      %v1575 = vpack.c.b16 %v1554, %v1553
      %v1576 = vpack.c.b16 %v1556, %v1555
      %v1577 = vpack.c.b16 %v1558, %v1557
      %v1578 = vpack.c.b16 %v1560, %v1559
      %v1579 = vpack.c.b16 %v1562, %v1561
      %v1580 = vpack.c.b16 %v1564, %v1563
      %vm1581 = vcmask 64512
      %v1583 = vsel %vm1581, %v1565, 0
      %v1586 = vsel %vm1581, %v1566, 0
      %v1589 = vsel %vm1581, %v1567, 0
      %v1592 = vsel %vm1581, %v1568, 0
      %v1595 = vsel %vm1581, %v1569, 0
      %v1598 = vsel %vm1581, %v1570, 0
      %v1601 = vsel %vm1581, %v1571, 0
      %v1604 = vsel %vm1581, %v1572, 0
      %v1607 = vsel %vm1581, %v1573, 0
      %v1610 = vsel %vm1581, %v1574, 0
      %v1613 = vsel %vm1581, %v1575, 0
      %v1616 = vsel %vm1581, %v1576, 0
      %v1619 = vsel %vm1581, %v1577, 0
      %v1622 = vsel %vm1581, %v1578, 0
      %v1625 = vsel %vm1581, %v1579, 0
      %v1628 = vsel %vm1581, %v1580, 0
      %vm1630 = vcmask 1043456
      %v1632 = vsel %vm1630, %v1500, 0
      %1634 = vmatpush.bf16.msra.mxu0 0
      %1635 = vmatpush.bf16.msra.mxu0 0
      %1636 = vmatpush.bf16.msra.mxu0 0
      %1637 = vmatpush.bf16.msra.mxu0 0
      %1638 = vmatpush.bf16.msra.mxu0 0
      %1639 = vmatpush.bf16.msra.mxu0 0
      %1640 = vmatpush.bf16.msra.mxu0 0
      %1641 = vmatpush.bf16.msra.mxu0 %v1632
      %1642 = vmatmul.bf16.gmra.mxu0 %v1583
      %v1643 = vpop.f32.mrf.mxu0
      %v1644 = vadd.f32 0.0, %v1643
      %v1645 = vpop.f32.mrf.mxu0
      %v1646 = vadd.f32 0.0, %v1645
      %1647 = vmatmul.bf16.gmra.mxu0 %v1586
      %v1648 = vpop.f32.mrf.mxu0
      %v1649 = vadd.f32 0.0, %v1648
      %v1650 = vpop.f32.mrf.mxu0
      %v1651 = vadd.f32 0.0, %v1650
      %1652 = vmatmul.bf16.gmra.mxu0 %v1589
      %v1653 = vpop.f32.mrf.mxu0
      %v1654 = vadd.f32 0.0, %v1653
      %v1655 = vpop.f32.mrf.mxu0
      %v1656 = vadd.f32 0.0, %v1655
      %1657 = vmatmul.bf16.gmra.mxu0 %v1592
      %v1658 = vpop.f32.mrf.mxu0
      %v1659 = vadd.f32 0.0, %v1658
      %v1660 = vpop.f32.mrf.mxu0
      %v1661 = vadd.f32 0.0, %v1660
      %1662 = vmatmul.bf16.gmra.mxu0 %v1595
      %v1663 = vpop.f32.mrf.mxu0
      %v1664 = vadd.f32 0.0, %v1663
      %v1665 = vpop.f32.mrf.mxu0
      %v1666 = vadd.f32 0.0, %v1665
      %1667 = vmatmul.bf16.gmra.mxu0 %v1598
      %v1668 = vpop.f32.mrf.mxu0
      %v1669 = vadd.f32 0.0, %v1668
      %v1670 = vpop.f32.mrf.mxu0
      %v1671 = vadd.f32 0.0, %v1670
      %1672 = vmatmul.bf16.gmra.mxu0 %v1601
      %v1673 = vpop.f32.mrf.mxu0
      %v1674 = vadd.f32 0.0, %v1673
      %v1675 = vpop.f32.mrf.mxu0
      %v1676 = vadd.f32 0.0, %v1675
      %1677 = vmatmul.bf16.gmra.mxu0 %v1604
      %v1678 = vpop.f32.mrf.mxu0
      %v1679 = vadd.f32 0.0, %v1678
      %v1680 = vpop.f32.mrf.mxu0
      %v1681 = vadd.f32 0.0, %v1680
      %1682 = vmatmul.bf16.gmra.mxu0 %v1607
      %v1683 = vpop.f32.mrf.mxu0
      %v1684 = vadd.f32 0.0, %v1683
      %v1685 = vpop.f32.mrf.mxu0
      %v1686 = vadd.f32 0.0, %v1685
      %1687 = vmatmul.bf16.gmra.mxu0 %v1610
      %v1688 = vpop.f32.mrf.mxu0
      %v1689 = vadd.f32 0.0, %v1688
      %v1690 = vpop.f32.mrf.mxu0
      %v1691 = vadd.f32 0.0, %v1690
      %1692 = vmatmul.bf16.gmra.mxu0 %v1613
      %v1693 = vpop.f32.mrf.mxu0
      %v1694 = vadd.f32 0.0, %v1693
      %v1695 = vpop.f32.mrf.mxu0
      %v1696 = vadd.f32 0.0, %v1695
      %1697 = vmatmul.bf16.gmra.mxu0 %v1616
      %v1698 = vpop.f32.mrf.mxu0
      %v1699 = vadd.f32 0.0, %v1698
      %v1700 = vpop.f32.mrf.mxu0
      %v1701 = vadd.f32 0.0, %v1700
      %1702 = vmatmul.bf16.gmra.mxu0 %v1619
      %v1703 = vpop.f32.mrf.mxu0
      %v1704 = vadd.f32 0.0, %v1703
      %v1705 = vpop.f32.mrf.mxu0
      %v1706 = vadd.f32 0.0, %v1705
      %1707 = vmatmul.bf16.gmra.mxu0 %v1622
      %v1708 = vpop.f32.mrf.mxu0
      %v1709 = vadd.f32 0.0, %v1708
      %v1710 = vpop.f32.mrf.mxu0
      %v1711 = vadd.f32 0.0, %v1710
      %1712 = vmatmul.bf16.gmra.mxu0 %v1625
      %v1713 = vpop.f32.mrf.mxu0
      %v1714 = vadd.f32 0.0, %v1713
      %v1715 = vpop.f32.mrf.mxu0
      %v1716 = vadd.f32 0.0, %v1715
      %1717 = vmatmul.bf16.gmra.mxu0 %v1628
      %v1718 = vpop.f32.mrf.mxu0
      %v1719 = vadd.f32 0.0, %v1718
      %v1720 = vpop.f32.mrf.mxu0
      %v1721 = vadd.f32 0.0, %v1720
      %1722 = vdwg.mxu0
      %v1755 = vunpack.c.l.b16 %v1434
      %v1756 = vunpack.c.l.b16 %v1435
      %v1757 = vunpack.c.l.b16 %v1436
      %v1758 = vunpack.c.l.b16 %v1437
      %v1759 = vunpack.c.l.b16 %v1438
      %v1760 = vunpack.c.l.b16 %v1439
      %v1761 = vunpack.c.l.b16 %v1440
      %v1762 = vunpack.c.l.b16 %v1441
      %v1763 = vunpack.c.l.b16 %v1442
      %v1764 = vunpack.c.l.b16 %v1443
      %v1765 = vunpack.c.l.b16 %v1444
      %v1766 = vunpack.c.l.b16 %v1445
      %v1767 = vunpack.c.l.b16 %v1446
      %v1768 = vunpack.c.l.b16 %v1447
      %v1769 = vunpack.c.l.b16 %v1448
      %v1770 = vunpack.c.l.b16 %v1449
      %v1771 = vunpack.c.l.b16 %v1450
      %v1772 = vunpack.c.l.b16 %v1451
      %v1773 = vunpack.c.l.b16 %v1452
      %v1774 = vunpack.c.l.b16 %v1453
      %v1775 = vunpack.c.l.b16 %v1454
      %v1776 = vunpack.c.l.b16 %v1455
      %v1777 = vunpack.c.l.b16 %v1456
      %v1778 = vunpack.c.l.b16 %v1457
      %v1779 = vunpack.c.l.b16 %v1458
      %v1780 = vunpack.c.l.b16 %v1459
      %v1781 = vunpack.c.l.b16 %v1460
      %v1782 = vunpack.c.l.b16 %v1461
      %v1783 = vunpack.c.l.b16 %v1462
      %v1784 = vunpack.c.l.b16 %v1463
      %v1785 = vunpack.c.l.b16 %v1464
      %v1786 = vunpack.c.l.b16 %v1465
      %v1787 = vpack.c.b16 %v1756, %v1755
      %v1788 = vpack.c.b16 %v1758, %v1757
      %v1789 = vpack.c.b16 %v1760, %v1759
      %v1790 = vpack.c.b16 %v1762, %v1761
      %v1791 = vpack.c.b16 %v1764, %v1763
      %v1792 = vpack.c.b16 %v1766, %v1765
      %v1793 = vpack.c.b16 %v1768, %v1767
      %v1794 = vpack.c.b16 %v1770, %v1769
      %v1795 = vpack.c.b16 %v1772, %v1771
      %v1796 = vpack.c.b16 %v1774, %v1773
      %v1797 = vpack.c.b16 %v1776, %v1775
      %v1798 = vpack.c.b16 %v1778, %v1777
      %v1799 = vpack.c.b16 %v1780, %v1779
      %v1800 = vpack.c.b16 %v1782, %v1781
      %v1801 = vpack.c.b16 %v1784, %v1783
      %v1802 = vpack.c.b16 %v1786, %v1785
      %v1804 = vsel %vm1581, %v1787, 0
      %v1807 = vsel %vm1581, %v1788, 0
      %v1810 = vsel %vm1581, %v1789, 0
      %v1813 = vsel %vm1581, %v1790, 0
      %v1816 = vsel %vm1581, %v1791, 0
      %v1819 = vsel %vm1581, %v1792, 0
      %v1822 = vsel %vm1581, %v1793, 0
      %v1825 = vsel %vm1581, %v1794, 0
      %v1828 = vsel %vm1581, %v1795, 0
      %v1831 = vsel %vm1581, %v1796, 0
      %v1834 = vsel %vm1581, %v1797, 0
      %v1837 = vsel %vm1581, %v1798, 0
      %v1840 = vsel %vm1581, %v1799, 0
      %v1843 = vsel %vm1581, %v1800, 0
      %v1846 = vsel %vm1581, %v1801, 0
      %v1849 = vsel %vm1581, %v1802, 0
      %v1852 = vsel %vm1630, %v1466, 0
      %1854 = vmatpush.bf16.msra.mxu0 0
      %1855 = vmatpush.bf16.msra.mxu0 0
      %1856 = vmatpush.bf16.msra.mxu0 0
      %1857 = vmatpush.bf16.msra.mxu0 0
      %1858 = vmatpush.bf16.msra.mxu0 0
      %1859 = vmatpush.bf16.msra.mxu0 0
      %1860 = vmatpush.bf16.msra.mxu0 0
      %1861 = vmatpush.bf16.msra.mxu0 %v1852
      %1862 = vmatmul.bf16.gmra.mxu0 %v1804
      %v1863 = vpop.f32.mrf.mxu0
      %v1864 = vadd.f32 %v1644, %v1863
      %v1865 = vpop.f32.mrf.mxu0
      %v1866 = vadd.f32 %v1646, %v1865
      %1867 = vmatmul.bf16.gmra.mxu0 %v1807
      %v1868 = vpop.f32.mrf.mxu0
      %v1869 = vadd.f32 %v1649, %v1868
      %v1870 = vpop.f32.mrf.mxu0
      %v1871 = vadd.f32 %v1651, %v1870
      %1872 = vmatmul.bf16.gmra.mxu0 %v1810
      %v1873 = vpop.f32.mrf.mxu0
      %v1874 = vadd.f32 %v1654, %v1873
      %v1875 = vpop.f32.mrf.mxu0
      %v1876 = vadd.f32 %v1656, %v1875
      %1877 = vmatmul.bf16.gmra.mxu0 %v1813
      %v1878 = vpop.f32.mrf.mxu0
      %v1879 = vadd.f32 %v1659, %v1878
      %v1880 = vpop.f32.mrf.mxu0
      %v1881 = vadd.f32 %v1661, %v1880
      %1882 = vmatmul.bf16.gmra.mxu0 %v1816
      %v1883 = vpop.f32.mrf.mxu0
      %v1884 = vadd.f32 %v1664, %v1883
      %v1885 = vpop.f32.mrf.mxu0
      %v1886 = vadd.f32 %v1666, %v1885
      %1887 = vmatmul.bf16.gmra.mxu0 %v1819
      %v1888 = vpop.f32.mrf.mxu0
      %v1889 = vadd.f32 %v1669, %v1888
      %v1890 = vpop.f32.mrf.mxu0
      %v1891 = vadd.f32 %v1671, %v1890
      %1892 = vmatmul.bf16.gmra.mxu0 %v1822
      %v1893 = vpop.f32.mrf.mxu0
      %v1894 = vadd.f32 %v1674, %v1893
      %v1895 = vpop.f32.mrf.mxu0
      %v1896 = vadd.f32 %v1676, %v1895
      %1897 = vmatmul.bf16.gmra.mxu0 %v1825
      %v1898 = vpop.f32.mrf.mxu0
      %v1899 = vadd.f32 %v1679, %v1898
      %v1900 = vpop.f32.mrf.mxu0
      %v1901 = vadd.f32 %v1681, %v1900
      %1902 = vmatmul.bf16.gmra.mxu0 %v1828
      %v1903 = vpop.f32.mrf.mxu0
      %v1904 = vadd.f32 %v1684, %v1903
      %v1905 = vpop.f32.mrf.mxu0
      %v1906 = vadd.f32 %v1686, %v1905
      %1907 = vmatmul.bf16.gmra.mxu0 %v1831
      %v1908 = vpop.f32.mrf.mxu0
      %v1909 = vadd.f32 %v1689, %v1908
      %v1910 = vpop.f32.mrf.mxu0
      %v1911 = vadd.f32 %v1691, %v1910
      %1912 = vmatmul.bf16.gmra.mxu0 %v1834
      %v1913 = vpop.f32.mrf.mxu0
      %v1914 = vadd.f32 %v1694, %v1913
      %v1915 = vpop.f32.mrf.mxu0
      %v1916 = vadd.f32 %v1696, %v1915
      %1917 = vmatmul.bf16.gmra.mxu0 %v1837
      %v1918 = vpop.f32.mrf.mxu0
      %v1919 = vadd.f32 %v1699, %v1918
      %v1920 = vpop.f32.mrf.mxu0
      %v1921 = vadd.f32 %v1701, %v1920
      %1922 = vmatmul.bf16.gmra.mxu0 %v1840
      %v1923 = vpop.f32.mrf.mxu0
      %v1924 = vadd.f32 %v1704, %v1923
      %v1925 = vpop.f32.mrf.mxu0
      %v1926 = vadd.f32 %v1706, %v1925
      %1927 = vmatmul.bf16.gmra.mxu0 %v1843
      %v1928 = vpop.f32.mrf.mxu0
      %v1929 = vadd.f32 %v1709, %v1928
      %v1930 = vpop.f32.mrf.mxu0
      %v1931 = vadd.f32 %v1711, %v1930
      %1932 = vmatmul.bf16.gmra.mxu0 %v1846
      %v1933 = vpop.f32.mrf.mxu0
      %v1934 = vadd.f32 %v1714, %v1933
      %v1935 = vpop.f32.mrf.mxu0
      %v1936 = vadd.f32 %v1716, %v1935
      %1937 = vmatmul.bf16.gmra.mxu0 %v1849
      %v1938 = vpop.f32.mrf.mxu0
      %v1939 = vadd.f32 %v1719, %v1938
      %v1940 = vpop.f32.mrf.mxu0
      %v1941 = vadd.f32 %v1721, %v1940
      %1942 = vdwg.mxu0
      %v1943 = vld [vmem:[%s1366] sm:$0xf]
      %v1944 = vld [vmem:[%s1366 + $0x4] sm:$0xf]
      %v1945 = vld [vmem:[%s1366 + $0x8] sm:$0xf]
      %v1946 = vld [vmem:[%s1366 + $0xc] sm:$0xf]
      %v1947 = vld [vmem:[%s1366 + $0x10] sm:$0xf]
      %v1948 = vld [vmem:[%s1366 + $0x14] sm:$0xf]
      %v1949 = vld [vmem:[%s1366 + $0x18] sm:$0xf]
      %v1950 = vld [vmem:[%s1366 + $0x1c] sm:$0xf]
      %v1951 = vld [vmem:[%s1366 + $0x20] sm:$0xf]
      %v1952 = vld [vmem:[%s1366 + $0x24] sm:$0xf]
      %v1953 = vld [vmem:[%s1366 + $0x28] sm:$0xf]
      %v1954 = vld [vmem:[%s1366 + $0x2c] sm:$0xf]
      %v1955 = vld [vmem:[%s1366 + $0x30] sm:$0xf]
      %v1956 = vld [vmem:[%s1366 + $0x34] sm:$0xf]
      %v1957 = vld [vmem:[%s1366 + $0x38] sm:$0xf]
      %v1958 = vld [vmem:[%s1366 + $0x3c] sm:$0xf]
      %v1959 = vld [vmem:[%s1366 + $0x40] sm:$0xf]
      %v1960 = vld [vmem:[%s1366 + $0x44] sm:$0xf]
      %v1961 = vld [vmem:[%s1366 + $0x48] sm:$0xf]
      %v1962 = vld [vmem:[%s1366 + $0x4c] sm:$0xf]
      %v1963 = vld [vmem:[%s1366 + $0x50] sm:$0xf]
      %v1964 = vld [vmem:[%s1366 + $0x54] sm:$0xf]
      %v1965 = vld [vmem:[%s1366 + $0x58] sm:$0xf]
      %v1966 = vld [vmem:[%s1366 + $0x5c] sm:$0xf]
      %v1967 = vld [vmem:[%s1366 + $0x60] sm:$0xf]
      %v1968 = vld [vmem:[%s1366 + $0x64] sm:$0xf]
      %v1969 = vld [vmem:[%s1366 + $0x68] sm:$0xf]
      %v1970 = vld [vmem:[%s1366 + $0x6c] sm:$0xf]
      %v1971 = vld [vmem:[%s1366 + $0x70] sm:$0xf]
      %v1972 = vld [vmem:[%s1366 + $0x74] sm:$0xf]
      %v1973 = vld [vmem:[%s1366 + $0x78] sm:$0xf]
      %v1974 = vld [vmem:[%s1366 + $0x7c] sm:$0xf]
      %s1975 = scalar_lea.vmem %s459, 8
      %v1976 = vld [vmem:[%s1975] sm:$0xf]
      %v2009 = vunpack.c.l.b16 %v1943
      %v2010 = vunpack.c.l.b16 %v1944
      %v2011 = vunpack.c.l.b16 %v1945
      %v2012 = vunpack.c.l.b16 %v1946
      %v2013 = vunpack.c.l.b16 %v1947
      %v2014 = vunpack.c.l.b16 %v1948
      %v2015 = vunpack.c.l.b16 %v1949
      %v2016 = vunpack.c.l.b16 %v1950
      %v2017 = vunpack.c.l.b16 %v1951
      %v2018 = vunpack.c.l.b16 %v1952
      %v2019 = vunpack.c.l.b16 %v1953
      %v2020 = vunpack.c.l.b16 %v1954
      %v2021 = vunpack.c.l.b16 %v1955
      %v2022 = vunpack.c.l.b16 %v1956
      %v2023 = vunpack.c.l.b16 %v1957
      %v2024 = vunpack.c.l.b16 %v1958
      %v2025 = vunpack.c.l.b16 %v1959
      %v2026 = vunpack.c.l.b16 %v1960
      %v2027 = vunpack.c.l.b16 %v1961
      %v2028 = vunpack.c.l.b16 %v1962
      %v2029 = vunpack.c.l.b16 %v1963
      %v2030 = vunpack.c.l.b16 %v1964
      %v2031 = vunpack.c.l.b16 %v1965
      %v2032 = vunpack.c.l.b16 %v1966
      %v2033 = vunpack.c.l.b16 %v1967
      %v2034 = vunpack.c.l.b16 %v1968
      %v2035 = vunpack.c.l.b16 %v1969
      %v2036 = vunpack.c.l.b16 %v1970
      %v2037 = vunpack.c.l.b16 %v1971
      %v2038 = vunpack.c.l.b16 %v1972
      %v2039 = vunpack.c.l.b16 %v1973
      %v2040 = vunpack.c.l.b16 %v1974
      %v2041 = vpack.c.b16 %v2010, %v2009
      %v2042 = vpack.c.b16 %v2012, %v2011
      %v2043 = vpack.c.b16 %v2014, %v2013
      %v2044 = vpack.c.b16 %v2016, %v2015
      %v2045 = vpack.c.b16 %v2018, %v2017
      %v2046 = vpack.c.b16 %v2020, %v2019
      %v2047 = vpack.c.b16 %v2022, %v2021
      %v2048 = vpack.c.b16 %v2024, %v2023
      %v2049 = vpack.c.b16 %v2026, %v2025
      %v2050 = vpack.c.b16 %v2028, %v2027
      %v2051 = vpack.c.b16 %v2030, %v2029
      %v2052 = vpack.c.b16 %v2032, %v2031
      %v2053 = vpack.c.b16 %v2034, %v2033
      %v2054 = vpack.c.b16 %v2036, %v2035
      %v2055 = vpack.c.b16 %v2038, %v2037
      %v2056 = vpack.c.b16 %v2040, %v2039
      %v2058 = vsel %vm1581, %v2041, 0
      %v2061 = vsel %vm1581, %v2042, 0
      %v2064 = vsel %vm1581, %v2043, 0
      %v2067 = vsel %vm1581, %v2044, 0
      %v2070 = vsel %vm1581, %v2045, 0
      %v2073 = vsel %vm1581, %v2046, 0
      %v2076 = vsel %vm1581, %v2047, 0
      %v2079 = vsel %vm1581, %v2048, 0
      %v2082 = vsel %vm1581, %v2049, 0
      %v2085 = vsel %vm1581, %v2050, 0
      %v2088 = vsel %vm1581, %v2051, 0
      %v2091 = vsel %vm1581, %v2052, 0
      %v2094 = vsel %vm1581, %v2053, 0
      %v2097 = vsel %vm1581, %v2054, 0
      %v2100 = vsel %vm1581, %v2055, 0
      %v2103 = vsel %vm1581, %v2056, 0
      %v2106 = vsel %vm1630, %v1976, 0
      %2108 = vmatpush.bf16.msra.mxu0 0
      %2109 = vmatpush.bf16.msra.mxu0 0
      %2110 = vmatpush.bf16.msra.mxu0 0
      %2111 = vmatpush.bf16.msra.mxu0 0
      %2112 = vmatpush.bf16.msra.mxu0 0
      %2113 = vmatpush.bf16.msra.mxu0 0
      %2114 = vmatpush.bf16.msra.mxu0 0
      %2115 = vmatpush.bf16.msra.mxu0 %v2106
      %2116 = vmatmul.bf16.gmra.mxu0 %v2058
      %v2117 = vpop.f32.mrf.mxu0
      %v2118 = vadd.f32 0.0, %v2117
      %v2119 = vpop.f32.mrf.mxu0
      %v2120 = vadd.f32 0.0, %v2119
      %2121 = vmatmul.bf16.gmra.mxu0 %v2061
      %v2122 = vpop.f32.mrf.mxu0
      %v2123 = vadd.f32 0.0, %v2122
      %v2124 = vpop.f32.mrf.mxu0
      %v2125 = vadd.f32 0.0, %v2124
      %2126 = vmatmul.bf16.gmra.mxu0 %v2064
      %v2127 = vpop.f32.mrf.mxu0
      %v2128 = vadd.f32 0.0, %v2127
      %v2129 = vpop.f32.mrf.mxu0
      %v2130 = vadd.f32 0.0, %v2129
      %2131 = vmatmul.bf16.gmra.mxu0 %v2067
      %v2132 = vpop.f32.mrf.mxu0
      %v2133 = vadd.f32 0.0, %v2132
      %v2134 = vpop.f32.mrf.mxu0
      %v2135 = vadd.f32 0.0, %v2134
      %2136 = vmatmul.bf16.gmra.mxu0 %v2070
      %v2137 = vpop.f32.mrf.mxu0
      %v2138 = vadd.f32 0.0, %v2137
      %v2139 = vpop.f32.mrf.mxu0
      %v2140 = vadd.f32 0.0, %v2139
      %2141 = vmatmul.bf16.gmra.mxu0 %v2073
      %v2142 = vpop.f32.mrf.mxu0
      %v2143 = vadd.f32 0.0, %v2142
      %v2144 = vpop.f32.mrf.mxu0
      %v2145 = vadd.f32 0.0, %v2144
      %2146 = vmatmul.bf16.gmra.mxu0 %v2076
      %v2147 = vpop.f32.mrf.mxu0
      %v2148 = vadd.f32 0.0, %v2147
      %v2149 = vpop.f32.mrf.mxu0
      %v2150 = vadd.f32 0.0, %v2149
      %2151 = vmatmul.bf16.gmra.mxu0 %v2079
      %v2152 = vpop.f32.mrf.mxu0
      %v2153 = vadd.f32 0.0, %v2152
      %v2154 = vpop.f32.mrf.mxu0
      %v2155 = vadd.f32 0.0, %v2154
      %2156 = vmatmul.bf16.gmra.mxu0 %v2082
      %v2157 = vpop.f32.mrf.mxu0
      %v2158 = vadd.f32 0.0, %v2157
      %v2159 = vpop.f32.mrf.mxu0
      %v2160 = vadd.f32 0.0, %v2159
      %2161 = vmatmul.bf16.gmra.mxu0 %v2085
      %v2162 = vpop.f32.mrf.mxu0
      %v2163 = vadd.f32 0.0, %v2162
      %v2164 = vpop.f32.mrf.mxu0
      %v2165 = vadd.f32 0.0, %v2164
      %2166 = vmatmul.bf16.gmra.mxu0 %v2088
      %v2167 = vpop.f32.mrf.mxu0
      %v2168 = vadd.f32 0.0, %v2167
      %v2169 = vpop.f32.mrf.mxu0
      %v2170 = vadd.f32 0.0, %v2169
      %2171 = vmatmul.bf16.gmra.mxu0 %v2091
      %v2172 = vpop.f32.mrf.mxu0
      %v2173 = vadd.f32 0.0, %v2172
      %v2174 = vpop.f32.mrf.mxu0
      %v2175 = vadd.f32 0.0, %v2174
      %2176 = vmatmul.bf16.gmra.mxu0 %v2094
      %v2177 = vpop.f32.mrf.mxu0
      %v2178 = vadd.f32 0.0, %v2177
      %v2179 = vpop.f32.mrf.mxu0
      %v2180 = vadd.f32 0.0, %v2179
      %2181 = vmatmul.bf16.gmra.mxu0 %v2097
      %v2182 = vpop.f32.mrf.mxu0
      %v2183 = vadd.f32 0.0, %v2182
      %v2184 = vpop.f32.mrf.mxu0
      %v2185 = vadd.f32 0.0, %v2184
      %2186 = vmatmul.bf16.gmra.mxu0 %v2100
      %v2187 = vpop.f32.mrf.mxu0
      %v2188 = vadd.f32 0.0, %v2187
      %v2189 = vpop.f32.mrf.mxu0
      %v2190 = vadd.f32 0.0, %v2189
      %2191 = vmatmul.bf16.gmra.mxu0 %v2103
      %v2192 = vpop.f32.mrf.mxu0
      %v2193 = vadd.f32 0.0, %v2192
      %v2194 = vpop.f32.mrf.mxu0
      %v2195 = vadd.f32 0.0, %v2194
      %2196 = vdwg.mxu0
      %v2197 = vadd.f32 %v1864, %v2118
      %v2198 = vadd.f32 %v1866, %v2120
      %v2199 = vadd.f32 %v1869, %v2123
      %v2200 = vadd.f32 %v1871, %v2125
      %v2201 = vadd.f32 %v1874, %v2128
      %v2202 = vadd.f32 %v1876, %v2130
      %v2203 = vadd.f32 %v1879, %v2133
      %v2204 = vadd.f32 %v1881, %v2135
      %v2205 = vadd.f32 %v1884, %v2138
      %v2206 = vadd.f32 %v1886, %v2140
      %v2207 = vadd.f32 %v1889, %v2143
      %v2208 = vadd.f32 %v1891, %v2145
      %v2209 = vadd.f32 %v1894, %v2148
      %v2210 = vadd.f32 %v1896, %v2150
      %v2211 = vadd.f32 %v1899, %v2153
      %v2212 = vadd.f32 %v1901, %v2155
      %v2213 = vadd.f32 %v1904, %v2158
      %v2214 = vadd.f32 %v1906, %v2160
      %v2215 = vadd.f32 %v1909, %v2163
      %v2216 = vadd.f32 %v1911, %v2165
      %v2217 = vadd.f32 %v1914, %v2168
      %v2218 = vadd.f32 %v1916, %v2170
      %v2219 = vadd.f32 %v1919, %v2173
      %v2220 = vadd.f32 %v1921, %v2175
      %v2221 = vadd.f32 %v1924, %v2178
      %v2222 = vadd.f32 %v1926, %v2180
      %v2223 = vadd.f32 %v1929, %v2183
      %v2224 = vadd.f32 %v1931, %v2185
      %v2225 = vadd.f32 %v1934, %v2188
      %v2226 = vadd.f32 %v1936, %v2190
      %v2227 = vadd.f32 %v1939, %v2193
      %v2228 = vadd.f32 %v1941, %v2195
      %s2229 = scalar_lea.vmem [#allocation2], 8
      %v2230 = vld [vmem:[%s2229] sm:$0xf]
      %v2231 = vld [vmem:[%s2229 + $0x4] sm:$0xf]
      %v2232 = vld [vmem:[%s2229 + $0x8] sm:$0xf]
      %v2233 = vld [vmem:[%s2229 + $0xc] sm:$0xf]
      %v2234 = vld [vmem:[%s2229 + $0x10] sm:$0xf]
      %v2235 = vld [vmem:[%s2229 + $0x14] sm:$0xf]
      %v2236 = vld [vmem:[%s2229 + $0x18] sm:$0xf]
      %v2237 = vld [vmem:[%s2229 + $0x1c] sm:$0xf]
      %v2238 = vld [vmem:[%s2229 + $0x20] sm:$0xf]
      %v2239 = vld [vmem:[%s2229 + $0x24] sm:$0xf]
      %v2240 = vld [vmem:[%s2229 + $0x28] sm:$0xf]
      %v2241 = vld [vmem:[%s2229 + $0x2c] sm:$0xf]
      %v2242 = vld [vmem:[%s2229 + $0x30] sm:$0xf]
      %v2243 = vld [vmem:[%s2229 + $0x34] sm:$0xf]
      %v2244 = vld [vmem:[%s2229 + $0x38] sm:$0xf]
      %v2245 = vld [vmem:[%s2229 + $0x3c] sm:$0xf]
      %v2246 = vld [vmem:[%s2229 + $0x40] sm:$0xf]
      %v2247 = vld [vmem:[%s2229 + $0x44] sm:$0xf]
      %v2248 = vld [vmem:[%s2229 + $0x48] sm:$0xf]
      %v2249 = vld [vmem:[%s2229 + $0x4c] sm:$0xf]
      %v2250 = vld [vmem:[%s2229 + $0x50] sm:$0xf]
      %v2251 = vld [vmem:[%s2229 + $0x54] sm:$0xf]
      %v2252 = vld [vmem:[%s2229 + $0x58] sm:$0xf]
      %v2253 = vld [vmem:[%s2229 + $0x5c] sm:$0xf]
      %v2254 = vld [vmem:[%s2229 + $0x60] sm:$0xf]
      %v2255 = vld [vmem:[%s2229 + $0x64] sm:$0xf]
      %v2256 = vld [vmem:[%s2229 + $0x68] sm:$0xf]
      %v2257 = vld [vmem:[%s2229 + $0x6c] sm:$0xf]
      %v2258 = vld [vmem:[%s2229 + $0x70] sm:$0xf]
      %v2259 = vld [vmem:[%s2229 + $0x74] sm:$0xf]
      %v2260 = vld [vmem:[%s2229 + $0x78] sm:$0xf]
      %v2261 = vld [vmem:[%s2229 + $0x7c] sm:$0xf]
      %s2262 = scalar_lea.vmem %s459, 12
      %v2263 = vld [vmem:[%s2262] sm:$0xf]
      %v2296 = vunpack.c.l.b16 %v2230
      %v2297 = vunpack.c.l.b16 %v2231
      %v2298 = vunpack.c.l.b16 %v2232
      %v2299 = vunpack.c.l.b16 %v2233
      %v2300 = vunpack.c.l.b16 %v2234
      %v2301 = vunpack.c.l.b16 %v2235
      %v2302 = vunpack.c.l.b16 %v2236
      %v2303 = vunpack.c.l.b16 %v2237
      %v2304 = vunpack.c.l.b16 %v2238
      %v2305 = vunpack.c.l.b16 %v2239
      %v2306 = vunpack.c.l.b16 %v2240
      %v2307 = vunpack.c.l.b16 %v2241
      %v2308 = vunpack.c.l.b16 %v2242
      %v2309 = vunpack.c.l.b16 %v2243
      %v2310 = vunpack.c.l.b16 %v2244
      %v2311 = vunpack.c.l.b16 %v2245
      %v2312 = vunpack.c.l.b16 %v2246
      %v2313 = vunpack.c.l.b16 %v2247
      %v2314 = vunpack.c.l.b16 %v2248
      %v2315 = vunpack.c.l.b16 %v2249
      %v2316 = vunpack.c.l.b16 %v2250
      %v2317 = vunpack.c.l.b16 %v2251
      %v2318 = vunpack.c.l.b16 %v2252
      %v2319 = vunpack.c.l.b16 %v2253
      %v2320 = vunpack.c.l.b16 %v2254
      %v2321 = vunpack.c.l.b16 %v2255
      %v2322 = vunpack.c.l.b16 %v2256
      %v2323 = vunpack.c.l.b16 %v2257
      %v2324 = vunpack.c.l.b16 %v2258
      %v2325 = vunpack.c.l.b16 %v2259
      %v2326 = vunpack.c.l.b16 %v2260
      %v2327 = vunpack.c.l.b16 %v2261
      %v2328 = vpack.c.b16 %v2297, %v2296
      %v2329 = vpack.c.b16 %v2299, %v2298
      %v2330 = vpack.c.b16 %v2301, %v2300
      %v2331 = vpack.c.b16 %v2303, %v2302
      %v2332 = vpack.c.b16 %v2305, %v2304
      %v2333 = vpack.c.b16 %v2307, %v2306
      %v2334 = vpack.c.b16 %v2309, %v2308
      %v2335 = vpack.c.b16 %v2311, %v2310
      %v2336 = vpack.c.b16 %v2313, %v2312
      %v2337 = vpack.c.b16 %v2315, %v2314
      %v2338 = vpack.c.b16 %v2317, %v2316
      %v2339 = vpack.c.b16 %v2319, %v2318
      %v2340 = vpack.c.b16 %v2321, %v2320
      %v2341 = vpack.c.b16 %v2323, %v2322
      %v2342 = vpack.c.b16 %v2325, %v2324
      %v2343 = vpack.c.b16 %v2327, %v2326
      %v2345 = vsel %vm1581, %v2328, 0
      %v2348 = vsel %vm1581, %v2329, 0
      %v2351 = vsel %vm1581, %v2330, 0
      %v2354 = vsel %vm1581, %v2331, 0
      %v2357 = vsel %vm1581, %v2332, 0
      %v2360 = vsel %vm1581, %v2333, 0
      %v2363 = vsel %vm1581, %v2334, 0
      %v2366 = vsel %vm1581, %v2335, 0
      %v2369 = vsel %vm1581, %v2336, 0
      %v2372 = vsel %vm1581, %v2337, 0
      %v2375 = vsel %vm1581, %v2338, 0
      %v2378 = vsel %vm1581, %v2339, 0
      %v2381 = vsel %vm1581, %v2340, 0
      %v2384 = vsel %vm1581, %v2341, 0
      %v2387 = vsel %vm1581, %v2342, 0
      %v2390 = vsel %vm1581, %v2343, 0
      %v2393 = vsel %vm1630, %v2263, 0
      %2395 = vmatpush.bf16.msra.mxu0 0
      %2396 = vmatpush.bf16.msra.mxu0 0
      %2397 = vmatpush.bf16.msra.mxu0 0
      %2398 = vmatpush.bf16.msra.mxu0 0
      %2399 = vmatpush.bf16.msra.mxu0 0
      %2400 = vmatpush.bf16.msra.mxu0 0
      %2401 = vmatpush.bf16.msra.mxu0 0
      %2402 = vmatpush.bf16.msra.mxu0 %v2393
      %2403 = vmatmul.bf16.gmra.mxu0 %v2345
      %v2404 = vpop.f32.mrf.mxu0
      %v2405 = vadd.f32 0.0, %v2404
      %v2406 = vpop.f32.mrf.mxu0
      %v2407 = vadd.f32 0.0, %v2406
      %2408 = vmatmul.bf16.gmra.mxu0 %v2348
      %v2409 = vpop.f32.mrf.mxu0
      %v2410 = vadd.f32 0.0, %v2409
      %v2411 = vpop.f32.mrf.mxu0
      %v2412 = vadd.f32 0.0, %v2411
      %2413 = vmatmul.bf16.gmra.mxu0 %v2351
      %v2414 = vpop.f32.mrf.mxu0
      %v2415 = vadd.f32 0.0, %v2414
      %v2416 = vpop.f32.mrf.mxu0
      %v2417 = vadd.f32 0.0, %v2416
      %2418 = vmatmul.bf16.gmra.mxu0 %v2354
      %v2419 = vpop.f32.mrf.mxu0
      %v2420 = vadd.f32 0.0, %v2419
      %v2421 = vpop.f32.mrf.mxu0
      %v2422 = vadd.f32 0.0, %v2421
      %2423 = vmatmul.bf16.gmra.mxu0 %v2357
      %v2424 = vpop.f32.mrf.mxu0
      %v2425 = vadd.f32 0.0, %v2424
      %v2426 = vpop.f32.mrf.mxu0
      %v2427 = vadd.f32 0.0, %v2426
      %2428 = vmatmul.bf16.gmra.mxu0 %v2360
      %v2429 = vpop.f32.mrf.mxu0
      %v2430 = vadd.f32 0.0, %v2429
      %v2431 = vpop.f32.mrf.mxu0
      %v2432 = vadd.f32 0.0, %v2431
      %2433 = vmatmul.bf16.gmra.mxu0 %v2363
      %v2434 = vpop.f32.mrf.mxu0
      %v2435 = vadd.f32 0.0, %v2434
      %v2436 = vpop.f32.mrf.mxu0
      %v2437 = vadd.f32 0.0, %v2436
      %2438 = vmatmul.bf16.gmra.mxu0 %v2366
      %v2439 = vpop.f32.mrf.mxu0
      %v2440 = vadd.f32 0.0, %v2439
      %v2441 = vpop.f32.mrf.mxu0
      %v2442 = vadd.f32 0.0, %v2441
      %2443 = vmatmul.bf16.gmra.mxu0 %v2369
      %v2444 = vpop.f32.mrf.mxu0
      %v2445 = vadd.f32 0.0, %v2444
      %v2446 = vpop.f32.mrf.mxu0
      %v2447 = vadd.f32 0.0, %v2446
      %2448 = vmatmul.bf16.gmra.mxu0 %v2372
      %v2449 = vpop.f32.mrf.mxu0
      %v2450 = vadd.f32 0.0, %v2449
      %v2451 = vpop.f32.mrf.mxu0
      %v2452 = vadd.f32 0.0, %v2451
      %2453 = vmatmul.bf16.gmra.mxu0 %v2375
      %v2454 = vpop.f32.mrf.mxu0
      %v2455 = vadd.f32 0.0, %v2454
      %v2456 = vpop.f32.mrf.mxu0
      %v2457 = vadd.f32 0.0, %v2456
      %2458 = vmatmul.bf16.gmra.mxu0 %v2378
      %v2459 = vpop.f32.mrf.mxu0
      %v2460 = vadd.f32 0.0, %v2459
      %v2461 = vpop.f32.mrf.mxu0
      %v2462 = vadd.f32 0.0, %v2461
      %2463 = vmatmul.bf16.gmra.mxu0 %v2381
      %v2464 = vpop.f32.mrf.mxu0
      %v2465 = vadd.f32 0.0, %v2464
      %v2466 = vpop.f32.mrf.mxu0
      %v2467 = vadd.f32 0.0, %v2466
      %2468 = vmatmul.bf16.gmra.mxu0 %v2384
      %v2469 = vpop.f32.mrf.mxu0
      %v2470 = vadd.f32 0.0, %v2469
      %v2471 = vpop.f32.mrf.mxu0
      %v2472 = vadd.f32 0.0, %v2471
      %2473 = vmatmul.bf16.gmra.mxu0 %v2387
      %v2474 = vpop.f32.mrf.mxu0
      %v2475 = vadd.f32 0.0, %v2474
      %v2476 = vpop.f32.mrf.mxu0
      %v2477 = vadd.f32 0.0, %v2476
      %2478 = vmatmul.bf16.gmra.mxu0 %v2390
      %v2479 = vpop.f32.mrf.mxu0
      %v2480 = vadd.f32 0.0, %v2479
      %v2481 = vpop.f32.mrf.mxu0
      %v2482 = vadd.f32 0.0, %v2481
      %2483 = vdwg.mxu0
      %v2484 = vadd.f32 %v2197, %v2405
      %v2485 = vadd.f32 %v2198, %v2407
      %v2486 = vadd.f32 %v2199, %v2410
      %v2487 = vadd.f32 %v2200, %v2412
      %v2488 = vadd.f32 %v2201, %v2415
      %v2489 = vadd.f32 %v2202, %v2417
      %v2490 = vadd.f32 %v2203, %v2420
      %v2491 = vadd.f32 %v2204, %v2422
      %v2492 = vadd.f32 %v2205, %v2425
      %v2493 = vadd.f32 %v2206, %v2427
      %v2494 = vadd.f32 %v2207, %v2430
      %v2495 = vadd.f32 %v2208, %v2432
      %v2496 = vadd.f32 %v2209, %v2435
      %v2497 = vadd.f32 %v2210, %v2437
      %v2498 = vadd.f32 %v2211, %v2440
      %v2499 = vadd.f32 %v2212, %v2442
      %v2500 = vadd.f32 %v2213, %v2445
      %v2501 = vadd.f32 %v2214, %v2447
      %v2502 = vadd.f32 %v2215, %v2450
      %v2503 = vadd.f32 %v2216, %v2452
      %v2504 = vadd.f32 %v2217, %v2455
      %v2505 = vadd.f32 %v2218, %v2457
      %v2506 = vadd.f32 %v2219, %v2460
      %v2507 = vadd.f32 %v2220, %v2462
      %v2508 = vadd.f32 %v2221, %v2465
      %v2509 = vadd.f32 %v2222, %v2467
      %v2510 = vadd.f32 %v2223, %v2470
      %v2511 = vadd.f32 %v2224, %v2472
      %v2512 = vadd.f32 %v2225, %v2475
      %v2513 = vadd.f32 %v2226, %v2477
      %v2514 = vadd.f32 %v2227, %v2480
      %v2515 = vadd.f32 %v2228, %v2482
      %s2516 = scalar_lea.vmem [#allocation2], 152
      %v2517 = vld [vmem:[%s2516] sm:$0xf]
      %v2518 = vld [vmem:[%s2516 + $0x4] sm:$0xf]
      %v2519 = vld [vmem:[%s2516 + $0x8] sm:$0xf]
      %v2520 = vld [vmem:[%s2516 + $0xc] sm:$0xf]
      %v2521 = vld [vmem:[%s2516 + $0x10] sm:$0xf]
      %v2522 = vld [vmem:[%s2516 + $0x14] sm:$0xf]
      %v2523 = vld [vmem:[%s2516 + $0x18] sm:$0xf]
      %v2524 = vld [vmem:[%s2516 + $0x1c] sm:$0xf]
      %v2525 = vld [vmem:[%s2516 + $0x20] sm:$0xf]
      %v2526 = vld [vmem:[%s2516 + $0x24] sm:$0xf]
      %v2527 = vld [vmem:[%s2516 + $0x28] sm:$0xf]
      %v2528 = vld [vmem:[%s2516 + $0x2c] sm:$0xf]
      %v2529 = vld [vmem:[%s2516 + $0x30] sm:$0xf]
      %v2530 = vld [vmem:[%s2516 + $0x34] sm:$0xf]
      %v2531 = vld [vmem:[%s2516 + $0x38] sm:$0xf]
      %v2532 = vld [vmem:[%s2516 + $0x3c] sm:$0xf]
      %v2533 = vld [vmem:[%s2516 + $0x40] sm:$0xf]
      %v2534 = vld [vmem:[%s2516 + $0x44] sm:$0xf]
      %v2535 = vld [vmem:[%s2516 + $0x48] sm:$0xf]
      %v2536 = vld [vmem:[%s2516 + $0x4c] sm:$0xf]
      %v2537 = vld [vmem:[%s2516 + $0x50] sm:$0xf]
      %v2538 = vld [vmem:[%s2516 + $0x54] sm:$0xf]
      %v2539 = vld [vmem:[%s2516 + $0x58] sm:$0xf]
      %v2540 = vld [vmem:[%s2516 + $0x5c] sm:$0xf]
      %v2541 = vld [vmem:[%s2516 + $0x60] sm:$0xf]
      %v2542 = vld [vmem:[%s2516 + $0x64] sm:$0xf]
      %v2543 = vld [vmem:[%s2516 + $0x68] sm:$0xf]
      %v2544 = vld [vmem:[%s2516 + $0x6c] sm:$0xf]
      %v2545 = vld [vmem:[%s2516 + $0x70] sm:$0xf]
      %v2546 = vld [vmem:[%s2516 + $0x74] sm:$0xf]
      %v2547 = vld [vmem:[%s2516 + $0x78] sm:$0xf]
      %v2548 = vld [vmem:[%s2516 + $0x7c] sm:$0xf]
      %s2549 = scalar_lea.vmem %s459, 16
      %v2550 = vld [vmem:[%s2549] sm:$0xf]
      %v2583 = vunpack.c.l.b16 %v2517
      %v2584 = vunpack.c.l.b16 %v2518
      %v2585 = vunpack.c.l.b16 %v2519
      %v2586 = vunpack.c.l.b16 %v2520
      %v2587 = vunpack.c.l.b16 %v2521
      %v2588 = vunpack.c.l.b16 %v2522
      %v2589 = vunpack.c.l.b16 %v2523
      %v2590 = vunpack.c.l.b16 %v2524
      %v2591 = vunpack.c.l.b16 %v2525
      %v2592 = vunpack.c.l.b16 %v2526
      %v2593 = vunpack.c.l.b16 %v2527
      %v2594 = vunpack.c.l.b16 %v2528
      %v2595 = vunpack.c.l.b16 %v2529
      %v2596 = vunpack.c.l.b16 %v2530
      %v2597 = vunpack.c.l.b16 %v2531
      %v2598 = vunpack.c.l.b16 %v2532
      %v2599 = vunpack.c.l.b16 %v2533
      %v2600 = vunpack.c.l.b16 %v2534
      %v2601 = vunpack.c.l.b16 %v2535
      %v2602 = vunpack.c.l.b16 %v2536
      %v2603 = vunpack.c.l.b16 %v2537
      %v2604 = vunpack.c.l.b16 %v2538
      %v2605 = vunpack.c.l.b16 %v2539
      %v2606 = vunpack.c.l.b16 %v2540
      %v2607 = vunpack.c.l.b16 %v2541
      %v2608 = vunpack.c.l.b16 %v2542
      %v2609 = vunpack.c.l.b16 %v2543
      %v2610 = vunpack.c.l.b16 %v2544
      %v2611 = vunpack.c.l.b16 %v2545
      %v2612 = vunpack.c.l.b16 %v2546
      %v2613 = vunpack.c.l.b16 %v2547
      %v2614 = vunpack.c.l.b16 %v2548
      %v2615 = vpack.c.b16 %v2584, %v2583
      %v2616 = vpack.c.b16 %v2586, %v2585
      %v2617 = vpack.c.b16 %v2588, %v2587
      %v2618 = vpack.c.b16 %v2590, %v2589
      %v2619 = vpack.c.b16 %v2592, %v2591
      %v2620 = vpack.c.b16 %v2594, %v2593
      %v2621 = vpack.c.b16 %v2596, %v2595
      %v2622 = vpack.c.b16 %v2598, %v2597
      %v2623 = vpack.c.b16 %v2600, %v2599
      %v2624 = vpack.c.b16 %v2602, %v2601
      %v2625 = vpack.c.b16 %v2604, %v2603
      %v2626 = vpack.c.b16 %v2606, %v2605
      %v2627 = vpack.c.b16 %v2608, %v2607
      %v2628 = vpack.c.b16 %v2610, %v2609
      %v2629 = vpack.c.b16 %v2612, %v2611
      %v2630 = vpack.c.b16 %v2614, %v2613
      %v2632 = vsel %vm1581, %v2615, 0
      %v2635 = vsel %vm1581, %v2616, 0
      %v2638 = vsel %vm1581, %v2617, 0
      %v2641 = vsel %vm1581, %v2618, 0
      %v2644 = vsel %vm1581, %v2619, 0
      %v2647 = vsel %vm1581, %v2620, 0
      %v2650 = vsel %vm1581, %v2621, 0
      %v2653 = vsel %vm1581, %v2622, 0
      %v2656 = vsel %vm1581, %v2623, 0
      %v2659 = vsel %vm1581, %v2624, 0
      %v2662 = vsel %vm1581, %v2625, 0
      %v2665 = vsel %vm1581, %v2626, 0
      %v2668 = vsel %vm1581, %v2627, 0
      %v2671 = vsel %vm1581, %v2628, 0
      %v2674 = vsel %vm1581, %v2629, 0
      %v2677 = vsel %vm1581, %v2630, 0
      %v2680 = vsel %vm1630, %v2550, 0
      %2682 = vmatpush.bf16.msra.mxu0 0
      %2683 = vmatpush.bf16.msra.mxu0 0
      %2684 = vmatpush.bf16.msra.mxu0 0
      %2685 = vmatpush.bf16.msra.mxu0 0
      %2686 = vmatpush.bf16.msra.mxu0 0
      %2687 = vmatpush.bf16.msra.mxu0 0
      %2688 = vmatpush.bf16.msra.mxu0 0
      %2689 = vmatpush.bf16.msra.mxu0 %v2680
      %2690 = vmatmul.bf16.gmra.mxu0 %v2632
      %v2691 = vpop.f32.mrf.mxu0
      %v2692 = vadd.f32 0.0, %v2691
      %v2693 = vpop.f32.mrf.mxu0
      %v2694 = vadd.f32 0.0, %v2693
      %2695 = vmatmul.bf16.gmra.mxu0 %v2635
      %v2696 = vpop.f32.mrf.mxu0
      %v2697 = vadd.f32 0.0, %v2696
      %v2698 = vpop.f32.mrf.mxu0
      %v2699 = vadd.f32 0.0, %v2698
      %2700 = vmatmul.bf16.gmra.mxu0 %v2638
      %v2701 = vpop.f32.mrf.mxu0
      %v2702 = vadd.f32 0.0, %v2701
      %v2703 = vpop.f32.mrf.mxu0
      %v2704 = vadd.f32 0.0, %v2703
      %2705 = vmatmul.bf16.gmra.mxu0 %v2641
      %v2706 = vpop.f32.mrf.mxu0
      %v2707 = vadd.f32 0.0, %v2706
      %v2708 = vpop.f32.mrf.mxu0
      %v2709 = vadd.f32 0.0, %v2708
      %2710 = vmatmul.bf16.gmra.mxu0 %v2644
      %v2711 = vpop.f32.mrf.mxu0
      %v2712 = vadd.f32 0.0, %v2711
      %v2713 = vpop.f32.mrf.mxu0
      %v2714 = vadd.f32 0.0, %v2713
      %2715 = vmatmul.bf16.gmra.mxu0 %v2647
      %v2716 = vpop.f32.mrf.mxu0
      %v2717 = vadd.f32 0.0, %v2716
      %v2718 = vpop.f32.mrf.mxu0
      %v2719 = vadd.f32 0.0, %v2718
      %2720 = vmatmul.bf16.gmra.mxu0 %v2650
      %v2721 = vpop.f32.mrf.mxu0
      %v2722 = vadd.f32 0.0, %v2721
      %v2723 = vpop.f32.mrf.mxu0
      %v2724 = vadd.f32 0.0, %v2723
      %2725 = vmatmul.bf16.gmra.mxu0 %v2653
      %v2726 = vpop.f32.mrf.mxu0
      %v2727 = vadd.f32 0.0, %v2726
      %v2728 = vpop.f32.mrf.mxu0
      %v2729 = vadd.f32 0.0, %v2728
      %2730 = vmatmul.bf16.gmra.mxu0 %v2656
      %v2731 = vpop.f32.mrf.mxu0
      %v2732 = vadd.f32 0.0, %v2731
      %v2733 = vpop.f32.mrf.mxu0
      %v2734 = vadd.f32 0.0, %v2733
      %2735 = vmatmul.bf16.gmra.mxu0 %v2659
      %v2736 = vpop.f32.mrf.mxu0
      %v2737 = vadd.f32 0.0, %v2736
      %v2738 = vpop.f32.mrf.mxu0
      %v2739 = vadd.f32 0.0, %v2738
      %2740 = vmatmul.bf16.gmra.mxu0 %v2662
      %v2741 = vpop.f32.mrf.mxu0
      %v2742 = vadd.f32 0.0, %v2741
      %v2743 = vpop.f32.mrf.mxu0
      %v2744 = vadd.f32 0.0, %v2743
      %2745 = vmatmul.bf16.gmra.mxu0 %v2665
      %v2746 = vpop.f32.mrf.mxu0
      %v2747 = vadd.f32 0.0, %v2746
      %v2748 = vpop.f32.mrf.mxu0
      %v2749 = vadd.f32 0.0, %v2748
      %2750 = vmatmul.bf16.gmra.mxu0 %v2668
      %v2751 = vpop.f32.mrf.mxu0
      %v2752 = vadd.f32 0.0, %v2751
      %v2753 = vpop.f32.mrf.mxu0
      %v2754 = vadd.f32 0.0, %v2753
      %2755 = vmatmul.bf16.gmra.mxu0 %v2671
      %v2756 = vpop.f32.mrf.mxu0
      %v2757 = vadd.f32 0.0, %v2756
      %v2758 = vpop.f32.mrf.mxu0
      %v2759 = vadd.f32 0.0, %v2758
      %2760 = vmatmul.bf16.gmra.mxu0 %v2674
      %v2761 = vpop.f32.mrf.mxu0
      %v2762 = vadd.f32 0.0, %v2761
      %v2763 = vpop.f32.mrf.mxu0
      %v2764 = vadd.f32 0.0, %v2763
      %2765 = vmatmul.bf16.gmra.mxu0 %v2677
      %v2766 = vpop.f32.mrf.mxu0
      %v2767 = vadd.f32 0.0, %v2766
      %v2768 = vpop.f32.mrf.mxu0
      %v2769 = vadd.f32 0.0, %v2768
      %2770 = vdwg.mxu0
      %v2771 = vadd.f32 %v2484, %v2692
      %v2772 = vadd.f32 %v2485, %v2694
      %v2773 = vadd.f32 %v2486, %v2697
      %v2774 = vadd.f32 %v2487, %v2699
      %v2775 = vadd.f32 %v2488, %v2702
      %v2776 = vadd.f32 %v2489, %v2704
      %v2777 = vadd.f32 %v2490, %v2707
      %v2778 = vadd.f32 %v2491, %v2709
      %v2779 = vadd.f32 %v2492, %v2712
      %v2780 = vadd.f32 %v2493, %v2714
      %v2781 = vadd.f32 %v2494, %v2717
      %v2782 = vadd.f32 %v2495, %v2719
      %v2783 = vadd.f32 %v2496, %v2722
      %v2784 = vadd.f32 %v2497, %v2724
      %v2785 = vadd.f32 %v2498, %v2727
      %v2786 = vadd.f32 %v2499, %v2729
      %v2787 = vadd.f32 %v2500, %v2732
      %v2788 = vadd.f32 %v2501, %v2734
      %v2789 = vadd.f32 %v2502, %v2737
      %v2790 = vadd.f32 %v2503, %v2739
      %v2791 = vadd.f32 %v2504, %v2742
      %v2792 = vadd.f32 %v2505, %v2744
      %v2793 = vadd.f32 %v2506, %v2747
      %v2794 = vadd.f32 %v2507, %v2749
      %v2795 = vadd.f32 %v2508, %v2752
      %v2796 = vadd.f32 %v2509, %v2754
      %v2797 = vadd.f32 %v2510, %v2757
      %v2798 = vadd.f32 %v2511, %v2759
      %v2799 = vadd.f32 %v2512, %v2762
      %v2800 = vadd.f32 %v2513, %v2764
      %v2801 = vadd.f32 %v2514, %v2767
      %v2802 = vadd.f32 %v2515, %v2769
      %s2803 = scalar_lea.vmem [#allocation2], 296
      %v2804 = vld [vmem:[%s2803] sm:$0xf]
      %v2805 = vld [vmem:[%s2803 + $0x4] sm:$0xf]
      %v2806 = vld [vmem:[%s2803 + $0x8] sm:$0xf]
      %v2807 = vld [vmem:[%s2803 + $0xc] sm:$0xf]
      %v2808 = vld [vmem:[%s2803 + $0x10] sm:$0xf]
      %v2809 = vld [vmem:[%s2803 + $0x14] sm:$0xf]
      %v2810 = vld [vmem:[%s2803 + $0x18] sm:$0xf]
      %v2811 = vld [vmem:[%s2803 + $0x1c] sm:$0xf]
      %v2812 = vld [vmem:[%s2803 + $0x20] sm:$0xf]
      %v2813 = vld [vmem:[%s2803 + $0x24] sm:$0xf]
      %v2814 = vld [vmem:[%s2803 + $0x28] sm:$0xf]
      %v2815 = vld [vmem:[%s2803 + $0x2c] sm:$0xf]
      %v2816 = vld [vmem:[%s2803 + $0x30] sm:$0xf]
      %v2817 = vld [vmem:[%s2803 + $0x34] sm:$0xf]
      %v2818 = vld [vmem:[%s2803 + $0x38] sm:$0xf]
      %v2819 = vld [vmem:[%s2803 + $0x3c] sm:$0xf]
      %v2820 = vld [vmem:[%s2803 + $0x40] sm:$0xf]
      %v2821 = vld [vmem:[%s2803 + $0x44] sm:$0xf]
      %v2822 = vld [vmem:[%s2803 + $0x48] sm:$0xf]
      %v2823 = vld [vmem:[%s2803 + $0x4c] sm:$0xf]
      %v2824 = vld [vmem:[%s2803 + $0x50] sm:$0xf]
      %v2825 = vld [vmem:[%s2803 + $0x54] sm:$0xf]
      %v2826 = vld [vmem:[%s2803 + $0x58] sm:$0xf]
      %v2827 = vld [vmem:[%s2803 + $0x5c] sm:$0xf]
      %v2828 = vld [vmem:[%s2803 + $0x60] sm:$0xf]
      %v2829 = vld [vmem:[%s2803 + $0x64] sm:$0xf]
      %v2830 = vld [vmem:[%s2803 + $0x68] sm:$0xf]
      %v2831 = vld [vmem:[%s2803 + $0x6c] sm:$0xf]
      %v2832 = vld [vmem:[%s2803 + $0x70] sm:$0xf]
      %v2833 = vld [vmem:[%s2803 + $0x74] sm:$0xf]
      %v2834 = vld [vmem:[%s2803 + $0x78] sm:$0xf]
      %v2835 = vld [vmem:[%s2803 + $0x7c] sm:$0xf]
      %s2836 = scalar_lea.vmem %s459, 20
      %v2837 = vld [vmem:[%s2836] sm:$0xf]
      %v2870 = vunpack.c.l.b16 %v2804
      %v2871 = vunpack.c.l.b16 %v2805
      %v2872 = vunpack.c.l.b16 %v2806
      %v2873 = vunpack.c.l.b16 %v2807
      %v2874 = vunpack.c.l.b16 %v2808
      %v2875 = vunpack.c.l.b16 %v2809
      %v2876 = vunpack.c.l.b16 %v2810
      %v2877 = vunpack.c.l.b16 %v2811
      %v2878 = vunpack.c.l.b16 %v2812
      %v2879 = vunpack.c.l.b16 %v2813
      %v2880 = vunpack.c.l.b16 %v2814
      %v2881 = vunpack.c.l.b16 %v2815
      %v2882 = vunpack.c.l.b16 %v2816
      %v2883 = vunpack.c.l.b16 %v2817
      %v2884 = vunpack.c.l.b16 %v2818
      %v2885 = vunpack.c.l.b16 %v2819
      %v2886 = vunpack.c.l.b16 %v2820
      %v2887 = vunpack.c.l.b16 %v2821
      %v2888 = vunpack.c.l.b16 %v2822
      %v2889 = vunpack.c.l.b16 %v2823
      %v2890 = vunpack.c.l.b16 %v2824
      %v2891 = vunpack.c.l.b16 %v2825
      %v2892 = vunpack.c.l.b16 %v2826
      %v2893 = vunpack.c.l.b16 %v2827
      %v2894 = vunpack.c.l.b16 %v2828
      %v2895 = vunpack.c.l.b16 %v2829
      %v2896 = vunpack.c.l.b16 %v2830
      %v2897 = vunpack.c.l.b16 %v2831
      %v2898 = vunpack.c.l.b16 %v2832
      %v2899 = vunpack.c.l.b16 %v2833
      %v2900 = vunpack.c.l.b16 %v2834
      %v2901 = vunpack.c.l.b16 %v2835
      %v2902 = vpack.c.b16 %v2871, %v2870
      %v2903 = vpack.c.b16 %v2873, %v2872
      %v2904 = vpack.c.b16 %v2875, %v2874
      %v2905 = vpack.c.b16 %v2877, %v2876
      %v2906 = vpack.c.b16 %v2879, %v2878
      %v2907 = vpack.c.b16 %v2881, %v2880
      %v2908 = vpack.c.b16 %v2883, %v2882
      %v2909 = vpack.c.b16 %v2885, %v2884
      %v2910 = vpack.c.b16 %v2887, %v2886
      %v2911 = vpack.c.b16 %v2889, %v2888
      %v2912 = vpack.c.b16 %v2891, %v2890
      %v2913 = vpack.c.b16 %v2893, %v2892
      %v2914 = vpack.c.b16 %v2895, %v2894
      %v2915 = vpack.c.b16 %v2897, %v2896
      %v2916 = vpack.c.b16 %v2899, %v2898
      %v2917 = vpack.c.b16 %v2901, %v2900
      %v2919 = vsel %vm1581, %v2902, 0
      %v2922 = vsel %vm1581, %v2903, 0
      %v2925 = vsel %vm1581, %v2904, 0
      %v2928 = vsel %vm1581, %v2905, 0
      %v2931 = vsel %vm1581, %v2906, 0
      %v2934 = vsel %vm1581, %v2907, 0
      %v2937 = vsel %vm1581, %v2908, 0
      %v2940 = vsel %vm1581, %v2909, 0
      %v2943 = vsel %vm1581, %v2910, 0
      %v2946 = vsel %vm1581, %v2911, 0
      %v2949 = vsel %vm1581, %v2912, 0
      %v2952 = vsel %vm1581, %v2913, 0
      %v2955 = vsel %vm1581, %v2914, 0
      %v2958 = vsel %vm1581, %v2915, 0
      %v2961 = vsel %vm1581, %v2916, 0
      %v2964 = vsel %vm1581, %v2917, 0
      %v2967 = vsel %vm1630, %v2837, 0
      %2969 = vmatpush.bf16.msra.mxu0 0
      %2970 = vmatpush.bf16.msra.mxu0 0
      %2971 = vmatpush.bf16.msra.mxu0 0
      %2972 = vmatpush.bf16.msra.mxu0 0
      %2973 = vmatpush.bf16.msra.mxu0 0
      %2974 = vmatpush.bf16.msra.mxu0 0
      %2975 = vmatpush.bf16.msra.mxu0 0
      %2976 = vmatpush.bf16.msra.mxu0 %v2967
      %2977 = vmatmul.bf16.gmra.mxu0 %v2919
      %v2978 = vpop.f32.mrf.mxu0
      %v2979 = vadd.f32 0.0, %v2978
      %v2980 = vpop.f32.mrf.mxu0
      %v2981 = vadd.f32 0.0, %v2980
      %2982 = vmatmul.bf16.gmra.mxu0 %v2922
      %v2983 = vpop.f32.mrf.mxu0
      %v2984 = vadd.f32 0.0, %v2983
      %v2985 = vpop.f32.mrf.mxu0
      %v2986 = vadd.f32 0.0, %v2985
      %2987 = vmatmul.bf16.gmra.mxu0 %v2925
      %v2988 = vpop.f32.mrf.mxu0
      %v2989 = vadd.f32 0.0, %v2988
      %v2990 = vpop.f32.mrf.mxu0
      %v2991 = vadd.f32 0.0, %v2990
      %2992 = vmatmul.bf16.gmra.mxu0 %v2928
      %v2993 = vpop.f32.mrf.mxu0
      %v2994 = vadd.f32 0.0, %v2993
      %v2995 = vpop.f32.mrf.mxu0
      %v2996 = vadd.f32 0.0, %v2995
      %2997 = vmatmul.bf16.gmra.mxu0 %v2931
      %v2998 = vpop.f32.mrf.mxu0
      %v2999 = vadd.f32 0.0, %v2998
      %v3000 = vpop.f32.mrf.mxu0
      %v3001 = vadd.f32 0.0, %v3000
      %3002 = vmatmul.bf16.gmra.mxu0 %v2934
      %v3003 = vpop.f32.mrf.mxu0
      %v3004 = vadd.f32 0.0, %v3003
      %v3005 = vpop.f32.mrf.mxu0
      %v3006 = vadd.f32 0.0, %v3005
      %3007 = vmatmul.bf16.gmra.mxu0 %v2937
      %v3008 = vpop.f32.mrf.mxu0
      %v3009 = vadd.f32 0.0, %v3008
      %v3010 = vpop.f32.mrf.mxu0
      %v3011 = vadd.f32 0.0, %v3010
      %3012 = vmatmul.bf16.gmra.mxu0 %v2940
      %v3013 = vpop.f32.mrf.mxu0
      %v3014 = vadd.f32 0.0, %v3013
      %v3015 = vpop.f32.mrf.mxu0
      %v3016 = vadd.f32 0.0, %v3015
      %3017 = vmatmul.bf16.gmra.mxu0 %v2943
      %v3018 = vpop.f32.mrf.mxu0
      %v3019 = vadd.f32 0.0, %v3018
      %v3020 = vpop.f32.mrf.mxu0
      %v3021 = vadd.f32 0.0, %v3020
      %3022 = vmatmul.bf16.gmra.mxu0 %v2946
      %v3023 = vpop.f32.mrf.mxu0
      %v3024 = vadd.f32 0.0, %v3023
      %v3025 = vpop.f32.mrf.mxu0
      %v3026 = vadd.f32 0.0, %v3025
      %3027 = vmatmul.bf16.gmra.mxu0 %v2949
      %v3028 = vpop.f32.mrf.mxu0
      %v3029 = vadd.f32 0.0, %v3028
      %v3030 = vpop.f32.mrf.mxu0
      %v3031 = vadd.f32 0.0, %v3030
      %3032 = vmatmul.bf16.gmra.mxu0 %v2952
      %v3033 = vpop.f32.mrf.mxu0
      %v3034 = vadd.f32 0.0, %v3033
      %v3035 = vpop.f32.mrf.mxu0
      %v3036 = vadd.f32 0.0, %v3035
      %3037 = vmatmul.bf16.gmra.mxu0 %v2955
      %v3038 = vpop.f32.mrf.mxu0
      %v3039 = vadd.f32 0.0, %v3038
      %v3040 = vpop.f32.mrf.mxu0
      %v3041 = vadd.f32 0.0, %v3040
      %3042 = vmatmul.bf16.gmra.mxu0 %v2958
      %v3043 = vpop.f32.mrf.mxu0
      %v3044 = vadd.f32 0.0, %v3043
      %v3045 = vpop.f32.mrf.mxu0
      %v3046 = vadd.f32 0.0, %v3045
      %3047 = vmatmul.bf16.gmra.mxu0 %v2961
      %v3048 = vpop.f32.mrf.mxu0
      %v3049 = vadd.f32 0.0, %v3048
      %v3050 = vpop.f32.mrf.mxu0
      %v3051 = vadd.f32 0.0, %v3050
      %3052 = vmatmul.bf16.gmra.mxu0 %v2964
      %v3053 = vpop.f32.mrf.mxu0
      %v3054 = vadd.f32 0.0, %v3053
      %v3055 = vpop.f32.mrf.mxu0
      %v3056 = vadd.f32 0.0, %v3055
      %3057 = vdwg.mxu0
      %v3058 = vadd.f32 %v2771, %v2979
      %v3059 = vadd.f32 %v2772, %v2981
      %v3060 = vadd.f32 %v2773, %v2984
      %v3061 = vadd.f32 %v2774, %v2986
      %v3062 = vadd.f32 %v2775, %v2989
      %v3063 = vadd.f32 %v2776, %v2991
      %v3064 = vadd.f32 %v2777, %v2994
      %v3065 = vadd.f32 %v2778, %v2996
      %v3066 = vadd.f32 %v2779, %v2999
      %v3067 = vadd.f32 %v2780, %v3001
      %v3068 = vadd.f32 %v2781, %v3004
      %v3069 = vadd.f32 %v2782, %v3006
      %v3070 = vadd.f32 %v2783, %v3009
      %v3071 = vadd.f32 %v2784, %v3011
      %v3072 = vadd.f32 %v2785, %v3014
      %v3073 = vadd.f32 %v2786, %v3016
      %v3074 = vadd.f32 %v2787, %v3019
      %v3075 = vadd.f32 %v2788, %v3021
      %v3076 = vadd.f32 %v2789, %v3024
      %v3077 = vadd.f32 %v2790, %v3026
      %v3078 = vadd.f32 %v2791, %v3029
      %v3079 = vadd.f32 %v2792, %v3031
      %v3080 = vadd.f32 %v2793, %v3034
      %v3081 = vadd.f32 %v2794, %v3036
      %v3082 = vadd.f32 %v2795, %v3039
      %v3083 = vadd.f32 %v2796, %v3041
      %v3084 = vadd.f32 %v2797, %v3044
      %v3085 = vadd.f32 %v2798, %v3046
      %v3086 = vadd.f32 %v2799, %v3049
      %v3087 = vadd.f32 %v2800, %v3051
      %v3088 = vadd.f32 %v2801, %v3054
      %v3089 = vadd.f32 %v2802, %v3056
      %s3090 = scalar_lea.vmem [#allocation2], 16
      %v3091 = vld [vmem:[%s3090] sm:$0xf]
      %v3092 = vld [vmem:[%s3090 + $0x4] sm:$0xf]
      %v3093 = vld [vmem:[%s3090 + $0x8] sm:$0xf]
      %v3094 = vld [vmem:[%s3090 + $0xc] sm:$0xf]
      %v3095 = vld [vmem:[%s3090 + $0x10] sm:$0xf]
      %v3096 = vld [vmem:[%s3090 + $0x14] sm:$0xf]
      %v3097 = vld [vmem:[%s3090 + $0x18] sm:$0xf]
      %v3098 = vld [vmem:[%s3090 + $0x1c] sm:$0xf]
      %v3099 = vld [vmem:[%s3090 + $0x20] sm:$0xf]
      %v3100 = vld [vmem:[%s3090 + $0x24] sm:$0xf]
      %v3101 = vld [vmem:[%s3090 + $0x28] sm:$0xf]
      %v3102 = vld [vmem:[%s3090 + $0x2c] sm:$0xf]
      %v3103 = vld [vmem:[%s3090 + $0x30] sm:$0xf]
      %v3104 = vld [vmem:[%s3090 + $0x34] sm:$0xf]
      %v3105 = vld [vmem:[%s3090 + $0x38] sm:$0xf]
      %v3106 = vld [vmem:[%s3090 + $0x3c] sm:$0xf]
      %v3107 = vld [vmem:[%s3090 + $0x40] sm:$0xf]
      %v3108 = vld [vmem:[%s3090 + $0x44] sm:$0xf]
      %v3109 = vld [vmem:[%s3090 + $0x48] sm:$0xf]
      %v3110 = vld [vmem:[%s3090 + $0x4c] sm:$0xf]
      %v3111 = vld [vmem:[%s3090 + $0x50] sm:$0xf]
      %v3112 = vld [vmem:[%s3090 + $0x54] sm:$0xf]
      %v3113 = vld [vmem:[%s3090 + $0x58] sm:$0xf]
      %v3114 = vld [vmem:[%s3090 + $0x5c] sm:$0xf]
      %v3115 = vld [vmem:[%s3090 + $0x60] sm:$0xf]
      %v3116 = vld [vmem:[%s3090 + $0x64] sm:$0xf]
      %v3117 = vld [vmem:[%s3090 + $0x68] sm:$0xf]
      %v3118 = vld [vmem:[%s3090 + $0x6c] sm:$0xf]
      %v3119 = vld [vmem:[%s3090 + $0x70] sm:$0xf]
      %v3120 = vld [vmem:[%s3090 + $0x74] sm:$0xf]
      %v3121 = vld [vmem:[%s3090 + $0x78] sm:$0xf]
      %v3122 = vld [vmem:[%s3090 + $0x7c] sm:$0xf]
      %s3123 = scalar_lea.vmem %s459, 24
      %v3124 = vld [vmem:[%s3123] sm:$0xf]
      %v3157 = vunpack.c.l.b16 %v3091
      %v3158 = vunpack.c.l.b16 %v3092
      %v3159 = vunpack.c.l.b16 %v3093
      %v3160 = vunpack.c.l.b16 %v3094
      %v3161 = vunpack.c.l.b16 %v3095
      %v3162 = vunpack.c.l.b16 %v3096
      %v3163 = vunpack.c.l.b16 %v3097
      %v3164 = vunpack.c.l.b16 %v3098
      %v3165 = vunpack.c.l.b16 %v3099
      %v3166 = vunpack.c.l.b16 %v3100
      %v3167 = vunpack.c.l.b16 %v3101
      %v3168 = vunpack.c.l.b16 %v3102
      %v3169 = vunpack.c.l.b16 %v3103
      %v3170 = vunpack.c.l.b16 %v3104
      %v3171 = vunpack.c.l.b16 %v3105
      %v3172 = vunpack.c.l.b16 %v3106
      %v3173 = vunpack.c.l.b16 %v3107
      %v3174 = vunpack.c.l.b16 %v3108
      %v3175 = vunpack.c.l.b16 %v3109
      %v3176 = vunpack.c.l.b16 %v3110
      %v3177 = vunpack.c.l.b16 %v3111
      %v3178 = vunpack.c.l.b16 %v3112
      %v3179 = vunpack.c.l.b16 %v3113
      %v3180 = vunpack.c.l.b16 %v3114
      %v3181 = vunpack.c.l.b16 %v3115
      %v3182 = vunpack.c.l.b16 %v3116
      %v3183 = vunpack.c.l.b16 %v3117
      %v3184 = vunpack.c.l.b16 %v3118
      %v3185 = vunpack.c.l.b16 %v3119
      %v3186 = vunpack.c.l.b16 %v3120
      %v3187 = vunpack.c.l.b16 %v3121
      %v3188 = vunpack.c.l.b16 %v3122
      %v3189 = vpack.c.b16 %v3158, %v3157
      %v3190 = vpack.c.b16 %v3160, %v3159
      %v3191 = vpack.c.b16 %v3162, %v3161
      %v3192 = vpack.c.b16 %v3164, %v3163
      %v3193 = vpack.c.b16 %v3166, %v3165
      %v3194 = vpack.c.b16 %v3168, %v3167
      %v3195 = vpack.c.b16 %v3170, %v3169
      %v3196 = vpack.c.b16 %v3172, %v3171
      %v3197 = vpack.c.b16 %v3174, %v3173
      %v3198 = vpack.c.b16 %v3176, %v3175
      %v3199 = vpack.c.b16 %v3178, %v3177
      %v3200 = vpack.c.b16 %v3180, %v3179
      %v3201 = vpack.c.b16 %v3182, %v3181
      %v3202 = vpack.c.b16 %v3184, %v3183
      %v3203 = vpack.c.b16 %v3186, %v3185
      %v3204 = vpack.c.b16 %v3188, %v3187
      %v3206 = vsel %vm1581, %v3189, 0
      %v3209 = vsel %vm1581, %v3190, 0
      %v3212 = vsel %vm1581, %v3191, 0
      %v3215 = vsel %vm1581, %v3192, 0
      %v3218 = vsel %vm1581, %v3193, 0
      %v3221 = vsel %vm1581, %v3194, 0
      %v3224 = vsel %vm1581, %v3195, 0
      %v3227 = vsel %vm1581, %v3196, 0
      %v3230 = vsel %vm1581, %v3197, 0
      %v3233 = vsel %vm1581, %v3198, 0
      %v3236 = vsel %vm1581, %v3199, 0
      %v3239 = vsel %vm1581, %v3200, 0
      %v3242 = vsel %vm1581, %v3201, 0
      %v3245 = vsel %vm1581, %v3202, 0
      %v3248 = vsel %vm1581, %v3203, 0
      %v3251 = vsel %vm1581, %v3204, 0
      %v3254 = vsel %vm1630, %v3124, 0
      %3256 = vmatpush.bf16.msra.mxu0 0
      %3257 = vmatpush.bf16.msra.mxu0 0
      %3258 = vmatpush.bf16.msra.mxu0 0
      %3259 = vmatpush.bf16.msra.mxu0 0
      %3260 = vmatpush.bf16.msra.mxu0 0
      %3261 = vmatpush.bf16.msra.mxu0 0
      %3262 = vmatpush.bf16.msra.mxu0 0
      %3263 = vmatpush.bf16.msra.mxu0 %v3254
      %3264 = vmatmul.bf16.gmra.mxu0 %v3206
      %v3265 = vpop.f32.mrf.mxu0
      %v3266 = vadd.f32 0.0, %v3265
      %v3267 = vpop.f32.mrf.mxu0
      %v3268 = vadd.f32 0.0, %v3267
      %3269 = vmatmul.bf16.gmra.mxu0 %v3209
      %v3270 = vpop.f32.mrf.mxu0
      %v3271 = vadd.f32 0.0, %v3270
      %v3272 = vpop.f32.mrf.mxu0
      %v3273 = vadd.f32 0.0, %v3272
      %3274 = vmatmul.bf16.gmra.mxu0 %v3212
      %v3275 = vpop.f32.mrf.mxu0
      %v3276 = vadd.f32 0.0, %v3275
      %v3277 = vpop.f32.mrf.mxu0
      %v3278 = vadd.f32 0.0, %v3277
      %3279 = vmatmul.bf16.gmra.mxu0 %v3215
      %v3280 = vpop.f32.mrf.mxu0
      %v3281 = vadd.f32 0.0, %v3280
      %v3282 = vpop.f32.mrf.mxu0
      %v3283 = vadd.f32 0.0, %v3282
      %3284 = vmatmul.bf16.gmra.mxu0 %v3218
      %v3285 = vpop.f32.mrf.mxu0
      %v3286 = vadd.f32 0.0, %v3285
      %v3287 = vpop.f32.mrf.mxu0
      %v3288 = vadd.f32 0.0, %v3287
      %3289 = vmatmul.bf16.gmra.mxu0 %v3221
      %v3290 = vpop.f32.mrf.mxu0
      %v3291 = vadd.f32 0.0, %v3290
      %v3292 = vpop.f32.mrf.mxu0
      %v3293 = vadd.f32 0.0, %v3292
      %3294 = vmatmul.bf16.gmra.mxu0 %v3224
      %v3295 = vpop.f32.mrf.mxu0
      %v3296 = vadd.f32 0.0, %v3295
      %v3297 = vpop.f32.mrf.mxu0
      %v3298 = vadd.f32 0.0, %v3297
      %3299 = vmatmul.bf16.gmra.mxu0 %v3227
      %v3300 = vpop.f32.mrf.mxu0
      %v3301 = vadd.f32 0.0, %v3300
      %v3302 = vpop.f32.mrf.mxu0
      %v3303 = vadd.f32 0.0, %v3302
      %3304 = vmatmul.bf16.gmra.mxu0 %v3230
      %v3305 = vpop.f32.mrf.mxu0
      %v3306 = vadd.f32 0.0, %v3305
      %v3307 = vpop.f32.mrf.mxu0
      %v3308 = vadd.f32 0.0, %v3307
      %3309 = vmatmul.bf16.gmra.mxu0 %v3233
      %v3310 = vpop.f32.mrf.mxu0
      %v3311 = vadd.f32 0.0, %v3310
      %v3312 = vpop.f32.mrf.mxu0
      %v3313 = vadd.f32 0.0, %v3312
      %3314 = vmatmul.bf16.gmra.mxu0 %v3236
      %v3315 = vpop.f32.mrf.mxu0
      %v3316 = vadd.f32 0.0, %v3315
      %v3317 = vpop.f32.mrf.mxu0
      %v3318 = vadd.f32 0.0, %v3317
      %3319 = vmatmul.bf16.gmra.mxu0 %v3239
      %v3320 = vpop.f32.mrf.mxu0
      %v3321 = vadd.f32 0.0, %v3320
      %v3322 = vpop.f32.mrf.mxu0
      %v3323 = vadd.f32 0.0, %v3322
      %3324 = vmatmul.bf16.gmra.mxu0 %v3242
      %v3325 = vpop.f32.mrf.mxu0
      %v3326 = vadd.f32 0.0, %v3325
      %v3327 = vpop.f32.mrf.mxu0
      %v3328 = vadd.f32 0.0, %v3327
      %3329 = vmatmul.bf16.gmra.mxu0 %v3245
      %v3330 = vpop.f32.mrf.mxu0
      %v3331 = vadd.f32 0.0, %v3330
      %v3332 = vpop.f32.mrf.mxu0
      %v3333 = vadd.f32 0.0, %v3332
      %3334 = vmatmul.bf16.gmra.mxu0 %v3248
      %v3335 = vpop.f32.mrf.mxu0
      %v3336 = vadd.f32 0.0, %v3335
      %v3337 = vpop.f32.mrf.mxu0
      %v3338 = vadd.f32 0.0, %v3337
      %3339 = vmatmul.bf16.gmra.mxu0 %v3251
      %v3340 = vpop.f32.mrf.mxu0
      %v3341 = vadd.f32 0.0, %v3340
      %v3342 = vpop.f32.mrf.mxu0
      %v3343 = vadd.f32 0.0, %v3342
      %3344 = vdwg.mxu0
      %v3345 = vadd.f32 %v3058, %v3266
      %v3346 = vadd.f32 %v3059, %v3268
      %v3347 = vadd.f32 %v3060, %v3271
      %v3348 = vadd.f32 %v3061, %v3273
      %v3349 = vadd.f32 %v3062, %v3276
      %v3350 = vadd.f32 %v3063, %v3278
      %v3351 = vadd.f32 %v3064, %v3281
      %v3352 = vadd.f32 %v3065, %v3283
      %v3353 = vadd.f32 %v3066, %v3286
      %v3354 = vadd.f32 %v3067, %v3288
      %v3355 = vadd.f32 %v3068, %v3291
      %v3356 = vadd.f32 %v3069, %v3293
      %v3357 = vadd.f32 %v3070, %v3296
      %v3358 = vadd.f32 %v3071, %v3298
      %v3359 = vadd.f32 %v3072, %v3301
      %v3360 = vadd.f32 %v3073, %v3303
      %v3361 = vadd.f32 %v3074, %v3306
      %v3362 = vadd.f32 %v3075, %v3308
      %v3363 = vadd.f32 %v3076, %v3311
      %v3364 = vadd.f32 %v3077, %v3313
      %v3365 = vadd.f32 %v3078, %v3316
      %v3366 = vadd.f32 %v3079, %v3318
      %v3367 = vadd.f32 %v3080, %v3321
      %v3368 = vadd.f32 %v3081, %v3323
      %v3369 = vadd.f32 %v3082, %v3326
      %v3370 = vadd.f32 %v3083, %v3328
      %v3371 = vadd.f32 %v3084, %v3331
      %v3372 = vadd.f32 %v3085, %v3333
      %v3373 = vadd.f32 %v3086, %v3336
      %v3374 = vadd.f32 %v3087, %v3338
      %v3375 = vadd.f32 %v3088, %v3341
      %v3376 = vadd.f32 %v3089, %v3343
      %s3377 = scalar_lea.vmem [#allocation2], 160
      %v3378 = vld [vmem:[%s3377] sm:$0xf]
      %v3379 = vld [vmem:[%s3377 + $0x4] sm:$0xf]
      %v3380 = vld [vmem:[%s3377 + $0x8] sm:$0xf]
      %v3381 = vld [vmem:[%s3377 + $0xc] sm:$0xf]
      %v3382 = vld [vmem:[%s3377 + $0x10] sm:$0xf]
      %v3383 = vld [vmem:[%s3377 + $0x14] sm:$0xf]
      %v3384 = vld [vmem:[%s3377 + $0x18] sm:$0xf]
      %v3385 = vld [vmem:[%s3377 + $0x1c] sm:$0xf]
      %v3386 = vld [vmem:[%s3377 + $0x20] sm:$0xf]
      %v3387 = vld [vmem:[%s3377 + $0x24] sm:$0xf]
      %v3388 = vld [vmem:[%s3377 + $0x28] sm:$0xf]
      %v3389 = vld [vmem:[%s3377 + $0x2c] sm:$0xf]
      %v3390 = vld [vmem:[%s3377 + $0x30] sm:$0xf]
      %v3391 = vld [vmem:[%s3377 + $0x34] sm:$0xf]
      %v3392 = vld [vmem:[%s3377 + $0x38] sm:$0xf]
      %v3393 = vld [vmem:[%s3377 + $0x3c] sm:$0xf]
      %v3394 = vld [vmem:[%s3377 + $0x40] sm:$0xf]
      %v3395 = vld [vmem:[%s3377 + $0x44] sm:$0xf]
      %v3396 = vld [vmem:[%s3377 + $0x48] sm:$0xf]
      %v3397 = vld [vmem:[%s3377 + $0x4c] sm:$0xf]
      %v3398 = vld [vmem:[%s3377 + $0x50] sm:$0xf]
      %v3399 = vld [vmem:[%s3377 + $0x54] sm:$0xf]
      %v3400 = vld [vmem:[%s3377 + $0x58] sm:$0xf]
      %v3401 = vld [vmem:[%s3377 + $0x5c] sm:$0xf]
      %v3402 = vld [vmem:[%s3377 + $0x60] sm:$0xf]
      %v3403 = vld [vmem:[%s3377 + $0x64] sm:$0xf]
      %v3404 = vld [vmem:[%s3377 + $0x68] sm:$0xf]
      %v3405 = vld [vmem:[%s3377 + $0x6c] sm:$0xf]
      %v3406 = vld [vmem:[%s3377 + $0x70] sm:$0xf]
      %v3407 = vld [vmem:[%s3377 + $0x74] sm:$0xf]
      %v3408 = vld [vmem:[%s3377 + $0x78] sm:$0xf]
      %v3409 = vld [vmem:[%s3377 + $0x7c] sm:$0xf]
      %s3410 = scalar_lea.vmem %s459, 28
      %v3411 = vld [vmem:[%s3410] sm:$0xf]
      %v3444 = vunpack.c.l.b16 %v3378
      %v3445 = vunpack.c.l.b16 %v3379
      %v3446 = vunpack.c.l.b16 %v3380
      %v3447 = vunpack.c.l.b16 %v3381
      %v3448 = vunpack.c.l.b16 %v3382
      %v3449 = vunpack.c.l.b16 %v3383
      %v3450 = vunpack.c.l.b16 %v3384
      %v3451 = vunpack.c.l.b16 %v3385
      %v3452 = vunpack.c.l.b16 %v3386
      %v3453 = vunpack.c.l.b16 %v3387
      %v3454 = vunpack.c.l.b16 %v3388
      %v3455 = vunpack.c.l.b16 %v3389
      %v3456 = vunpack.c.l.b16 %v3390
      %v3457 = vunpack.c.l.b16 %v3391
      %v3458 = vunpack.c.l.b16 %v3392
      %v3459 = vunpack.c.l.b16 %v3393
      %v3460 = vunpack.c.l.b16 %v3394
      %v3461 = vunpack.c.l.b16 %v3395
      %v3462 = vunpack.c.l.b16 %v3396
      %v3463 = vunpack.c.l.b16 %v3397
      %v3464 = vunpack.c.l.b16 %v3398
      %v3465 = vunpack.c.l.b16 %v3399
      %v3466 = vunpack.c.l.b16 %v3400
      %v3467 = vunpack.c.l.b16 %v3401
      %v3468 = vunpack.c.l.b16 %v3402
      %v3469 = vunpack.c.l.b16 %v3403
      %v3470 = vunpack.c.l.b16 %v3404
      %v3471 = vunpack.c.l.b16 %v3405
      %v3472 = vunpack.c.l.b16 %v3406
      %v3473 = vunpack.c.l.b16 %v3407
      %v3474 = vunpack.c.l.b16 %v3408
      %v3475 = vunpack.c.l.b16 %v3409
      %v3476 = vpack.c.b16 %v3445, %v3444
      %v3477 = vpack.c.b16 %v3447, %v3446
      %v3478 = vpack.c.b16 %v3449, %v3448
      %v3479 = vpack.c.b16 %v3451, %v3450
      %v3480 = vpack.c.b16 %v3453, %v3452
      %v3481 = vpack.c.b16 %v3455, %v3454
      %v3482 = vpack.c.b16 %v3457, %v3456
      %v3483 = vpack.c.b16 %v3459, %v3458
      %v3484 = vpack.c.b16 %v3461, %v3460
      %v3485 = vpack.c.b16 %v3463, %v3462
      %v3486 = vpack.c.b16 %v3465, %v3464
      %v3487 = vpack.c.b16 %v3467, %v3466
      %v3488 = vpack.c.b16 %v3469, %v3468
      %v3489 = vpack.c.b16 %v3471, %v3470
      %v3490 = vpack.c.b16 %v3473, %v3472
      %v3491 = vpack.c.b16 %v3475, %v3474
      %v3493 = vsel %vm1581, %v3476, 0
      %v3496 = vsel %vm1581, %v3477, 0
      %v3499 = vsel %vm1581, %v3478, 0
      %v3502 = vsel %vm1581, %v3479, 0
      %v3505 = vsel %vm1581, %v3480, 0
      %v3508 = vsel %vm1581, %v3481, 0
      %v3511 = vsel %vm1581, %v3482, 0
      %v3514 = vsel %vm1581, %v3483, 0
      %v3517 = vsel %vm1581, %v3484, 0
      %v3520 = vsel %vm1581, %v3485, 0
      %v3523 = vsel %vm1581, %v3486, 0
      %v3526 = vsel %vm1581, %v3487, 0
      %v3529 = vsel %vm1581, %v3488, 0
      %v3532 = vsel %vm1581, %v3489, 0
      %v3535 = vsel %vm1581, %v3490, 0
      %v3538 = vsel %vm1581, %v3491, 0
      %v3541 = vsel %vm1630, %v3411, 0
      %3543 = vmatpush.bf16.msra.mxu0 0
      %3544 = vmatpush.bf16.msra.mxu0 0
      %3545 = vmatpush.bf16.msra.mxu0 0
      %3546 = vmatpush.bf16.msra.mxu0 0
      %3547 = vmatpush.bf16.msra.mxu0 0
      %3548 = vmatpush.bf16.msra.mxu0 0
      %3549 = vmatpush.bf16.msra.mxu0 0
      %3550 = vmatpush.bf16.msra.mxu0 %v3541
      %3551 = vmatmul.bf16.gmra.mxu0 %v3493
      %v3552 = vpop.f32.mrf.mxu0
      %v3553 = vadd.f32 0.0, %v3552
      %v3554 = vpop.f32.mrf.mxu0
      %v3555 = vadd.f32 0.0, %v3554
      %3556 = vmatmul.bf16.gmra.mxu0 %v3496
      %v3557 = vpop.f32.mrf.mxu0
      %v3558 = vadd.f32 0.0, %v3557
      %v3559 = vpop.f32.mrf.mxu0
      %v3560 = vadd.f32 0.0, %v3559
      %3561 = vmatmul.bf16.gmra.mxu0 %v3499
      %v3562 = vpop.f32.mrf.mxu0
      %v3563 = vadd.f32 0.0, %v3562
      %v3564 = vpop.f32.mrf.mxu0
      %v3565 = vadd.f32 0.0, %v3564
      %3566 = vmatmul.bf16.gmra.mxu0 %v3502
      %v3567 = vpop.f32.mrf.mxu0
      %v3568 = vadd.f32 0.0, %v3567
      %v3569 = vpop.f32.mrf.mxu0
      %v3570 = vadd.f32 0.0, %v3569
      %3571 = vmatmul.bf16.gmra.mxu0 %v3505
      %v3572 = vpop.f32.mrf.mxu0
      %v3573 = vadd.f32 0.0, %v3572
      %v3574 = vpop.f32.mrf.mxu0
      %v3575 = vadd.f32 0.0, %v3574
      %3576 = vmatmul.bf16.gmra.mxu0 %v3508
      %v3577 = vpop.f32.mrf.mxu0
      %v3578 = vadd.f32 0.0, %v3577
      %v3579 = vpop.f32.mrf.mxu0
      %v3580 = vadd.f32 0.0, %v3579
      %3581 = vmatmul.bf16.gmra.mxu0 %v3511
      %v3582 = vpop.f32.mrf.mxu0
      %v3583 = vadd.f32 0.0, %v3582
      %v3584 = vpop.f32.mrf.mxu0
      %v3585 = vadd.f32 0.0, %v3584
      %3586 = vmatmul.bf16.gmra.mxu0 %v3514
      %v3587 = vpop.f32.mrf.mxu0
      %v3588 = vadd.f32 0.0, %v3587
      %v3589 = vpop.f32.mrf.mxu0
      %v3590 = vadd.f32 0.0, %v3589
      %3591 = vmatmul.bf16.gmra.mxu0 %v3517
      %v3592 = vpop.f32.mrf.mxu0
      %v3593 = vadd.f32 0.0, %v3592
      %v3594 = vpop.f32.mrf.mxu0
      %v3595 = vadd.f32 0.0, %v3594
      %3596 = vmatmul.bf16.gmra.mxu0 %v3520
      %v3597 = vpop.f32.mrf.mxu0
      %v3598 = vadd.f32 0.0, %v3597
      %v3599 = vpop.f32.mrf.mxu0
      %v3600 = vadd.f32 0.0, %v3599
      %3601 = vmatmul.bf16.gmra.mxu0 %v3523
      %v3602 = vpop.f32.mrf.mxu0
      %v3603 = vadd.f32 0.0, %v3602
      %v3604 = vpop.f32.mrf.mxu0
      %v3605 = vadd.f32 0.0, %v3604
      %3606 = vmatmul.bf16.gmra.mxu0 %v3526
      %v3607 = vpop.f32.mrf.mxu0
      %v3608 = vadd.f32 0.0, %v3607
      %v3609 = vpop.f32.mrf.mxu0
      %v3610 = vadd.f32 0.0, %v3609
      %3611 = vmatmul.bf16.gmra.mxu0 %v3529
      %v3612 = vpop.f32.mrf.mxu0
      %v3613 = vadd.f32 0.0, %v3612
      %v3614 = vpop.f32.mrf.mxu0
      %v3615 = vadd.f32 0.0, %v3614
      %3616 = vmatmul.bf16.gmra.mxu0 %v3532
      %v3617 = vpop.f32.mrf.mxu0
      %v3618 = vadd.f32 0.0, %v3617
      %v3619 = vpop.f32.mrf.mxu0
      %v3620 = vadd.f32 0.0, %v3619
      %3621 = vmatmul.bf16.gmra.mxu0 %v3535
      %v3622 = vpop.f32.mrf.mxu0
      %v3623 = vadd.f32 0.0, %v3622
      %v3624 = vpop.f32.mrf.mxu0
      %v3625 = vadd.f32 0.0, %v3624
      %3626 = vmatmul.bf16.gmra.mxu0 %v3538
      %v3627 = vpop.f32.mrf.mxu0
      %v3628 = vadd.f32 0.0, %v3627
      %v3629 = vpop.f32.mrf.mxu0
      %v3630 = vadd.f32 0.0, %v3629
      %3631 = vdwg.mxu0
      %v3632 = vadd.f32 %v3345, %v3553
      %v3633 = vadd.f32 %v3346, %v3555
      %v3634 = vadd.f32 %v3347, %v3558
      %v3635 = vadd.f32 %v3348, %v3560
      %v3636 = vadd.f32 %v3349, %v3563
      %v3637 = vadd.f32 %v3350, %v3565
      %v3638 = vadd.f32 %v3351, %v3568
      %v3639 = vadd.f32 %v3352, %v3570
      %v3640 = vadd.f32 %v3353, %v3573
      %v3641 = vadd.f32 %v3354, %v3575
      %v3642 = vadd.f32 %v3355, %v3578
      %v3643 = vadd.f32 %v3356, %v3580
      %v3644 = vadd.f32 %v3357, %v3583
      %v3645 = vadd.f32 %v3358, %v3585
      %v3646 = vadd.f32 %v3359, %v3588
      %v3647 = vadd.f32 %v3360, %v3590
      %v3648 = vadd.f32 %v3361, %v3593
      %v3649 = vadd.f32 %v3362, %v3595
      %v3650 = vadd.f32 %v3363, %v3598
      %v3651 = vadd.f32 %v3364, %v3600
      %v3652 = vadd.f32 %v3365, %v3603
      %v3653 = vadd.f32 %v3366, %v3605
      %v3654 = vadd.f32 %v3367, %v3608
      %v3655 = vadd.f32 %v3368, %v3610
      %v3656 = vadd.f32 %v3369, %v3613
      %v3657 = vadd.f32 %v3370, %v3615
      %v3658 = vadd.f32 %v3371, %v3618
      %v3659 = vadd.f32 %v3372, %v3620
      %v3660 = vadd.f32 %v3373, %v3623
      %v3661 = vadd.f32 %v3374, %v3625
      %v3662 = vadd.f32 %v3375, %v3628
      %v3663 = vadd.f32 %v3376, %v3630
      %s3664 = scalar_lea.vmem [#allocation2], 304
      %v3665 = vld [vmem:[%s3664] sm:$0xf]
      %v3666 = vld [vmem:[%s3664 + $0x4] sm:$0xf]
      %v3667 = vld [vmem:[%s3664 + $0x8] sm:$0xf]
      %v3668 = vld [vmem:[%s3664 + $0xc] sm:$0xf]
      %v3669 = vld [vmem:[%s3664 + $0x10] sm:$0xf]
      %v3670 = vld [vmem:[%s3664 + $0x14] sm:$0xf]
      %v3671 = vld [vmem:[%s3664 + $0x18] sm:$0xf]
      %v3672 = vld [vmem:[%s3664 + $0x1c] sm:$0xf]
      %v3673 = vld [vmem:[%s3664 + $0x20] sm:$0xf]
      %v3674 = vld [vmem:[%s3664 + $0x24] sm:$0xf]
      %v3675 = vld [vmem:[%s3664 + $0x28] sm:$0xf]
      %v3676 = vld [vmem:[%s3664 + $0x2c] sm:$0xf]
      %v3677 = vld [vmem:[%s3664 + $0x30] sm:$0xf]
      %v3678 = vld [vmem:[%s3664 + $0x34] sm:$0xf]
      %v3679 = vld [vmem:[%s3664 + $0x38] sm:$0xf]
      %v3680 = vld [vmem:[%s3664 + $0x3c] sm:$0xf]
      %v3681 = vld [vmem:[%s3664 + $0x40] sm:$0xf]
      %v3682 = vld [vmem:[%s3664 + $0x44] sm:$0xf]
      %v3683 = vld [vmem:[%s3664 + $0x48] sm:$0xf]
      %v3684 = vld [vmem:[%s3664 + $0x4c] sm:$0xf]
      %v3685 = vld [vmem:[%s3664 + $0x50] sm:$0xf]
      %v3686 = vld [vmem:[%s3664 + $0x54] sm:$0xf]
      %v3687 = vld [vmem:[%s3664 + $0x58] sm:$0xf]
      %v3688 = vld [vmem:[%s3664 + $0x5c] sm:$0xf]
      %v3689 = vld [vmem:[%s3664 + $0x60] sm:$0xf]
      %v3690 = vld [vmem:[%s3664 + $0x64] sm:$0xf]
      %v3691 = vld [vmem:[%s3664 + $0x68] sm:$0xf]
      %v3692 = vld [vmem:[%s3664 + $0x6c] sm:$0xf]
      %v3693 = vld [vmem:[%s3664 + $0x70] sm:$0xf]
      %v3694 = vld [vmem:[%s3664 + $0x74] sm:$0xf]
      %v3695 = vld [vmem:[%s3664 + $0x78] sm:$0xf]
      %v3696 = vld [vmem:[%s3664 + $0x7c] sm:$0xf]
      %s3697 = scalar_lea.vmem %s459, 32
      %v3698 = vld [vmem:[%s3697] sm:$0xf]
      %v3731 = vunpack.c.l.b16 %v3665
      %v3732 = vunpack.c.l.b16 %v3666
      %v3733 = vunpack.c.l.b16 %v3667
      %v3734 = vunpack.c.l.b16 %v3668
      %v3735 = vunpack.c.l.b16 %v3669
      %v3736 = vunpack.c.l.b16 %v3670
      %v3737 = vunpack.c.l.b16 %v3671
      %v3738 = vunpack.c.l.b16 %v3672
      %v3739 = vunpack.c.l.b16 %v3673
      %v3740 = vunpack.c.l.b16 %v3674
      %v3741 = vunpack.c.l.b16 %v3675
      %v3742 = vunpack.c.l.b16 %v3676
      %v3743 = vunpack.c.l.b16 %v3677
      %v3744 = vunpack.c.l.b16 %v3678
      %v3745 = vunpack.c.l.b16 %v3679
      %v3746 = vunpack.c.l.b16 %v3680
      %v3747 = vunpack.c.l.b16 %v3681
      %v3748 = vunpack.c.l.b16 %v3682
      %v3749 = vunpack.c.l.b16 %v3683
      %v3750 = vunpack.c.l.b16 %v3684
      %v3751 = vunpack.c.l.b16 %v3685
      %v3752 = vunpack.c.l.b16 %v3686
      %v3753 = vunpack.c.l.b16 %v3687
      %v3754 = vunpack.c.l.b16 %v3688
      %v3755 = vunpack.c.l.b16 %v3689
      %v3756 = vunpack.c.l.b16 %v3690
      %v3757 = vunpack.c.l.b16 %v3691
      %v3758 = vunpack.c.l.b16 %v3692
      %v3759 = vunpack.c.l.b16 %v3693
      %v3760 = vunpack.c.l.b16 %v3694
      %v3761 = vunpack.c.l.b16 %v3695
      %v3762 = vunpack.c.l.b16 %v3696
      %v3763 = vpack.c.b16 %v3732, %v3731
      %v3764 = vpack.c.b16 %v3734, %v3733
      %v3765 = vpack.c.b16 %v3736, %v3735
      %v3766 = vpack.c.b16 %v3738, %v3737
      %v3767 = vpack.c.b16 %v3740, %v3739
      %v3768 = vpack.c.b16 %v3742, %v3741
      %v3769 = vpack.c.b16 %v3744, %v3743
      %v3770 = vpack.c.b16 %v3746, %v3745
      %v3771 = vpack.c.b16 %v3748, %v3747
      %v3772 = vpack.c.b16 %v3750, %v3749
      %v3773 = vpack.c.b16 %v3752, %v3751
      %v3774 = vpack.c.b16 %v3754, %v3753
      %v3775 = vpack.c.b16 %v3756, %v3755
      %v3776 = vpack.c.b16 %v3758, %v3757
      %v3777 = vpack.c.b16 %v3760, %v3759
      %v3778 = vpack.c.b16 %v3762, %v3761
      %v3780 = vsel %vm1581, %v3763, 0
      %v3783 = vsel %vm1581, %v3764, 0
      %v3786 = vsel %vm1581, %v3765, 0
      %v3789 = vsel %vm1581, %v3766, 0
      %v3792 = vsel %vm1581, %v3767, 0
      %v3795 = vsel %vm1581, %v3768, 0
      %v3798 = vsel %vm1581, %v3769, 0
      %v3801 = vsel %vm1581, %v3770, 0
      %v3804 = vsel %vm1581, %v3771, 0
      %v3807 = vsel %vm1581, %v3772, 0
      %v3810 = vsel %vm1581, %v3773, 0
      %v3813 = vsel %vm1581, %v3774, 0
      %v3816 = vsel %vm1581, %v3775, 0
      %v3819 = vsel %vm1581, %v3776, 0
      %v3822 = vsel %vm1581, %v3777, 0
      %v3825 = vsel %vm1581, %v3778, 0
      %v3828 = vsel %vm1630, %v3698, 0
      %3830 = vmatpush.bf16.msra.mxu0 0
      %3831 = vmatpush.bf16.msra.mxu0 0
      %3832 = vmatpush.bf16.msra.mxu0 0
      %3833 = vmatpush.bf16.msra.mxu0 0
      %3834 = vmatpush.bf16.msra.mxu0 0
      %3835 = vmatpush.bf16.msra.mxu0 0
      %3836 = vmatpush.bf16.msra.mxu0 0
      %3837 = vmatpush.bf16.msra.mxu0 %v3828
      %3838 = vmatmul.bf16.gmra.mxu0 %v3780
      %v3839 = vpop.f32.mrf.mxu0
      %v3840 = vadd.f32 0.0, %v3839
      %v3841 = vpop.f32.mrf.mxu0
      %v3842 = vadd.f32 0.0, %v3841
      %3843 = vmatmul.bf16.gmra.mxu0 %v3783
      %v3844 = vpop.f32.mrf.mxu0
      %v3845 = vadd.f32 0.0, %v3844
      %v3846 = vpop.f32.mrf.mxu0
      %v3847 = vadd.f32 0.0, %v3846
      %3848 = vmatmul.bf16.gmra.mxu0 %v3786
      %v3849 = vpop.f32.mrf.mxu0
      %v3850 = vadd.f32 0.0, %v3849
      %v3851 = vpop.f32.mrf.mxu0
      %v3852 = vadd.f32 0.0, %v3851
      %3853 = vmatmul.bf16.gmra.mxu0 %v3789
      %v3854 = vpop.f32.mrf.mxu0
      %v3855 = vadd.f32 0.0, %v3854
      %v3856 = vpop.f32.mrf.mxu0
      %v3857 = vadd.f32 0.0, %v3856
      %3858 = vmatmul.bf16.gmra.mxu0 %v3792
      %v3859 = vpop.f32.mrf.mxu0
      %v3860 = vadd.f32 0.0, %v3859
      %v3861 = vpop.f32.mrf.mxu0
      %v3862 = vadd.f32 0.0, %v3861
      %3863 = vmatmul.bf16.gmra.mxu0 %v3795
      %v3864 = vpop.f32.mrf.mxu0
      %v3865 = vadd.f32 0.0, %v3864
      %v3866 = vpop.f32.mrf.mxu0
      %v3867 = vadd.f32 0.0, %v3866
      %3868 = vmatmul.bf16.gmra.mxu0 %v3798
      %v3869 = vpop.f32.mrf.mxu0
      %v3870 = vadd.f32 0.0, %v3869
      %v3871 = vpop.f32.mrf.mxu0
      %v3872 = vadd.f32 0.0, %v3871
      %3873 = vmatmul.bf16.gmra.mxu0 %v3801
      %v3874 = vpop.f32.mrf.mxu0
      %v3875 = vadd.f32 0.0, %v3874
      %v3876 = vpop.f32.mrf.mxu0
      %v3877 = vadd.f32 0.0, %v3876
      %3878 = vmatmul.bf16.gmra.mxu0 %v3804
      %v3879 = vpop.f32.mrf.mxu0
      %v3880 = vadd.f32 0.0, %v3879
      %v3881 = vpop.f32.mrf.mxu0
      %v3882 = vadd.f32 0.0, %v3881
      %3883 = vmatmul.bf16.gmra.mxu0 %v3807
      %v3884 = vpop.f32.mrf.mxu0
      %v3885 = vadd.f32 0.0, %v3884
      %v3886 = vpop.f32.mrf.mxu0
      %v3887 = vadd.f32 0.0, %v3886
      %3888 = vmatmul.bf16.gmra.mxu0 %v3810
      %v3889 = vpop.f32.mrf.mxu0
      %v3890 = vadd.f32 0.0, %v3889
      %v3891 = vpop.f32.mrf.mxu0
      %v3892 = vadd.f32 0.0, %v3891
      %3893 = vmatmul.bf16.gmra.mxu0 %v3813
      %v3894 = vpop.f32.mrf.mxu0
      %v3895 = vadd.f32 0.0, %v3894
      %v3896 = vpop.f32.mrf.mxu0
      %v3897 = vadd.f32 0.0, %v3896
      %3898 = vmatmul.bf16.gmra.mxu0 %v3816
      %v3899 = vpop.f32.mrf.mxu0
      %v3900 = vadd.f32 0.0, %v3899
      %v3901 = vpop.f32.mrf.mxu0
      %v3902 = vadd.f32 0.0, %v3901
      %3903 = vmatmul.bf16.gmra.mxu0 %v3819
      %v3904 = vpop.f32.mrf.mxu0
      %v3905 = vadd.f32 0.0, %v3904
      %v3906 = vpop.f32.mrf.mxu0
      %v3907 = vadd.f32 0.0, %v3906
      %3908 = vmatmul.bf16.gmra.mxu0 %v3822
      %v3909 = vpop.f32.mrf.mxu0
      %v3910 = vadd.f32 0.0, %v3909
      %v3911 = vpop.f32.mrf.mxu0
      %v3912 = vadd.f32 0.0, %v3911
      %3913 = vmatmul.bf16.gmra.mxu0 %v3825
      %v3914 = vpop.f32.mrf.mxu0
      %v3915 = vadd.f32 0.0, %v3914
      %v3916 = vpop.f32.mrf.mxu0
      %v3917 = vadd.f32 0.0, %v3916
      %3918 = vdwg.mxu0
      %v3919 = vadd.f32 %v3632, %v3840
      %v3920 = vadd.f32 %v3633, %v3842
      %v3921 = vadd.f32 %v3634, %v3845
      %v3922 = vadd.f32 %v3635, %v3847
      %v3923 = vadd.f32 %v3636, %v3850
      %v3924 = vadd.f32 %v3637, %v3852
      %v3925 = vadd.f32 %v3638, %v3855
      %v3926 = vadd.f32 %v3639, %v3857
      %v3927 = vadd.f32 %v3640, %v3860
      %v3928 = vadd.f32 %v3641, %v3862
      %v3929 = vadd.f32 %v3642, %v3865
      %v3930 = vadd.f32 %v3643, %v3867
      %v3931 = vadd.f32 %v3644, %v3870
      %v3932 = vadd.f32 %v3645, %v3872
      %v3933 = vadd.f32 %v3646, %v3875
      %v3934 = vadd.f32 %v3647, %v3877
      %v3935 = vadd.f32 %v3648, %v3880
      %v3936 = vadd.f32 %v3649, %v3882
      %v3937 = vadd.f32 %v3650, %v3885
      %v3938 = vadd.f32 %v3651, %v3887
      %v3939 = vadd.f32 %v3652, %v3890
      %v3940 = vadd.f32 %v3653, %v3892
      %v3941 = vadd.f32 %v3654, %v3895
      %v3942 = vadd.f32 %v3655, %v3897
      %v3943 = vadd.f32 %v3656, %v3900
      %v3944 = vadd.f32 %v3657, %v3902
      %v3945 = vadd.f32 %v3658, %v3905
      %v3946 = vadd.f32 %v3659, %v3907
      %v3947 = vadd.f32 %v3660, %v3910
      %v3948 = vadd.f32 %v3661, %v3912
      %v3949 = vadd.f32 %v3662, %v3915
      %v3950 = vadd.f32 %v3663, %v3917
      %v3951 = vld [vmem:[%s462] sm:$0x1]
      %v3953 = vperm.slane %v3951, 0
      %v3955 = vadd.f32 %v3919, %v3953
      %v3956 = vadd.f32 %v3920, %v3953
      %v3957 = vadd.f32 %v3921, %v3953
      %v3958 = vadd.f32 %v3922, %v3953
      %v3959 = vadd.f32 %v3923, %v3953
      %v3960 = vadd.f32 %v3924, %v3953
      %v3961 = vadd.f32 %v3925, %v3953
      %v3962 = vadd.f32 %v3926, %v3953
      %v3963 = vadd.f32 %v3927, %v3953
      %v3964 = vadd.f32 %v3928, %v3953
      %v3965 = vadd.f32 %v3929, %v3953
      %v3966 = vadd.f32 %v3930, %v3953
      %v3967 = vadd.f32 %v3931, %v3953
      %v3968 = vadd.f32 %v3932, %v3953
      %v3969 = vadd.f32 %v3933, %v3953
      %v3970 = vadd.f32 %v3934, %v3953
      %v3971 = vadd.f32 %v3935, %v3953
      %v3972 = vadd.f32 %v3936, %v3953
      %v3973 = vadd.f32 %v3937, %v3953
      %v3974 = vadd.f32 %v3938, %v3953
      %v3975 = vadd.f32 %v3939, %v3953
      %v3976 = vadd.f32 %v3940, %v3953
      %v3977 = vadd.f32 %v3941, %v3953
      %v3978 = vadd.f32 %v3942, %v3953
      %v3979 = vadd.f32 %v3943, %v3953
      %v3980 = vadd.f32 %v3944, %v3953
      %v3981 = vadd.f32 %v3945, %v3953
      %v3982 = vadd.f32 %v3946, %v3953
      %v3983 = vadd.f32 %v3947, %v3953
      %v3984 = vadd.f32 %v3948, %v3953
      %v3985 = vadd.f32 %v3949, %v3953
      %v3986 = vadd.f32 %v3950, %v3953
      %v3987 = vmax.f32 %v3955, 0.0
      %v3988 = vmax.f32 %v3956, 0.0
      %v3989 = vmax.f32 %v3957, 0.0
      %v3990 = vmax.f32 %v3958, 0.0
      %v3991 = vmax.f32 %v3959, 0.0
      %v3992 = vmax.f32 %v3960, 0.0
      %v3993 = vmax.f32 %v3961, 0.0
      %v3994 = vmax.f32 %v3962, 0.0
      %v3995 = vmax.f32 %v3963, 0.0
      %v3996 = vmax.f32 %v3964, 0.0
      %v3997 = vmax.f32 %v3965, 0.0
      %v3998 = vmax.f32 %v3966, 0.0
      %v3999 = vmax.f32 %v3967, 0.0
      %v4000 = vmax.f32 %v3968, 0.0
      %v4001 = vmax.f32 %v3969, 0.0
      %v4002 = vmax.f32 %v3970, 0.0
      %v4003 = vmax.f32 %v3971, 0.0
      %v4004 = vmax.f32 %v3972, 0.0
      %v4005 = vmax.f32 %v3973, 0.0
      %v4006 = vmax.f32 %v3974, 0.0
      %v4007 = vmax.f32 %v3975, 0.0
      %v4008 = vmax.f32 %v3976, 0.0
      %v4009 = vmax.f32 %v3977, 0.0
      %v4010 = vmax.f32 %v3978, 0.0
      %v4011 = vmax.f32 %v3979, 0.0
      %v4012 = vmax.f32 %v3980, 0.0
      %v4013 = vmax.f32 %v3981, 0.0
      %v4014 = vmax.f32 %v3982, 0.0
      %v4015 = vmax.f32 %v3983, 0.0
      %v4016 = vmax.f32 %v3984, 0.0
      %v4017 = vmax.f32 %v3985, 0.0
      %v4018 = vmax.f32 %v3986, 0.0
      %v4019 = vpack.c.bf16 %v3988, %v3987
      %v4020 = vpack.c.bf16 %v3990, %v3989
      %v4021 = vpack.c.bf16 %v3992, %v3991
      %v4022 = vpack.c.bf16 %v3994, %v3993
      %v4023 = vpack.c.bf16 %v3996, %v3995
      %v4024 = vpack.c.bf16 %v3998, %v3997
      %v4025 = vpack.c.bf16 %v4000, %v3999
      %v4026 = vpack.c.bf16 %v4002, %v4001
      %v4027 = vpack.c.bf16 %v4004, %v4003
      %v4028 = vpack.c.bf16 %v4006, %v4005
      %v4029 = vpack.c.bf16 %v4008, %v4007
      %v4030 = vpack.c.bf16 %v4010, %v4009
      %v4031 = vpack.c.bf16 %v4012, %v4011
      %v4032 = vpack.c.bf16 %v4014, %v4013
      %v4033 = vpack.c.bf16 %v4016, %v4015
      %v4034 = vpack.c.bf16 %v4018, %v4017
      %v4035 = vld [vmem:[%s466] sm:$0xf]
      %v4036 = vld [vmem:[%s470] sm:$0x7f]
      %4038 = vset.pattern.permute.xlu0 0
      %4039 = vperm.xlu0 %4038, %v4036
      %v4040 = vpop.permute.xlu0 %4039
      %vm4042 = vcmask 195584
      %v4044 = vsel %vm4042, %v4035, 0
      %v4047 = vsel %vm4042, %v4019, 0
      %v4050 = vsel %vm4042, %v4020, 0
      %v4053 = vsel %vm4042, %v4021, 0
      %v4056 = vsel %vm4042, %v4022, 0
      %v4059 = vsel %vm4042, %v4023, 0
      %v4062 = vsel %vm4042, %v4024, 0
      %v4065 = vsel %vm4042, %v4025, 0
      %v4068 = vsel %vm4042, %v4026, 0
      %v4071 = vsel %vm4042, %v4027, 0
      %v4074 = vsel %vm4042, %v4028, 0
      %v4077 = vsel %vm4042, %v4029, 0
      %v4080 = vsel %vm4042, %v4030, 0
      %v4083 = vsel %vm4042, %v4031, 0
      %v4086 = vsel %vm4042, %v4032, 0
      %v4089 = vsel %vm4042, %v4033, 0
      %v4092 = vsel %vm4042, %v4034, 0
      %4094 = vmatpush.bf16.xpose.msra.mxu0 %v4068
      %4095 = vmatpush.bf16.xpose.msra.mxu0 %v4065
      %4096 = vmatpush.bf16.xpose.msra.mxu0 %v4062
      %4097 = vmatpush.bf16.xpose.msra.mxu0 %v4059
      %4098 = vmatpush.bf16.xpose.msra.mxu0 %v4056
      %4099 = vmatpush.bf16.xpose.msra.mxu0 %v4053
      %4100 = vmatpush.bf16.xpose.msra.mxu0 %v4050
      %4101 = vmatpush.bf16.xpose.msra.mxu0 %v4047
      %4102 = vmatmul.bf16.gmra.mxu0 %v4044
      %v4103 = vpop.f32.mrf.mxu0
      %v4104 = vadd.f32 %v4040, %v4103
      %v4105 = vpop.f32.mrf.mxu0
      %4106 = vdwg.mxu0
      %4107 = vmatpush.bf16.xpose.msra.mxu0 %v4092
      %4108 = vmatpush.bf16.xpose.msra.mxu0 %v4089
      %4109 = vmatpush.bf16.xpose.msra.mxu0 %v4086
      %4110 = vmatpush.bf16.xpose.msra.mxu0 %v4083
      %4111 = vmatpush.bf16.xpose.msra.mxu0 %v4080
      %4112 = vmatpush.bf16.xpose.msra.mxu0 %v4077
      %4113 = vmatpush.bf16.xpose.msra.mxu0 %v4074
      %4114 = vmatpush.bf16.xpose.msra.mxu0 %v4071
      %4115 = vmatmul.bf16.gmra.mxu0 %v4044
      %v4116 = vpop.f32.mrf.mxu0
      %v4117 = vadd.f32 %v4040, %v4116
      %v4118 = vpop.f32.mrf.mxu0
      %4119 = vdwg.mxu0
      %4120 = vst [vmem:[%s483] sm:$0x7f] %v4104
      %4121 = vst [vmem:[%s483 + $0x8] sm:$0x7f] %v4117
      %s4122 = smul.u32 2, %s24
      %p4123 = scmp.lt.s32.totalorder %s22, 1
      %s4124 = scalar_select %p4123, %s22, 1
      %p4125 = scmp.lt.s32.totalorder %s23, 1
      %s4126 = scalar_select %p4125, %s23, 1
      %p4127 = scmp.lt.s32.totalorder %s4122, 1
      %s4128 = scalar_select %p4127, %s4122, 1
      %s4129 = smul.addr %s4126, 2
      %s4130 = sadd.s32 %s4128, %s4129
      %s4131 = smul.addr %s4124, 4
      %s4132 = sadd.s32 %s4130, %s4131
      %s4133 = smul.addr %s4132, 8
      %s4134 = scalar_lea.vmem %s6, %s4133
      // Predicated region
      $region45: #{_lambda_.9} parent=43 // pred_check
        %p4135 = pneg %p226
      $region46: #{_lambda_.9} parent=43 // pred_check_branch
        %4137 = sbr.rel (%p4135) target = $region48
      $region47: #{_lambda_.9} parent=43 // pred_region
        %s4138 = smul.u32 2, %s24
      $region48: #{_lambda_.9} parent=43 // pred_fallthru
        _
    $region44: #{_lambda_.9} parent=5 // pred_fallthru
      _
    %p4139 = scmp.le.s32.totalorder 2, %s12
    // Predicated region
    $region49: #{_lambda_.9} parent=5 // pred_check
      %p4140 = pneg %p4139
    $region50: #{_lambda_.9} parent=5 // pred_check_branch
      %4142 = sbr.rel (%p4140) target = $region52
    $region51: #{_lambda_.9} parent=5 // pred_region
      %s4143 = ssub.s32 %s12, 2
      // Predicated region
      $region53: #{_lambda_.9} parent=51 // pred_check
        %p4144 = pneg %p232
      $region54: #{_lambda_.9} parent=51 // pred_check_branch
        %4146 = sbr.rel (%p4144) target = $region56
      $region55: #{_lambda_.9} parent=51 // pred_region
        %s4147 = smul.u32 2, %s27
        %p4148 = scmp.lt.s32.totalorder %s25, 1
        %s4149 = scalar_select %p4148, %s25, 1
        %p4150 = scmp.lt.s32.totalorder %s26, 1
        %s4151 = scalar_select %p4150, %s26, 1
        %p4152 = scmp.lt.s32.totalorder %s4147, 1
        %s4153 = scalar_select %p4152, %s4147, 1
        %s4154 = smul.addr %s4151, 2
        %s4155 = sadd.s32 %s4153, %s4154
        %s4156 = smul.addr %s4149, 4
        %s4157 = sadd.s32 %s4155, %s4156
        %s4158 = smul.addr %s4157, 8
        %s4159 = scalar_lea.vmem %s6, %s4158
      $region56: #{_lambda_.9} parent=51 // pred_fallthru
        _
    $region52: #{_lambda_.9} parent=5 // pred_fallthru
      _
  $region6: #{_lambda_.9} parent=0 // loop_footer
    %s16 = sadd.s32 1, %s12
  $region7: #{_lambda_.9} parent=0 // loop_footer_branch
    %11 = sbr.rel target = $region3
  $region8: #{_lambda_.9} parent=0 // loop_exit
    _

</llo_original>
